<compile_context>
chip_gen: v7x
topology: tpu7x:2x2x1
jax: 0.10.0
libtpu: 0.0.40
codegen_flags: <defaults>
</compile_context>

<pallas_src>
import functools

import jax
import jax.numpy as jnp
from jax.experimental import pallas as pl
from jax.experimental.pallas import tpu as pltpu

LANE = 128          # channel slab width (vreg lane width)
N_CLASS = 2
C0, C1, C2 = 8, 16, 32


def _round_up(x, m):
    return ((x + m - 1) // m) * m


# ---------------------------------------------------------------------------
# Fused 3x3 conv kernel: in-kernel tap accumulation (no im2col in HBM),
# resident (9,128,128) bf16 weights + f32 bias, f32 accumulate, bias+ReLU
# epilogue, optional fused 1x1 head emitting f32 logits.
# ---------------------------------------------------------------------------
def _conv3x3_kernel(*refs, th, wo, relu, has_head):
    if has_head:
        x_ref, w_ref, b_ref, wh_ref, bh_ref, o_ref = refs
    else:
        x_ref, w_ref, b_ref, o_ref = refs

    xt = x_ref[0]                                        # (th+2, wo+2, 128) bf16
    acc = jnp.zeros((th * wo, LANE), jnp.float32)
    for t in range(9):                                   # unrolled tap reduction (MXU)
        kh, kw = divmod(t, 3)
        tap = xt[kh:kh + th, kw:kw + wo, :].reshape(th * wo, LANE)
        acc = acc + jnp.dot(tap, w_ref[t], preferred_element_type=jnp.float32)
    acc = acc + b_ref[...]                               # f32 epilogue (v5e-friendly)
    if relu:
        acc = jnp.maximum(acc, 0.0)

    if has_head:                                         # fused 1x1 head -> f32 logits
        logits = jnp.dot(acc.astype(jnp.bfloat16), wh_ref[...],
                         preferred_element_type=jnp.float32) + bh_ref[...]
        o_ref[0] = logits.reshape(th, wo, LANE).astype(o_ref.dtype)
    else:
        o_ref[0] = acc.reshape(th, wo, LANE).astype(o_ref.dtype)


def _choose_th(H, W8, out_bytes):
    """Row-tile height: whole image if it fits a ~8 MiB per-step budget, else halve."""
    def est(th):
        return (2 * (th + 2) * (W8 + 2) * LANE * 2       # double-buffered bf16 input tile
                + 2 * th * W8 * LANE * out_bytes         # double-buffered output tile
                + th * W8 * LANE * 4)                    # f32 accumulator
    th = H
    while th % 2 == 0 and th > 8 and est(th) > (8 << 20):
        th //= 2
    return th


def _halo_tiles(x, th, W8):
    """(N,H,W,128) -> (N*R, th+2, W8+2, 128): spatial zero pad + row tiles with 1-row halo.
    R = H // th; when R == 1 this is just the padded image (no duplication)."""
    N, H, W, C = x.shape
    xp = jnp.pad(x, ((0, 0), (1, 1), (1, 1 + W8 - W), (0, 0)))
    R = H // th
    if R == 1:
        return xp
    tiles = jnp.stack([xp[:, r * th: r * th + th + 2] for r in range(R)], axis=1)
    return tiles.reshape(N * R, th + 2, W8 + 2, C)


def conv3x3(x, wb, relu=True, head=None, out_dtype=jnp.bfloat16):
    """Fused SAME 3x3 conv (+bias, +ReLU, optional fused 1x1 head).

    x: (N,H,W,128) bf16 slab (real channels densely packed from lane 0).
    wb = (w:(9,128,128) bf16 tap-major, b:(1,128) f32).
    head = (wh:(128,128) bf16, bh:(1,128) f32) -> output is f32 logits slab."""
    w, b = wb
    N, H, W, C = x.shape
    assert C == LANE, x.shape
    W8 = _round_up(W, 8)                        # sublane-friendly output width
    has_head = head is not None
    out_dt = jnp.float32 if has_head else out_dtype
    th = _choose_th(H, W8, jnp.dtype(out_dt).itemsize)
    tiles = _halo_tiles(x, th, W8)              # (N*R, th+2, W8+2, 128)
    NR = tiles.shape[0]

    in_specs = [
        pl.BlockSpec((1, th + 2, W8 + 2, LANE), lambda i: (i, 0, 0, 0)),  # act tile (pipelined)
        pl.BlockSpec((9, LANE, LANE), lambda i: (0, 0, 0)),               # weights resident (288 KB)
        pl.BlockSpec((1, LANE), lambda i: (0, 0)),                        # bias resident
    ]
    args = [tiles, w, b]
    if has_head:
        wh, bh = head
        in_specs += [pl.BlockSpec((LANE, LANE), lambda i: (0, 0)),        # head weight resident
                     pl.BlockSpec((1, LANE), lambda i: (0, 0))]           # head bias resident
        args += [wh, bh]

    out = pl.pallas_call(
        functools.partial(_conv3x3_kernel, th=th, wo=W8, relu=relu, has_head=has_head),
        out_shape=jax.ShapeDtypeStruct((NR, th, W8, LANE), out_dt),
        grid_spec=pltpu.PrefetchScalarGridSpec(
            num_scalar_prefetch=0,
            grid=(NR,),                                                   # independent row tiles
            in_specs=in_specs,
            out_specs=pl.BlockSpec((1, th, W8, LANE), lambda i: (i, 0, 0, 0)),
        ),
        compiler_params=pltpu.CompilerParams(
            dimension_semantics=("parallel",),       # shards tiles across TCs (v7x megacore)
            vmem_limit_bytes=32 * 1024 * 1024,
        ),
    )(*args)

    out = out.reshape(N, H, W8, LANE)
    if W8 != W:
        out = out[:, :, :W, :]                   # drop the W-alignment columns
    return out


# ---------------------------------------------------------------------------
# Parameters: He-normal init, BN folded to identity; weights embedded ONCE into
# tap-major 128-lane-padded bf16 form (dense concat packing on the input lanes).
# ---------------------------------------------------------------------------
# name -> (kernel size, cin (densely packed concat width), cout)
CONVS = {
    "x0_0_1": (3, 3,            C0), "x0_0_2": (3, C0, C0),
    "x1_0_1": (3, C0,           C1), "x1_0_2": (3, C1, C1),
    "x2_0_1": (3, C1,           C2), "x2_0_2": (3, C2, C2),
    "x0_1_1": (3, C0 + C1,      C0), "x0_1_2": (3, C0, C0),
    "x1_1_1": (3, C1 + C2,      C1), "x1_1_2": (3, C1, C1),
    "x0_2_1": (3, C0 + C0 + C1, C0), "x0_2_2": (3, C0, C0),
    "head":   (1, C0,           N_CLASS),
}


def _embed_conv(w, bias):
    """(k,k,cin,cout) f32 -> ((k*k,128,128) bf16 tap-major, (1,128) f32 bias)."""
    kh, kw, cin, cout = w.shape
    wp = jnp.pad(w, ((0, 0), (0, 0), (0, LANE - cin), (0, LANE - cout)))
    wt = wp.reshape(kh * kw, LANE, LANE).astype(jnp.bfloat16)
    bv = jnp.pad(bias, (0, LANE - cout)).astype(jnp.float32).reshape(1, LANE)
    return wt, bv


def build_params(key):
    params = {}
    names = sorted(CONVS)
    keys = jax.random.split(key, len(names))
    for k, name in zip(keys, names):
        ksize, cin, cout = CONVS[name]
        fan_in = ksize * ksize * cin
        w = jax.random.normal(k, (ksize, ksize, cin, cout), jnp.float32)
        w = w * (2.0 / fan_in) ** 0.5
        b = jnp.zeros((cout,), jnp.float32)
        params[name] = _embed_conv(w, b)
    return params


# ---------------------------------------------------------------------------
# Forward pass (UNet++ nested dense skips); autocast analogue: bf16 operands,
# f32 MXU accumulation, f32 logits.
# ---------------------------------------------------------------------------
def _pool2(x):  # 2x2 max pool (glue, operates on real channels only)
    n, h, w, c = x.shape
    return x.reshape(n, h // 2, 2, w // 2, 2, c).max(axis=(2, 4))


def _up2(x):  # nearest-neighbour x2 upsample (glue; smp UNet++ uses mode="nearest")
    return jnp.repeat(jnp.repeat(x, 2, axis=1), 2, axis=2)


def _pack128(parts):
    """Densely concat real-channel tensors and zero-pad to one 128-lane slab."""
    cat = parts[0] if len(parts) == 1 else jnp.concatenate(parts, axis=-1)
    return jnp.pad(cat, ((0, 0), (0, 0), (0, 0), (0, LANE - cat.shape[-1])))


def seg_qyl_forward(params, x_nchw):
    x = jnp.transpose(x_nchw, (0, 2, 3, 1)).astype(jnp.bfloat16)   # NCHW -> NHWC

    def real(t, c):                      # drop zero lanes before pool/upsample/concat glue
        return t[..., :c]

    def block(name, x_in):
        t = conv3x3(x_in, params[name + "_1"], relu=True)
        t = conv3x3(t, params[name + "_2"], relu=True)
        return t

    x0_0 = block("x0_0", _pack128([x]))
    x1_0 = block("x1_0", _pack128([_pool2(real(x0_0, C0))]))
    x2_0 = block("x2_0", _pack128([_pool2(real(x1_0, C1))]))
    x0_1 = block("x0_1", _pack128([real(x0_0, C0), _up2(real(x1_0, C1))]))
    x1_1 = block("x1_1", _pack128([real(x1_0, C1), _up2(real(x2_0, C2))]))

    x0_2_in = _pack128([real(x0_0, C0), real(x0_1, C0), _up2(real(x1_1, C1))])
    t = conv3x3(x0_2_in, params["x0_2_1"], relu=True)
    logits = conv3x3(t, params["x0_2_2"], relu=True,
                     head=(params["head"][0].reshape(LANE, LANE), params["head"][1]))
    logits = logits[..., :N_CLASS]                        # f32, slice padded lanes at the end
    return jnp.transpose(logits, (0, 3, 1, 2))            # -> (N, n_class, H, W)


if __name__ == "__main__":
    key = jax.random.PRNGKey(0)
    pkey, xkey = jax.random.split(key)
    params = build_params(pkey)
    x = jax.random.normal(xkey, (2, 3, 16, 16), jnp.float32)  # (N, 3, H, W), NCHW

    fwd = jax.jit(seg_qyl_forward)
    out = jax.block_until_ready(fwd(params, x))
    assert out.shape == (2, N_CLASS, 16, 16), out.shape
    assert out.dtype == jnp.float32
    print("KERNEL_OK")
</pallas_src>

<mosaic_0001>
module attributes {stable_mosaic.version = 11 : i64} {
  func.func @_conv3x3_kernel(%arg0: i32, %arg1: memref<1x18x18x128xbf16, #tpu.memory_space<vmem>>, %arg2: memref<9x128x128xbf16, #tpu.memory_space<vmem>>, %arg3: memref<1x128xf32, #tpu.memory_space<vmem>>, %arg4: memref<1x16x16x128xbf16, #tpu.memory_space<vmem>>) attributes {dimension_semantics = [#tpu.dimension_semantics<parallel>], iteration_bounds = array<i64: 2>, scalar_prefetch = 0 : i64, scratch_operands = 0 : i64, tpu.core_type = #tpu.core_type<tc>, window_params = [{transform_indices = @transform_0, window_bounds = array<i64: 1, 18, 18, 128>}, {pipeline_mode = #tpu.pipeline_mode<synchronous>, transform_indices = @transform_1, window_bounds = array<i64: 9, 128, 128>}, {pipeline_mode = #tpu.pipeline_mode<synchronous>, transform_indices = @transform_2, window_bounds = array<i64: 1, 128>}, {transform_indices = @transform_3, window_bounds = array<i64: 1, 16, 16, 128>}]} {
    %c0 = arith.constant 0 : index
    %c0_0 = arith.constant 0 : index
    %c0_1 = arith.constant 0 : index
    %c0_2 = arith.constant 0 : index
    %0 = vector.load %arg1[%c0, %c0_0, %c0_1, %c0_2] : memref<1x18x18x128xbf16, #tpu.memory_space<vmem>>, vector<1x18x18x128xbf16>
    %1 = vector.shape_cast %0 : vector<1x18x18x128xbf16> to vector<18x18x128xbf16>
    %cst = arith.constant 0.000000e+00 : f32
    %2 = vector.broadcast %cst : f32 to vector<256x128xf32>
    %3 = vector.extract_strided_slice %1 {offsets = [0, 0, 0], sizes = [16, 16, 128], strides = [1, 1, 1]} : vector<18x18x128xbf16> to vector<16x16x128xbf16>
    %4 = vector.shape_cast %3 : vector<16x16x128xbf16> to vector<256x128xbf16>
    %c0_3 = arith.constant 0 : index
    %c0_4 = arith.constant 0 : index
    %c0_5 = arith.constant 0 : index
    %5 = vector.load %arg2[%c0_3, %c0_4, %c0_5] : memref<9x128x128xbf16, #tpu.memory_space<vmem>>, vector<1x128x128xbf16>
    %6 = vector.shape_cast %5 : vector<1x128x128xbf16> to vector<128x128xbf16>
    %cst_6 = arith.constant dense<0.000000e+00> : vector<256x128xf32>
    %7 = tpu.matmul %4, %6, %cst_6 {dimension_numbers = #tpu.dot_dimension_numbers<[1], [0], [0], [1], [0, 0, 1, 1], [], []>} : vector<256x128xbf16>, vector<128x128xbf16>, vector<256x128xf32> -> vector<256x128xf32>
    %8 = arith.addf %2, %7 : vector<256x128xf32>
    %9 = vector.extract_strided_slice %1 {offsets = [0, 1, 0], sizes = [16, 16, 128], strides = [1, 1, 1]} : vector<18x18x128xbf16> to vector<16x16x128xbf16>
    %10 = vector.shape_cast %9 : vector<16x16x128xbf16> to vector<256x128xbf16>
    %c1 = arith.constant 1 : index
    %c0_7 = arith.constant 0 : index
    %c0_8 = arith.constant 0 : index
    %11 = vector.load %arg2[%c1, %c0_7, %c0_8] : memref<9x128x128xbf16, #tpu.memory_space<vmem>>, vector<1x128x128xbf16>
    %12 = vector.shape_cast %11 : vector<1x128x128xbf16> to vector<128x128xbf16>
    %cst_9 = arith.constant dense<0.000000e+00> : vector<256x128xf32>
    %13 = tpu.matmul %10, %12, %cst_9 {dimension_numbers = #tpu.dot_dimension_numbers<[1], [0], [0], [1], [0, 0, 1, 1], [], []>} : vector<256x128xbf16>, vector<128x128xbf16>, vector<256x128xf32> -> vector<256x128xf32>
    %14 = arith.addf %8, %13 : vector<256x128xf32>
    %15 = vector.extract_strided_slice %1 {offsets = [0, 2, 0], sizes = [16, 16, 128], strides = [1, 1, 1]} : vector<18x18x128xbf16> to vector<16x16x128xbf16>
    %16 = vector.shape_cast %15 : vector<16x16x128xbf16> to vector<256x128xbf16>
    %c2 = arith.constant 2 : index
    %c0_10 = arith.constant 0 : index
    %c0_11 = arith.constant 0 : index
    %17 = vector.load %arg2[%c2, %c0_10, %c0_11] : memref<9x128x128xbf16, #tpu.memory_space<vmem>>, vector<1x128x128xbf16>
    %18 = vector.shape_cast %17 : vector<1x128x128xbf16> to vector<128x128xbf16>
    %cst_12 = arith.constant dense<0.000000e+00> : vector<256x128xf32>
    %19 = tpu.matmul %16, %18, %cst_12 {dimension_numbers = #tpu.dot_dimension_numbers<[1], [0], [0], [1], [0, 0, 1, 1], [], []>} : vector<256x128xbf16>, vector<128x128xbf16>, vector<256x128xf32> -> vector<256x128xf32>
    %20 = arith.addf %14, %19 : vector<256x128xf32>
    %21 = vector.extract_strided_slice %1 {offsets = [1, 0, 0], sizes = [16, 16, 128], strides = [1, 1, 1]} : vector<18x18x128xbf16> to vector<16x16x128xbf16>
    %22 = vector.shape_cast %21 : vector<16x16x128xbf16> to vector<256x128xbf16>
    %c3 = arith.constant 3 : index
    %c0_13 = arith.constant 0 : index
    %c0_14 = arith.constant 0 : index
    %23 = vector.load %arg2[%c3, %c0_13, %c0_14] : memref<9x128x128xbf16, #tpu.memory_space<vmem>>, vector<1x128x128xbf16>
    %24 = vector.shape_cast %23 : vector<1x128x128xbf16> to vector<128x128xbf16>
    %cst_15 = arith.constant dense<0.000000e+00> : vector<256x128xf32>
    %25 = tpu.matmul %22, %24, %cst_15 {dimension_numbers = #tpu.dot_dimension_numbers<[1], [0], [0], [1], [0, 0, 1, 1], [], []>} : vector<256x128xbf16>, vector<128x128xbf16>, vector<256x128xf32> -> vector<256x128xf32>
    %26 = arith.addf %20, %25 : vector<256x128xf32>
    %27 = vector.extract_strided_slice %1 {offsets = [1, 1, 0], sizes = [16, 16, 128], strides = [1, 1, 1]} : vector<18x18x128xbf16> to vector<16x16x128xbf16>
    %28 = vector.shape_cast %27 : vector<16x16x128xbf16> to vector<256x128xbf16>
    %c4 = arith.constant 4 : index
    %c0_16 = arith.constant 0 : index
    %c0_17 = arith.constant 0 : index
    %29 = vector.load %arg2[%c4, %c0_16, %c0_17] : memref<9x128x128xbf16, #tpu.memory_space<vmem>>, vector<1x128x128xbf16>
    %30 = vector.shape_cast %29 : vector<1x128x128xbf16> to vector<128x128xbf16>
    %cst_18 = arith.constant dense<0.000000e+00> : vector<256x128xf32>
    %31 = tpu.matmul %28, %30, %cst_18 {dimension_numbers = #tpu.dot_dimension_numbers<[1], [0], [0], [1], [0, 0, 1, 1], [], []>} : vector<256x128xbf16>, vector<128x128xbf16>, vector<256x128xf32> -> vector<256x128xf32>
    %32 = arith.addf %26, %31 : vector<256x128xf32>
    %33 = vector.extract_strided_slice %1 {offsets = [1, 2, 0], sizes = [16, 16, 128], strides = [1, 1, 1]} : vector<18x18x128xbf16> to vector<16x16x128xbf16>
    %34 = vector.shape_cast %33 : vector<16x16x128xbf16> to vector<256x128xbf16>
    %c5 = arith.constant 5 : index
    %c0_19 = arith.constant 0 : index
    %c0_20 = arith.constant 0 : index
    %35 = vector.load %arg2[%c5, %c0_19, %c0_20] : memref<9x128x128xbf16, #tpu.memory_space<vmem>>, vector<1x128x128xbf16>
    %36 = vector.shape_cast %35 : vector<1x128x128xbf16> to vector<128x128xbf16>
    %cst_21 = arith.constant dense<0.000000e+00> : vector<256x128xf32>
    %37 = tpu.matmul %34, %36, %cst_21 {dimension_numbers = #tpu.dot_dimension_numbers<[1], [0], [0], [1], [0, 0, 1, 1], [], []>} : vector<256x128xbf16>, vector<128x128xbf16>, vector<256x128xf32> -> vector<256x128xf32>
    %38 = arith.addf %32, %37 : vector<256x128xf32>
    %39 = vector.extract_strided_slice %1 {offsets = [2, 0, 0], sizes = [16, 16, 128], strides = [1, 1, 1]} : vector<18x18x128xbf16> to vector<16x16x128xbf16>
    %40 = vector.shape_cast %39 : vector<16x16x128xbf16> to vector<256x128xbf16>
    %c6 = arith.constant 6 : index
    %c0_22 = arith.constant 0 : index
    %c0_23 = arith.constant 0 : index
    %41 = vector.load %arg2[%c6, %c0_22, %c0_23] : memref<9x128x128xbf16, #tpu.memory_space<vmem>>, vector<1x128x128xbf16>
    %42 = vector.shape_cast %41 : vector<1x128x128xbf16> to vector<128x128xbf16>
    %cst_24 = arith.constant dense<0.000000e+00> : vector<256x128xf32>
    %43 = tpu.matmul %40, %42, %cst_24 {dimension_numbers = #tpu.dot_dimension_numbers<[1], [0], [0], [1], [0, 0, 1, 1], [], []>} : vector<256x128xbf16>, vector<128x128xbf16>, vector<256x128xf32> -> vector<256x128xf32>
    %44 = arith.addf %38, %43 : vector<256x128xf32>
    %45 = vector.extract_strided_slice %1 {offsets = [2, 1, 0], sizes = [16, 16, 128], strides = [1, 1, 1]} : vector<18x18x128xbf16> to vector<16x16x128xbf16>
    %46 = vector.shape_cast %45 : vector<16x16x128xbf16> to vector<256x128xbf16>
    %c7 = arith.constant 7 : index
    %c0_25 = arith.constant 0 : index
    %c0_26 = arith.constant 0 : index
    %47 = vector.load %arg2[%c7, %c0_25, %c0_26] : memref<9x128x128xbf16, #tpu.memory_space<vmem>>, vector<1x128x128xbf16>
    %48 = vector.shape_cast %47 : vector<1x128x128xbf16> to vector<128x128xbf16>
    %cst_27 = arith.constant dense<0.000000e+00> : vector<256x128xf32>
    %49 = tpu.matmul %46, %48, %cst_27 {dimension_numbers = #tpu.dot_dimension_numbers<[1], [0], [0], [1], [0, 0, 1, 1], [], []>} : vector<256x128xbf16>, vector<128x128xbf16>, vector<256x128xf32> -> vector<256x128xf32>
    %50 = arith.addf %44, %49 : vector<256x128xf32>
    %51 = vector.extract_strided_slice %1 {offsets = [2, 2, 0], sizes = [16, 16, 128], strides = [1, 1, 1]} : vector<18x18x128xbf16> to vector<16x16x128xbf16>
    %52 = vector.shape_cast %51 : vector<16x16x128xbf16> to vector<256x128xbf16>
    %c8 = arith.constant 8 : index
    %c0_28 = arith.constant 0 : index
    %c0_29 = arith.constant 0 : index
    %53 = vector.load %arg2[%c8, %c0_28, %c0_29] : memref<9x128x128xbf16, #tpu.memory_space<vmem>>, vector<1x128x128xbf16>
    %54 = vector.shape_cast %53 : vector<1x128x128xbf16> to vector<128x128xbf16>
    %cst_30 = arith.constant dense<0.000000e+00> : vector<256x128xf32>
    %55 = tpu.matmul %52, %54, %cst_30 {dimension_numbers = #tpu.dot_dimension_numbers<[1], [0], [0], [1], [0, 0, 1, 1], [], []>} : vector<256x128xbf16>, vector<128x128xbf16>, vector<256x128xf32> -> vector<256x128xf32>
    %56 = arith.addf %50, %55 : vector<256x128xf32>
    %c0_31 = arith.constant 0 : index
    %c0_32 = arith.constant 0 : index
    %57 = vector.load %arg3[%c0_31, %c0_32] : memref<1x128xf32, #tpu.memory_space<vmem>>, vector<1x128xf32>
    %58 = vector.broadcast %57 : vector<1x128xf32> to vector<256x128xf32>
    %59 = arith.addf %56, %58 : vector<256x128xf32>
    %cst_33 = arith.constant 0.000000e+00 : f32
    %60 = vector.broadcast %cst_33 : f32 to vector<256x128xf32>
    %61 = arith.maximumf %59, %60 : vector<256x128xf32>
    %62 = vector.shape_cast %61 : vector<256x128xf32> to vector<16x16x128xf32>
    %63 = arith.truncf %62 : vector<16x16x128xf32> to vector<16x16x128xbf16>
    %c0_34 = arith.constant 0 : index
    %c0_35 = arith.constant 0 : index
    %c0_36 = arith.constant 0 : index
    %c0_37 = arith.constant 0 : index
    %64 = vector.load %arg4[%c0_34, %c0_35, %c0_36, %c0_37] : memref<1x16x16x128xbf16, #tpu.memory_space<vmem>>, vector<1x16x16x128xbf16>
    %65 = vector.shape_cast %64 : vector<1x16x16x128xbf16> to vector<16x16x128xbf16>
    %66 = vector.shape_cast %63 : vector<16x16x128xbf16> to vector<1x16x16x128xbf16>
    tpu.vector_store %arg4[%c0_34, %c0_35, %c0_36, %c0_37], %66 {strides = array<i32>} : memref<1x16x16x128xbf16, #tpu.memory_space<vmem>>, vector<1x16x16x128xbf16>,
    return
  }
  func.func @transform_0(%arg0: i32) -> (i32, i32, i32, i32) {
    %c0_i32 = arith.constant 0 : i32
    %c0_i32_0 = arith.constant 0 : i32
    %c0_i32_1 = arith.constant 0 : i32
    %c0_i32_2 = arith.constant 0 : i32
    return %arg0, %c0_i32, %c0_i32_0, %c0_i32_1 : i32, i32, i32, i32
  }
  func.func @transform_1(%arg0: i32) -> (i32, i32, i32) {
    %c0_i32 = arith.constant 0 : i32
    %c0_i32_0 = arith.constant 0 : i32
    %c0_i32_1 = arith.constant 0 : i32
    %c0_i32_2 = arith.constant 0 : i32
    return %c0_i32, %c0_i32_0, %c0_i32_1 : i32, i32, i32
  }
  func.func @transform_2(%arg0: i32) -> (i32, i32) {
    %c0_i32 = arith.constant 0 : i32
    %c0_i32_0 = arith.constant 0 : i32
    %c0_i32_1 = arith.constant 0 : i32
    return %c0_i32, %c0_i32_0 : i32, i32
  }
  func.func @transform_3(%arg0: i32) -> (i32, i32, i32, i32) {
    %c0_i32 = arith.constant 0 : i32
    %c0_i32_0 = arith.constant 0 : i32
    %c0_i32_1 = arith.constant 0 : i32
    %c0_i32_2 = arith.constant 0 : i32
    return %arg0, %c0_i32, %c0_i32_0, %c0_i32_1 : i32, i32, i32, i32
  }
}

module attributes {stable_mosaic.version = 11 : i64} {
  func.func @_conv3x3_kernel(%arg0: i32, %arg1: memref<1x10x10x128xbf16, #tpu.memory_space<vmem>>, %arg2: memref<9x128x128xbf16, #tpu.memory_space<vmem>>, %arg3: memref<1x128xf32, #tpu.memory_space<vmem>>, %arg4: memref<1x8x8x128xbf16, #tpu.memory_space<vmem>>) attributes {dimension_semantics = [#tpu.dimension_semantics<parallel>], iteration_bounds = array<i64: 2>, scalar_prefetch = 0 : i64, scratch_operands = 0 : i64, tpu.core_type = #tpu.core_type<tc>, window_params = [{transform_indices = @transform_0, window_bounds = array<i64: 1, 10, 10, 128>}, {pipeline_mode = #tpu.pipeline_mode<synchronous>, transform_indices = @transform_1, window_bounds = array<i64: 9, 128, 128>}, {pipeline_mode = #tpu.pipeline_mode<synchronous>, transform_indices = @transform_2, window_bounds = array<i64: 1, 128>}, {transform_indices = @transform_3, window_bounds = array<i64: 1, 8, 8, 128>}]} {
    %c0 = arith.constant 0 : index
    %c0_0 = arith.constant 0 : index
    %c0_1 = arith.constant 0 : index
    %c0_2 = arith.constant 0 : index
    %0 = vector.load %arg1[%c0, %c0_0, %c0_1, %c0_2] : memref<1x10x10x128xbf16, #tpu.memory_space<vmem>>, vector<1x10x10x128xbf16>
    %1 = vector.shape_cast %0 : vector<1x10x10x128xbf16> to vector<10x10x128xbf16>
    %cst = arith.constant 0.000000e+00 : f32
    %2 = vector.broadcast %cst : f32 to vector<64x128xf32>
    %3 = vector.extract_strided_slice %1 {offsets = [0, 0, 0], sizes = [8, 8, 128], strides = [1, 1, 1]} : vector<10x10x128xbf16> to vector<8x8x128xbf16>
    %4 = vector.shape_cast %3 : vector<8x8x128xbf16> to vector<64x128xbf16>
    %c0_3 = arith.constant 0 : index
    %c0_4 = arith.constant 0 : index
    %c0_5 = arith.constant 0 : index
    %5 = vector.load %arg2[%c0_3, %c0_4, %c0_5] : memref<9x128x128xbf16, #tpu.memory_space<vmem>>, vector<1x128x128xbf16>
    %6 = vector.shape_cast %5 : vector<1x128x128xbf16> to vector<128x128xbf16>
    %cst_6 = arith.constant dense<0.000000e+00> : vector<64x128xf32>
    %7 = tpu.matmul %4, %6, %cst_6 {dimension_numbers = #tpu.dot_dimension_numbers<[1], [0], [0], [1], [0, 0, 1, 1], [], []>} : vector<64x128xbf16>, vector<128x128xbf16>, vector<64x128xf32> -> vector<64x128xf32>
    %8 = arith.addf %2, %7 : vector<64x128xf32>
    %9 = vector.extract_strided_slice %1 {offsets = [0, 1, 0], sizes = [8, 8, 128], strides = [1, 1, 1]} : vector<10x10x128xbf16> to vector<8x8x128xbf16>
    %10 = vector.shape_cast %9 : vector<8x8x128xbf16> to vector<64x128xbf16>
    %c1 = arith.constant 1 : index
    %c0_7 = arith.constant 0 : index
    %c0_8 = arith.constant 0 : index
    %11 = vector.load %arg2[%c1, %c0_7, %c0_8] : memref<9x128x128xbf16, #tpu.memory_space<vmem>>, vector<1x128x128xbf16>
    %12 = vector.shape_cast %11 : vector<1x128x128xbf16> to vector<128x128xbf16>
    %cst_9 = arith.constant dense<0.000000e+00> : vector<64x128xf32>
    %13 = tpu.matmul %10, %12, %cst_9 {dimension_numbers = #tpu.dot_dimension_numbers<[1], [0], [0], [1], [0, 0, 1, 1], [], []>} : vector<64x128xbf16>, vector<128x128xbf16>, vector<64x128xf32> -> vector<64x128xf32>
    %14 = arith.addf %8, %13 : vector<64x128xf32>
    %15 = vector.extract_strided_slice %1 {offsets = [0, 2, 0], sizes = [8, 8, 128], strides = [1, 1, 1]} : vector<10x10x128xbf16> to vector<8x8x128xbf16>
    %16 = vector.shape_cast %15 : vector<8x8x128xbf16> to vector<64x128xbf16>
    %c2 = arith.constant 2 : index
    %c0_10 = arith.constant 0 : index
    %c0_11 = arith.constant 0 : index
    %17 = vector.load %arg2[%c2, %c0_10, %c0_11] : memref<9x128x128xbf16, #tpu.memory_space<vmem>>, vector<1x128x128xbf16>
    %18 = vector.shape_cast %17 : vector<1x128x128xbf16> to vector<128x128xbf16>
    %cst_12 = arith.constant dense<0.000000e+00> : vector<64x128xf32>
    %19 = tpu.matmul %16, %18, %cst_12 {dimension_numbers = #tpu.dot_dimension_numbers<[1], [0], [0], [1], [0, 0, 1, 1], [], []>} : vector<64x128xbf16>, vector<128x128xbf16>, vector<64x128xf32> -> vector<64x128xf32>
    %20 = arith.addf %14, %19 : vector<64x128xf32>
    %21 = vector.extract_strided_slice %1 {offsets = [1, 0, 0], sizes = [8, 8, 128], strides = [1, 1, 1]} : vector<10x10x128xbf16> to vector<8x8x128xbf16>
    %22 = vector.shape_cast %21 : vector<8x8x128xbf16> to vector<64x128xbf16>
    %c3 = arith.constant 3 : index
    %c0_13 = arith.constant 0 : index
    %c0_14 = arith.constant 0 : index
    %23 = vector.load %arg2[%c3, %c0_13, %c0_14] : memref<9x128x128xbf16, #tpu.memory_space<vmem>>, vector<1x128x128xbf16>
    %24 = vector.shape_cast %23 : vector<1x128x128xbf16> to vector<128x128xbf16>
    %cst_15 = arith.constant dense<0.000000e+00> : vector<64x128xf32>
    %25 = tpu.matmul %22, %24, %cst_15 {dimension_numbers = #tpu.dot_dimension_numbers<[1], [0], [0], [1], [0, 0, 1, 1], [], []>} : vector<64x128xbf16>, vector<128x128xbf16>, vector<64x128xf32> -> vector<64x128xf32>
    %26 = arith.addf %20, %25 : vector<64x128xf32>
    %27 = vector.extract_strided_slice %1 {offsets = [1, 1, 0], sizes = [8, 8, 128], strides = [1, 1, 1]} : vector<10x10x128xbf16> to vector<8x8x128xbf16>
    %28 = vector.shape_cast %27 : vector<8x8x128xbf16> to vector<64x128xbf16>
    %c4 = arith.constant 4 : index
    %c0_16 = arith.constant 0 : index
    %c0_17 = arith.constant 0 : index
    %29 = vector.load %arg2[%c4, %c0_16, %c0_17] : memref<9x128x128xbf16, #tpu.memory_space<vmem>>, vector<1x128x128xbf16>
    %30 = vector.shape_cast %29 : vector<1x128x128xbf16> to vector<128x128xbf16>
    %cst_18 = arith.constant dense<0.000000e+00> : vector<64x128xf32>
    %31 = tpu.matmul %28, %30, %cst_18 {dimension_numbers = #tpu.dot_dimension_numbers<[1], [0], [0], [1], [0, 0, 1, 1], [], []>} : vector<64x128xbf16>, vector<128x128xbf16>, vector<64x128xf32> -> vector<64x128xf32>
    %32 = arith.addf %26, %31 : vector<64x128xf32>
    %33 = vector.extract_strided_slice %1 {offsets = [1, 2, 0], sizes = [8, 8, 128], strides = [1, 1, 1]} : vector<10x10x128xbf16> to vector<8x8x128xbf16>
    %34 = vector.shape_cast %33 : vector<8x8x128xbf16> to vector<64x128xbf16>
    %c5 = arith.constant 5 : index
    %c0_19 = arith.constant 0 : index
    %c0_20 = arith.constant 0 : index
    %35 = vector.load %arg2[%c5, %c0_19, %c0_20] : memref<9x128x128xbf16, #tpu.memory_space<vmem>>, vector<1x128x128xbf16>
    %36 = vector.shape_cast %35 : vector<1x128x128xbf16> to vector<128x128xbf16>
    %cst_21 = arith.constant dense<0.000000e+00> : vector<64x128xf32>
    %37 = tpu.matmul %34, %36, %cst_21 {dimension_numbers = #tpu.dot_dimension_numbers<[1], [0], [0], [1], [0, 0, 1, 1], [], []>} : vector<64x128xbf16>, vector<128x128xbf16>, vector<64x128xf32> -> vector<64x128xf32>
    %38 = arith.addf %32, %37 : vector<64x128xf32>
    %39 = vector.extract_strided_slice %1 {offsets = [2, 0, 0], sizes = [8, 8, 128], strides = [1, 1, 1]} : vector<10x10x128xbf16> to vector<8x8x128xbf16>
    %40 = vector.shape_cast %39 : vector<8x8x128xbf16> to vector<64x128xbf16>
    %c6 = arith.constant 6 : index
    %c0_22 = arith.constant 0 : index
    %c0_23 = arith.constant 0 : index
    %41 = vector.load %arg2[%c6, %c0_22, %c0_23] : memref<9x128x128xbf16, #tpu.memory_space<vmem>>, vector<1x128x128xbf16>
    %42 = vector.shape_cast %41 : vector<1x128x128xbf16> to vector<128x128xbf16>
    %cst_24 = arith.constant dense<0.000000e+00> : vector<64x128xf32>
    %43 = tpu.matmul %40, %42, %cst_24 {dimension_numbers = #tpu.dot_dimension_numbers<[1], [0], [0], [1], [0, 0, 1, 1], [], []>} : vector<64x128xbf16>, vector<128x128xbf16>, vector<64x128xf32> -> vector<64x128xf32>
    %44 = arith.addf %38, %43 : vector<64x128xf32>
    %45 = vector.extract_strided_slice %1 {offsets = [2, 1, 0], sizes = [8, 8, 128], strides = [1, 1, 1]} : vector<10x10x128xbf16> to vector<8x8x128xbf16>
    %46 = vector.shape_cast %45 : vector<8x8x128xbf16> to vector<64x128xbf16>
    %c7 = arith.constant 7 : index
    %c0_25 = arith.constant 0 : index
    %c0_26 = arith.constant 0 : index
    %47 = vector.load %arg2[%c7, %c0_25, %c0_26] : memref<9x128x128xbf16, #tpu.memory_space<vmem>>, vector<1x128x128xbf16>
    %48 = vector.shape_cast %47 : vector<1x128x128xbf16> to vector<128x128xbf16>
    %cst_27 = arith.constant dense<0.000000e+00> : vector<64x128xf32>
    %49 = tpu.matmul %46, %48, %cst_27 {dimension_numbers = #tpu.dot_dimension_numbers<[1], [0], [0], [1], [0, 0, 1, 1], [], []>} : vector<64x128xbf16>, vector<128x128xbf16>, vector<64x128xf32> -> vector<64x128xf32>
    %50 = arith.addf %44, %49 : vector<64x128xf32>
    %51 = vector.extract_strided_slice %1 {offsets = [2, 2, 0], sizes = [8, 8, 128], strides = [1, 1, 1]} : vector<10x10x128xbf16> to vector<8x8x128xbf16>
    %52 = vector.shape_cast %51 : vector<8x8x128xbf16> to vector<64x128xbf16>
    %c8 = arith.constant 8 : index
    %c0_28 = arith.constant 0 : index
    %c0_29 = arith.constant 0 : index
    %53 = vector.load %arg2[%c8, %c0_28, %c0_29] : memref<9x128x128xbf16, #tpu.memory_space<vmem>>, vector<1x128x128xbf16>
    %54 = vector.shape_cast %53 : vector<1x128x128xbf16> to vector<128x128xbf16>
    %cst_30 = arith.constant dense<0.000000e+00> : vector<64x128xf32>
    %55 = tpu.matmul %52, %54, %cst_30 {dimension_numbers = #tpu.dot_dimension_numbers<[1], [0], [0], [1], [0, 0, 1, 1], [], []>} : vector<64x128xbf16>, vector<128x128xbf16>, vector<64x128xf32> -> vector<64x128xf32>
    %56 = arith.addf %50, %55 : vector<64x128xf32>
    %c0_31 = arith.constant 0 : index
    %c0_32 = arith.constant 0 : index
    %57 = vector.load %arg3[%c0_31, %c0_32] : memref<1x128xf32, #tpu.memory_space<vmem>>, vector<1x128xf32>
    %58 = vector.broadcast %57 : vector<1x128xf32> to vector<64x128xf32>
    %59 = arith.addf %56, %58 : vector<64x128xf32>
    %cst_33 = arith.constant 0.000000e+00 : f32
    %60 = vector.broadcast %cst_33 : f32 to vector<64x128xf32>
    %61 = arith.maximumf %59, %60 : vector<64x128xf32>
    %62 = vector.shape_cast %61 : vector<64x128xf32> to vector<8x8x128xf32>
    %63 = arith.truncf %62 : vector<8x8x128xf32> to vector<8x8x128xbf16>
    %c0_34 = arith.constant 0 : index
    %c0_35 = arith.constant 0 : index
    %c0_36 = arith.constant 0 : index
    %c0_37 = arith.constant 0 : index
    %64 = vector.load %arg4[%c0_34, %c0_35, %c0_36, %c0_37] : memref<1x8x8x128xbf16, #tpu.memory_space<vmem>>, vector<1x8x8x128xbf16>
    %65 = vector.shape_cast %64 : vector<1x8x8x128xbf16> to vector<8x8x128xbf16>
    %66 = vector.shape_cast %63 : vector<8x8x128xbf16> to vector<1x8x8x128xbf16>
    tpu.vector_store %arg4[%c0_34, %c0_35, %c0_36, %c0_37], %66 {strides = array<i32>} : memref<1x8x8x128xbf16, #tpu.memory_space<vmem>>, vector<1x8x8x128xbf16>,
    return
  }
  func.func @transform_0(%arg0: i32) -> (i32, i32, i32, i32) {
    %c0_i32 = arith.constant 0 : i32
    %c0_i32_0 = arith.constant 0 : i32
    %c0_i32_1 = arith.constant 0 : i32
    %c0_i32_2 = arith.constant 0 : i32
    return %arg0, %c0_i32, %c0_i32_0, %c0_i32_1 : i32, i32, i32, i32
  }
  func.func @transform_1(%arg0: i32) -> (i32, i32, i32) {
    %c0_i32 = arith.constant 0 : i32
    %c0_i32_0 = arith.constant 0 : i32
    %c0_i32_1 = arith.constant 0 : i32
    %c0_i32_2 = arith.constant 0 : i32
    return %c0_i32, %c0_i32_0, %c0_i32_1 : i32, i32, i32
  }
  func.func @transform_2(%arg0: i32) -> (i32, i32) {
    %c0_i32 = arith.constant 0 : i32
    %c0_i32_0 = arith.constant 0 : i32
    %c0_i32_1 = arith.constant 0 : i32
    return %c0_i32, %c0_i32_0 : i32, i32
  }
  func.func @transform_3(%arg0: i32) -> (i32, i32, i32, i32) {
    %c0_i32 = arith.constant 0 : i32
    %c0_i32_0 = arith.constant 0 : i32
    %c0_i32_1 = arith.constant 0 : i32
    %c0_i32_2 = arith.constant 0 : i32
    return %arg0, %c0_i32, %c0_i32_0, %c0_i32_1 : i32, i32, i32, i32
  }
}

module attributes {stable_mosaic.version = 11 : i64} {
  func.func @_conv3x3_kernel(%arg0: i32, %arg1: memref<1x6x10x128xbf16, #tpu.memory_space<vmem>>, %arg2: memref<9x128x128xbf16, #tpu.memory_space<vmem>>, %arg3: memref<1x128xf32, #tpu.memory_space<vmem>>, %arg4: memref<1x4x8x128xbf16, #tpu.memory_space<vmem>>) attributes {dimension_semantics = [#tpu.dimension_semantics<parallel>], iteration_bounds = array<i64: 2>, scalar_prefetch = 0 : i64, scratch_operands = 0 : i64, tpu.core_type = #tpu.core_type<tc>, window_params = [{transform_indices = @transform_0, window_bounds = array<i64: 1, 6, 10, 128>}, {pipeline_mode = #tpu.pipeline_mode<synchronous>, transform_indices = @transform_1, window_bounds = array<i64: 9, 128, 128>}, {pipeline_mode = #tpu.pipeline_mode<synchronous>, transform_indices = @transform_2, window_bounds = array<i64: 1, 128>}, {transform_indices = @transform_3, window_bounds = array<i64: 1, 4, 8, 128>}]} {
    %c0 = arith.constant 0 : index
    %c0_0 = arith.constant 0 : index
    %c0_1 = arith.constant 0 : index
    %c0_2 = arith.constant 0 : index
    %0 = vector.load %arg1[%c0, %c0_0, %c0_1, %c0_2] : memref<1x6x10x128xbf16, #tpu.memory_space<vmem>>, vector<1x6x10x128xbf16>
    %1 = vector.shape_cast %0 : vector<1x6x10x128xbf16> to vector<6x10x128xbf16>
    %cst = arith.constant 0.000000e+00 : f32
    %2 = vector.broadcast %cst : f32 to vector<32x128xf32>
    %3 = vector.extract_strided_slice %1 {offsets = [0, 0, 0], sizes = [4, 8, 128], strides = [1, 1, 1]} : vector<6x10x128xbf16> to vector<4x8x128xbf16>
    %4 = vector.shape_cast %3 : vector<4x8x128xbf16> to vector<32x128xbf16>
    %c0_3 = arith.constant 0 : index
    %c0_4 = arith.constant 0 : index
    %c0_5 = arith.constant 0 : index
    %5 = vector.load %arg2[%c0_3, %c0_4, %c0_5] : memref<9x128x128xbf16, #tpu.memory_space<vmem>>, vector<1x128x128xbf16>
    %6 = vector.shape_cast %5 : vector<1x128x128xbf16> to vector<128x128xbf16>
    %cst_6 = arith.constant dense<0.000000e+00> : vector<32x128xf32>
    %7 = tpu.matmul %4, %6, %cst_6 {dimension_numbers = #tpu.dot_dimension_numbers<[1], [0], [0], [1], [0, 0, 1, 1], [], []>} : vector<32x128xbf16>, vector<128x128xbf16>, vector<32x128xf32> -> vector<32x128xf32>
    %8 = arith.addf %2, %7 : vector<32x128xf32>
    %9 = vector.extract_strided_slice %1 {offsets = [0, 1, 0], sizes = [4, 8, 128], strides = [1, 1, 1]} : vector<6x10x128xbf16> to vector<4x8x128xbf16>
    %10 = vector.shape_cast %9 : vector<4x8x128xbf16> to vector<32x128xbf16>
    %c1 = arith.constant 1 : index
    %c0_7 = arith.constant 0 : index
    %c0_8 = arith.constant 0 : index
    %11 = vector.load %arg2[%c1, %c0_7, %c0_8] : memref<9x128x128xbf16, #tpu.memory_space<vmem>>, vector<1x128x128xbf16>
    %12 = vector.shape_cast %11 : vector<1x128x128xbf16> to vector<128x128xbf16>
    %cst_9 = arith.constant dense<0.000000e+00> : vector<32x128xf32>
    %13 = tpu.matmul %10, %12, %cst_9 {dimension_numbers = #tpu.dot_dimension_numbers<[1], [0], [0], [1], [0, 0, 1, 1], [], []>} : vector<32x128xbf16>, vector<128x128xbf16>, vector<32x128xf32> -> vector<32x128xf32>
    %14 = arith.addf %8, %13 : vector<32x128xf32>
    %15 = vector.extract_strided_slice %1 {offsets = [0, 2, 0], sizes = [4, 8, 128], strides = [1, 1, 1]} : vector<6x10x128xbf16> to vector<4x8x128xbf16>
    %16 = vector.shape_cast %15 : vector<4x8x128xbf16> to vector<32x128xbf16>
    %c2 = arith.constant 2 : index
    %c0_10 = arith.constant 0 : index
    %c0_11 = arith.constant 0 : index
    %17 = vector.load %arg2[%c2, %c0_10, %c0_11] : memref<9x128x128xbf16, #tpu.memory_space<vmem>>, vector<1x128x128xbf16>
    %18 = vector.shape_cast %17 : vector<1x128x128xbf16> to vector<128x128xbf16>
    %cst_12 = arith.constant dense<0.000000e+00> : vector<32x128xf32>
    %19 = tpu.matmul %16, %18, %cst_12 {dimension_numbers = #tpu.dot_dimension_numbers<[1], [0], [0], [1], [0, 0, 1, 1], [], []>} : vector<32x128xbf16>, vector<128x128xbf16>, vector<32x128xf32> -> vector<32x128xf32>
    %20 = arith.addf %14, %19 : vector<32x128xf32>
    %21 = vector.extract_strided_slice %1 {offsets = [1, 0, 0], sizes = [4, 8, 128], strides = [1, 1, 1]} : vector<6x10x128xbf16> to vector<4x8x128xbf16>
    %22 = vector.shape_cast %21 : vector<4x8x128xbf16> to vector<32x128xbf16>
    %c3 = arith.constant 3 : index
    %c0_13 = arith.constant 0 : index
    %c0_14 = arith.constant 0 : index
    %23 = vector.load %arg2[%c3, %c0_13, %c0_14] : memref<9x128x128xbf16, #tpu.memory_space<vmem>>, vector<1x128x128xbf16>
    %24 = vector.shape_cast %23 : vector<1x128x128xbf16> to vector<128x128xbf16>
    %cst_15 = arith.constant dense<0.000000e+00> : vector<32x128xf32>
    %25 = tpu.matmul %22, %24, %cst_15 {dimension_numbers = #tpu.dot_dimension_numbers<[1], [0], [0], [1], [0, 0, 1, 1], [], []>} : vector<32x128xbf16>, vector<128x128xbf16>, vector<32x128xf32> -> vector<32x128xf32>
    %26 = arith.addf %20, %25 : vector<32x128xf32>
    %27 = vector.extract_strided_slice %1 {offsets = [1, 1, 0], sizes = [4, 8, 128], strides = [1, 1, 1]} : vector<6x10x128xbf16> to vector<4x8x128xbf16>
    %28 = vector.shape_cast %27 : vector<4x8x128xbf16> to vector<32x128xbf16>
    %c4 = arith.constant 4 : index
    %c0_16 = arith.constant 0 : index
    %c0_17 = arith.constant 0 : index
    %29 = vector.load %arg2[%c4, %c0_16, %c0_17] : memref<9x128x128xbf16, #tpu.memory_space<vmem>>, vector<1x128x128xbf16>
    %30 = vector.shape_cast %29 : vector<1x128x128xbf16> to vector<128x128xbf16>
    %cst_18 = arith.constant dense<0.000000e+00> : vector<32x128xf32>
    %31 = tpu.matmul %28, %30, %cst_18 {dimension_numbers = #tpu.dot_dimension_numbers<[1], [0], [0], [1], [0, 0, 1, 1], [], []>} : vector<32x128xbf16>, vector<128x128xbf16>, vector<32x128xf32> -> vector<32x128xf32>
    %32 = arith.addf %26, %31 : vector<32x128xf32>
    %33 = vector.extract_strided_slice %1 {offsets = [1, 2, 0], sizes = [4, 8, 128], strides = [1, 1, 1]} : vector<6x10x128xbf16> to vector<4x8x128xbf16>
    %34 = vector.shape_cast %33 : vector<4x8x128xbf16> to vector<32x128xbf16>
    %c5 = arith.constant 5 : index
    %c0_19 = arith.constant 0 : index
    %c0_20 = arith.constant 0 : index
    %35 = vector.load %arg2[%c5, %c0_19, %c0_20] : memref<9x128x128xbf16, #tpu.memory_space<vmem>>, vector<1x128x128xbf16>
    %36 = vector.shape_cast %35 : vector<1x128x128xbf16> to vector<128x128xbf16>
    %cst_21 = arith.constant dense<0.000000e+00> : vector<32x128xf32>
    %37 = tpu.matmul %34, %36, %cst_21 {dimension_numbers = #tpu.dot_dimension_numbers<[1], [0], [0], [1], [0, 0, 1, 1], [], []>} : vector<32x128xbf16>, vector<128x128xbf16>, vector<32x128xf32> -> vector<32x128xf32>
    %38 = arith.addf %32, %37 : vector<32x128xf32>
    %39 = vector.extract_strided_slice %1 {offsets = [2, 0, 0], sizes = [4, 8, 128], strides = [1, 1, 1]} : vector<6x10x128xbf16> to vector<4x8x128xbf16>
    %40 = vector.shape_cast %39 : vector<4x8x128xbf16> to vector<32x128xbf16>
    %c6 = arith.constant 6 : index
    %c0_22 = arith.constant 0 : index
    %c0_23 = arith.constant 0 : index
    %41 = vector.load %arg2[%c6, %c0_22, %c0_23] : memref<9x128x128xbf16, #tpu.memory_space<vmem>>, vector<1x128x128xbf16>
    %42 = vector.shape_cast %41 : vector<1x128x128xbf16> to vector<128x128xbf16>
    %cst_24 = arith.constant dense<0.000000e+00> : vector<32x128xf32>
    %43 = tpu.matmul %40, %42, %cst_24 {dimension_numbers = #tpu.dot_dimension_numbers<[1], [0], [0], [1], [0, 0, 1, 1], [], []>} : vector<32x128xbf16>, vector<128x128xbf16>, vector<32x128xf32> -> vector<32x128xf32>
    %44 = arith.addf %38, %43 : vector<32x128xf32>
    %45 = vector.extract_strided_slice %1 {offsets = [2, 1, 0], sizes = [4, 8, 128], strides = [1, 1, 1]} : vector<6x10x128xbf16> to vector<4x8x128xbf16>
    %46 = vector.shape_cast %45 : vector<4x8x128xbf16> to vector<32x128xbf16>
    %c7 = arith.constant 7 : index
    %c0_25 = arith.constant 0 : index
    %c0_26 = arith.constant 0 : index
    %47 = vector.load %arg2[%c7, %c0_25, %c0_26] : memref<9x128x128xbf16, #tpu.memory_space<vmem>>, vector<1x128x128xbf16>
    %48 = vector.shape_cast %47 : vector<1x128x128xbf16> to vector<128x128xbf16>
    %cst_27 = arith.constant dense<0.000000e+00> : vector<32x128xf32>
    %49 = tpu.matmul %46, %48, %cst_27 {dimension_numbers = #tpu.dot_dimension_numbers<[1], [0], [0], [1], [0, 0, 1, 1], [], []>} : vector<32x128xbf16>, vector<128x128xbf16>, vector<32x128xf32> -> vector<32x128xf32>
    %50 = arith.addf %44, %49 : vector<32x128xf32>
    %51 = vector.extract_strided_slice %1 {offsets = [2, 2, 0], sizes = [4, 8, 128], strides = [1, 1, 1]} : vector<6x10x128xbf16> to vector<4x8x128xbf16>
    %52 = vector.shape_cast %51 : vector<4x8x128xbf16> to vector<32x128xbf16>
    %c8 = arith.constant 8 : index
    %c0_28 = arith.constant 0 : index
    %c0_29 = arith.constant 0 : index
    %53 = vector.load %arg2[%c8, %c0_28, %c0_29] : memref<9x128x128xbf16, #tpu.memory_space<vmem>>, vector<1x128x128xbf16>
    %54 = vector.shape_cast %53 : vector<1x128x128xbf16> to vector<128x128xbf16>
    %cst_30 = arith.constant dense<0.000000e+00> : vector<32x128xf32>
    %55 = tpu.matmul %52, %54, %cst_30 {dimension_numbers = #tpu.dot_dimension_numbers<[1], [0], [0], [1], [0, 0, 1, 1], [], []>} : vector<32x128xbf16>, vector<128x128xbf16>, vector<32x128xf32> -> vector<32x128xf32>
    %56 = arith.addf %50, %55 : vector<32x128xf32>
    %c0_31 = arith.constant 0 : index
    %c0_32 = arith.constant 0 : index
    %57 = vector.load %arg3[%c0_31, %c0_32] : memref<1x128xf32, #tpu.memory_space<vmem>>, vector<1x128xf32>
    %58 = vector.broadcast %57 : vector<1x128xf32> to vector<32x128xf32>
    %59 = arith.addf %56, %58 : vector<32x128xf32>
    %cst_33 = arith.constant 0.000000e+00 : f32
    %60 = vector.broadcast %cst_33 : f32 to vector<32x128xf32>
    %61 = arith.maximumf %59, %60 : vector<32x128xf32>
    %62 = vector.shape_cast %61 : vector<32x128xf32> to vector<4x8x128xf32>
    %63 = arith.truncf %62 : vector<4x8x128xf32> to vector<4x8x128xbf16>
    %c0_34 = arith.constant 0 : index
    %c0_35 = arith.constant 0 : index
    %c0_36 = arith.constant 0 : index
    %c0_37 = arith.constant 0 : index
    %64 = vector.load %arg4[%c0_34, %c0_35, %c0_36, %c0_37] : memref<1x4x8x128xbf16, #tpu.memory_space<vmem>>, vector<1x4x8x128xbf16>
    %65 = vector.shape_cast %64 : vector<1x4x8x128xbf16> to vector<4x8x128xbf16>
    %66 = vector.shape_cast %63 : vector<4x8x128xbf16> to vector<1x4x8x128xbf16>
    tpu.vector_store %arg4[%c0_34, %c0_35, %c0_36, %c0_37], %66 {strides = array<i32>} : memref<1x4x8x128xbf16, #tpu.memory_space<vmem>>, vector<1x4x8x128xbf16>,
    return
  }
  func.func @transform_0(%arg0: i32) -> (i32, i32, i32, i32) {
    %c0_i32 = arith.constant 0 : i32
    %c0_i32_0 = arith.constant 0 : i32
    %c0_i32_1 = arith.constant 0 : i32
    %c0_i32_2 = arith.constant 0 : i32
    return %arg0, %c0_i32, %c0_i32_0, %c0_i32_1 : i32, i32, i32, i32
  }
  func.func @transform_1(%arg0: i32) -> (i32, i32, i32) {
    %c0_i32 = arith.constant 0 : i32
    %c0_i32_0 = arith.constant 0 : i32
    %c0_i32_1 = arith.constant 0 : i32
    %c0_i32_2 = arith.constant 0 : i32
    return %c0_i32, %c0_i32_0, %c0_i32_1 : i32, i32, i32
  }
  func.func @transform_2(%arg0: i32) -> (i32, i32) {
    %c0_i32 = arith.constant 0 : i32
    %c0_i32_0 = arith.constant 0 : i32
    %c0_i32_1 = arith.constant 0 : i32
    return %c0_i32, %c0_i32_0 : i32, i32
  }
  func.func @transform_3(%arg0: i32) -> (i32, i32, i32, i32) {
    %c0_i32 = arith.constant 0 : i32
    %c0_i32_0 = arith.constant 0 : i32
    %c0_i32_1 = arith.constant 0 : i32
    %c0_i32_2 = arith.constant 0 : i32
    return %arg0, %c0_i32, %c0_i32_0, %c0_i32_1 : i32, i32, i32, i32
  }
}

module attributes {stable_mosaic.version = 11 : i64} {
  func.func @_conv3x3_kernel(%arg0: i32, %arg1: memref<1x18x18x128xbf16, #tpu.memory_space<vmem>>, %arg2: memref<9x128x128xbf16, #tpu.memory_space<vmem>>, %arg3: memref<1x128xf32, #tpu.memory_space<vmem>>, %arg4: memref<128x128xbf16, #tpu.memory_space<vmem>>, %arg5: memref<1x128xf32, #tpu.memory_space<vmem>>, %arg6: memref<1x16x16x128xf32, #tpu.memory_space<vmem>>) attributes {dimension_semantics = [#tpu.dimension_semantics<parallel>], iteration_bounds = array<i64: 2>, scalar_prefetch = 0 : i64, scratch_operands = 0 : i64, tpu.core_type = #tpu.core_type<tc>, window_params = [{transform_indices = @transform_0, window_bounds = array<i64: 1, 18, 18, 128>}, {pipeline_mode = #tpu.pipeline_mode<synchronous>, transform_indices = @transform_1, window_bounds = array<i64: 9, 128, 128>}, {pipeline_mode = #tpu.pipeline_mode<synchronous>, transform_indices = @transform_2, window_bounds = array<i64: 1, 128>}, {pipeline_mode = #tpu.pipeline_mode<synchronous>, transform_indices = @transform_3, window_bounds = array<i64: 128, 128>}, {pipeline_mode = #tpu.pipeline_mode<synchronous>, transform_indices = @transform_4, window_bounds = array<i64: 1, 128>}, {transform_indices = @transform_5, window_bounds = array<i64: 1, 16, 16, 128>}]} {
    %c0 = arith.constant 0 : index
    %c0_0 = arith.constant 0 : index
    %c0_1 = arith.constant 0 : index
    %c0_2 = arith.constant 0 : index
    %0 = vector.load %arg1[%c0, %c0_0, %c0_1, %c0_2] : memref<1x18x18x128xbf16, #tpu.memory_space<vmem>>, vector<1x18x18x128xbf16>
    %1 = vector.shape_cast %0 : vector<1x18x18x128xbf16> to vector<18x18x128xbf16>
    %cst = arith.constant 0.000000e+00 : f32
    %2 = vector.broadcast %cst : f32 to vector<256x128xf32>
    %3 = vector.extract_strided_slice %1 {offsets = [0, 0, 0], sizes = [16, 16, 128], strides = [1, 1, 1]} : vector<18x18x128xbf16> to vector<16x16x128xbf16>
    %4 = vector.shape_cast %3 : vector<16x16x128xbf16> to vector<256x128xbf16>
    %c0_3 = arith.constant 0 : index
    %c0_4 = arith.constant 0 : index
    %c0_5 = arith.constant 0 : index
    %5 = vector.load %arg2[%c0_3, %c0_4, %c0_5] : memref<9x128x128xbf16, #tpu.memory_space<vmem>>, vector<1x128x128xbf16>
    %6 = vector.shape_cast %5 : vector<1x128x128xbf16> to vector<128x128xbf16>
    %cst_6 = arith.constant dense<0.000000e+00> : vector<256x128xf32>
    %7 = tpu.matmul %4, %6, %cst_6 {dimension_numbers = #tpu.dot_dimension_numbers<[1], [0], [0], [1], [0, 0, 1, 1], [], []>} : vector<256x128xbf16>, vector<128x128xbf16>, vector<256x128xf32> -> vector<256x128xf32>
    %8 = arith.addf %2, %7 : vector<256x128xf32>
    %9 = vector.extract_strided_slice %1 {offsets = [0, 1, 0], sizes = [16, 16, 128], strides = [1, 1, 1]} : vector<18x18x128xbf16> to vector<16x16x128xbf16>
    %10 = vector.shape_cast %9 : vector<16x16x128xbf16> to vector<256x128xbf16>
    %c1 = arith.constant 1 : index
    %c0_7 = arith.constant 0 : index
    %c0_8 = arith.constant 0 : index
    %11 = vector.load %arg2[%c1, %c0_7, %c0_8] : memref<9x128x128xbf16, #tpu.memory_space<vmem>>, vector<1x128x128xbf16>
    %12 = vector.shape_cast %11 : vector<1x128x128xbf16> to vector<128x128xbf16>
    %cst_9 = arith.constant dense<0.000000e+00> : vector<256x128xf32>
    %13 = tpu.matmul %10, %12, %cst_9 {dimension_numbers = #tpu.dot_dimension_numbers<[1], [0], [0], [1], [0, 0, 1, 1], [], []>} : vector<256x128xbf16>, vector<128x128xbf16>, vector<256x128xf32> -> vector<256x128xf32>
    %14 = arith.addf %8, %13 : vector<256x128xf32>
    %15 = vector.extract_strided_slice %1 {offsets = [0, 2, 0], sizes = [16, 16, 128], strides = [1, 1, 1]} : vector<18x18x128xbf16> to vector<16x16x128xbf16>
    %16 = vector.shape_cast %15 : vector<16x16x128xbf16> to vector<256x128xbf16>
    %c2 = arith.constant 2 : index
    %c0_10 = arith.constant 0 : index
    %c0_11 = arith.constant 0 : index
    %17 = vector.load %arg2[%c2, %c0_10, %c0_11] : memref<9x128x128xbf16, #tpu.memory_space<vmem>>, vector<1x128x128xbf16>
    %18 = vector.shape_cast %17 : vector<1x128x128xbf16> to vector<128x128xbf16>
    %cst_12 = arith.constant dense<0.000000e+00> : vector<256x128xf32>
    %19 = tpu.matmul %16, %18, %cst_12 {dimension_numbers = #tpu.dot_dimension_numbers<[1], [0], [0], [1], [0, 0, 1, 1], [], []>} : vector<256x128xbf16>, vector<128x128xbf16>, vector<256x128xf32> -> vector<256x128xf32>
    %20 = arith.addf %14, %19 : vector<256x128xf32>
    %21 = vector.extract_strided_slice %1 {offsets = [1, 0, 0], sizes = [16, 16, 128], strides = [1, 1, 1]} : vector<18x18x128xbf16> to vector<16x16x128xbf16>
    %22 = vector.shape_cast %21 : vector<16x16x128xbf16> to vector<256x128xbf16>
    %c3 = arith.constant 3 : index
    %c0_13 = arith.constant 0 : index
    %c0_14 = arith.constant 0 : index
    %23 = vector.load %arg2[%c3, %c0_13, %c0_14] : memref<9x128x128xbf16, #tpu.memory_space<vmem>>, vector<1x128x128xbf16>
    %24 = vector.shape_cast %23 : vector<1x128x128xbf16> to vector<128x128xbf16>
    %cst_15 = arith.constant dense<0.000000e+00> : vector<256x128xf32>
    %25 = tpu.matmul %22, %24, %cst_15 {dimension_numbers = #tpu.dot_dimension_numbers<[1], [0], [0], [1], [0, 0, 1, 1], [], []>} : vector<256x128xbf16>, vector<128x128xbf16>, vector<256x128xf32> -> vector<256x128xf32>
    %26 = arith.addf %20, %25 : vector<256x128xf32>
    %27 = vector.extract_strided_slice %1 {offsets = [1, 1, 0], sizes = [16, 16, 128], strides = [1, 1, 1]} : vector<18x18x128xbf16> to vector<16x16x128xbf16>
    %28 = vector.shape_cast %27 : vector<16x16x128xbf16> to vector<256x128xbf16>
    %c4 = arith.constant 4 : index
    %c0_16 = arith.constant 0 : index
    %c0_17 = arith.constant 0 : index
    %29 = vector.load %arg2[%c4, %c0_16, %c0_17] : memref<9x128x128xbf16, #tpu.memory_space<vmem>>, vector<1x128x128xbf16>
    %30 = vector.shape_cast %29 : vector<1x128x128xbf16> to vector<128x128xbf16>
    %cst_18 = arith.constant dense<0.000000e+00> : vector<256x128xf32>
    %31 = tpu.matmul %28, %30, %cst_18 {dimension_numbers = #tpu.dot_dimension_numbers<[1], [0], [0], [1], [0, 0, 1, 1], [], []>} : vector<256x128xbf16>, vector<128x128xbf16>, vector<256x128xf32> -> vector<256x128xf32>
    %32 = arith.addf %26, %31 : vector<256x128xf32>
    %33 = vector.extract_strided_slice %1 {offsets = [1, 2, 0], sizes = [16, 16, 128], strides = [1, 1, 1]} : vector<18x18x128xbf16> to vector<16x16x128xbf16>
    %34 = vector.shape_cast %33 : vector<16x16x128xbf16> to vector<256x128xbf16>
    %c5 = arith.constant 5 : index
    %c0_19 = arith.constant 0 : index
    %c0_20 = arith.constant 0 : index
    %35 = vector.load %arg2[%c5, %c0_19, %c0_20] : memref<9x128x128xbf16, #tpu.memory_space<vmem>>, vector<1x128x128xbf16>
    %36 = vector.shape_cast %35 : vector<1x128x128xbf16> to vector<128x128xbf16>
    %cst_21 = arith.constant dense<0.000000e+00> : vector<256x128xf32>
    %37 = tpu.matmul %34, %36, %cst_21 {dimension_numbers = #tpu.dot_dimension_numbers<[1], [0], [0], [1], [0, 0, 1, 1], [], []>} : vector<256x128xbf16>, vector<128x128xbf16>, vector<256x128xf32> -> vector<256x128xf32>
    %38 = arith.addf %32, %37 : vector<256x128xf32>
    %39 = vector.extract_strided_slice %1 {offsets = [2, 0, 0], sizes = [16, 16, 128], strides = [1, 1, 1]} : vector<18x18x128xbf16> to vector<16x16x128xbf16>
    %40 = vector.shape_cast %39 : vector<16x16x128xbf16> to vector<256x128xbf16>
    %c6 = arith.constant 6 : index
    %c0_22 = arith.constant 0 : index
    %c0_23 = arith.constant 0 : index
    %41 = vector.load %arg2[%c6, %c0_22, %c0_23] : memref<9x128x128xbf16, #tpu.memory_space<vmem>>, vector<1x128x128xbf16>
    %42 = vector.shape_cast %41 : vector<1x128x128xbf16> to vector<128x128xbf16>
    %cst_24 = arith.constant dense<0.000000e+00> : vector<256x128xf32>
    %43 = tpu.matmul %40, %42, %cst_24 {dimension_numbers = #tpu.dot_dimension_numbers<[1], [0], [0], [1], [0, 0, 1, 1], [], []>} : vector<256x128xbf16>, vector<128x128xbf16>, vector<256x128xf32> -> vector<256x128xf32>
    %44 = arith.addf %38, %43 : vector<256x128xf32>
    %45 = vector.extract_strided_slice %1 {offsets = [2, 1, 0], sizes = [16, 16, 128], strides = [1, 1, 1]} : vector<18x18x128xbf16> to vector<16x16x128xbf16>
    %46 = vector.shape_cast %45 : vector<16x16x128xbf16> to vector<256x128xbf16>
    %c7 = arith.constant 7 : index
    %c0_25 = arith.constant 0 : index
    %c0_26 = arith.constant 0 : index
    %47 = vector.load %arg2[%c7, %c0_25, %c0_26] : memref<9x128x128xbf16, #tpu.memory_space<vmem>>, vector<1x128x128xbf16>
    %48 = vector.shape_cast %47 : vector<1x128x128xbf16> to vector<128x128xbf16>
    %cst_27 = arith.constant dense<0.000000e+00> : vector<256x128xf32>
    %49 = tpu.matmul %46, %48, %cst_27 {dimension_numbers = #tpu.dot_dimension_numbers<[1], [0], [0], [1], [0, 0, 1, 1], [], []>} : vector<256x128xbf16>, vector<128x128xbf16>, vector<256x128xf32> -> vector<256x128xf32>
    %50 = arith.addf %44, %49 : vector<256x128xf32>
    %51 = vector.extract_strided_slice %1 {offsets = [2, 2, 0], sizes = [16, 16, 128], strides = [1, 1, 1]} : vector<18x18x128xbf16> to vector<16x16x128xbf16>
    %52 = vector.shape_cast %51 : vector<16x16x128xbf16> to vector<256x128xbf16>
    %c8 = arith.constant 8 : index
    %c0_28 = arith.constant 0 : index
    %c0_29 = arith.constant 0 : index
    %53 = vector.load %arg2[%c8, %c0_28, %c0_29] : memref<9x128x128xbf16, #tpu.memory_space<vmem>>, vector<1x128x128xbf16>
    %54 = vector.shape_cast %53 : vector<1x128x128xbf16> to vector<128x128xbf16>
    %cst_30 = arith.constant dense<0.000000e+00> : vector<256x128xf32>
    %55 = tpu.matmul %52, %54, %cst_30 {dimension_numbers = #tpu.dot_dimension_numbers<[1], [0], [0], [1], [0, 0, 1, 1], [], []>} : vector<256x128xbf16>, vector<128x128xbf16>, vector<256x128xf32> -> vector<256x128xf32>
    %56 = arith.addf %50, %55 : vector<256x128xf32>
    %c0_31 = arith.constant 0 : index
    %c0_32 = arith.constant 0 : index
    %57 = vector.load %arg3[%c0_31, %c0_32] : memref<1x128xf32, #tpu.memory_space<vmem>>, vector<1x128xf32>
    %58 = vector.broadcast %57 : vector<1x128xf32> to vector<256x128xf32>
    %59 = arith.addf %56, %58 : vector<256x128xf32>
    %cst_33 = arith.constant 0.000000e+00 : f32
    %60 = vector.broadcast %cst_33 : f32 to vector<256x128xf32>
    %61 = arith.maximumf %59, %60 : vector<256x128xf32>
    %62 = arith.truncf %61 : vector<256x128xf32> to vector<256x128xbf16>
    %c0_34 = arith.constant 0 : index
    %c0_35 = arith.constant 0 : index
    %63 = vector.load %arg4[%c0_34, %c0_35] : memref<128x128xbf16, #tpu.memory_space<vmem>>, vector<128x128xbf16>
    %cst_36 = arith.constant dense<0.000000e+00> : vector<256x128xf32>
    %64 = tpu.matmul %62, %63, %cst_36 {dimension_numbers = #tpu.dot_dimension_numbers<[1], [0], [0], [1], [0, 0, 1, 1], [], []>} : vector<256x128xbf16>, vector<128x128xbf16>, vector<256x128xf32> -> vector<256x128xf32>
    %c0_37 = arith.constant 0 : index
    %c0_38 = arith.constant 0 : index
    %65 = vector.load %arg5[%c0_37, %c0_38] : memref<1x128xf32, #tpu.memory_space<vmem>>, vector<1x128xf32>
    %66 = vector.broadcast %65 : vector<1x128xf32> to vector<256x128xf32>
    %67 = arith.addf %64, %66 : vector<256x128xf32>
    %68 = vector.shape_cast %67 : vector<256x128xf32> to vector<16x16x128xf32>
    %c0_39 = arith.constant 0 : index
    %c0_40 = arith.constant 0 : index
    %c0_41 = arith.constant 0 : index
    %c0_42 = arith.constant 0 : index
    %69 = vector.load %arg6[%c0_39, %c0_40, %c0_41, %c0_42] : memref<1x16x16x128xf32, #tpu.memory_space<vmem>>, vector<1x16x16x128xf32>
    %70 = vector.shape_cast %69 : vector<1x16x16x128xf32> to vector<16x16x128xf32>
    %71 = vector.shape_cast %68 : vector<16x16x128xf32> to vector<1x16x16x128xf32>
    tpu.vector_store %arg6[%c0_39, %c0_40, %c0_41, %c0_42], %71 {strides = array<i32>} : memref<1x16x16x128xf32, #tpu.memory_space<vmem>>, vector<1x16x16x128xf32>,
    return
  }
  func.func @transform_0(%arg0: i32) -> (i32, i32, i32, i32) {
    %c0_i32 = arith.constant 0 : i32
    %c0_i32_0 = arith.constant 0 : i32
    %c0_i32_1 = arith.constant 0 : i32
    %c0_i32_2 = arith.constant 0 : i32
    return %arg0, %c0_i32, %c0_i32_0, %c0_i32_1 : i32, i32, i32, i32
  }
  func.func @transform_1(%arg0: i32) -> (i32, i32, i32) {
    %c0_i32 = arith.constant 0 : i32
    %c0_i32_0 = arith.constant 0 : i32
    %c0_i32_1 = arith.constant 0 : i32
    %c0_i32_2 = arith.constant 0 : i32
    return %c0_i32, %c0_i32_0, %c0_i32_1 : i32, i32, i32
  }
  func.func @transform_2(%arg0: i32) -> (i32, i32) {
    %c0_i32 = arith.constant 0 : i32
    %c0_i32_0 = arith.constant 0 : i32
    %c0_i32_1 = arith.constant 0 : i32
    return %c0_i32, %c0_i32_0 : i32, i32
  }
  func.func @transform_3(%arg0: i32) -> (i32, i32) {
    %c0_i32 = arith.constant 0 : i32
    %c0_i32_0 = arith.constant 0 : i32
    %c0_i32_1 = arith.constant 0 : i32
    return %c0_i32, %c0_i32_0 : i32, i32
  }
  func.func @transform_4(%arg0: i32) -> (i32, i32) {
    %c0_i32 = arith.constant 0 : i32
    %c0_i32_0 = arith.constant 0 : i32
    %c0_i32_1 = arith.constant 0 : i32
    return %c0_i32, %c0_i32_0 : i32, i32
  }
  func.func @transform_5(%arg0: i32) -> (i32, i32, i32, i32) {
    %c0_i32 = arith.constant 0 : i32
    %c0_i32_0 = arith.constant 0 : i32
    %c0_i32_1 = arith.constant 0 : i32
    %c0_i32_2 = arith.constant 0 : i32
    return %arg0, %c0_i32, %c0_i32_0, %c0_i32_1 : i32, i32, i32, i32
  }
}

</mosaic_0001>

<llo_original>
// kernel: seg_qyl_forward.12
$region0: #{seg_qyl_forward.12}
  #allocation0 [shape = 'u32[]', space=smem, size = 0x4, offset = 0x4, fixed_abs, tag = 'smem constant byte address 0x4 - core index']
  #allocation1 [shape = 'u32[144,128]{1,0:T(1,128)}', space=vmem, size = 0x12000, scoped, tag = 'internal scratch']
  %s0 = inlined_call_operand.vmem [shape: bf16[2,18,18,128], index: 0, kind: input, shape index: {}]
  %s1 = inlined_call_operand.vmem [shape: bf16[9,128,128], index: 1, kind: input, shape index: {}]
  %s2 = inlined_call_operand.vmem [shape: f32[1,128], index: 2, kind: input, shape index: {}]
  %s3 = inlined_call_operand.vmem [shape: bf16[2,16,16,128], index: 3, kind: output, shape index: {}]
  %s4 = sld [smem:[#allocation0]]
  $region45: #{seg_qyl_forward.12} parent=0
    _
  %s6 = ssub.s32 1, %s4
  %s7 = scalar_select 0, %s6, %s4
  loop: start=0, step=1, limit=4
  $region2: #{seg_qyl_forward.12} parent=0 // loop_pre_header
    _
  $region3: #{seg_qyl_forward.12} parent=0 // loop_header
    %s9 = sphi 0, %s13
    %p10 = scmp.ge.s32.totalorder %s9, 4
    %s19 = sphi 0, %s21
    %s22 = sphi 0, %s19
    %s23 = sphi 0, %s22
    %s39 = sphi 0, %s23
    %s43 = sphi 0, %s43
    %s45 = sphi 0, %s43
    %s46 = sphi 0, %s45
    %s60 = sphi 0, %s46
    %s64 = sphi 0, %s64
    %s66 = sphi 0, %s64
    %s67 = sphi 0, %s66
    %s81 = sphi 0, %s67
    %s87 = sphi 0, %s89
    %s90 = sphi 0, %s87
    %s91 = sphi 0, %s90
    %s107 = sphi 0, %s91
  $region4: #{seg_qyl_forward.12} parent=0 // loop_header_branch
    %12 = sbr.rel (%p10) target = $region8
  $region5: #{seg_qyl_forward.12} parent=0 // loop_body
    %s14 = ssub.s32 %s9, 1
    %s15 = ssub.s32 %s9, 2
    %s16 = sadd.s32 %s9, 1
    %s17 = ssub.s32 %s9, %s16
    %p18 = scmp.eq.s32.totalorder %s17, 0
    %s20 = sadd.s32 %s19, 1
    %s21 = scalar_select %p18, %s19, %s20
    %p24 = pneg %p18
    %p25 = scmp.eq.s32.totalorder %s9, 1
    %p26 = por %p24, %p25
    %p27 = scmp.ne.s32.totalorder %s19, %s22
    %p28 = scmp.eq.s32.totalorder %s9, 0
    %p29 = por %p27, %p28
    %p30 = scmp.ne.s32.totalorder %s19, %s22
    %p31 = scmp.eq.s32.totalorder %s14, 1
    %p32 = por %p30, %p31
    %p33 = scmp.ne.s32.totalorder %s22, %s23
    %p34 = scmp.eq.s32.totalorder %s14, 0
    %p35 = por %p33, %p34
    %p36 = scmp.ne.s32.totalorder %s22, %s23
    %p37 = scmp.eq.s32.totalorder %s15, 1
    %p38 = por %p36, %p37
    %p40 = scmp.ne.s32.totalorder %s23, %s39
    %p41 = scmp.eq.s32.totalorder %s15, 0
    %p42 = por %p40, %p41
    %s44 = sadd.s32 %s43, 1
    %p47 = scmp.eq.s32.totalorder %s9, 1
    %p48 = scmp.ne.s32.totalorder %s43, %s45
    %p49 = scmp.eq.s32.totalorder %s9, 0
    %p50 = por %p48, %p49
    %p51 = scmp.ne.s32.totalorder %s43, %s45
    %p52 = scmp.eq.s32.totalorder %s14, 1
    %p53 = por %p51, %p52
    %p54 = scmp.ne.s32.totalorder %s45, %s46
    %p55 = scmp.eq.s32.totalorder %s14, 0
    %p56 = por %p54, %p55
    %p57 = scmp.ne.s32.totalorder %s45, %s46
    %p58 = scmp.eq.s32.totalorder %s15, 1
    %p59 = por %p57, %p58
    %p61 = scmp.ne.s32.totalorder %s46, %s60
    %p62 = scmp.eq.s32.totalorder %s15, 0
    %p63 = por %p61, %p62
    %s65 = sadd.s32 %s64, 1
    %p68 = scmp.eq.s32.totalorder %s9, 1
    %p69 = scmp.ne.s32.totalorder %s64, %s66
    %p70 = scmp.eq.s32.totalorder %s9, 0
    %p71 = por %p69, %p70
    %p72 = scmp.ne.s32.totalorder %s64, %s66
    %p73 = scmp.eq.s32.totalorder %s14, 1
    %p74 = por %p72, %p73
    %p75 = scmp.ne.s32.totalorder %s66, %s67
    %p76 = scmp.eq.s32.totalorder %s14, 0
    %p77 = por %p75, %p76
    %p78 = scmp.ne.s32.totalorder %s66, %s67
    %p79 = scmp.eq.s32.totalorder %s15, 1
    %p80 = por %p78, %p79
    %p82 = scmp.ne.s32.totalorder %s67, %s81
    %p83 = scmp.eq.s32.totalorder %s15, 0
    %p84 = por %p82, %p83
    %s85 = ssub.s32 %s9, %s16
    %p86 = scmp.eq.s32.totalorder %s85, 0
    %s88 = sadd.s32 %s87, 1
    %s89 = scalar_select %p86, %s87, %s88
    %p92 = pneg %p86
    %p93 = scmp.eq.s32.totalorder %s9, 1
    %p94 = por %p92, %p93
    %p95 = scmp.ne.s32.totalorder %s87, %s90
    %p96 = scmp.eq.s32.totalorder %s9, 0
    %p97 = por %p95, %p96
    %p98 = scmp.ne.s32.totalorder %s87, %s90
    %p99 = scmp.eq.s32.totalorder %s14, 1
    %p100 = por %p98, %p99
    %p101 = scmp.ne.s32.totalorder %s90, %s91
    %p102 = scmp.eq.s32.totalorder %s14, 0
    %p103 = por %p101, %p102
    %p104 = scmp.ne.s32.totalorder %s90, %s91
    %p105 = scmp.eq.s32.totalorder %s15, 1
    %p106 = por %p104, %p105
    %p108 = scmp.ne.s32.totalorder %s91, %s107
    %p109 = scmp.eq.s32.totalorder %s15, 0
    %p110 = por %p108, %p109
    %p111 = scmp.le.s32.totalorder 1, %s9
    %p112 = scmp.lt.s32.totalorder %s9, 3
    %p113 = pnand %p111, %p112
    %p114 = pneg %p113
    // Predicated region
    $region9: #{seg_qyl_forward.12} parent=5 // pred_check
      _
    $region10: #{seg_qyl_forward.12} parent=5 // pred_check_branch
      %116 = sbr.rel (%p113) target = $region12
    $region11: #{seg_qyl_forward.12} parent=5 // pred_region
      %s117 = ssub.s32 %s9, 1
      // Predicated region
      $region13: #{seg_qyl_forward.12} parent=11 // pred_check
        %p118 = pneg %p56
      $region14: #{seg_qyl_forward.12} parent=11 // pred_check_branch
        %120 = sbr.rel (%p118) target = $region16
      $region15: #{seg_qyl_forward.12} parent=11 // pred_region
        _
      $region16: #{seg_qyl_forward.12} parent=11 // pred_fallthru
        _
      // Predicated region
      $region17: #{seg_qyl_forward.12} parent=11 // pred_check
        %p121 = pneg %p77
      $region18: #{seg_qyl_forward.12} parent=11 // pred_check_branch
        %123 = sbr.rel (%p121) target = $region20
      $region19: #{seg_qyl_forward.12} parent=11 // pred_region
        _
      $region20: #{seg_qyl_forward.12} parent=11 // pred_fallthru
        _
    $region12: #{seg_qyl_forward.12} parent=5 // pred_fallthru
      _
    %p124 = scmp.lt.s32.totalorder %s9, 2
    // Predicated region
    $region21: #{seg_qyl_forward.12} parent=5 // pred_check
      %p125 = pneg %p124
    $region22: #{seg_qyl_forward.12} parent=5 // pred_check_branch
      %127 = sbr.rel (%p125) target = $region24
    $region23: #{seg_qyl_forward.12} parent=5 // pred_region
      // Predicated region
      $region25: #{seg_qyl_forward.12} parent=23 // pred_check
        %p128 = pneg %p29
      $region26: #{seg_qyl_forward.12} parent=23 // pred_check_branch
        %130 = sbr.rel (%p128) target = $region28
      $region27: #{seg_qyl_forward.12} parent=23 // pred_region
        %p131 = scmp.lt.s32.totalorder %s9, 1
        %s132 = scalar_select %p131, %s9, 1
        %s133 = smul.addr %s132, 54
        %s134 = smul.addr %s133, 4
        %s135 = scalar_lea.vmem %s0, %s134
      $region28: #{seg_qyl_forward.12} parent=23 // pred_fallthru
        _
    $region24: #{seg_qyl_forward.12} parent=5 // pred_fallthru
      _
    %p136 = scmp.le.s32.totalorder 1, %s9
    %p137 = scmp.lt.s32.totalorder %s9, 3
    %p138 = pnand %p136, %p137
    %p139 = pneg %p138
    // Predicated region
    $region29: #{seg_qyl_forward.12} parent=5 // pred_check
      _
    $region30: #{seg_qyl_forward.12} parent=5 // pred_check_branch
      %141 = sbr.rel (%p138) target = $region32
    $region31: #{seg_qyl_forward.12} parent=5 // pred_region
      %s142 = ssub.s32 %s9, 1
      %p143 = scmp.lt.s32.totalorder %s14, 1
      %s144 = scalar_select %p143, %s14, 1
      %s145 = smul.addr %s144, 54
      %s146 = smul.addr %s145, 4
      %s147 = scalar_lea.vmem %s0, %s146
      %p148 = pneg %p35
      %p149 = pneg %p32
      %p150 = pneg %p56
      %p151 = pneg %p53
      %p152 = pneg %p77
      %p153 = pneg %p74
      %p154 = pneg %p103
      %p155 = pneg %p100
      %p156 = scmp.lt.s32.totalorder %s14, 1
      %s157 = scalar_select %p156, %s14, 1
      %s158 = smul.addr %s157, 32
      %s159 = smul.addr %s158, 4
      %s160 = scalar_lea.vmem %s3, %s159
      %p161 = scmp.lt.s32.totalorder %s14, 1
      %s162 = scalar_select %p161, %s14, 1
      %s163 = smul.addr %s162, 54
      %s164 = smul.addr %s163, 4
      %s165 = scalar_lea.vmem %s0, %s164
      %p166 = scmp.lt.s32.totalorder %s14, 1
      %s167 = scalar_select %p166, %s14, 1
      %s168 = smul.addr %s167, 32
      %s169 = smul.addr %s168, 4
      %s170 = scalar_lea.vmem %s3, %s169
      %v172 = vld [vmem:[%s165] sm:$0xf]
      %v173 = vld [vmem:[%s165 + $0x4] sm:$0xf]
      %v174 = vld [vmem:[%s165 + $0x8] sm:$0x1]
      %v175 = vld [vmem:[%s165 + $0xc] sm:$0xf]
      %v176 = vld [vmem:[%s165 + $0x10] sm:$0xf]
      %v177 = vld [vmem:[%s165 + $0x14] sm:$0x1]
      %v178 = vld [vmem:[%s165 + $0x18] sm:$0xf]
      %v179 = vld [vmem:[%s165 + $0x1c] sm:$0xf]
      %v180 = vld [vmem:[%s165 + $0x20] sm:$0x1]
      %v181 = vld [vmem:[%s165 + $0x24] sm:$0xf]
      %v182 = vld [vmem:[%s165 + $0x28] sm:$0xf]
      %v183 = vld [vmem:[%s165 + $0x2c] sm:$0x1]
      %v184 = vld [vmem:[%s165 + $0x30] sm:$0xf]
      %v185 = vld [vmem:[%s165 + $0x34] sm:$0xf]
      %v186 = vld [vmem:[%s165 + $0x38] sm:$0x1]
      %v187 = vld [vmem:[%s165 + $0x3c] sm:$0xf]
      %v188 = vld [vmem:[%s165 + $0x40] sm:$0xf]
      %v189 = vld [vmem:[%s165 + $0x44] sm:$0x1]
      %v190 = vld [vmem:[%s165 + $0x48] sm:$0xf]
      %v191 = vld [vmem:[%s165 + $0x4c] sm:$0xf]
      %v192 = vld [vmem:[%s165 + $0x50] sm:$0x1]
      %v193 = vld [vmem:[%s165 + $0x54] sm:$0xf]
      %v194 = vld [vmem:[%s165 + $0x58] sm:$0xf]
      %v195 = vld [vmem:[%s165 + $0x5c] sm:$0x1]
      %v196 = vld [vmem:[%s165 + $0x60] sm:$0xf]
      %v197 = vld [vmem:[%s165 + $0x64] sm:$0xf]
      %v198 = vld [vmem:[%s165 + $0x68] sm:$0x1]
      %v199 = vld [vmem:[%s165 + $0x6c] sm:$0xf]
      %v200 = vld [vmem:[%s165 + $0x70] sm:$0xf]
      %v201 = vld [vmem:[%s165 + $0x74] sm:$0x1]
      %v202 = vld [vmem:[%s165 + $0x78] sm:$0xf]
      %v203 = vld [vmem:[%s165 + $0x7c] sm:$0xf]
      %v204 = vld [vmem:[%s165 + $0x80] sm:$0x1]
      %v205 = vld [vmem:[%s165 + $0x84] sm:$0xf]
      %v206 = vld [vmem:[%s165 + $0x88] sm:$0xf]
      %v207 = vld [vmem:[%s165 + $0x8c] sm:$0x1]
      %v208 = vld [vmem:[%s165 + $0x90] sm:$0xf]
      %v209 = vld [vmem:[%s165 + $0x94] sm:$0xf]
      %v210 = vld [vmem:[%s165 + $0x98] sm:$0x1]
      %v211 = vld [vmem:[%s165 + $0x9c] sm:$0xf]
      %v212 = vld [vmem:[%s165 + $0xa0] sm:$0xf]
      %v213 = vld [vmem:[%s165 + $0xa4] sm:$0x1]
      %v214 = vld [vmem:[%s165 + $0xa8] sm:$0xf]
      %v215 = vld [vmem:[%s165 + $0xac] sm:$0xf]
      %v216 = vld [vmem:[%s165 + $0xb0] sm:$0x1]
      %v217 = vld [vmem:[%s165 + $0xb4] sm:$0xf]
      %v218 = vld [vmem:[%s165 + $0xb8] sm:$0xf]
      %v219 = vld [vmem:[%s165 + $0xbc] sm:$0x1]
      %v220 = vld [vmem:[%s165 + $0xc0] sm:$0xf]
      %v221 = vld [vmem:[%s165 + $0xc4] sm:$0xf]
      %v222 = vld [vmem:[%s165 + $0xc8] sm:$0x1]
      %v223 = vld [vmem:[%s165 + $0xcc] sm:$0xf]
      %v224 = vld [vmem:[%s165 + $0xd0] sm:$0xf]
      %v225 = vld [vmem:[%s165 + $0xd4] sm:$0x1]
      %v226 = vld [vmem:[%s1] sm:$0xf]
      %v227 = vld [vmem:[%s1 + $0x4] sm:$0xf]
      %v228 = vld [vmem:[%s1 + $0x8] sm:$0xf]
      %v229 = vld [vmem:[%s1 + $0xc] sm:$0xf]
      %v230 = vld [vmem:[%s1 + $0x10] sm:$0xf]
      %v231 = vld [vmem:[%s1 + $0x14] sm:$0xf]
      %v232 = vld [vmem:[%s1 + $0x18] sm:$0xf]
      %v233 = vld [vmem:[%s1 + $0x1c] sm:$0xf]
      %v234 = vld [vmem:[%s1 + $0x20] sm:$0xf]
      %v235 = vld [vmem:[%s1 + $0x24] sm:$0xf]
      %v236 = vld [vmem:[%s1 + $0x28] sm:$0xf]
      %v237 = vld [vmem:[%s1 + $0x2c] sm:$0xf]
      %v238 = vld [vmem:[%s1 + $0x30] sm:$0xf]
      %v239 = vld [vmem:[%s1 + $0x34] sm:$0xf]
      %v240 = vld [vmem:[%s1 + $0x38] sm:$0xf]
      %v241 = vld [vmem:[%s1 + $0x3c] sm:$0xf]
      %vm242 = vsmask.f32 3328
      %vm243 = vsmask.f32 7440
      %vm244 = vmor %vm242, %vm243
      %v246 = vshrl.u32 %v172, 16
      %v248 = vrot.slane %v246, 4
      %v249 = vshll.u32 %v172, 16
      %v251 = vrot.slane %v249, 5
      %v252 = vor.u32 %v248, %v251
      %v253 = vrot.slane %v252, 4
      %v255 = vshll.u32 %v173, 16
      %v257 = vrot.slane %v255, 5
      %v258 = vsel %vm244, %v253, %v257
      %v259 = vshrl.u32 %v173, 16
      %v261 = vrot.slane %v259, 4
      %v262 = vor.u32 %v261, %v257
      %v263 = vrot.slane %v262, 4
      %v265 = vshll.u32 %v174, 16
      %v267 = vrot.slane %v265, 5
      %v268 = vsel %vm244, %v263, %v267
      %v270 = vshrl.u32 %v175, 16
      %v272 = vrot.slane %v270, 4
      %v273 = vshll.u32 %v175, 16
      %v275 = vrot.slane %v273, 5
      %v276 = vor.u32 %v272, %v275
      %v277 = vrot.slane %v276, 4
      %v279 = vshll.u32 %v176, 16
      %v281 = vrot.slane %v279, 5
      %v282 = vsel %vm244, %v277, %v281
      %v283 = vshrl.u32 %v176, 16
      %v285 = vrot.slane %v283, 4
      %v286 = vor.u32 %v285, %v281
      %v287 = vrot.slane %v286, 4
      %v289 = vshll.u32 %v177, 16
      %v291 = vrot.slane %v289, 5
      %v292 = vsel %vm244, %v287, %v291
      %v294 = vshrl.u32 %v178, 16
      %v296 = vrot.slane %v294, 4
      %v297 = vshll.u32 %v178, 16
      %v299 = vrot.slane %v297, 5
      %v300 = vor.u32 %v296, %v299
      %v301 = vrot.slane %v300, 4
      %v303 = vshll.u32 %v179, 16
      %v305 = vrot.slane %v303, 5
      %v306 = vsel %vm244, %v301, %v305
      %v307 = vshrl.u32 %v179, 16
      %v309 = vrot.slane %v307, 4
      %v310 = vor.u32 %v309, %v305
      %v311 = vrot.slane %v310, 4
      %v313 = vshll.u32 %v180, 16
      %v315 = vrot.slane %v313, 5
      %v316 = vsel %vm244, %v311, %v315
      %v318 = vshrl.u32 %v181, 16
      %v320 = vrot.slane %v318, 4
      %v321 = vshll.u32 %v181, 16
      %v323 = vrot.slane %v321, 5
      %v324 = vor.u32 %v320, %v323
      %v325 = vrot.slane %v324, 4
      %v327 = vshll.u32 %v182, 16
      %v329 = vrot.slane %v327, 5
      %v330 = vsel %vm244, %v325, %v329
      %v331 = vshrl.u32 %v182, 16
      %v333 = vrot.slane %v331, 4
      %v334 = vor.u32 %v333, %v329
      %v335 = vrot.slane %v334, 4
      %v337 = vshll.u32 %v183, 16
      %v339 = vrot.slane %v337, 5
      %v340 = vsel %vm244, %v335, %v339
      %v342 = vshrl.u32 %v184, 16
      %v344 = vrot.slane %v342, 4
      %v345 = vshll.u32 %v184, 16
      %v347 = vrot.slane %v345, 5
      %v348 = vor.u32 %v344, %v347
      %v349 = vrot.slane %v348, 4
      %v351 = vshll.u32 %v185, 16
      %v353 = vrot.slane %v351, 5
      %v354 = vsel %vm244, %v349, %v353
      %v355 = vshrl.u32 %v185, 16
      %v357 = vrot.slane %v355, 4
      %v358 = vor.u32 %v357, %v353
      %v359 = vrot.slane %v358, 4
      %v361 = vshll.u32 %v186, 16
      %v363 = vrot.slane %v361, 5
      %v364 = vsel %vm244, %v359, %v363
      %v366 = vshrl.u32 %v187, 16
      %v368 = vrot.slane %v366, 4
      %v369 = vshll.u32 %v187, 16
      %v371 = vrot.slane %v369, 5
      %v372 = vor.u32 %v368, %v371
      %v373 = vrot.slane %v372, 4
      %v375 = vshll.u32 %v188, 16
      %v377 = vrot.slane %v375, 5
      %v378 = vsel %vm244, %v373, %v377
      %v379 = vshrl.u32 %v188, 16
      %v381 = vrot.slane %v379, 4
      %v382 = vor.u32 %v381, %v377
      %v383 = vrot.slane %v382, 4
      %v385 = vshll.u32 %v189, 16
      %v387 = vrot.slane %v385, 5
      %v388 = vsel %vm244, %v383, %v387
      %v390 = vshrl.u32 %v190, 16
      %v392 = vrot.slane %v390, 4
      %v393 = vshll.u32 %v190, 16
      %v395 = vrot.slane %v393, 5
      %v396 = vor.u32 %v392, %v395
      %v397 = vrot.slane %v396, 4
      %v399 = vshll.u32 %v191, 16
      %v401 = vrot.slane %v399, 5
      %v402 = vsel %vm244, %v397, %v401
      %v403 = vshrl.u32 %v191, 16
      %v405 = vrot.slane %v403, 4
      %v406 = vor.u32 %v405, %v401
      %v407 = vrot.slane %v406, 4
      %v409 = vshll.u32 %v192, 16
      %v411 = vrot.slane %v409, 5
      %v412 = vsel %vm244, %v407, %v411
      %v414 = vshrl.u32 %v193, 16
      %v416 = vrot.slane %v414, 4
      %v417 = vshll.u32 %v193, 16
      %v419 = vrot.slane %v417, 5
      %v420 = vor.u32 %v416, %v419
      %v421 = vrot.slane %v420, 4
      %v423 = vshll.u32 %v194, 16
      %v425 = vrot.slane %v423, 5
      %v426 = vsel %vm244, %v421, %v425
      %v427 = vshrl.u32 %v194, 16
      %v429 = vrot.slane %v427, 4
      %v430 = vor.u32 %v429, %v425
      %v431 = vrot.slane %v430, 4
      %v433 = vshll.u32 %v195, 16
      %v435 = vrot.slane %v433, 5
      %v436 = vsel %vm244, %v431, %v435
      %v438 = vshrl.u32 %v196, 16
      %v440 = vrot.slane %v438, 4
      %v441 = vshll.u32 %v196, 16
      %v443 = vrot.slane %v441, 5
      %v444 = vor.u32 %v440, %v443
      %v445 = vrot.slane %v444, 4
      %v447 = vshll.u32 %v197, 16
      %v449 = vrot.slane %v447, 5
      %v450 = vsel %vm244, %v445, %v449
      %v451 = vshrl.u32 %v197, 16
      %v453 = vrot.slane %v451, 4
      %v454 = vor.u32 %v453, %v449
      %v455 = vrot.slane %v454, 4
      %v457 = vshll.u32 %v198, 16
      %v459 = vrot.slane %v457, 5
      %v460 = vsel %vm244, %v455, %v459
      %v462 = vshrl.u32 %v199, 16
      %v464 = vrot.slane %v462, 4
      %v465 = vshll.u32 %v199, 16
      %v467 = vrot.slane %v465, 5
      %v468 = vor.u32 %v464, %v467
      %v469 = vrot.slane %v468, 4
      %v471 = vshll.u32 %v200, 16
      %v473 = vrot.slane %v471, 5
      %v474 = vsel %vm244, %v469, %v473
      %v475 = vshrl.u32 %v200, 16
      %v477 = vrot.slane %v475, 4
      %v478 = vor.u32 %v477, %v473
      %v479 = vrot.slane %v478, 4
      %v481 = vshll.u32 %v201, 16
      %v483 = vrot.slane %v481, 5
      %v484 = vsel %vm244, %v479, %v483
      %v486 = vshrl.u32 %v202, 16
      %v488 = vrot.slane %v486, 4
      %v489 = vshll.u32 %v202, 16
      %v491 = vrot.slane %v489, 5
      %v492 = vor.u32 %v488, %v491
      %v493 = vrot.slane %v492, 4
      %v495 = vshll.u32 %v203, 16
      %v497 = vrot.slane %v495, 5
      %v498 = vsel %vm244, %v493, %v497
      %v499 = vshrl.u32 %v203, 16
      %v501 = vrot.slane %v499, 4
      %v502 = vor.u32 %v501, %v497
      %v503 = vrot.slane %v502, 4
      %v505 = vshll.u32 %v204, 16
      %v507 = vrot.slane %v505, 5
      %v508 = vsel %vm244, %v503, %v507
      %v510 = vshrl.u32 %v205, 16
      %v512 = vrot.slane %v510, 4
      %v513 = vshll.u32 %v205, 16
      %v515 = vrot.slane %v513, 5
      %v516 = vor.u32 %v512, %v515
      %v517 = vrot.slane %v516, 4
      %v519 = vshll.u32 %v206, 16
      %v521 = vrot.slane %v519, 5
      %v522 = vsel %vm244, %v517, %v521
      %v523 = vshrl.u32 %v206, 16
      %v525 = vrot.slane %v523, 4
      %v526 = vor.u32 %v525, %v521
      %v527 = vrot.slane %v526, 4
      %v529 = vshll.u32 %v207, 16
      %v531 = vrot.slane %v529, 5
      %v532 = vsel %vm244, %v527, %v531
      %v534 = vshrl.u32 %v208, 16
      %v536 = vrot.slane %v534, 4
      %v537 = vshll.u32 %v208, 16
      %v539 = vrot.slane %v537, 5
      %v540 = vor.u32 %v536, %v539
      %v541 = vrot.slane %v540, 4
      %v543 = vshll.u32 %v209, 16
      %v545 = vrot.slane %v543, 5
      %v546 = vsel %vm244, %v541, %v545
      %v547 = vshrl.u32 %v209, 16
      %v549 = vrot.slane %v547, 4
      %v550 = vor.u32 %v549, %v545
      %v551 = vrot.slane %v550, 4
      %v553 = vshll.u32 %v210, 16
      %v555 = vrot.slane %v553, 5
      %v556 = vsel %vm244, %v551, %v555
      %v558 = vshrl.u32 %v211, 16
      %v560 = vrot.slane %v558, 4
      %v561 = vshll.u32 %v211, 16
      %v563 = vrot.slane %v561, 5
      %v564 = vor.u32 %v560, %v563
      %v565 = vrot.slane %v564, 4
      %v567 = vshll.u32 %v212, 16
      %v569 = vrot.slane %v567, 5
      %v570 = vsel %vm244, %v565, %v569
      %v571 = vshrl.u32 %v212, 16
      %v573 = vrot.slane %v571, 4
      %v574 = vor.u32 %v573, %v569
      %v575 = vrot.slane %v574, 4
      %v577 = vshll.u32 %v213, 16
      %v579 = vrot.slane %v577, 5
      %v580 = vsel %vm244, %v575, %v579
      %v582 = vshrl.u32 %v214, 16
      %v584 = vrot.slane %v582, 4
      %v585 = vshll.u32 %v214, 16
      %v587 = vrot.slane %v585, 5
      %v588 = vor.u32 %v584, %v587
      %v589 = vrot.slane %v588, 4
      %v591 = vshll.u32 %v215, 16
      %v593 = vrot.slane %v591, 5
      %v594 = vsel %vm244, %v589, %v593
      %v595 = vshrl.u32 %v215, 16
      %v597 = vrot.slane %v595, 4
      %v598 = vor.u32 %v597, %v593
      %v599 = vrot.slane %v598, 4
      %v601 = vshll.u32 %v216, 16
      %v603 = vrot.slane %v601, 5
      %v604 = vsel %vm244, %v599, %v603
      %v606 = vshrl.u32 %v217, 16
      %v608 = vrot.slane %v606, 4
      %v609 = vshll.u32 %v217, 16
      %v611 = vrot.slane %v609, 5
      %v612 = vor.u32 %v608, %v611
      %v613 = vrot.slane %v612, 4
      %v615 = vshll.u32 %v218, 16
      %v617 = vrot.slane %v615, 5
      %v618 = vsel %vm244, %v613, %v617
      %v619 = vshrl.u32 %v218, 16
      %v621 = vrot.slane %v619, 4
      %v622 = vor.u32 %v621, %v617
      %v623 = vrot.slane %v622, 4
      %v625 = vshll.u32 %v219, 16
      %v627 = vrot.slane %v625, 5
      %v628 = vsel %vm244, %v623, %v627
      %s629 = scalar_lea.vmem %s1, 64
      %v630 = vld [vmem:[%s629] sm:$0xf]
      %v631 = vld [vmem:[%s629 + $0x4] sm:$0xf]
      %v632 = vld [vmem:[%s629 + $0x8] sm:$0xf]
      %v633 = vld [vmem:[%s629 + $0xc] sm:$0xf]
      %v634 = vld [vmem:[%s629 + $0x10] sm:$0xf]
      %v635 = vld [vmem:[%s629 + $0x14] sm:$0xf]
      %v636 = vld [vmem:[%s629 + $0x18] sm:$0xf]
      %v637 = vld [vmem:[%s629 + $0x1c] sm:$0xf]
      %v638 = vld [vmem:[%s629 + $0x20] sm:$0xf]
      %v639 = vld [vmem:[%s629 + $0x24] sm:$0xf]
      %v640 = vld [vmem:[%s629 + $0x28] sm:$0xf]
      %v641 = vld [vmem:[%s629 + $0x2c] sm:$0xf]
      %v642 = vld [vmem:[%s629 + $0x30] sm:$0xf]
      %v643 = vld [vmem:[%s629 + $0x34] sm:$0xf]
      %v644 = vld [vmem:[%s629 + $0x38] sm:$0xf]
      %v645 = vld [vmem:[%s629 + $0x3c] sm:$0xf]
      %v646 = vunpack.c.l.b16 %v258
      %v647 = vunpack.c.l.b16 %v268
      %v648 = vunpack.c.l.b16 %v282
      %v649 = vunpack.c.l.b16 %v292
      %v650 = vunpack.c.l.b16 %v306
      %v651 = vunpack.c.l.b16 %v316
      %v652 = vunpack.c.l.b16 %v330
      %v653 = vunpack.c.l.b16 %v340
      %v654 = vunpack.c.l.b16 %v354
      %v655 = vunpack.c.l.b16 %v364
      %v656 = vunpack.c.l.b16 %v378
      %v657 = vunpack.c.l.b16 %v388
      %v658 = vunpack.c.l.b16 %v402
      %v659 = vunpack.c.l.b16 %v412
      %v660 = vunpack.c.l.b16 %v426
      %v661 = vunpack.c.l.b16 %v436
      %v662 = vunpack.c.l.b16 %v450
      %v663 = vunpack.c.l.b16 %v460
      %v664 = vunpack.c.l.b16 %v474
      %v665 = vunpack.c.l.b16 %v484
      %v666 = vunpack.c.l.b16 %v498
      %v667 = vunpack.c.l.b16 %v508
      %v668 = vunpack.c.l.b16 %v522
      %v669 = vunpack.c.l.b16 %v532
      %v670 = vunpack.c.l.b16 %v546
      %v671 = vunpack.c.l.b16 %v556
      %v672 = vunpack.c.l.b16 %v570
      %v673 = vunpack.c.l.b16 %v580
      %v674 = vunpack.c.l.b16 %v594
      %v675 = vunpack.c.l.b16 %v604
      %v676 = vunpack.c.l.b16 %v618
      %v677 = vunpack.c.l.b16 %v628
      %v678 = vpack.c.b16 %v647, %v646
      %v679 = vpack.c.b16 %v649, %v648
      %v680 = vpack.c.b16 %v651, %v650
      %v681 = vpack.c.b16 %v653, %v652
      %v682 = vpack.c.b16 %v655, %v654
      %v683 = vpack.c.b16 %v657, %v656
      %v684 = vpack.c.b16 %v659, %v658
      %v685 = vpack.c.b16 %v661, %v660
      %v686 = vpack.c.b16 %v663, %v662
      %v687 = vpack.c.b16 %v665, %v664
      %v688 = vpack.c.b16 %v667, %v666
      %v689 = vpack.c.b16 %v669, %v668
      %v690 = vpack.c.b16 %v671, %v670
      %v691 = vpack.c.b16 %v673, %v672
      %v692 = vpack.c.b16 %v675, %v674
      %v693 = vpack.c.b16 %v677, %v676
      %v726 = vunpack.c.l.b16 %v630
      %v727 = vunpack.c.l.b16 %v631
      %v728 = vunpack.c.l.b16 %v632
      %v729 = vunpack.c.l.b16 %v633
      %v730 = vunpack.c.l.b16 %v634
      %v731 = vunpack.c.l.b16 %v635
      %v732 = vunpack.c.l.b16 %v636
      %v733 = vunpack.c.l.b16 %v637
      %v734 = vunpack.c.l.b16 %v638
      %v735 = vunpack.c.l.b16 %v639
      %v736 = vunpack.c.l.b16 %v640
      %v737 = vunpack.c.l.b16 %v641
      %v738 = vunpack.c.l.b16 %v642
      %v739 = vunpack.c.l.b16 %v643
      %v740 = vunpack.c.l.b16 %v644
      %v741 = vunpack.c.l.b16 %v645
      %v742 = vpack.c.b16 %v727, %v726
      %v743 = vpack.c.b16 %v729, %v728
      %v744 = vpack.c.b16 %v731, %v730
      %v745 = vpack.c.b16 %v733, %v732
      %v746 = vpack.c.b16 %v735, %v734
      %v747 = vpack.c.b16 %v737, %v736
      %v748 = vpack.c.b16 %v739, %v738
      %v749 = vpack.c.b16 %v741, %v740
      %758 = vmatprep.subr.bf16.mxu0 0
      %759 = vmatpush1.bf16.msra.mxu0 %v742
      %760 = vmatprep.subr.bf16.mxu0 0
      %761 = vmatpush1.bf16.msra.mxu0 %v743
      %762 = vmatprep.subr.bf16.mxu0 0
      %763 = vmatpush1.bf16.msra.mxu0 %v744
      %764 = vmatprep.subr.bf16.mxu0 0
      %765 = vmatpush1.bf16.msra.mxu0 %v745
      %766 = vmatprep.subr.bf16.mxu0 0
      %767 = vmatpush1.bf16.msra.mxu0 %v746
      %768 = vmatprep.subr.bf16.mxu0 0
      %769 = vmatpush1.bf16.msra.mxu0 %v747
      %770 = vmatprep.subr.bf16.mxu0 0
      %771 = vmatpush1.bf16.msra.mxu0 %v748
      %772 = vmatprep.subr.bf16.mxu0 0
      %773 = vmatpush1.bf16.msra.mxu0 %v749
      %774 = vmatprep.subr.bf16.mxu0 0
      %775 = vmatpush1.bf16.msra.mxu0 0
      %776 = vmatprep.subr.bf16.mxu0 0
      %777 = vmatpush1.bf16.msra.mxu0 0
      %778 = vmatprep.subr.bf16.mxu0 0
      %779 = vmatpush1.bf16.msra.mxu0 0
      %780 = vmatprep.subr.bf16.mxu0 0
      %781 = vmatpush1.bf16.msra.mxu0 0
      %782 = vmatprep.subr.bf16.mxu0 0
      %783 = vmatpush1.bf16.msra.mxu0 0
      %784 = vmatprep.subr.bf16.mxu0 0
      %785 = vmatpush1.bf16.msra.mxu0 0
      %786 = vmatprep.subr.bf16.mxu0 0
      %787 = vmatpush1.bf16.msra.mxu0 0
      %788 = vmatprep.subr.bf16.mxu0 0
      %789 = vmatpush1.bf16.msra.mxu0 0
      %790 = vmatprep.mubr.bf16.mxu0 0
      %791 = vmatmul.mubr.bf16.gmra.mrb[0].mxu0 %v678
      %v792 = vpop.f32.mrb[0].mxu0
      %v793 = vadd.f32 0.0, %v792
      %v794 = vpop.f32.mrb[0].mxu0
      %v795 = vpop.f32.mrb[0].mxu0
      %v796 = vadd.f32 0.0, %v795
      %v797 = vpop.f32.mrb[0].mxu0
      %798 = vmatprep.mubr.bf16.mxu0 0
      %799 = vmatmul.mubr.bf16.gmra.mrb[0].mxu0 %v679
      %v800 = vpop.f32.mrb[0].mxu0
      %v801 = vadd.f32 0.0, %v800
      %v802 = vpop.f32.mrb[0].mxu0
      %v803 = vpop.f32.mrb[0].mxu0
      %v804 = vadd.f32 0.0, %v803
      %v805 = vpop.f32.mrb[0].mxu0
      %806 = vmatprep.mubr.bf16.mxu0 0
      %807 = vmatmul.mubr.bf16.gmra.mrb[0].mxu0 %v680
      %v808 = vpop.f32.mrb[0].mxu0
      %v809 = vadd.f32 0.0, %v808
      %v810 = vpop.f32.mrb[0].mxu0
      %v811 = vpop.f32.mrb[0].mxu0
      %v812 = vadd.f32 0.0, %v811
      %v813 = vpop.f32.mrb[0].mxu0
      %814 = vmatprep.mubr.bf16.mxu0 0
      %815 = vmatmul.mubr.bf16.gmra.mrb[0].mxu0 %v681
      %v816 = vpop.f32.mrb[0].mxu0
      %v817 = vadd.f32 0.0, %v816
      %v818 = vpop.f32.mrb[0].mxu0
      %v819 = vpop.f32.mrb[0].mxu0
      %v820 = vadd.f32 0.0, %v819
      %v821 = vpop.f32.mrb[0].mxu0
      %822 = vmatprep.mubr.bf16.mxu0 0
      %823 = vmatmul.mubr.bf16.gmra.mrb[0].mxu0 %v682
      %v824 = vpop.f32.mrb[0].mxu0
      %v825 = vadd.f32 0.0, %v824
      %v826 = vpop.f32.mrb[0].mxu0
      %v827 = vpop.f32.mrb[0].mxu0
      %v828 = vadd.f32 0.0, %v827
      %v829 = vpop.f32.mrb[0].mxu0
      %830 = vmatprep.mubr.bf16.mxu0 0
      %831 = vmatmul.mubr.bf16.gmra.mrb[0].mxu0 %v683
      %v832 = vpop.f32.mrb[0].mxu0
      %v833 = vadd.f32 0.0, %v832
      %v834 = vpop.f32.mrb[0].mxu0
      %v835 = vpop.f32.mrb[0].mxu0
      %v836 = vadd.f32 0.0, %v835
      %v837 = vpop.f32.mrb[0].mxu0
      %838 = vmatprep.mubr.bf16.mxu0 0
      %839 = vmatmul.mubr.bf16.gmra.mrb[0].mxu0 %v684
      %v840 = vpop.f32.mrb[0].mxu0
      %v841 = vadd.f32 0.0, %v840
      %v842 = vpop.f32.mrb[0].mxu0
      %v843 = vpop.f32.mrb[0].mxu0
      %v844 = vadd.f32 0.0, %v843
      %v845 = vpop.f32.mrb[0].mxu0
      %846 = vmatprep.mubr.bf16.mxu0 0
      %847 = vmatmul.mubr.bf16.gmra.mrb[0].mxu0 %v685
      %v848 = vpop.f32.mrb[0].mxu0
      %v849 = vadd.f32 0.0, %v848
      %v850 = vpop.f32.mrb[0].mxu0
      %v851 = vpop.f32.mrb[0].mxu0
      %v852 = vadd.f32 0.0, %v851
      %v853 = vpop.f32.mrb[0].mxu0
      %854 = vmatprep.mubr.bf16.mxu0 0
      %855 = vmatmul.mubr.bf16.gmra.mrb[0].mxu0 %v686
      %v856 = vpop.f32.mrb[0].mxu0
      %v857 = vadd.f32 0.0, %v856
      %v858 = vpop.f32.mrb[0].mxu0
      %v859 = vpop.f32.mrb[0].mxu0
      %v860 = vadd.f32 0.0, %v859
      %v861 = vpop.f32.mrb[0].mxu0
      %862 = vmatprep.mubr.bf16.mxu0 0
      %863 = vmatmul.mubr.bf16.gmra.mrb[0].mxu0 %v687
      %v864 = vpop.f32.mrb[0].mxu0
      %v865 = vadd.f32 0.0, %v864
      %v866 = vpop.f32.mrb[0].mxu0
      %v867 = vpop.f32.mrb[0].mxu0
      %v868 = vadd.f32 0.0, %v867
      %v869 = vpop.f32.mrb[0].mxu0
      %870 = vmatprep.mubr.bf16.mxu0 0
      %871 = vmatmul.mubr.bf16.gmra.mrb[0].mxu0 %v688
      %v872 = vpop.f32.mrb[0].mxu0
      %v873 = vadd.f32 0.0, %v872
      %v874 = vpop.f32.mrb[0].mxu0
      %v875 = vpop.f32.mrb[0].mxu0
      %v876 = vadd.f32 0.0, %v875
      %v877 = vpop.f32.mrb[0].mxu0
      %878 = vmatprep.mubr.bf16.mxu0 0
      %879 = vmatmul.mubr.bf16.gmra.mrb[0].mxu0 %v689
      %v880 = vpop.f32.mrb[0].mxu0
      %v881 = vadd.f32 0.0, %v880
      %v882 = vpop.f32.mrb[0].mxu0
      %v883 = vpop.f32.mrb[0].mxu0
      %v884 = vadd.f32 0.0, %v883
      %v885 = vpop.f32.mrb[0].mxu0
      %886 = vmatprep.mubr.bf16.mxu0 0
      %887 = vmatmul.mubr.bf16.gmra.mrb[0].mxu0 %v690
      %v888 = vpop.f32.mrb[0].mxu0
      %v889 = vadd.f32 0.0, %v888
      %v890 = vpop.f32.mrb[0].mxu0
      %v891 = vpop.f32.mrb[0].mxu0
      %v892 = vadd.f32 0.0, %v891
      %v893 = vpop.f32.mrb[0].mxu0
      %894 = vmatprep.mubr.bf16.mxu0 0
      %895 = vmatmul.mubr.bf16.gmra.mrb[0].mxu0 %v691
      %v896 = vpop.f32.mrb[0].mxu0
      %v897 = vadd.f32 0.0, %v896
      %v898 = vpop.f32.mrb[0].mxu0
      %v899 = vpop.f32.mrb[0].mxu0
      %v900 = vadd.f32 0.0, %v899
      %v901 = vpop.f32.mrb[0].mxu0
      %902 = vmatprep.mubr.bf16.mxu0 0
      %903 = vmatmul.mubr.bf16.gmra.mrb[0].mxu0 %v692
      %v904 = vpop.f32.mrb[0].mxu0
      %v905 = vadd.f32 0.0, %v904
      %v906 = vpop.f32.mrb[0].mxu0
      %v907 = vpop.f32.mrb[0].mxu0
      %v908 = vadd.f32 0.0, %v907
      %v909 = vpop.f32.mrb[0].mxu0
      %910 = vmatprep.mubr.bf16.mxu0 0
      %911 = vmatmul.mubr.bf16.gmra.mrb[0].mxu0 %v693
      %v912 = vpop.f32.mrb[0].mxu0
      %v913 = vadd.f32 0.0, %v912
      %v914 = vpop.f32.mrb[0].mxu0
      %v915 = vpop.f32.mrb[0].mxu0
      %v916 = vadd.f32 0.0, %v915
      %v917 = vpop.f32.mrb[0].mxu0
      %918 = vdwg.mxu0
      %v951 = vunpack.c.l.b16 %v172
      %v952 = vunpack.c.l.b16 %v173
      %v953 = vunpack.c.l.b16 %v175
      %v954 = vunpack.c.l.b16 %v176
      %v955 = vunpack.c.l.b16 %v178
      %v956 = vunpack.c.l.b16 %v179
      %v957 = vunpack.c.l.b16 %v181
      %v958 = vunpack.c.l.b16 %v182
      %v959 = vunpack.c.l.b16 %v184
      %v960 = vunpack.c.l.b16 %v185
      %v961 = vunpack.c.l.b16 %v187
      %v962 = vunpack.c.l.b16 %v188
      %v963 = vunpack.c.l.b16 %v190
      %v964 = vunpack.c.l.b16 %v191
      %v965 = vunpack.c.l.b16 %v193
      %v966 = vunpack.c.l.b16 %v194
      %v967 = vunpack.c.l.b16 %v196
      %v968 = vunpack.c.l.b16 %v197
      %v969 = vunpack.c.l.b16 %v199
      %v970 = vunpack.c.l.b16 %v200
      %v971 = vunpack.c.l.b16 %v202
      %v972 = vunpack.c.l.b16 %v203
      %v973 = vunpack.c.l.b16 %v205
      %v974 = vunpack.c.l.b16 %v206
      %v975 = vunpack.c.l.b16 %v208
      %v976 = vunpack.c.l.b16 %v209
      %v977 = vunpack.c.l.b16 %v211
      %v978 = vunpack.c.l.b16 %v212
      %v979 = vunpack.c.l.b16 %v214
      %v980 = vunpack.c.l.b16 %v215
      %v981 = vunpack.c.l.b16 %v217
      %v982 = vunpack.c.l.b16 %v218
      %v983 = vpack.c.b16 %v952, %v951
      %v984 = vpack.c.b16 %v954, %v953
      %v985 = vpack.c.b16 %v956, %v955
      %v986 = vpack.c.b16 %v958, %v957
      %v987 = vpack.c.b16 %v960, %v959
      %v988 = vpack.c.b16 %v962, %v961
      %v989 = vpack.c.b16 %v964, %v963
      %v990 = vpack.c.b16 %v966, %v965
      %v991 = vpack.c.b16 %v968, %v967
      %v992 = vpack.c.b16 %v970, %v969
      %v993 = vpack.c.b16 %v972, %v971
      %v994 = vpack.c.b16 %v974, %v973
      %v995 = vpack.c.b16 %v976, %v975
      %v996 = vpack.c.b16 %v978, %v977
      %v997 = vpack.c.b16 %v980, %v979
      %v998 = vpack.c.b16 %v982, %v981
      %v1031 = vunpack.c.l.b16 %v226
      %v1032 = vunpack.c.l.b16 %v227
      %v1033 = vunpack.c.l.b16 %v228
      %v1034 = vunpack.c.l.b16 %v229
      %v1035 = vunpack.c.l.b16 %v230
      %v1036 = vunpack.c.l.b16 %v231
      %v1037 = vunpack.c.l.b16 %v232
      %v1038 = vunpack.c.l.b16 %v233
      %v1039 = vunpack.c.l.b16 %v234
      %v1040 = vunpack.c.l.b16 %v235
      %v1041 = vunpack.c.l.b16 %v236
      %v1042 = vunpack.c.l.b16 %v237
      %v1043 = vunpack.c.l.b16 %v238
      %v1044 = vunpack.c.l.b16 %v239
      %v1045 = vunpack.c.l.b16 %v240
      %v1046 = vunpack.c.l.b16 %v241
      %v1047 = vpack.c.b16 %v1032, %v1031
      %v1048 = vpack.c.b16 %v1034, %v1033
      %v1049 = vpack.c.b16 %v1036, %v1035
      %v1050 = vpack.c.b16 %v1038, %v1037
      %v1051 = vpack.c.b16 %v1040, %v1039
      %v1052 = vpack.c.b16 %v1042, %v1041
      %v1053 = vpack.c.b16 %v1044, %v1043
      %v1054 = vpack.c.b16 %v1046, %v1045
      %1063 = vmatprep.subr.bf16.mxu0 0
      %1064 = vmatpush1.bf16.msra.mxu0 %v1047
      %1065 = vmatprep.subr.bf16.mxu0 0
      %1066 = vmatpush1.bf16.msra.mxu0 %v1048
      %1067 = vmatprep.subr.bf16.mxu0 0
      %1068 = vmatpush1.bf16.msra.mxu0 %v1049
      %1069 = vmatprep.subr.bf16.mxu0 0
      %1070 = vmatpush1.bf16.msra.mxu0 %v1050
      %1071 = vmatprep.subr.bf16.mxu0 0
      %1072 = vmatpush1.bf16.msra.mxu0 %v1051
      %1073 = vmatprep.subr.bf16.mxu0 0
      %1074 = vmatpush1.bf16.msra.mxu0 %v1052
      %1075 = vmatprep.subr.bf16.mxu0 0
      %1076 = vmatpush1.bf16.msra.mxu0 %v1053
      %1077 = vmatprep.subr.bf16.mxu0 0
      %1078 = vmatpush1.bf16.msra.mxu0 %v1054
      %1079 = vmatprep.subr.bf16.mxu0 0
      %1080 = vmatpush1.bf16.msra.mxu0 0
      %1081 = vmatprep.subr.bf16.mxu0 0
      %1082 = vmatpush1.bf16.msra.mxu0 0
      %1083 = vmatprep.subr.bf16.mxu0 0
      %1084 = vmatpush1.bf16.msra.mxu0 0
      %1085 = vmatprep.subr.bf16.mxu0 0
      %1086 = vmatpush1.bf16.msra.mxu0 0
      %1087 = vmatprep.subr.bf16.mxu0 0
      %1088 = vmatpush1.bf16.msra.mxu0 0
      %1089 = vmatprep.subr.bf16.mxu0 0
      %1090 = vmatpush1.bf16.msra.mxu0 0
      %1091 = vmatprep.subr.bf16.mxu0 0
      %1092 = vmatpush1.bf16.msra.mxu0 0
      %1093 = vmatprep.subr.bf16.mxu0 0
      %1094 = vmatpush1.bf16.msra.mxu0 0
      %1095 = vmatprep.mubr.bf16.mxu0 0
      %1096 = vmatmul.mubr.bf16.gmra.mrb[0].mxu0 %v983
      %v1097 = vpop.f32.mrb[0].mxu0
      %v1098 = vadd.f32 %v793, %v1097
      %v1099 = vpop.f32.mrb[0].mxu0
      %v1100 = vpop.f32.mrb[0].mxu0
      %v1101 = vadd.f32 %v796, %v1100
      %v1102 = vpop.f32.mrb[0].mxu0
      %1103 = vmatprep.mubr.bf16.mxu0 0
      %1104 = vmatmul.mubr.bf16.gmra.mrb[0].mxu0 %v984
      %v1105 = vpop.f32.mrb[0].mxu0
      %v1106 = vadd.f32 %v801, %v1105
      %v1107 = vpop.f32.mrb[0].mxu0
      %v1108 = vpop.f32.mrb[0].mxu0
      %v1109 = vadd.f32 %v804, %v1108
      %v1110 = vpop.f32.mrb[0].mxu0
      %1111 = vmatprep.mubr.bf16.mxu0 0
      %1112 = vmatmul.mubr.bf16.gmra.mrb[0].mxu0 %v985
      %v1113 = vpop.f32.mrb[0].mxu0
      %v1114 = vadd.f32 %v809, %v1113
      %v1115 = vpop.f32.mrb[0].mxu0
      %v1116 = vpop.f32.mrb[0].mxu0
      %v1117 = vadd.f32 %v812, %v1116
      %v1118 = vpop.f32.mrb[0].mxu0
      %1119 = vmatprep.mubr.bf16.mxu0 0
      %1120 = vmatmul.mubr.bf16.gmra.mrb[0].mxu0 %v986
      %v1121 = vpop.f32.mrb[0].mxu0
      %v1122 = vadd.f32 %v817, %v1121
      %v1123 = vpop.f32.mrb[0].mxu0
      %v1124 = vpop.f32.mrb[0].mxu0
      %v1125 = vadd.f32 %v820, %v1124
      %v1126 = vpop.f32.mrb[0].mxu0
      %1127 = vmatprep.mubr.bf16.mxu0 0
      %1128 = vmatmul.mubr.bf16.gmra.mrb[0].mxu0 %v987
      %v1129 = vpop.f32.mrb[0].mxu0
      %v1130 = vadd.f32 %v825, %v1129
      %v1131 = vpop.f32.mrb[0].mxu0
      %v1132 = vpop.f32.mrb[0].mxu0
      %v1133 = vadd.f32 %v828, %v1132
      %v1134 = vpop.f32.mrb[0].mxu0
      %1135 = vmatprep.mubr.bf16.mxu0 0
      %1136 = vmatmul.mubr.bf16.gmra.mrb[0].mxu0 %v988
      %v1137 = vpop.f32.mrb[0].mxu0
      %v1138 = vadd.f32 %v833, %v1137
      %v1139 = vpop.f32.mrb[0].mxu0
      %v1140 = vpop.f32.mrb[0].mxu0
      %v1141 = vadd.f32 %v836, %v1140
      %v1142 = vpop.f32.mrb[0].mxu0
      %1143 = vmatprep.mubr.bf16.mxu0 0
      %1144 = vmatmul.mubr.bf16.gmra.mrb[0].mxu0 %v989
      %v1145 = vpop.f32.mrb[0].mxu0
      %v1146 = vadd.f32 %v841, %v1145
      %v1147 = vpop.f32.mrb[0].mxu0
      %v1148 = vpop.f32.mrb[0].mxu0
      %v1149 = vadd.f32 %v844, %v1148
      %v1150 = vpop.f32.mrb[0].mxu0
      %1151 = vmatprep.mubr.bf16.mxu0 0
      %1152 = vmatmul.mubr.bf16.gmra.mrb[0].mxu0 %v990
      %v1153 = vpop.f32.mrb[0].mxu0
      %v1154 = vadd.f32 %v849, %v1153
      %v1155 = vpop.f32.mrb[0].mxu0
      %v1156 = vpop.f32.mrb[0].mxu0
      %v1157 = vadd.f32 %v852, %v1156
      %v1158 = vpop.f32.mrb[0].mxu0
      %1159 = vmatprep.mubr.bf16.mxu0 0
      %1160 = vmatmul.mubr.bf16.gmra.mrb[0].mxu0 %v991
      %v1161 = vpop.f32.mrb[0].mxu0
      %v1162 = vadd.f32 %v857, %v1161
      %v1163 = vpop.f32.mrb[0].mxu0
      %v1164 = vpop.f32.mrb[0].mxu0
      %v1165 = vadd.f32 %v860, %v1164
      %v1166 = vpop.f32.mrb[0].mxu0
      %1167 = vmatprep.mubr.bf16.mxu0 0
      %1168 = vmatmul.mubr.bf16.gmra.mrb[0].mxu0 %v992
      %v1169 = vpop.f32.mrb[0].mxu0
      %v1170 = vadd.f32 %v865, %v1169
      %v1171 = vpop.f32.mrb[0].mxu0
      %v1172 = vpop.f32.mrb[0].mxu0
      %v1173 = vadd.f32 %v868, %v1172
      %v1174 = vpop.f32.mrb[0].mxu0
      %1175 = vmatprep.mubr.bf16.mxu0 0
      %1176 = vmatmul.mubr.bf16.gmra.mrb[0].mxu0 %v993
      %v1177 = vpop.f32.mrb[0].mxu0
      %v1178 = vadd.f32 %v873, %v1177
      %v1179 = vpop.f32.mrb[0].mxu0
      %v1180 = vpop.f32.mrb[0].mxu0
      %v1181 = vadd.f32 %v876, %v1180
      %v1182 = vpop.f32.mrb[0].mxu0
      %1183 = vmatprep.mubr.bf16.mxu0 0
      %1184 = vmatmul.mubr.bf16.gmra.mrb[0].mxu0 %v994
      %v1185 = vpop.f32.mrb[0].mxu0
      %v1186 = vadd.f32 %v881, %v1185
      %v1187 = vpop.f32.mrb[0].mxu0
      %v1188 = vpop.f32.mrb[0].mxu0
      %v1189 = vadd.f32 %v884, %v1188
      %v1190 = vpop.f32.mrb[0].mxu0
      %1191 = vmatprep.mubr.bf16.mxu0 0
      %1192 = vmatmul.mubr.bf16.gmra.mrb[0].mxu0 %v995
      %v1193 = vpop.f32.mrb[0].mxu0
      %v1194 = vadd.f32 %v889, %v1193
      %v1195 = vpop.f32.mrb[0].mxu0
      %v1196 = vpop.f32.mrb[0].mxu0
      %v1197 = vadd.f32 %v892, %v1196
      %v1198 = vpop.f32.mrb[0].mxu0
      %1199 = vmatprep.mubr.bf16.mxu0 0
      %1200 = vmatmul.mubr.bf16.gmra.mrb[0].mxu0 %v996
      %v1201 = vpop.f32.mrb[0].mxu0
      %v1202 = vadd.f32 %v897, %v1201
      %v1203 = vpop.f32.mrb[0].mxu0
      %v1204 = vpop.f32.mrb[0].mxu0
      %v1205 = vadd.f32 %v900, %v1204
      %v1206 = vpop.f32.mrb[0].mxu0
      %1207 = vmatprep.mubr.bf16.mxu0 0
      %1208 = vmatmul.mubr.bf16.gmra.mrb[0].mxu0 %v997
      %v1209 = vpop.f32.mrb[0].mxu0
      %v1210 = vadd.f32 %v905, %v1209
      %v1211 = vpop.f32.mrb[0].mxu0
      %v1212 = vpop.f32.mrb[0].mxu0
      %v1213 = vadd.f32 %v908, %v1212
      %v1214 = vpop.f32.mrb[0].mxu0
      %1215 = vmatprep.mubr.bf16.mxu0 0
      %1216 = vmatmul.mubr.bf16.gmra.mrb[0].mxu0 %v998
      %v1217 = vpop.f32.mrb[0].mxu0
      %v1218 = vadd.f32 %v913, %v1217
      %v1219 = vpop.f32.mrb[0].mxu0
      %v1220 = vpop.f32.mrb[0].mxu0
      %v1221 = vadd.f32 %v916, %v1220
      %v1222 = vpop.f32.mrb[0].mxu0
      %1223 = vdwg.mxu0
      %vm1240 = vcmask 1042432
      %vm1241 = vcmask 1046532
      %vm1242 = vmor %vm1240, %vm1241
      %v1243 = vrot.slane %v172, 5
      %v1244 = vrot.slane %v1243, 4
      %v1245 = vrot.slane %v173, 5
      %v1246 = vsel %vm1242, %v1244, %v1245
      %v1247 = vrot.slane %v1245, 4
      %v1248 = vrot.slane %v174, 5
      %v1249 = vsel %vm1242, %v1247, %v1248
      %v1250 = vrot.slane %v175, 5
      %v1251 = vrot.slane %v1250, 4
      %v1252 = vrot.slane %v176, 5
      %v1253 = vsel %vm1242, %v1251, %v1252
      %v1254 = vrot.slane %v1252, 4
      %v1255 = vrot.slane %v177, 5
      %v1256 = vsel %vm1242, %v1254, %v1255
      %v1257 = vrot.slane %v178, 5
      %v1258 = vrot.slane %v1257, 4
      %v1259 = vrot.slane %v179, 5
      %v1260 = vsel %vm1242, %v1258, %v1259
      %v1261 = vrot.slane %v1259, 4
      %v1262 = vrot.slane %v180, 5
      %v1263 = vsel %vm1242, %v1261, %v1262
      %v1264 = vrot.slane %v181, 5
      %v1265 = vrot.slane %v1264, 4
      %v1266 = vrot.slane %v182, 5
      %v1267 = vsel %vm1242, %v1265, %v1266
      %v1268 = vrot.slane %v1266, 4
      %v1269 = vrot.slane %v183, 5
      %v1270 = vsel %vm1242, %v1268, %v1269
      %v1271 = vrot.slane %v184, 5
      %v1272 = vrot.slane %v1271, 4
      %v1273 = vrot.slane %v185, 5
      %v1274 = vsel %vm1242, %v1272, %v1273
      %v1275 = vrot.slane %v1273, 4
      %v1276 = vrot.slane %v186, 5
      %v1277 = vsel %vm1242, %v1275, %v1276
      %v1278 = vrot.slane %v187, 5
      %v1279 = vrot.slane %v1278, 4
      %v1280 = vrot.slane %v188, 5
      %v1281 = vsel %vm1242, %v1279, %v1280
      %v1282 = vrot.slane %v1280, 4
      %v1283 = vrot.slane %v189, 5
      %v1284 = vsel %vm1242, %v1282, %v1283
      %v1285 = vrot.slane %v190, 5
      %v1286 = vrot.slane %v1285, 4
      %v1287 = vrot.slane %v191, 5
      %v1288 = vsel %vm1242, %v1286, %v1287
      %v1289 = vrot.slane %v1287, 4
      %v1290 = vrot.slane %v192, 5
      %v1291 = vsel %vm1242, %v1289, %v1290
      %v1292 = vrot.slane %v193, 5
      %v1293 = vrot.slane %v1292, 4
      %v1294 = vrot.slane %v194, 5
      %v1295 = vsel %vm1242, %v1293, %v1294
      %v1296 = vrot.slane %v1294, 4
      %v1297 = vrot.slane %v195, 5
      %v1298 = vsel %vm1242, %v1296, %v1297
      %v1299 = vrot.slane %v196, 5
      %v1300 = vrot.slane %v1299, 4
      %v1301 = vrot.slane %v197, 5
      %v1302 = vsel %vm1242, %v1300, %v1301
      %v1303 = vrot.slane %v1301, 4
      %v1304 = vrot.slane %v198, 5
      %v1305 = vsel %vm1242, %v1303, %v1304
      %v1306 = vrot.slane %v199, 5
      %v1307 = vrot.slane %v1306, 4
      %v1308 = vrot.slane %v200, 5
      %v1309 = vsel %vm1242, %v1307, %v1308
      %v1310 = vrot.slane %v1308, 4
      %v1311 = vrot.slane %v201, 5
      %v1312 = vsel %vm1242, %v1310, %v1311
      %v1313 = vrot.slane %v202, 5
      %v1314 = vrot.slane %v1313, 4
      %v1315 = vrot.slane %v203, 5
      %v1316 = vsel %vm1242, %v1314, %v1315
      %v1317 = vrot.slane %v1315, 4
      %v1318 = vrot.slane %v204, 5
      %v1319 = vsel %vm1242, %v1317, %v1318
      %v1320 = vrot.slane %v205, 5
      %v1321 = vrot.slane %v1320, 4
      %v1322 = vrot.slane %v206, 5
      %v1323 = vsel %vm1242, %v1321, %v1322
      %v1324 = vrot.slane %v1322, 4
      %v1325 = vrot.slane %v207, 5
      %v1326 = vsel %vm1242, %v1324, %v1325
      %v1327 = vrot.slane %v208, 5
      %v1328 = vrot.slane %v1327, 4
      %v1329 = vrot.slane %v209, 5
      %v1330 = vsel %vm1242, %v1328, %v1329
      %v1331 = vrot.slane %v1329, 4
      %v1332 = vrot.slane %v210, 5
      %v1333 = vsel %vm1242, %v1331, %v1332
      %v1334 = vrot.slane %v211, 5
      %v1335 = vrot.slane %v1334, 4
      %v1336 = vrot.slane %v212, 5
      %v1337 = vsel %vm1242, %v1335, %v1336
      %v1338 = vrot.slane %v1336, 4
      %v1339 = vrot.slane %v213, 5
      %v1340 = vsel %vm1242, %v1338, %v1339
      %v1341 = vrot.slane %v214, 5
      %v1342 = vrot.slane %v1341, 4
      %v1343 = vrot.slane %v215, 5
      %v1344 = vsel %vm1242, %v1342, %v1343
      %v1345 = vrot.slane %v1343, 4
      %v1346 = vrot.slane %v216, 5
      %v1347 = vsel %vm1242, %v1345, %v1346
      %v1348 = vrot.slane %v217, 5
      %v1349 = vrot.slane %v1348, 4
      %v1350 = vrot.slane %v218, 5
      %v1351 = vsel %vm1242, %v1349, %v1350
      %v1352 = vrot.slane %v1350, 4
      %v1353 = vrot.slane %v219, 5
      %v1354 = vsel %vm1242, %v1352, %v1353
      %s1355 = scalar_lea.vmem %s1, 128
      %v1356 = vld [vmem:[%s1355] sm:$0xf]
      %v1357 = vld [vmem:[%s1355 + $0x4] sm:$0xf]
      %v1358 = vld [vmem:[%s1355 + $0x8] sm:$0xf]
      %v1359 = vld [vmem:[%s1355 + $0xc] sm:$0xf]
      %v1360 = vld [vmem:[%s1355 + $0x10] sm:$0xf]
      %v1361 = vld [vmem:[%s1355 + $0x14] sm:$0xf]
      %v1362 = vld [vmem:[%s1355 + $0x18] sm:$0xf]
      %v1363 = vld [vmem:[%s1355 + $0x1c] sm:$0xf]
      %v1364 = vld [vmem:[%s1355 + $0x20] sm:$0xf]
      %v1365 = vld [vmem:[%s1355 + $0x24] sm:$0xf]
      %v1366 = vld [vmem:[%s1355 + $0x28] sm:$0xf]
      %v1367 = vld [vmem:[%s1355 + $0x2c] sm:$0xf]
      %v1368 = vld [vmem:[%s1355 + $0x30] sm:$0xf]
      %v1369 = vld [vmem:[%s1355 + $0x34] sm:$0xf]
      %v1370 = vld [vmem:[%s1355 + $0x38] sm:$0xf]
      %v1371 = vld [vmem:[%s1355 + $0x3c] sm:$0xf]
      %v1372 = vunpack.c.l.b16 %v1246
      %v1373 = vunpack.c.l.b16 %v1249
      %v1374 = vunpack.c.l.b16 %v1253
      %v1375 = vunpack.c.l.b16 %v1256
      %v1376 = vunpack.c.l.b16 %v1260
      %v1377 = vunpack.c.l.b16 %v1263
      %v1378 = vunpack.c.l.b16 %v1267
      %v1379 = vunpack.c.l.b16 %v1270
      %v1380 = vunpack.c.l.b16 %v1274
      %v1381 = vunpack.c.l.b16 %v1277
      %v1382 = vunpack.c.l.b16 %v1281
      %v1383 = vunpack.c.l.b16 %v1284
      %v1384 = vunpack.c.l.b16 %v1288
      %v1385 = vunpack.c.l.b16 %v1291
      %v1386 = vunpack.c.l.b16 %v1295
      %v1387 = vunpack.c.l.b16 %v1298
      %v1388 = vunpack.c.l.b16 %v1302
      %v1389 = vunpack.c.l.b16 %v1305
      %v1390 = vunpack.c.l.b16 %v1309
      %v1391 = vunpack.c.l.b16 %v1312
      %v1392 = vunpack.c.l.b16 %v1316
      %v1393 = vunpack.c.l.b16 %v1319
      %v1394 = vunpack.c.l.b16 %v1323
      %v1395 = vunpack.c.l.b16 %v1326
      %v1396 = vunpack.c.l.b16 %v1330
      %v1397 = vunpack.c.l.b16 %v1333
      %v1398 = vunpack.c.l.b16 %v1337
      %v1399 = vunpack.c.l.b16 %v1340
      %v1400 = vunpack.c.l.b16 %v1344
      %v1401 = vunpack.c.l.b16 %v1347
      %v1402 = vunpack.c.l.b16 %v1351
      %v1403 = vunpack.c.l.b16 %v1354
      %v1404 = vpack.c.b16 %v1373, %v1372
      %v1405 = vpack.c.b16 %v1375, %v1374
      %v1406 = vpack.c.b16 %v1377, %v1376
      %v1407 = vpack.c.b16 %v1379, %v1378
      %v1408 = vpack.c.b16 %v1381, %v1380
      %v1409 = vpack.c.b16 %v1383, %v1382
      %v1410 = vpack.c.b16 %v1385, %v1384
      %v1411 = vpack.c.b16 %v1387, %v1386
      %v1412 = vpack.c.b16 %v1389, %v1388
      %v1413 = vpack.c.b16 %v1391, %v1390
      %v1414 = vpack.c.b16 %v1393, %v1392
      %v1415 = vpack.c.b16 %v1395, %v1394
      %v1416 = vpack.c.b16 %v1397, %v1396
      %v1417 = vpack.c.b16 %v1399, %v1398
      %v1418 = vpack.c.b16 %v1401, %v1400
      %v1419 = vpack.c.b16 %v1403, %v1402
      %v1452 = vunpack.c.l.b16 %v1356
      %v1453 = vunpack.c.l.b16 %v1357
      %v1454 = vunpack.c.l.b16 %v1358
      %v1455 = vunpack.c.l.b16 %v1359
      %v1456 = vunpack.c.l.b16 %v1360
      %v1457 = vunpack.c.l.b16 %v1361
      %v1458 = vunpack.c.l.b16 %v1362
      %v1459 = vunpack.c.l.b16 %v1363
      %v1460 = vunpack.c.l.b16 %v1364
      %v1461 = vunpack.c.l.b16 %v1365
      %v1462 = vunpack.c.l.b16 %v1366
      %v1463 = vunpack.c.l.b16 %v1367
      %v1464 = vunpack.c.l.b16 %v1368
      %v1465 = vunpack.c.l.b16 %v1369
      %v1466 = vunpack.c.l.b16 %v1370
      %v1467 = vunpack.c.l.b16 %v1371
      %v1468 = vpack.c.b16 %v1453, %v1452
      %v1469 = vpack.c.b16 %v1455, %v1454
      %v1470 = vpack.c.b16 %v1457, %v1456
      %v1471 = vpack.c.b16 %v1459, %v1458
      %v1472 = vpack.c.b16 %v1461, %v1460
      %v1473 = vpack.c.b16 %v1463, %v1462
      %v1474 = vpack.c.b16 %v1465, %v1464
      %v1475 = vpack.c.b16 %v1467, %v1466
      %1484 = vmatprep.subr.bf16.mxu0 0
      %1485 = vmatpush1.bf16.msra.mxu0 %v1468
      %1486 = vmatprep.subr.bf16.mxu0 0
      %1487 = vmatpush1.bf16.msra.mxu0 %v1469
      %1488 = vmatprep.subr.bf16.mxu0 0
      %1489 = vmatpush1.bf16.msra.mxu0 %v1470
      %1490 = vmatprep.subr.bf16.mxu0 0
      %1491 = vmatpush1.bf16.msra.mxu0 %v1471
      %1492 = vmatprep.subr.bf16.mxu0 0
      %1493 = vmatpush1.bf16.msra.mxu0 %v1472
      %1494 = vmatprep.subr.bf16.mxu0 0
      %1495 = vmatpush1.bf16.msra.mxu0 %v1473
      %1496 = vmatprep.subr.bf16.mxu0 0
      %1497 = vmatpush1.bf16.msra.mxu0 %v1474
      %1498 = vmatprep.subr.bf16.mxu0 0
      %1499 = vmatpush1.bf16.msra.mxu0 %v1475
      %1500 = vmatprep.subr.bf16.mxu0 0
      %1501 = vmatpush1.bf16.msra.mxu0 0
      %1502 = vmatprep.subr.bf16.mxu0 0
      %1503 = vmatpush1.bf16.msra.mxu0 0
      %1504 = vmatprep.subr.bf16.mxu0 0
      %1505 = vmatpush1.bf16.msra.mxu0 0
      %1506 = vmatprep.subr.bf16.mxu0 0
      %1507 = vmatpush1.bf16.msra.mxu0 0
      %1508 = vmatprep.subr.bf16.mxu0 0
      %1509 = vmatpush1.bf16.msra.mxu0 0
      %1510 = vmatprep.subr.bf16.mxu0 0
      %1511 = vmatpush1.bf16.msra.mxu0 0
      %1512 = vmatprep.subr.bf16.mxu0 0
      %1513 = vmatpush1.bf16.msra.mxu0 0
      %1514 = vmatprep.subr.bf16.mxu0 0
      %1515 = vmatpush1.bf16.msra.mxu0 0
      %1516 = vmatprep.mubr.bf16.mxu0 0
      %1517 = vmatmul.mubr.bf16.gmra.mrb[0].mxu0 %v1404
      %v1518 = vpop.f32.mrb[0].mxu0
      %v1519 = vadd.f32 0.0, %v1518
      %v1520 = vpop.f32.mrb[0].mxu0
      %v1521 = vpop.f32.mrb[0].mxu0
      %v1522 = vadd.f32 0.0, %v1521
      %v1523 = vpop.f32.mrb[0].mxu0
      %1524 = vmatprep.mubr.bf16.mxu0 0
      %1525 = vmatmul.mubr.bf16.gmra.mrb[0].mxu0 %v1405
      %v1526 = vpop.f32.mrb[0].mxu0
      %v1527 = vadd.f32 0.0, %v1526
      %v1528 = vpop.f32.mrb[0].mxu0
      %v1529 = vpop.f32.mrb[0].mxu0
      %v1530 = vadd.f32 0.0, %v1529
      %v1531 = vpop.f32.mrb[0].mxu0
      %1532 = vmatprep.mubr.bf16.mxu0 0
      %1533 = vmatmul.mubr.bf16.gmra.mrb[0].mxu0 %v1406
      %v1534 = vpop.f32.mrb[0].mxu0
      %v1535 = vadd.f32 0.0, %v1534
      %v1536 = vpop.f32.mrb[0].mxu0
      %v1537 = vpop.f32.mrb[0].mxu0
      %v1538 = vadd.f32 0.0, %v1537
      %v1539 = vpop.f32.mrb[0].mxu0
      %1540 = vmatprep.mubr.bf16.mxu0 0
      %1541 = vmatmul.mubr.bf16.gmra.mrb[0].mxu0 %v1407
      %v1542 = vpop.f32.mrb[0].mxu0
      %v1543 = vadd.f32 0.0, %v1542
      %v1544 = vpop.f32.mrb[0].mxu0
      %v1545 = vpop.f32.mrb[0].mxu0
      %v1546 = vadd.f32 0.0, %v1545
      %v1547 = vpop.f32.mrb[0].mxu0
      %1548 = vmatprep.mubr.bf16.mxu0 0
      %1549 = vmatmul.mubr.bf16.gmra.mrb[0].mxu0 %v1408
      %v1550 = vpop.f32.mrb[0].mxu0
      %v1551 = vadd.f32 0.0, %v1550
      %v1552 = vpop.f32.mrb[0].mxu0
      %v1553 = vpop.f32.mrb[0].mxu0
      %v1554 = vadd.f32 0.0, %v1553
      %v1555 = vpop.f32.mrb[0].mxu0
      %1556 = vmatprep.mubr.bf16.mxu0 0
      %1557 = vmatmul.mubr.bf16.gmra.mrb[0].mxu0 %v1409
      %v1558 = vpop.f32.mrb[0].mxu0
      %v1559 = vadd.f32 0.0, %v1558
      %v1560 = vpop.f32.mrb[0].mxu0
      %v1561 = vpop.f32.mrb[0].mxu0
      %v1562 = vadd.f32 0.0, %v1561
      %v1563 = vpop.f32.mrb[0].mxu0
      %1564 = vmatprep.mubr.bf16.mxu0 0
      %1565 = vmatmul.mubr.bf16.gmra.mrb[0].mxu0 %v1410
      %v1566 = vpop.f32.mrb[0].mxu0
      %v1567 = vadd.f32 0.0, %v1566
      %v1568 = vpop.f32.mrb[0].mxu0
      %v1569 = vpop.f32.mrb[0].mxu0
      %v1570 = vadd.f32 0.0, %v1569
      %v1571 = vpop.f32.mrb[0].mxu0
      %1572 = vmatprep.mubr.bf16.mxu0 0
      %1573 = vmatmul.mubr.bf16.gmra.mrb[0].mxu0 %v1411
      %v1574 = vpop.f32.mrb[0].mxu0
      %v1575 = vadd.f32 0.0, %v1574
      %v1576 = vpop.f32.mrb[0].mxu0
      %v1577 = vpop.f32.mrb[0].mxu0
      %v1578 = vadd.f32 0.0, %v1577
      %v1579 = vpop.f32.mrb[0].mxu0
      %1580 = vmatprep.mubr.bf16.mxu0 0
      %1581 = vmatmul.mubr.bf16.gmra.mrb[0].mxu0 %v1412
      %v1582 = vpop.f32.mrb[0].mxu0
      %v1583 = vadd.f32 0.0, %v1582
      %v1584 = vpop.f32.mrb[0].mxu0
      %v1585 = vpop.f32.mrb[0].mxu0
      %v1586 = vadd.f32 0.0, %v1585
      %v1587 = vpop.f32.mrb[0].mxu0
      %1588 = vmatprep.mubr.bf16.mxu0 0
      %1589 = vmatmul.mubr.bf16.gmra.mrb[0].mxu0 %v1413
      %v1590 = vpop.f32.mrb[0].mxu0
      %v1591 = vadd.f32 0.0, %v1590
      %v1592 = vpop.f32.mrb[0].mxu0
      %v1593 = vpop.f32.mrb[0].mxu0
      %v1594 = vadd.f32 0.0, %v1593
      %v1595 = vpop.f32.mrb[0].mxu0
      %1596 = vmatprep.mubr.bf16.mxu0 0
      %1597 = vmatmul.mubr.bf16.gmra.mrb[0].mxu0 %v1414
      %v1598 = vpop.f32.mrb[0].mxu0
      %v1599 = vadd.f32 0.0, %v1598
      %v1600 = vpop.f32.mrb[0].mxu0
      %v1601 = vpop.f32.mrb[0].mxu0
      %v1602 = vadd.f32 0.0, %v1601
      %v1603 = vpop.f32.mrb[0].mxu0
      %1604 = vmatprep.mubr.bf16.mxu0 0
      %1605 = vmatmul.mubr.bf16.gmra.mrb[0].mxu0 %v1415
      %v1606 = vpop.f32.mrb[0].mxu0
      %v1607 = vadd.f32 0.0, %v1606
      %v1608 = vpop.f32.mrb[0].mxu0
      %v1609 = vpop.f32.mrb[0].mxu0
      %v1610 = vadd.f32 0.0, %v1609
      %v1611 = vpop.f32.mrb[0].mxu0
      %1612 = vmatprep.mubr.bf16.mxu0 0
      %1613 = vmatmul.mubr.bf16.gmra.mrb[0].mxu0 %v1416
      %v1614 = vpop.f32.mrb[0].mxu0
      %v1615 = vadd.f32 0.0, %v1614
      %v1616 = vpop.f32.mrb[0].mxu0
      %v1617 = vpop.f32.mrb[0].mxu0
      %v1618 = vadd.f32 0.0, %v1617
      %v1619 = vpop.f32.mrb[0].mxu0
      %1620 = vmatprep.mubr.bf16.mxu0 0
      %1621 = vmatmul.mubr.bf16.gmra.mrb[0].mxu0 %v1417
      %v1622 = vpop.f32.mrb[0].mxu0
      %v1623 = vadd.f32 0.0, %v1622
      %v1624 = vpop.f32.mrb[0].mxu0
      %v1625 = vpop.f32.mrb[0].mxu0
      %v1626 = vadd.f32 0.0, %v1625
      %v1627 = vpop.f32.mrb[0].mxu0
      %1628 = vmatprep.mubr.bf16.mxu0 0
      %1629 = vmatmul.mubr.bf16.gmra.mrb[0].mxu0 %v1418
      %v1630 = vpop.f32.mrb[0].mxu0
      %v1631 = vadd.f32 0.0, %v1630
      %v1632 = vpop.f32.mrb[0].mxu0
      %v1633 = vpop.f32.mrb[0].mxu0
      %v1634 = vadd.f32 0.0, %v1633
      %v1635 = vpop.f32.mrb[0].mxu0
      %1636 = vmatprep.mubr.bf16.mxu0 0
      %1637 = vmatmul.mubr.bf16.gmra.mrb[0].mxu0 %v1419
      %v1638 = vpop.f32.mrb[0].mxu0
      %v1639 = vadd.f32 0.0, %v1638
      %v1640 = vpop.f32.mrb[0].mxu0
      %v1641 = vpop.f32.mrb[0].mxu0
      %v1642 = vadd.f32 0.0, %v1641
      %v1643 = vpop.f32.mrb[0].mxu0
      %1644 = vdwg.mxu0
      %v1645 = vadd.f32 %v1098, %v1519
      %v1646 = vadd.f32 %v1101, %v1522
      %v1647 = vadd.f32 %v1106, %v1527
      %v1648 = vadd.f32 %v1109, %v1530
      %v1649 = vadd.f32 %v1114, %v1535
      %v1650 = vadd.f32 %v1117, %v1538
      %v1651 = vadd.f32 %v1122, %v1543
      %v1652 = vadd.f32 %v1125, %v1546
      %v1653 = vadd.f32 %v1130, %v1551
      %v1654 = vadd.f32 %v1133, %v1554
      %v1655 = vadd.f32 %v1138, %v1559
      %v1656 = vadd.f32 %v1141, %v1562
      %v1657 = vadd.f32 %v1146, %v1567
      %v1658 = vadd.f32 %v1149, %v1570
      %v1659 = vadd.f32 %v1154, %v1575
      %v1660 = vadd.f32 %v1157, %v1578
      %v1661 = vadd.f32 %v1162, %v1583
      %v1662 = vadd.f32 %v1165, %v1586
      %v1663 = vadd.f32 %v1170, %v1591
      %v1664 = vadd.f32 %v1173, %v1594
      %v1665 = vadd.f32 %v1178, %v1599
      %v1666 = vadd.f32 %v1181, %v1602
      %v1667 = vadd.f32 %v1186, %v1607
      %v1668 = vadd.f32 %v1189, %v1610
      %v1669 = vadd.f32 %v1194, %v1615
      %v1670 = vadd.f32 %v1197, %v1618
      %v1671 = vadd.f32 %v1202, %v1623
      %v1672 = vadd.f32 %v1205, %v1626
      %v1673 = vadd.f32 %v1210, %v1631
      %v1674 = vadd.f32 %v1213, %v1634
      %v1675 = vadd.f32 %v1218, %v1639
      %v1676 = vadd.f32 %v1221, %v1642
      %s1677 = scalar_lea.vmem %s1, 192
      %v1678 = vld [vmem:[%s1677] sm:$0xf]
      %v1679 = vld [vmem:[%s1677 + $0x4] sm:$0xf]
      %v1680 = vld [vmem:[%s1677 + $0x8] sm:$0xf]
      %v1681 = vld [vmem:[%s1677 + $0xc] sm:$0xf]
      %v1682 = vld [vmem:[%s1677 + $0x10] sm:$0xf]
      %v1683 = vld [vmem:[%s1677 + $0x14] sm:$0xf]
      %v1684 = vld [vmem:[%s1677 + $0x18] sm:$0xf]
      %v1685 = vld [vmem:[%s1677 + $0x1c] sm:$0xf]
      %v1686 = vld [vmem:[%s1677 + $0x20] sm:$0xf]
      %v1687 = vld [vmem:[%s1677 + $0x24] sm:$0xf]
      %v1688 = vld [vmem:[%s1677 + $0x28] sm:$0xf]
      %v1689 = vld [vmem:[%s1677 + $0x2c] sm:$0xf]
      %v1690 = vld [vmem:[%s1677 + $0x30] sm:$0xf]
      %v1691 = vld [vmem:[%s1677 + $0x34] sm:$0xf]
      %v1692 = vld [vmem:[%s1677 + $0x38] sm:$0xf]
      %v1693 = vld [vmem:[%s1677 + $0x3c] sm:$0xf]
      %v1696 = vunpack.c.l.b16 %v220
      %v1697 = vunpack.c.l.b16 %v221
      %v1698 = vpack.c.b16 %v1697, %v1696
      %v1716 = vunpack.c.l.b16 %v1678
      %v1717 = vunpack.c.l.b16 %v1679
      %v1718 = vunpack.c.l.b16 %v1680
      %v1719 = vunpack.c.l.b16 %v1681
      %v1720 = vunpack.c.l.b16 %v1682
      %v1721 = vunpack.c.l.b16 %v1683
      %v1722 = vunpack.c.l.b16 %v1684
      %v1723 = vunpack.c.l.b16 %v1685
      %v1724 = vunpack.c.l.b16 %v1686
      %v1725 = vunpack.c.l.b16 %v1687
      %v1726 = vunpack.c.l.b16 %v1688
      %v1727 = vunpack.c.l.b16 %v1689
      %v1728 = vunpack.c.l.b16 %v1690
      %v1729 = vunpack.c.l.b16 %v1691
      %v1730 = vunpack.c.l.b16 %v1692
      %v1731 = vunpack.c.l.b16 %v1693
      %v1732 = vpack.c.b16 %v1717, %v1716
      %v1733 = vpack.c.b16 %v1719, %v1718
      %v1734 = vpack.c.b16 %v1721, %v1720
      %v1735 = vpack.c.b16 %v1723, %v1722
      %v1736 = vpack.c.b16 %v1725, %v1724
      %v1737 = vpack.c.b16 %v1727, %v1726
      %v1738 = vpack.c.b16 %v1729, %v1728
      %v1739 = vpack.c.b16 %v1731, %v1730
      %1748 = vmatprep.subr.bf16.mxu0 0
      %1749 = vmatpush1.bf16.msra.mxu0 %v1732
      %1750 = vmatprep.subr.bf16.mxu0 0
      %1751 = vmatpush1.bf16.msra.mxu0 %v1733
      %1752 = vmatprep.subr.bf16.mxu0 0
      %1753 = vmatpush1.bf16.msra.mxu0 %v1734
      %1754 = vmatprep.subr.bf16.mxu0 0
      %1755 = vmatpush1.bf16.msra.mxu0 %v1735
      %1756 = vmatprep.subr.bf16.mxu0 0
      %1757 = vmatpush1.bf16.msra.mxu0 %v1736
      %1758 = vmatprep.subr.bf16.mxu0 0
      %1759 = vmatpush1.bf16.msra.mxu0 %v1737
      %1760 = vmatprep.subr.bf16.mxu0 0
      %1761 = vmatpush1.bf16.msra.mxu0 %v1738
      %1762 = vmatprep.subr.bf16.mxu0 0
      %1763 = vmatpush1.bf16.msra.mxu0 %v1739
      %1764 = vmatprep.subr.bf16.mxu0 0
      %1765 = vmatpush1.bf16.msra.mxu0 0
      %1766 = vmatprep.subr.bf16.mxu0 0
      %1767 = vmatpush1.bf16.msra.mxu0 0
      %1768 = vmatprep.subr.bf16.mxu0 0
      %1769 = vmatpush1.bf16.msra.mxu0 0
      %1770 = vmatprep.subr.bf16.mxu0 0
      %1771 = vmatpush1.bf16.msra.mxu0 0
      %1772 = vmatprep.subr.bf16.mxu0 0
      %1773 = vmatpush1.bf16.msra.mxu0 0
      %1774 = vmatprep.subr.bf16.mxu0 0
      %1775 = vmatpush1.bf16.msra.mxu0 0
      %1776 = vmatprep.subr.bf16.mxu0 0
      %1777 = vmatpush1.bf16.msra.mxu0 0
      %1778 = vmatprep.subr.bf16.mxu0 0
      %1779 = vmatpush1.bf16.msra.mxu0 0
      %1780 = vmatprep.mubr.bf16.mxu0 0
      %1781 = vmatmul.mubr.bf16.gmra.mrb[0].mxu0 %v984
      %v1782 = vpop.f32.mrb[0].mxu0
      %v1783 = vadd.f32 0.0, %v1782
      %v1784 = vpop.f32.mrb[0].mxu0
      %v1785 = vpop.f32.mrb[0].mxu0
      %v1786 = vadd.f32 0.0, %v1785
      %v1787 = vpop.f32.mrb[0].mxu0
      %1788 = vmatprep.mubr.bf16.mxu0 0
      %1789 = vmatmul.mubr.bf16.gmra.mrb[0].mxu0 %v985
      %v1790 = vpop.f32.mrb[0].mxu0
      %v1791 = vadd.f32 0.0, %v1790
      %v1792 = vpop.f32.mrb[0].mxu0
      %v1793 = vpop.f32.mrb[0].mxu0
      %v1794 = vadd.f32 0.0, %v1793
      %v1795 = vpop.f32.mrb[0].mxu0
      %1796 = vmatprep.mubr.bf16.mxu0 0
      %1797 = vmatmul.mubr.bf16.gmra.mrb[0].mxu0 %v986
      %v1798 = vpop.f32.mrb[0].mxu0
      %v1799 = vadd.f32 0.0, %v1798
      %v1800 = vpop.f32.mrb[0].mxu0
      %v1801 = vpop.f32.mrb[0].mxu0
      %v1802 = vadd.f32 0.0, %v1801
      %v1803 = vpop.f32.mrb[0].mxu0
      %1804 = vmatprep.mubr.bf16.mxu0 0
      %1805 = vmatmul.mubr.bf16.gmra.mrb[0].mxu0 %v987
      %v1806 = vpop.f32.mrb[0].mxu0
      %v1807 = vadd.f32 0.0, %v1806
      %v1808 = vpop.f32.mrb[0].mxu0
      %v1809 = vpop.f32.mrb[0].mxu0
      %v1810 = vadd.f32 0.0, %v1809
      %v1811 = vpop.f32.mrb[0].mxu0
      %1812 = vmatprep.mubr.bf16.mxu0 0
      %1813 = vmatmul.mubr.bf16.gmra.mrb[0].mxu0 %v988
      %v1814 = vpop.f32.mrb[0].mxu0
      %v1815 = vadd.f32 0.0, %v1814
      %v1816 = vpop.f32.mrb[0].mxu0
      %v1817 = vpop.f32.mrb[0].mxu0
      %v1818 = vadd.f32 0.0, %v1817
      %v1819 = vpop.f32.mrb[0].mxu0
      %1820 = vmatprep.mubr.bf16.mxu0 0
      %1821 = vmatmul.mubr.bf16.gmra.mrb[0].mxu0 %v989
      %v1822 = vpop.f32.mrb[0].mxu0
      %v1823 = vadd.f32 0.0, %v1822
      %v1824 = vpop.f32.mrb[0].mxu0
      %v1825 = vpop.f32.mrb[0].mxu0
      %v1826 = vadd.f32 0.0, %v1825
      %v1827 = vpop.f32.mrb[0].mxu0
      %1828 = vmatprep.mubr.bf16.mxu0 0
      %1829 = vmatmul.mubr.bf16.gmra.mrb[0].mxu0 %v990
      %v1830 = vpop.f32.mrb[0].mxu0
      %v1831 = vadd.f32 0.0, %v1830
      %v1832 = vpop.f32.mrb[0].mxu0
      %v1833 = vpop.f32.mrb[0].mxu0
      %v1834 = vadd.f32 0.0, %v1833
      %v1835 = vpop.f32.mrb[0].mxu0
      %1836 = vmatprep.mubr.bf16.mxu0 0
      %1837 = vmatmul.mubr.bf16.gmra.mrb[0].mxu0 %v991
      %v1838 = vpop.f32.mrb[0].mxu0
      %v1839 = vadd.f32 0.0, %v1838
      %v1840 = vpop.f32.mrb[0].mxu0
      %v1841 = vpop.f32.mrb[0].mxu0
      %v1842 = vadd.f32 0.0, %v1841
      %v1843 = vpop.f32.mrb[0].mxu0
      %1844 = vmatprep.mubr.bf16.mxu0 0
      %1845 = vmatmul.mubr.bf16.gmra.mrb[0].mxu0 %v992
      %v1846 = vpop.f32.mrb[0].mxu0
      %v1847 = vadd.f32 0.0, %v1846
      %v1848 = vpop.f32.mrb[0].mxu0
      %v1849 = vpop.f32.mrb[0].mxu0
      %v1850 = vadd.f32 0.0, %v1849
      %v1851 = vpop.f32.mrb[0].mxu0
      %1852 = vmatprep.mubr.bf16.mxu0 0
      %1853 = vmatmul.mubr.bf16.gmra.mrb[0].mxu0 %v993
      %v1854 = vpop.f32.mrb[0].mxu0
      %v1855 = vadd.f32 0.0, %v1854
      %v1856 = vpop.f32.mrb[0].mxu0
      %v1857 = vpop.f32.mrb[0].mxu0
      %v1858 = vadd.f32 0.0, %v1857
      %v1859 = vpop.f32.mrb[0].mxu0
      %1860 = vmatprep.mubr.bf16.mxu0 0
      %1861 = vmatmul.mubr.bf16.gmra.mrb[0].mxu0 %v994
      %v1862 = vpop.f32.mrb[0].mxu0
      %v1863 = vadd.f32 0.0, %v1862
      %v1864 = vpop.f32.mrb[0].mxu0
      %v1865 = vpop.f32.mrb[0].mxu0
      %v1866 = vadd.f32 0.0, %v1865
      %v1867 = vpop.f32.mrb[0].mxu0
      %1868 = vmatprep.mubr.bf16.mxu0 0
      %1869 = vmatmul.mubr.bf16.gmra.mrb[0].mxu0 %v995
      %v1870 = vpop.f32.mrb[0].mxu0
      %v1871 = vadd.f32 0.0, %v1870
      %v1872 = vpop.f32.mrb[0].mxu0
      %v1873 = vpop.f32.mrb[0].mxu0
      %v1874 = vadd.f32 0.0, %v1873
      %v1875 = vpop.f32.mrb[0].mxu0
      %1876 = vmatprep.mubr.bf16.mxu0 0
      %1877 = vmatmul.mubr.bf16.gmra.mrb[0].mxu0 %v996
      %v1878 = vpop.f32.mrb[0].mxu0
      %v1879 = vadd.f32 0.0, %v1878
      %v1880 = vpop.f32.mrb[0].mxu0
      %v1881 = vpop.f32.mrb[0].mxu0
      %v1882 = vadd.f32 0.0, %v1881
      %v1883 = vpop.f32.mrb[0].mxu0
      %1884 = vmatprep.mubr.bf16.mxu0 0
      %1885 = vmatmul.mubr.bf16.gmra.mrb[0].mxu0 %v997
      %v1886 = vpop.f32.mrb[0].mxu0
      %v1887 = vadd.f32 0.0, %v1886
      %v1888 = vpop.f32.mrb[0].mxu0
      %v1889 = vpop.f32.mrb[0].mxu0
      %v1890 = vadd.f32 0.0, %v1889
      %v1891 = vpop.f32.mrb[0].mxu0
      %1892 = vmatprep.mubr.bf16.mxu0 0
      %1893 = vmatmul.mubr.bf16.gmra.mrb[0].mxu0 %v998
      %v1894 = vpop.f32.mrb[0].mxu0
      %v1895 = vadd.f32 0.0, %v1894
      %v1896 = vpop.f32.mrb[0].mxu0
      %v1897 = vpop.f32.mrb[0].mxu0
      %v1898 = vadd.f32 0.0, %v1897
      %v1899 = vpop.f32.mrb[0].mxu0
      %1900 = vmatprep.mubr.bf16.mxu0 0
      %1901 = vmatmul.mubr.bf16.gmra.mrb[0].mxu0 %v1698
      %v1902 = vpop.f32.mrb[0].mxu0
      %v1903 = vadd.f32 0.0, %v1902
      %v1904 = vpop.f32.mrb[0].mxu0
      %v1905 = vpop.f32.mrb[0].mxu0
      %v1906 = vadd.f32 0.0, %v1905
      %v1907 = vpop.f32.mrb[0].mxu0
      %1908 = vdwg.mxu0
      %v1909 = vadd.f32 %v1645, %v1783
      %v1910 = vadd.f32 %v1646, %v1786
      %v1911 = vadd.f32 %v1647, %v1791
      %v1912 = vadd.f32 %v1648, %v1794
      %v1913 = vadd.f32 %v1649, %v1799
      %v1914 = vadd.f32 %v1650, %v1802
      %v1915 = vadd.f32 %v1651, %v1807
      %v1916 = vadd.f32 %v1652, %v1810
      %v1917 = vadd.f32 %v1653, %v1815
      %v1918 = vadd.f32 %v1654, %v1818
      %v1919 = vadd.f32 %v1655, %v1823
      %v1920 = vadd.f32 %v1656, %v1826
      %v1921 = vadd.f32 %v1657, %v1831
      %v1922 = vadd.f32 %v1658, %v1834
      %v1923 = vadd.f32 %v1659, %v1839
      %v1924 = vadd.f32 %v1660, %v1842
      %v1925 = vadd.f32 %v1661, %v1847
      %v1926 = vadd.f32 %v1662, %v1850
      %v1927 = vadd.f32 %v1663, %v1855
      %v1928 = vadd.f32 %v1664, %v1858
      %v1929 = vadd.f32 %v1665, %v1863
      %v1930 = vadd.f32 %v1666, %v1866
      %v1931 = vadd.f32 %v1667, %v1871
      %v1932 = vadd.f32 %v1668, %v1874
      %v1933 = vadd.f32 %v1669, %v1879
      %v1934 = vadd.f32 %v1670, %v1882
      %v1935 = vadd.f32 %v1671, %v1887
      %v1936 = vadd.f32 %v1672, %v1890
      %v1937 = vadd.f32 %v1673, %v1895
      %v1938 = vadd.f32 %v1674, %v1898
      %v1939 = vadd.f32 %v1675, %v1903
      %v1940 = vadd.f32 %v1676, %v1906
      %v1942 = vshrl.u32 %v220, 16
      %v1944 = vrot.slane %v1942, 4
      %v1945 = vshll.u32 %v220, 16
      %v1947 = vrot.slane %v1945, 5
      %v1948 = vor.u32 %v1944, %v1947
      %v1949 = vrot.slane %v1948, 4
      %v1951 = vshll.u32 %v221, 16
      %v1953 = vrot.slane %v1951, 5
      %v1954 = vsel %vm244, %v1949, %v1953
      %v1955 = vshrl.u32 %v221, 16
      %v1957 = vrot.slane %v1955, 4
      %v1958 = vor.u32 %v1957, %v1953
      %v1959 = vrot.slane %v1958, 4
      %v1961 = vshll.u32 %v222, 16
      %v1963 = vrot.slane %v1961, 5
      %v1964 = vsel %vm244, %v1959, %v1963
      %s1965 = scalar_lea.vmem %s1, 256
      %v1966 = vld [vmem:[%s1965] sm:$0xf]
      %v1967 = vld [vmem:[%s1965 + $0x4] sm:$0xf]
      %v1968 = vld [vmem:[%s1965 + $0x8] sm:$0xf]
      %v1969 = vld [vmem:[%s1965 + $0xc] sm:$0xf]
      %v1970 = vld [vmem:[%s1965 + $0x10] sm:$0xf]
      %v1971 = vld [vmem:[%s1965 + $0x14] sm:$0xf]
      %v1972 = vld [vmem:[%s1965 + $0x18] sm:$0xf]
      %v1973 = vld [vmem:[%s1965 + $0x1c] sm:$0xf]
      %v1974 = vld [vmem:[%s1965 + $0x20] sm:$0xf]
      %v1975 = vld [vmem:[%s1965 + $0x24] sm:$0xf]
      %v1976 = vld [vmem:[%s1965 + $0x28] sm:$0xf]
      %v1977 = vld [vmem:[%s1965 + $0x2c] sm:$0xf]
      %v1978 = vld [vmem:[%s1965 + $0x30] sm:$0xf]
      %v1979 = vld [vmem:[%s1965 + $0x34] sm:$0xf]
      %v1980 = vld [vmem:[%s1965 + $0x38] sm:$0xf]
      %v1981 = vld [vmem:[%s1965 + $0x3c] sm:$0xf]
      %v1982 = vunpack.c.l.b16 %v1954
      %v1983 = vunpack.c.l.b16 %v1964
      %v1984 = vpack.c.b16 %v1983, %v1982
      %v2002 = vunpack.c.l.b16 %v1966
      %v2003 = vunpack.c.l.b16 %v1967
      %v2004 = vunpack.c.l.b16 %v1968
      %v2005 = vunpack.c.l.b16 %v1969
      %v2006 = vunpack.c.l.b16 %v1970
      %v2007 = vunpack.c.l.b16 %v1971
      %v2008 = vunpack.c.l.b16 %v1972
      %v2009 = vunpack.c.l.b16 %v1973
      %v2010 = vunpack.c.l.b16 %v1974
      %v2011 = vunpack.c.l.b16 %v1975
      %v2012 = vunpack.c.l.b16 %v1976
      %v2013 = vunpack.c.l.b16 %v1977
      %v2014 = vunpack.c.l.b16 %v1978
      %v2015 = vunpack.c.l.b16 %v1979
      %v2016 = vunpack.c.l.b16 %v1980
      %v2017 = vunpack.c.l.b16 %v1981
      %v2018 = vpack.c.b16 %v2003, %v2002
      %v2019 = vpack.c.b16 %v2005, %v2004
      %v2020 = vpack.c.b16 %v2007, %v2006
      %v2021 = vpack.c.b16 %v2009, %v2008
      %v2022 = vpack.c.b16 %v2011, %v2010
      %v2023 = vpack.c.b16 %v2013, %v2012
      %v2024 = vpack.c.b16 %v2015, %v2014
      %v2025 = vpack.c.b16 %v2017, %v2016
      %2034 = vmatprep.subr.bf16.mxu0 0
      %2035 = vmatpush1.bf16.msra.mxu0 %v2018
      %2036 = vmatprep.subr.bf16.mxu0 0
      %2037 = vmatpush1.bf16.msra.mxu0 %v2019
      %2038 = vmatprep.subr.bf16.mxu0 0
      %2039 = vmatpush1.bf16.msra.mxu0 %v2020
      %2040 = vmatprep.subr.bf16.mxu0 0
      %2041 = vmatpush1.bf16.msra.mxu0 %v2021
      %2042 = vmatprep.subr.bf16.mxu0 0
      %2043 = vmatpush1.bf16.msra.mxu0 %v2022
      %2044 = vmatprep.subr.bf16.mxu0 0
      %2045 = vmatpush1.bf16.msra.mxu0 %v2023
      %2046 = vmatprep.subr.bf16.mxu0 0
      %2047 = vmatpush1.bf16.msra.mxu0 %v2024
      %2048 = vmatprep.subr.bf16.mxu0 0
      %2049 = vmatpush1.bf16.msra.mxu0 %v2025
      %2050 = vmatprep.subr.bf16.mxu0 0
      %2051 = vmatpush1.bf16.msra.mxu0 0
      %2052 = vmatprep.subr.bf16.mxu0 0
      %2053 = vmatpush1.bf16.msra.mxu0 0
      %2054 = vmatprep.subr.bf16.mxu0 0
      %2055 = vmatpush1.bf16.msra.mxu0 0
      %2056 = vmatprep.subr.bf16.mxu0 0
      %2057 = vmatpush1.bf16.msra.mxu0 0
      %2058 = vmatprep.subr.bf16.mxu0 0
      %2059 = vmatpush1.bf16.msra.mxu0 0
      %2060 = vmatprep.subr.bf16.mxu0 0
      %2061 = vmatpush1.bf16.msra.mxu0 0
      %2062 = vmatprep.subr.bf16.mxu0 0
      %2063 = vmatpush1.bf16.msra.mxu0 0
      %2064 = vmatprep.subr.bf16.mxu0 0
      %2065 = vmatpush1.bf16.msra.mxu0 0
      %2066 = vmatprep.mubr.bf16.mxu0 0
      %2067 = vmatmul.mubr.bf16.gmra.mrb[0].mxu0 %v679
      %v2068 = vpop.f32.mrb[0].mxu0
      %v2069 = vadd.f32 0.0, %v2068
      %v2070 = vpop.f32.mrb[0].mxu0
      %v2071 = vpop.f32.mrb[0].mxu0
      %v2072 = vadd.f32 0.0, %v2071
      %v2073 = vpop.f32.mrb[0].mxu0
      %2074 = vmatprep.mubr.bf16.mxu0 0
      %2075 = vmatmul.mubr.bf16.gmra.mrb[0].mxu0 %v680
      %v2076 = vpop.f32.mrb[0].mxu0
      %v2077 = vadd.f32 0.0, %v2076
      %v2078 = vpop.f32.mrb[0].mxu0
      %v2079 = vpop.f32.mrb[0].mxu0
      %v2080 = vadd.f32 0.0, %v2079
      %v2081 = vpop.f32.mrb[0].mxu0
      %2082 = vmatprep.mubr.bf16.mxu0 0
      %2083 = vmatmul.mubr.bf16.gmra.mrb[0].mxu0 %v681
      %v2084 = vpop.f32.mrb[0].mxu0
      %v2085 = vadd.f32 0.0, %v2084
      %v2086 = vpop.f32.mrb[0].mxu0
      %v2087 = vpop.f32.mrb[0].mxu0
      %v2088 = vadd.f32 0.0, %v2087
      %v2089 = vpop.f32.mrb[0].mxu0
      %2090 = vmatprep.mubr.bf16.mxu0 0
      %2091 = vmatmul.mubr.bf16.gmra.mrb[0].mxu0 %v682
      %v2092 = vpop.f32.mrb[0].mxu0
      %v2093 = vadd.f32 0.0, %v2092
      %v2094 = vpop.f32.mrb[0].mxu0
      %v2095 = vpop.f32.mrb[0].mxu0
      %v2096 = vadd.f32 0.0, %v2095
      %v2097 = vpop.f32.mrb[0].mxu0
      %2098 = vmatprep.mubr.bf16.mxu0 0
      %2099 = vmatmul.mubr.bf16.gmra.mrb[0].mxu0 %v683
      %v2100 = vpop.f32.mrb[0].mxu0
      %v2101 = vadd.f32 0.0, %v2100
      %v2102 = vpop.f32.mrb[0].mxu0
      %v2103 = vpop.f32.mrb[0].mxu0
      %v2104 = vadd.f32 0.0, %v2103
      %v2105 = vpop.f32.mrb[0].mxu0
      %2106 = vmatprep.mubr.bf16.mxu0 0
      %2107 = vmatmul.mubr.bf16.gmra.mrb[0].mxu0 %v684
      %v2108 = vpop.f32.mrb[0].mxu0
      %v2109 = vadd.f32 0.0, %v2108
      %v2110 = vpop.f32.mrb[0].mxu0
      %v2111 = vpop.f32.mrb[0].mxu0
      %v2112 = vadd.f32 0.0, %v2111
      %v2113 = vpop.f32.mrb[0].mxu0
      %2114 = vmatprep.mubr.bf16.mxu0 0
      %2115 = vmatmul.mubr.bf16.gmra.mrb[0].mxu0 %v685
      %v2116 = vpop.f32.mrb[0].mxu0
      %v2117 = vadd.f32 0.0, %v2116
      %v2118 = vpop.f32.mrb[0].mxu0
      %v2119 = vpop.f32.mrb[0].mxu0
      %v2120 = vadd.f32 0.0, %v2119
      %v2121 = vpop.f32.mrb[0].mxu0
      %2122 = vmatprep.mubr.bf16.mxu0 0
      %2123 = vmatmul.mubr.bf16.gmra.mrb[0].mxu0 %v686
      %v2124 = vpop.f32.mrb[0].mxu0
      %v2125 = vadd.f32 0.0, %v2124
      %v2126 = vpop.f32.mrb[0].mxu0
      %v2127 = vpop.f32.mrb[0].mxu0
      %v2128 = vadd.f32 0.0, %v2127
      %v2129 = vpop.f32.mrb[0].mxu0
      %2130 = vmatprep.mubr.bf16.mxu0 0
      %2131 = vmatmul.mubr.bf16.gmra.mrb[0].mxu0 %v687
      %v2132 = vpop.f32.mrb[0].mxu0
      %v2133 = vadd.f32 0.0, %v2132
      %v2134 = vpop.f32.mrb[0].mxu0
      %v2135 = vpop.f32.mrb[0].mxu0
      %v2136 = vadd.f32 0.0, %v2135
      %v2137 = vpop.f32.mrb[0].mxu0
      %2138 = vmatprep.mubr.bf16.mxu0 0
      %2139 = vmatmul.mubr.bf16.gmra.mrb[0].mxu0 %v688
      %v2140 = vpop.f32.mrb[0].mxu0
      %v2141 = vadd.f32 0.0, %v2140
      %v2142 = vpop.f32.mrb[0].mxu0
      %v2143 = vpop.f32.mrb[0].mxu0
      %v2144 = vadd.f32 0.0, %v2143
      %v2145 = vpop.f32.mrb[0].mxu0
      %2146 = vmatprep.mubr.bf16.mxu0 0
      %2147 = vmatmul.mubr.bf16.gmra.mrb[0].mxu0 %v689
      %v2148 = vpop.f32.mrb[0].mxu0
      %v2149 = vadd.f32 0.0, %v2148
      %v2150 = vpop.f32.mrb[0].mxu0
      %v2151 = vpop.f32.mrb[0].mxu0
      %v2152 = vadd.f32 0.0, %v2151
      %v2153 = vpop.f32.mrb[0].mxu0
      %2154 = vmatprep.mubr.bf16.mxu0 0
      %2155 = vmatmul.mubr.bf16.gmra.mrb[0].mxu0 %v690
      %v2156 = vpop.f32.mrb[0].mxu0
      %v2157 = vadd.f32 0.0, %v2156
      %v2158 = vpop.f32.mrb[0].mxu0
      %v2159 = vpop.f32.mrb[0].mxu0
      %v2160 = vadd.f32 0.0, %v2159
      %v2161 = vpop.f32.mrb[0].mxu0
      %2162 = vmatprep.mubr.bf16.mxu0 0
      %2163 = vmatmul.mubr.bf16.gmra.mrb[0].mxu0 %v691
      %v2164 = vpop.f32.mrb[0].mxu0
      %v2165 = vadd.f32 0.0, %v2164
      %v2166 = vpop.f32.mrb[0].mxu0
      %v2167 = vpop.f32.mrb[0].mxu0
      %v2168 = vadd.f32 0.0, %v2167
      %v2169 = vpop.f32.mrb[0].mxu0
      %2170 = vmatprep.mubr.bf16.mxu0 0
      %2171 = vmatmul.mubr.bf16.gmra.mrb[0].mxu0 %v692
      %v2172 = vpop.f32.mrb[0].mxu0
      %v2173 = vadd.f32 0.0, %v2172
      %v2174 = vpop.f32.mrb[0].mxu0
      %v2175 = vpop.f32.mrb[0].mxu0
      %v2176 = vadd.f32 0.0, %v2175
      %v2177 = vpop.f32.mrb[0].mxu0
      %2178 = vmatprep.mubr.bf16.mxu0 0
      %2179 = vmatmul.mubr.bf16.gmra.mrb[0].mxu0 %v693
      %v2180 = vpop.f32.mrb[0].mxu0
      %v2181 = vadd.f32 0.0, %v2180
      %v2182 = vpop.f32.mrb[0].mxu0
      %v2183 = vpop.f32.mrb[0].mxu0
      %v2184 = vadd.f32 0.0, %v2183
      %v2185 = vpop.f32.mrb[0].mxu0
      %2186 = vmatprep.mubr.bf16.mxu0 0
      %2187 = vmatmul.mubr.bf16.gmra.mrb[0].mxu0 %v1984
      %v2188 = vpop.f32.mrb[0].mxu0
      %v2189 = vadd.f32 0.0, %v2188
      %v2190 = vpop.f32.mrb[0].mxu0
      %v2191 = vpop.f32.mrb[0].mxu0
      %v2192 = vadd.f32 0.0, %v2191
      %v2193 = vpop.f32.mrb[0].mxu0
      %2194 = vdwg.mxu0
      %v2195 = vadd.f32 %v1909, %v2069
      %v2196 = vadd.f32 %v1910, %v2072
      %v2197 = vadd.f32 %v1911, %v2077
      %v2198 = vadd.f32 %v1912, %v2080
      %v2199 = vadd.f32 %v1913, %v2085
      %v2200 = vadd.f32 %v1914, %v2088
      %v2201 = vadd.f32 %v1915, %v2093
      %v2202 = vadd.f32 %v1916, %v2096
      %v2203 = vadd.f32 %v1917, %v2101
      %v2204 = vadd.f32 %v1918, %v2104
      %v2205 = vadd.f32 %v1919, %v2109
      %v2206 = vadd.f32 %v1920, %v2112
      %v2207 = vadd.f32 %v1921, %v2117
      %v2208 = vadd.f32 %v1922, %v2120
      %v2209 = vadd.f32 %v1923, %v2125
      %v2210 = vadd.f32 %v1924, %v2128
      %v2211 = vadd.f32 %v1925, %v2133
      %v2212 = vadd.f32 %v1926, %v2136
      %v2213 = vadd.f32 %v1927, %v2141
      %v2214 = vadd.f32 %v1928, %v2144
      %v2215 = vadd.f32 %v1929, %v2149
      %v2216 = vadd.f32 %v1930, %v2152
      %v2217 = vadd.f32 %v1931, %v2157
      %v2218 = vadd.f32 %v1932, %v2160
      %v2219 = vadd.f32 %v1933, %v2165
      %v2220 = vadd.f32 %v1934, %v2168
      %v2221 = vadd.f32 %v1935, %v2173
      %v2222 = vadd.f32 %v1936, %v2176
      %v2223 = vadd.f32 %v1937, %v2181
      %v2224 = vadd.f32 %v1938, %v2184
      %v2225 = vadd.f32 %v1939, %v2189
      %v2226 = vadd.f32 %v1940, %v2192
      %v2228 = vrot.slane %v220, 5
      %v2229 = vrot.slane %v2228, 4
      %v2230 = vrot.slane %v221, 5
      %v2231 = vsel %vm1242, %v2229, %v2230
      %v2232 = vrot.slane %v2230, 4
      %v2233 = vrot.slane %v222, 5
      %v2234 = vsel %vm1242, %v2232, %v2233
      %s2235 = scalar_lea.vmem %s1, 320
      %v2236 = vld [vmem:[%s2235] sm:$0xf]
      %v2237 = vld [vmem:[%s2235 + $0x4] sm:$0xf]
      %v2238 = vld [vmem:[%s2235 + $0x8] sm:$0xf]
      %v2239 = vld [vmem:[%s2235 + $0xc] sm:$0xf]
      %v2240 = vld [vmem:[%s2235 + $0x10] sm:$0xf]
      %v2241 = vld [vmem:[%s2235 + $0x14] sm:$0xf]
      %v2242 = vld [vmem:[%s2235 + $0x18] sm:$0xf]
      %v2243 = vld [vmem:[%s2235 + $0x1c] sm:$0xf]
      %v2244 = vld [vmem:[%s2235 + $0x20] sm:$0xf]
      %v2245 = vld [vmem:[%s2235 + $0x24] sm:$0xf]
      %v2246 = vld [vmem:[%s2235 + $0x28] sm:$0xf]
      %v2247 = vld [vmem:[%s2235 + $0x2c] sm:$0xf]
      %v2248 = vld [vmem:[%s2235 + $0x30] sm:$0xf]
      %v2249 = vld [vmem:[%s2235 + $0x34] sm:$0xf]
      %v2250 = vld [vmem:[%s2235 + $0x38] sm:$0xf]
      %v2251 = vld [vmem:[%s2235 + $0x3c] sm:$0xf]
      %v2252 = vunpack.c.l.b16 %v2231
      %v2253 = vunpack.c.l.b16 %v2234
      %v2254 = vpack.c.b16 %v2253, %v2252
      %v2272 = vunpack.c.l.b16 %v2236
      %v2273 = vunpack.c.l.b16 %v2237
      %v2274 = vunpack.c.l.b16 %v2238
      %v2275 = vunpack.c.l.b16 %v2239
      %v2276 = vunpack.c.l.b16 %v2240
      %v2277 = vunpack.c.l.b16 %v2241
      %v2278 = vunpack.c.l.b16 %v2242
      %v2279 = vunpack.c.l.b16 %v2243
      %v2280 = vunpack.c.l.b16 %v2244
      %v2281 = vunpack.c.l.b16 %v2245
      %v2282 = vunpack.c.l.b16 %v2246
      %v2283 = vunpack.c.l.b16 %v2247
      %v2284 = vunpack.c.l.b16 %v2248
      %v2285 = vunpack.c.l.b16 %v2249
      %v2286 = vunpack.c.l.b16 %v2250
      %v2287 = vunpack.c.l.b16 %v2251
      %v2288 = vpack.c.b16 %v2273, %v2272
      %v2289 = vpack.c.b16 %v2275, %v2274
      %v2290 = vpack.c.b16 %v2277, %v2276
      %v2291 = vpack.c.b16 %v2279, %v2278
      %v2292 = vpack.c.b16 %v2281, %v2280
      %v2293 = vpack.c.b16 %v2283, %v2282
      %v2294 = vpack.c.b16 %v2285, %v2284
      %v2295 = vpack.c.b16 %v2287, %v2286
      %2304 = vmatprep.subr.bf16.mxu0 0
      %2305 = vmatpush1.bf16.msra.mxu0 %v2288
      %2306 = vmatprep.subr.bf16.mxu0 0
      %2307 = vmatpush1.bf16.msra.mxu0 %v2289
      %2308 = vmatprep.subr.bf16.mxu0 0
      %2309 = vmatpush1.bf16.msra.mxu0 %v2290
      %2310 = vmatprep.subr.bf16.mxu0 0
      %2311 = vmatpush1.bf16.msra.mxu0 %v2291
      %2312 = vmatprep.subr.bf16.mxu0 0
      %2313 = vmatpush1.bf16.msra.mxu0 %v2292
      %2314 = vmatprep.subr.bf16.mxu0 0
      %2315 = vmatpush1.bf16.msra.mxu0 %v2293
      %2316 = vmatprep.subr.bf16.mxu0 0
      %2317 = vmatpush1.bf16.msra.mxu0 %v2294
      %2318 = vmatprep.subr.bf16.mxu0 0
      %2319 = vmatpush1.bf16.msra.mxu0 %v2295
      %2320 = vmatprep.subr.bf16.mxu0 0
      %2321 = vmatpush1.bf16.msra.mxu0 0
      %2322 = vmatprep.subr.bf16.mxu0 0
      %2323 = vmatpush1.bf16.msra.mxu0 0
      %2324 = vmatprep.subr.bf16.mxu0 0
      %2325 = vmatpush1.bf16.msra.mxu0 0
      %2326 = vmatprep.subr.bf16.mxu0 0
      %2327 = vmatpush1.bf16.msra.mxu0 0
      %2328 = vmatprep.subr.bf16.mxu0 0
      %2329 = vmatpush1.bf16.msra.mxu0 0
      %2330 = vmatprep.subr.bf16.mxu0 0
      %2331 = vmatpush1.bf16.msra.mxu0 0
      %2332 = vmatprep.subr.bf16.mxu0 0
      %2333 = vmatpush1.bf16.msra.mxu0 0
      %2334 = vmatprep.subr.bf16.mxu0 0
      %2335 = vmatpush1.bf16.msra.mxu0 0
      %2336 = vmatprep.mubr.bf16.mxu0 0
      %2337 = vmatmul.mubr.bf16.gmra.mrb[0].mxu0 %v1405
      %v2338 = vpop.f32.mrb[0].mxu0
      %v2339 = vadd.f32 0.0, %v2338
      %v2340 = vpop.f32.mrb[0].mxu0
      %v2341 = vpop.f32.mrb[0].mxu0
      %v2342 = vadd.f32 0.0, %v2341
      %v2343 = vpop.f32.mrb[0].mxu0
      %2344 = vmatprep.mubr.bf16.mxu0 0
      %2345 = vmatmul.mubr.bf16.gmra.mrb[0].mxu0 %v1406
      %v2346 = vpop.f32.mrb[0].mxu0
      %v2347 = vadd.f32 0.0, %v2346
      %v2348 = vpop.f32.mrb[0].mxu0
      %v2349 = vpop.f32.mrb[0].mxu0
      %v2350 = vadd.f32 0.0, %v2349
      %v2351 = vpop.f32.mrb[0].mxu0
      %2352 = vmatprep.mubr.bf16.mxu0 0
      %2353 = vmatmul.mubr.bf16.gmra.mrb[0].mxu0 %v1407
      %v2354 = vpop.f32.mrb[0].mxu0
      %v2355 = vadd.f32 0.0, %v2354
      %v2356 = vpop.f32.mrb[0].mxu0
      %v2357 = vpop.f32.mrb[0].mxu0
      %v2358 = vadd.f32 0.0, %v2357
      %v2359 = vpop.f32.mrb[0].mxu0
      %2360 = vmatprep.mubr.bf16.mxu0 0
      %2361 = vmatmul.mubr.bf16.gmra.mrb[0].mxu0 %v1408
      %v2362 = vpop.f32.mrb[0].mxu0
      %v2363 = vadd.f32 0.0, %v2362
      %v2364 = vpop.f32.mrb[0].mxu0
      %v2365 = vpop.f32.mrb[0].mxu0
      %v2366 = vadd.f32 0.0, %v2365
      %v2367 = vpop.f32.mrb[0].mxu0
      %2368 = vmatprep.mubr.bf16.mxu0 0
      %2369 = vmatmul.mubr.bf16.gmra.mrb[0].mxu0 %v1409
      %v2370 = vpop.f32.mrb[0].mxu0
      %v2371 = vadd.f32 0.0, %v2370
      %v2372 = vpop.f32.mrb[0].mxu0
      %v2373 = vpop.f32.mrb[0].mxu0
      %v2374 = vadd.f32 0.0, %v2373
      %v2375 = vpop.f32.mrb[0].mxu0
      %2376 = vmatprep.mubr.bf16.mxu0 0
      %2377 = vmatmul.mubr.bf16.gmra.mrb[0].mxu0 %v1410
      %v2378 = vpop.f32.mrb[0].mxu0
      %v2379 = vadd.f32 0.0, %v2378
      %v2380 = vpop.f32.mrb[0].mxu0
      %v2381 = vpop.f32.mrb[0].mxu0
      %v2382 = vadd.f32 0.0, %v2381
      %v2383 = vpop.f32.mrb[0].mxu0
      %2384 = vmatprep.mubr.bf16.mxu0 0
      %2385 = vmatmul.mubr.bf16.gmra.mrb[0].mxu0 %v1411
      %v2386 = vpop.f32.mrb[0].mxu0
      %v2387 = vadd.f32 0.0, %v2386
      %v2388 = vpop.f32.mrb[0].mxu0
      %v2389 = vpop.f32.mrb[0].mxu0
      %v2390 = vadd.f32 0.0, %v2389
      %v2391 = vpop.f32.mrb[0].mxu0
      %2392 = vmatprep.mubr.bf16.mxu0 0
      %2393 = vmatmul.mubr.bf16.gmra.mrb[0].mxu0 %v1412
      %v2394 = vpop.f32.mrb[0].mxu0
      %v2395 = vadd.f32 0.0, %v2394
      %v2396 = vpop.f32.mrb[0].mxu0
      %v2397 = vpop.f32.mrb[0].mxu0
      %v2398 = vadd.f32 0.0, %v2397
      %v2399 = vpop.f32.mrb[0].mxu0
      %2400 = vmatprep.mubr.bf16.mxu0 0
      %2401 = vmatmul.mubr.bf16.gmra.mrb[0].mxu0 %v1413
      %v2402 = vpop.f32.mrb[0].mxu0
      %v2403 = vadd.f32 0.0, %v2402
      %v2404 = vpop.f32.mrb[0].mxu0
      %v2405 = vpop.f32.mrb[0].mxu0
      %v2406 = vadd.f32 0.0, %v2405
      %v2407 = vpop.f32.mrb[0].mxu0
      %2408 = vmatprep.mubr.bf16.mxu0 0
      %2409 = vmatmul.mubr.bf16.gmra.mrb[0].mxu0 %v1414
      %v2410 = vpop.f32.mrb[0].mxu0
      %v2411 = vadd.f32 0.0, %v2410
      %v2412 = vpop.f32.mrb[0].mxu0
      %v2413 = vpop.f32.mrb[0].mxu0
      %v2414 = vadd.f32 0.0, %v2413
      %v2415 = vpop.f32.mrb[0].mxu0
      %2416 = vmatprep.mubr.bf16.mxu0 0
      %2417 = vmatmul.mubr.bf16.gmra.mrb[0].mxu0 %v1415
      %v2418 = vpop.f32.mrb[0].mxu0
      %v2419 = vadd.f32 0.0, %v2418
      %v2420 = vpop.f32.mrb[0].mxu0
      %v2421 = vpop.f32.mrb[0].mxu0
      %v2422 = vadd.f32 0.0, %v2421
      %v2423 = vpop.f32.mrb[0].mxu0
      %2424 = vmatprep.mubr.bf16.mxu0 0
      %2425 = vmatmul.mubr.bf16.gmra.mrb[0].mxu0 %v1416
      %v2426 = vpop.f32.mrb[0].mxu0
      %v2427 = vadd.f32 0.0, %v2426
      %v2428 = vpop.f32.mrb[0].mxu0
      %v2429 = vpop.f32.mrb[0].mxu0
      %v2430 = vadd.f32 0.0, %v2429
      %v2431 = vpop.f32.mrb[0].mxu0
      %2432 = vmatprep.mubr.bf16.mxu0 0
      %2433 = vmatmul.mubr.bf16.gmra.mrb[0].mxu0 %v1417
      %v2434 = vpop.f32.mrb[0].mxu0
      %v2435 = vadd.f32 0.0, %v2434
      %v2436 = vpop.f32.mrb[0].mxu0
      %v2437 = vpop.f32.mrb[0].mxu0
      %v2438 = vadd.f32 0.0, %v2437
      %v2439 = vpop.f32.mrb[0].mxu0
      %2440 = vmatprep.mubr.bf16.mxu0 0
      %2441 = vmatmul.mubr.bf16.gmra.mrb[0].mxu0 %v1418
      %v2442 = vpop.f32.mrb[0].mxu0
      %v2443 = vadd.f32 0.0, %v2442
      %v2444 = vpop.f32.mrb[0].mxu0
      %v2445 = vpop.f32.mrb[0].mxu0
      %v2446 = vadd.f32 0.0, %v2445
      %v2447 = vpop.f32.mrb[0].mxu0
      %2448 = vmatprep.mubr.bf16.mxu0 0
      %2449 = vmatmul.mubr.bf16.gmra.mrb[0].mxu0 %v1419
      %v2450 = vpop.f32.mrb[0].mxu0
      %v2451 = vadd.f32 0.0, %v2450
      %v2452 = vpop.f32.mrb[0].mxu0
      %v2453 = vpop.f32.mrb[0].mxu0
      %v2454 = vadd.f32 0.0, %v2453
      %v2455 = vpop.f32.mrb[0].mxu0
      %2456 = vmatprep.mubr.bf16.mxu0 0
      %2457 = vmatmul.mubr.bf16.gmra.mrb[0].mxu0 %v2254
      %v2458 = vpop.f32.mrb[0].mxu0
      %v2459 = vadd.f32 0.0, %v2458
      %v2460 = vpop.f32.mrb[0].mxu0
      %v2461 = vpop.f32.mrb[0].mxu0
      %v2462 = vadd.f32 0.0, %v2461
      %v2463 = vpop.f32.mrb[0].mxu0
      %2464 = vdwg.mxu0
      %v2465 = vadd.f32 %v2195, %v2339
      %v2466 = vadd.f32 %v2196, %v2342
      %v2467 = vadd.f32 %v2197, %v2347
      %v2468 = vadd.f32 %v2198, %v2350
      %v2469 = vadd.f32 %v2199, %v2355
      %v2470 = vadd.f32 %v2200, %v2358
      %v2471 = vadd.f32 %v2201, %v2363
      %v2472 = vadd.f32 %v2202, %v2366
      %v2473 = vadd.f32 %v2203, %v2371
      %v2474 = vadd.f32 %v2204, %v2374
      %v2475 = vadd.f32 %v2205, %v2379
      %v2476 = vadd.f32 %v2206, %v2382
      %v2477 = vadd.f32 %v2207, %v2387
      %v2478 = vadd.f32 %v2208, %v2390
      %v2479 = vadd.f32 %v2209, %v2395
      %v2480 = vadd.f32 %v2210, %v2398
      %v2481 = vadd.f32 %v2211, %v2403
      %v2482 = vadd.f32 %v2212, %v2406
      %v2483 = vadd.f32 %v2213, %v2411
      %v2484 = vadd.f32 %v2214, %v2414
      %v2485 = vadd.f32 %v2215, %v2419
      %v2486 = vadd.f32 %v2216, %v2422
      %v2487 = vadd.f32 %v2217, %v2427
      %v2488 = vadd.f32 %v2218, %v2430
      %v2489 = vadd.f32 %v2219, %v2435
      %v2490 = vadd.f32 %v2220, %v2438
      %v2491 = vadd.f32 %v2221, %v2443
      %v2492 = vadd.f32 %v2222, %v2446
      %v2493 = vadd.f32 %v2223, %v2451
      %v2494 = vadd.f32 %v2224, %v2454
      %v2495 = vadd.f32 %v2225, %v2459
      %v2496 = vadd.f32 %v2226, %v2462
      %s2497 = scalar_lea.vmem %s1, 384
      %v2498 = vld [vmem:[%s2497] sm:$0xf]
      %v2499 = vld [vmem:[%s2497 + $0x4] sm:$0xf]
      %v2500 = vld [vmem:[%s2497 + $0x8] sm:$0xf]
      %v2501 = vld [vmem:[%s2497 + $0xc] sm:$0xf]
      %v2502 = vld [vmem:[%s2497 + $0x10] sm:$0xf]
      %v2503 = vld [vmem:[%s2497 + $0x14] sm:$0xf]
      %v2504 = vld [vmem:[%s2497 + $0x18] sm:$0xf]
      %v2505 = vld [vmem:[%s2497 + $0x1c] sm:$0xf]
      %v2506 = vld [vmem:[%s2497 + $0x20] sm:$0xf]
      %v2507 = vld [vmem:[%s2497 + $0x24] sm:$0xf]
      %v2508 = vld [vmem:[%s2497 + $0x28] sm:$0xf]
      %v2509 = vld [vmem:[%s2497 + $0x2c] sm:$0xf]
      %v2510 = vld [vmem:[%s2497 + $0x30] sm:$0xf]
      %v2511 = vld [vmem:[%s2497 + $0x34] sm:$0xf]
      %v2512 = vld [vmem:[%s2497 + $0x38] sm:$0xf]
      %v2513 = vld [vmem:[%s2497 + $0x3c] sm:$0xf]
      %v2516 = vunpack.c.l.b16 %v223
      %v2517 = vunpack.c.l.b16 %v224
      %v2518 = vpack.c.b16 %v2517, %v2516
      %v2536 = vunpack.c.l.b16 %v2498
      %v2537 = vunpack.c.l.b16 %v2499
      %v2538 = vunpack.c.l.b16 %v2500
      %v2539 = vunpack.c.l.b16 %v2501
      %v2540 = vunpack.c.l.b16 %v2502
      %v2541 = vunpack.c.l.b16 %v2503
      %v2542 = vunpack.c.l.b16 %v2504
      %v2543 = vunpack.c.l.b16 %v2505
      %v2544 = vunpack.c.l.b16 %v2506
      %v2545 = vunpack.c.l.b16 %v2507
      %v2546 = vunpack.c.l.b16 %v2508
      %v2547 = vunpack.c.l.b16 %v2509
      %v2548 = vunpack.c.l.b16 %v2510
      %v2549 = vunpack.c.l.b16 %v2511
      %v2550 = vunpack.c.l.b16 %v2512
      %v2551 = vunpack.c.l.b16 %v2513
      %v2552 = vpack.c.b16 %v2537, %v2536
      %v2553 = vpack.c.b16 %v2539, %v2538
      %v2554 = vpack.c.b16 %v2541, %v2540
      %v2555 = vpack.c.b16 %v2543, %v2542
      %v2556 = vpack.c.b16 %v2545, %v2544
      %v2557 = vpack.c.b16 %v2547, %v2546
      %v2558 = vpack.c.b16 %v2549, %v2548
      %v2559 = vpack.c.b16 %v2551, %v2550
      %2568 = vmatprep.subr.bf16.mxu0 0
      %2569 = vmatpush1.bf16.msra.mxu0 %v2552
      %2570 = vmatprep.subr.bf16.mxu0 0
      %2571 = vmatpush1.bf16.msra.mxu0 %v2553
      %2572 = vmatprep.subr.bf16.mxu0 0
      %2573 = vmatpush1.bf16.msra.mxu0 %v2554
      %2574 = vmatprep.subr.bf16.mxu0 0
      %2575 = vmatpush1.bf16.msra.mxu0 %v2555
      %2576 = vmatprep.subr.bf16.mxu0 0
      %2577 = vmatpush1.bf16.msra.mxu0 %v2556
      %2578 = vmatprep.subr.bf16.mxu0 0
      %2579 = vmatpush1.bf16.msra.mxu0 %v2557
      %2580 = vmatprep.subr.bf16.mxu0 0
      %2581 = vmatpush1.bf16.msra.mxu0 %v2558
      %2582 = vmatprep.subr.bf16.mxu0 0
      %2583 = vmatpush1.bf16.msra.mxu0 %v2559
      %2584 = vmatprep.subr.bf16.mxu0 0
      %2585 = vmatpush1.bf16.msra.mxu0 0
      %2586 = vmatprep.subr.bf16.mxu0 0
      %2587 = vmatpush1.bf16.msra.mxu0 0
      %2588 = vmatprep.subr.bf16.mxu0 0
      %2589 = vmatpush1.bf16.msra.mxu0 0
      %2590 = vmatprep.subr.bf16.mxu0 0
      %2591 = vmatpush1.bf16.msra.mxu0 0
      %2592 = vmatprep.subr.bf16.mxu0 0
      %2593 = vmatpush1.bf16.msra.mxu0 0
      %2594 = vmatprep.subr.bf16.mxu0 0
      %2595 = vmatpush1.bf16.msra.mxu0 0
      %2596 = vmatprep.subr.bf16.mxu0 0
      %2597 = vmatpush1.bf16.msra.mxu0 0
      %2598 = vmatprep.subr.bf16.mxu0 0
      %2599 = vmatpush1.bf16.msra.mxu0 0
      %2600 = vmatprep.mubr.bf16.mxu0 0
      %2601 = vmatmul.mubr.bf16.gmra.mrb[0].mxu0 %v985
      %v2602 = vpop.f32.mrb[0].mxu0
      %v2603 = vadd.f32 0.0, %v2602
      %v2604 = vpop.f32.mrb[0].mxu0
      %v2605 = vpop.f32.mrb[0].mxu0
      %v2606 = vadd.f32 0.0, %v2605
      %v2607 = vpop.f32.mrb[0].mxu0
      %2608 = vmatprep.mubr.bf16.mxu0 0
      %2609 = vmatmul.mubr.bf16.gmra.mrb[0].mxu0 %v986
      %v2610 = vpop.f32.mrb[0].mxu0
      %v2611 = vadd.f32 0.0, %v2610
      %v2612 = vpop.f32.mrb[0].mxu0
      %v2613 = vpop.f32.mrb[0].mxu0
      %v2614 = vadd.f32 0.0, %v2613
      %v2615 = vpop.f32.mrb[0].mxu0
      %2616 = vmatprep.mubr.bf16.mxu0 0
      %2617 = vmatmul.mubr.bf16.gmra.mrb[0].mxu0 %v987
      %v2618 = vpop.f32.mrb[0].mxu0
      %v2619 = vadd.f32 0.0, %v2618
      %v2620 = vpop.f32.mrb[0].mxu0
      %v2621 = vpop.f32.mrb[0].mxu0
      %v2622 = vadd.f32 0.0, %v2621
      %v2623 = vpop.f32.mrb[0].mxu0
      %2624 = vmatprep.mubr.bf16.mxu0 0
      %2625 = vmatmul.mubr.bf16.gmra.mrb[0].mxu0 %v988
      %v2626 = vpop.f32.mrb[0].mxu0
      %v2627 = vadd.f32 0.0, %v2626
      %v2628 = vpop.f32.mrb[0].mxu0
      %v2629 = vpop.f32.mrb[0].mxu0
      %v2630 = vadd.f32 0.0, %v2629
      %v2631 = vpop.f32.mrb[0].mxu0
      %2632 = vmatprep.mubr.bf16.mxu0 0
      %2633 = vmatmul.mubr.bf16.gmra.mrb[0].mxu0 %v989
      %v2634 = vpop.f32.mrb[0].mxu0
      %v2635 = vadd.f32 0.0, %v2634
      %v2636 = vpop.f32.mrb[0].mxu0
      %v2637 = vpop.f32.mrb[0].mxu0
      %v2638 = vadd.f32 0.0, %v2637
      %v2639 = vpop.f32.mrb[0].mxu0
      %2640 = vmatprep.mubr.bf16.mxu0 0
      %2641 = vmatmul.mubr.bf16.gmra.mrb[0].mxu0 %v990
      %v2642 = vpop.f32.mrb[0].mxu0
      %v2643 = vadd.f32 0.0, %v2642
      %v2644 = vpop.f32.mrb[0].mxu0
      %v2645 = vpop.f32.mrb[0].mxu0
      %v2646 = vadd.f32 0.0, %v2645
      %v2647 = vpop.f32.mrb[0].mxu0
      %2648 = vmatprep.mubr.bf16.mxu0 0
      %2649 = vmatmul.mubr.bf16.gmra.mrb[0].mxu0 %v991
      %v2650 = vpop.f32.mrb[0].mxu0
      %v2651 = vadd.f32 0.0, %v2650
      %v2652 = vpop.f32.mrb[0].mxu0
      %v2653 = vpop.f32.mrb[0].mxu0
      %v2654 = vadd.f32 0.0, %v2653
      %v2655 = vpop.f32.mrb[0].mxu0
      %2656 = vmatprep.mubr.bf16.mxu0 0
      %2657 = vmatmul.mubr.bf16.gmra.mrb[0].mxu0 %v992
      %v2658 = vpop.f32.mrb[0].mxu0
      %v2659 = vadd.f32 0.0, %v2658
      %v2660 = vpop.f32.mrb[0].mxu0
      %v2661 = vpop.f32.mrb[0].mxu0
      %v2662 = vadd.f32 0.0, %v2661
      %v2663 = vpop.f32.mrb[0].mxu0
      %2664 = vmatprep.mubr.bf16.mxu0 0
      %2665 = vmatmul.mubr.bf16.gmra.mrb[0].mxu0 %v993
      %v2666 = vpop.f32.mrb[0].mxu0
      %v2667 = vadd.f32 0.0, %v2666
      %v2668 = vpop.f32.mrb[0].mxu0
      %v2669 = vpop.f32.mrb[0].mxu0
      %v2670 = vadd.f32 0.0, %v2669
      %v2671 = vpop.f32.mrb[0].mxu0
      %2672 = vmatprep.mubr.bf16.mxu0 0
      %2673 = vmatmul.mubr.bf16.gmra.mrb[0].mxu0 %v994
      %v2674 = vpop.f32.mrb[0].mxu0
      %v2675 = vadd.f32 0.0, %v2674
      %v2676 = vpop.f32.mrb[0].mxu0
      %v2677 = vpop.f32.mrb[0].mxu0
      %v2678 = vadd.f32 0.0, %v2677
      %v2679 = vpop.f32.mrb[0].mxu0
      %2680 = vmatprep.mubr.bf16.mxu0 0
      %2681 = vmatmul.mubr.bf16.gmra.mrb[0].mxu0 %v995
      %v2682 = vpop.f32.mrb[0].mxu0
      %v2683 = vadd.f32 0.0, %v2682
      %v2684 = vpop.f32.mrb[0].mxu0
      %v2685 = vpop.f32.mrb[0].mxu0
      %v2686 = vadd.f32 0.0, %v2685
      %v2687 = vpop.f32.mrb[0].mxu0
      %2688 = vmatprep.mubr.bf16.mxu0 0
      %2689 = vmatmul.mubr.bf16.gmra.mrb[0].mxu0 %v996
      %v2690 = vpop.f32.mrb[0].mxu0
      %v2691 = vadd.f32 0.0, %v2690
      %v2692 = vpop.f32.mrb[0].mxu0
      %v2693 = vpop.f32.mrb[0].mxu0
      %v2694 = vadd.f32 0.0, %v2693
      %v2695 = vpop.f32.mrb[0].mxu0
      %2696 = vmatprep.mubr.bf16.mxu0 0
      %2697 = vmatmul.mubr.bf16.gmra.mrb[0].mxu0 %v997
      %v2698 = vpop.f32.mrb[0].mxu0
      %v2699 = vadd.f32 0.0, %v2698
      %v2700 = vpop.f32.mrb[0].mxu0
      %v2701 = vpop.f32.mrb[0].mxu0
      %v2702 = vadd.f32 0.0, %v2701
      %v2703 = vpop.f32.mrb[0].mxu0
      %2704 = vmatprep.mubr.bf16.mxu0 0
      %2705 = vmatmul.mubr.bf16.gmra.mrb[0].mxu0 %v998
      %v2706 = vpop.f32.mrb[0].mxu0
      %v2707 = vadd.f32 0.0, %v2706
      %v2708 = vpop.f32.mrb[0].mxu0
      %v2709 = vpop.f32.mrb[0].mxu0
      %v2710 = vadd.f32 0.0, %v2709
      %v2711 = vpop.f32.mrb[0].mxu0
      %2712 = vmatprep.mubr.bf16.mxu0 0
      %2713 = vmatmul.mubr.bf16.gmra.mrb[0].mxu0 %v1698
      %v2714 = vpop.f32.mrb[0].mxu0
      %v2715 = vadd.f32 0.0, %v2714
      %v2716 = vpop.f32.mrb[0].mxu0
      %v2717 = vpop.f32.mrb[0].mxu0
      %v2718 = vadd.f32 0.0, %v2717
      %v2719 = vpop.f32.mrb[0].mxu0
      %2720 = vmatprep.mubr.bf16.mxu0 0
      %2721 = vmatmul.mubr.bf16.gmra.mrb[0].mxu0 %v2518
      %v2722 = vpop.f32.mrb[0].mxu0
      %v2723 = vadd.f32 0.0, %v2722
      %v2724 = vpop.f32.mrb[0].mxu0
      %v2725 = vpop.f32.mrb[0].mxu0
      %v2726 = vadd.f32 0.0, %v2725
      %v2727 = vpop.f32.mrb[0].mxu0
      %2728 = vdwg.mxu0
      %v2729 = vadd.f32 %v2465, %v2603
      %v2730 = vadd.f32 %v2466, %v2606
      %v2731 = vadd.f32 %v2467, %v2611
      %v2732 = vadd.f32 %v2468, %v2614
      %v2733 = vadd.f32 %v2469, %v2619
      %v2734 = vadd.f32 %v2470, %v2622
      %v2735 = vadd.f32 %v2471, %v2627
      %v2736 = vadd.f32 %v2472, %v2630
      %v2737 = vadd.f32 %v2473, %v2635
      %v2738 = vadd.f32 %v2474, %v2638
      %v2739 = vadd.f32 %v2475, %v2643
      %v2740 = vadd.f32 %v2476, %v2646
      %v2741 = vadd.f32 %v2477, %v2651
      %v2742 = vadd.f32 %v2478, %v2654
      %v2743 = vadd.f32 %v2479, %v2659
      %v2744 = vadd.f32 %v2480, %v2662
      %v2745 = vadd.f32 %v2481, %v2667
      %v2746 = vadd.f32 %v2482, %v2670
      %v2747 = vadd.f32 %v2483, %v2675
      %v2748 = vadd.f32 %v2484, %v2678
      %v2749 = vadd.f32 %v2485, %v2683
      %v2750 = vadd.f32 %v2486, %v2686
      %v2751 = vadd.f32 %v2487, %v2691
      %v2752 = vadd.f32 %v2488, %v2694
      %v2753 = vadd.f32 %v2489, %v2699
      %v2754 = vadd.f32 %v2490, %v2702
      %v2755 = vadd.f32 %v2491, %v2707
      %v2756 = vadd.f32 %v2492, %v2710
      %v2757 = vadd.f32 %v2493, %v2715
      %v2758 = vadd.f32 %v2494, %v2718
      %v2759 = vadd.f32 %v2495, %v2723
      %v2760 = vadd.f32 %v2496, %v2726
      %v2762 = vshrl.u32 %v223, 16
      %v2764 = vrot.slane %v2762, 4
      %v2765 = vshll.u32 %v223, 16
      %v2767 = vrot.slane %v2765, 5
      %v2768 = vor.u32 %v2764, %v2767
      %v2769 = vrot.slane %v2768, 4
      %v2771 = vshll.u32 %v224, 16
      %v2773 = vrot.slane %v2771, 5
      %v2774 = vsel %vm244, %v2769, %v2773
      %v2775 = vshrl.u32 %v224, 16
      %v2777 = vrot.slane %v2775, 4
      %v2778 = vor.u32 %v2777, %v2773
      %v2779 = vrot.slane %v2778, 4
      %v2781 = vshll.u32 %v225, 16
      %v2783 = vrot.slane %v2781, 5
      %v2784 = vsel %vm244, %v2779, %v2783
      %s2785 = scalar_lea.vmem %s1, 448
      %v2786 = vld [vmem:[%s2785] sm:$0xf]
      %v2787 = vld [vmem:[%s2785 + $0x4] sm:$0xf]
      %v2788 = vld [vmem:[%s2785 + $0x8] sm:$0xf]
      %v2789 = vld [vmem:[%s2785 + $0xc] sm:$0xf]
      %v2790 = vld [vmem:[%s2785 + $0x10] sm:$0xf]
      %v2791 = vld [vmem:[%s2785 + $0x14] sm:$0xf]
      %v2792 = vld [vmem:[%s2785 + $0x18] sm:$0xf]
      %v2793 = vld [vmem:[%s2785 + $0x1c] sm:$0xf]
      %v2794 = vld [vmem:[%s2785 + $0x20] sm:$0xf]
      %v2795 = vld [vmem:[%s2785 + $0x24] sm:$0xf]
      %v2796 = vld [vmem:[%s2785 + $0x28] sm:$0xf]
      %v2797 = vld [vmem:[%s2785 + $0x2c] sm:$0xf]
      %v2798 = vld [vmem:[%s2785 + $0x30] sm:$0xf]
      %v2799 = vld [vmem:[%s2785 + $0x34] sm:$0xf]
      %v2800 = vld [vmem:[%s2785 + $0x38] sm:$0xf]
      %v2801 = vld [vmem:[%s2785 + $0x3c] sm:$0xf]
      %v2802 = vunpack.c.l.b16 %v2774
      %v2803 = vunpack.c.l.b16 %v2784
      %v2804 = vpack.c.b16 %v2803, %v2802
      %v2822 = vunpack.c.l.b16 %v2786
      %v2823 = vunpack.c.l.b16 %v2787
      %v2824 = vunpack.c.l.b16 %v2788
      %v2825 = vunpack.c.l.b16 %v2789
      %v2826 = vunpack.c.l.b16 %v2790
      %v2827 = vunpack.c.l.b16 %v2791
      %v2828 = vunpack.c.l.b16 %v2792
      %v2829 = vunpack.c.l.b16 %v2793
      %v2830 = vunpack.c.l.b16 %v2794
      %v2831 = vunpack.c.l.b16 %v2795
      %v2832 = vunpack.c.l.b16 %v2796
      %v2833 = vunpack.c.l.b16 %v2797
      %v2834 = vunpack.c.l.b16 %v2798
      %v2835 = vunpack.c.l.b16 %v2799
      %v2836 = vunpack.c.l.b16 %v2800
      %v2837 = vunpack.c.l.b16 %v2801
      %v2838 = vpack.c.b16 %v2823, %v2822
      %v2839 = vpack.c.b16 %v2825, %v2824
      %v2840 = vpack.c.b16 %v2827, %v2826
      %v2841 = vpack.c.b16 %v2829, %v2828
      %v2842 = vpack.c.b16 %v2831, %v2830
      %v2843 = vpack.c.b16 %v2833, %v2832
      %v2844 = vpack.c.b16 %v2835, %v2834
      %v2845 = vpack.c.b16 %v2837, %v2836
      %2854 = vmatprep.subr.bf16.mxu0 0
      %2855 = vmatpush1.bf16.msra.mxu0 %v2838
      %2856 = vmatprep.subr.bf16.mxu0 0
      %2857 = vmatpush1.bf16.msra.mxu0 %v2839
      %2858 = vmatprep.subr.bf16.mxu0 0
      %2859 = vmatpush1.bf16.msra.mxu0 %v2840
      %2860 = vmatprep.subr.bf16.mxu0 0
      %2861 = vmatpush1.bf16.msra.mxu0 %v2841
      %2862 = vmatprep.subr.bf16.mxu0 0
      %2863 = vmatpush1.bf16.msra.mxu0 %v2842
      %2864 = vmatprep.subr.bf16.mxu0 0
      %2865 = vmatpush1.bf16.msra.mxu0 %v2843
      %2866 = vmatprep.subr.bf16.mxu0 0
      %2867 = vmatpush1.bf16.msra.mxu0 %v2844
      %2868 = vmatprep.subr.bf16.mxu0 0
      %2869 = vmatpush1.bf16.msra.mxu0 %v2845
      %2870 = vmatprep.subr.bf16.mxu0 0
      %2871 = vmatpush1.bf16.msra.mxu0 0
      %2872 = vmatprep.subr.bf16.mxu0 0
      %2873 = vmatpush1.bf16.msra.mxu0 0
      %2874 = vmatprep.subr.bf16.mxu0 0
      %2875 = vmatpush1.bf16.msra.mxu0 0
      %2876 = vmatprep.subr.bf16.mxu0 0
      %2877 = vmatpush1.bf16.msra.mxu0 0
      %2878 = vmatprep.subr.bf16.mxu0 0
      %2879 = vmatpush1.bf16.msra.mxu0 0
      %2880 = vmatprep.subr.bf16.mxu0 0
      %2881 = vmatpush1.bf16.msra.mxu0 0
      %2882 = vmatprep.subr.bf16.mxu0 0
      %2883 = vmatpush1.bf16.msra.mxu0 0
      %2884 = vmatprep.subr.bf16.mxu0 0
      %2885 = vmatpush1.bf16.msra.mxu0 0
      %2886 = vmatprep.mubr.bf16.mxu0 0
      %2887 = vmatmul.mubr.bf16.gmra.mrb[0].mxu0 %v680
      %v2888 = vpop.f32.mrb[0].mxu0
      %v2889 = vadd.f32 0.0, %v2888
      %v2890 = vpop.f32.mrb[0].mxu0
      %v2891 = vpop.f32.mrb[0].mxu0
      %v2892 = vadd.f32 0.0, %v2891
      %v2893 = vpop.f32.mrb[0].mxu0
      %2894 = vmatprep.mubr.bf16.mxu0 0
      %2895 = vmatmul.mubr.bf16.gmra.mrb[0].mxu0 %v681
      %v2896 = vpop.f32.mrb[0].mxu0
      %v2897 = vadd.f32 0.0, %v2896
      %v2898 = vpop.f32.mrb[0].mxu0
      %v2899 = vpop.f32.mrb[0].mxu0
      %v2900 = vadd.f32 0.0, %v2899
      %v2901 = vpop.f32.mrb[0].mxu0
      %2902 = vmatprep.mubr.bf16.mxu0 0
      %2903 = vmatmul.mubr.bf16.gmra.mrb[0].mxu0 %v682
      %v2904 = vpop.f32.mrb[0].mxu0
      %v2905 = vadd.f32 0.0, %v2904
      %v2906 = vpop.f32.mrb[0].mxu0
      %v2907 = vpop.f32.mrb[0].mxu0
      %v2908 = vadd.f32 0.0, %v2907
      %v2909 = vpop.f32.mrb[0].mxu0
      %2910 = vmatprep.mubr.bf16.mxu0 0
      %2911 = vmatmul.mubr.bf16.gmra.mrb[0].mxu0 %v683
      %v2912 = vpop.f32.mrb[0].mxu0
      %v2913 = vadd.f32 0.0, %v2912
      %v2914 = vpop.f32.mrb[0].mxu0
      %v2915 = vpop.f32.mrb[0].mxu0
      %v2916 = vadd.f32 0.0, %v2915
      %v2917 = vpop.f32.mrb[0].mxu0
      %2918 = vmatprep.mubr.bf16.mxu0 0
      %2919 = vmatmul.mubr.bf16.gmra.mrb[0].mxu0 %v684
      %v2920 = vpop.f32.mrb[0].mxu0
      %v2921 = vadd.f32 0.0, %v2920
      %v2922 = vpop.f32.mrb[0].mxu0
      %v2923 = vpop.f32.mrb[0].mxu0
      %v2924 = vadd.f32 0.0, %v2923
      %v2925 = vpop.f32.mrb[0].mxu0
      %2926 = vmatprep.mubr.bf16.mxu0 0
      %2927 = vmatmul.mubr.bf16.gmra.mrb[0].mxu0 %v685
      %v2928 = vpop.f32.mrb[0].mxu0
      %v2929 = vadd.f32 0.0, %v2928
      %v2930 = vpop.f32.mrb[0].mxu0
      %v2931 = vpop.f32.mrb[0].mxu0
      %v2932 = vadd.f32 0.0, %v2931
      %v2933 = vpop.f32.mrb[0].mxu0
      %2934 = vmatprep.mubr.bf16.mxu0 0
      %2935 = vmatmul.mubr.bf16.gmra.mrb[0].mxu0 %v686
      %v2936 = vpop.f32.mrb[0].mxu0
      %v2937 = vadd.f32 0.0, %v2936
      %v2938 = vpop.f32.mrb[0].mxu0
      %v2939 = vpop.f32.mrb[0].mxu0
      %v2940 = vadd.f32 0.0, %v2939
      %v2941 = vpop.f32.mrb[0].mxu0
      %2942 = vmatprep.mubr.bf16.mxu0 0
      %2943 = vmatmul.mubr.bf16.gmra.mrb[0].mxu0 %v687
      %v2944 = vpop.f32.mrb[0].mxu0
      %v2945 = vadd.f32 0.0, %v2944
      %v2946 = vpop.f32.mrb[0].mxu0
      %v2947 = vpop.f32.mrb[0].mxu0
      %v2948 = vadd.f32 0.0, %v2947
      %v2949 = vpop.f32.mrb[0].mxu0
      %2950 = vmatprep.mubr.bf16.mxu0 0
      %2951 = vmatmul.mubr.bf16.gmra.mrb[0].mxu0 %v688
      %v2952 = vpop.f32.mrb[0].mxu0
      %v2953 = vadd.f32 0.0, %v2952
      %v2954 = vpop.f32.mrb[0].mxu0
      %v2955 = vpop.f32.mrb[0].mxu0
      %v2956 = vadd.f32 0.0, %v2955
      %v2957 = vpop.f32.mrb[0].mxu0
      %2958 = vmatprep.mubr.bf16.mxu0 0
      %2959 = vmatmul.mubr.bf16.gmra.mrb[0].mxu0 %v689
      %v2960 = vpop.f32.mrb[0].mxu0
      %v2961 = vadd.f32 0.0, %v2960
      %v2962 = vpop.f32.mrb[0].mxu0
      %v2963 = vpop.f32.mrb[0].mxu0
      %v2964 = vadd.f32 0.0, %v2963
      %v2965 = vpop.f32.mrb[0].mxu0
      %2966 = vmatprep.mubr.bf16.mxu0 0
      %2967 = vmatmul.mubr.bf16.gmra.mrb[0].mxu0 %v690
      %v2968 = vpop.f32.mrb[0].mxu0
      %v2969 = vadd.f32 0.0, %v2968
      %v2970 = vpop.f32.mrb[0].mxu0
      %v2971 = vpop.f32.mrb[0].mxu0
      %v2972 = vadd.f32 0.0, %v2971
      %v2973 = vpop.f32.mrb[0].mxu0
      %2974 = vmatprep.mubr.bf16.mxu0 0
      %2975 = vmatmul.mubr.bf16.gmra.mrb[0].mxu0 %v691
      %v2976 = vpop.f32.mrb[0].mxu0
      %v2977 = vadd.f32 0.0, %v2976
      %v2978 = vpop.f32.mrb[0].mxu0
      %v2979 = vpop.f32.mrb[0].mxu0
      %v2980 = vadd.f32 0.0, %v2979
      %v2981 = vpop.f32.mrb[0].mxu0
      %2982 = vmatprep.mubr.bf16.mxu0 0
      %2983 = vmatmul.mubr.bf16.gmra.mrb[0].mxu0 %v692
      %v2984 = vpop.f32.mrb[0].mxu0
      %v2985 = vadd.f32 0.0, %v2984
      %v2986 = vpop.f32.mrb[0].mxu0
      %v2987 = vpop.f32.mrb[0].mxu0
      %v2988 = vadd.f32 0.0, %v2987
      %v2989 = vpop.f32.mrb[0].mxu0
      %2990 = vmatprep.mubr.bf16.mxu0 0
      %2991 = vmatmul.mubr.bf16.gmra.mrb[0].mxu0 %v693
      %v2992 = vpop.f32.mrb[0].mxu0
      %v2993 = vadd.f32 0.0, %v2992
      %v2994 = vpop.f32.mrb[0].mxu0
      %v2995 = vpop.f32.mrb[0].mxu0
      %v2996 = vadd.f32 0.0, %v2995
      %v2997 = vpop.f32.mrb[0].mxu0
      %2998 = vmatprep.mubr.bf16.mxu0 0
      %2999 = vmatmul.mubr.bf16.gmra.mrb[0].mxu0 %v1984
      %v3000 = vpop.f32.mrb[0].mxu0
      %v3001 = vadd.f32 0.0, %v3000
      %v3002 = vpop.f32.mrb[0].mxu0
      %v3003 = vpop.f32.mrb[0].mxu0
      %v3004 = vadd.f32 0.0, %v3003
      %v3005 = vpop.f32.mrb[0].mxu0
      %3006 = vmatprep.mubr.bf16.mxu0 0
      %3007 = vmatmul.mubr.bf16.gmra.mrb[0].mxu0 %v2804
      %v3008 = vpop.f32.mrb[0].mxu0
      %v3009 = vadd.f32 0.0, %v3008
      %v3010 = vpop.f32.mrb[0].mxu0
      %v3011 = vpop.f32.mrb[0].mxu0
      %v3012 = vadd.f32 0.0, %v3011
      %v3013 = vpop.f32.mrb[0].mxu0
      %3014 = vdwg.mxu0
      %v3015 = vadd.f32 %v2729, %v2889
      %v3016 = vadd.f32 %v2730, %v2892
      %v3017 = vadd.f32 %v2731, %v2897
      %v3018 = vadd.f32 %v2732, %v2900
      %v3019 = vadd.f32 %v2733, %v2905
      %v3020 = vadd.f32 %v2734, %v2908
      %v3021 = vadd.f32 %v2735, %v2913
      %v3022 = vadd.f32 %v2736, %v2916
      %v3023 = vadd.f32 %v2737, %v2921
      %v3024 = vadd.f32 %v2738, %v2924
      %v3025 = vadd.f32 %v2739, %v2929
      %v3026 = vadd.f32 %v2740, %v2932
      %v3027 = vadd.f32 %v2741, %v2937
      %v3028 = vadd.f32 %v2742, %v2940
      %v3029 = vadd.f32 %v2743, %v2945
      %v3030 = vadd.f32 %v2744, %v2948
      %v3031 = vadd.f32 %v2745, %v2953
      %v3032 = vadd.f32 %v2746, %v2956
      %v3033 = vadd.f32 %v2747, %v2961
      %v3034 = vadd.f32 %v2748, %v2964
      %v3035 = vadd.f32 %v2749, %v2969
      %v3036 = vadd.f32 %v2750, %v2972
      %v3037 = vadd.f32 %v2751, %v2977
      %v3038 = vadd.f32 %v2752, %v2980
      %v3039 = vadd.f32 %v2753, %v2985
      %v3040 = vadd.f32 %v2754, %v2988
      %v3041 = vadd.f32 %v2755, %v2993
      %v3042 = vadd.f32 %v2756, %v2996
      %v3043 = vadd.f32 %v2757, %v3001
      %v3044 = vadd.f32 %v2758, %v3004
      %v3045 = vadd.f32 %v2759, %v3009
      %v3046 = vadd.f32 %v2760, %v3012
      %v3048 = vrot.slane %v223, 5
      %v3049 = vrot.slane %v3048, 4
      %v3050 = vrot.slane %v224, 5
      %v3051 = vsel %vm1242, %v3049, %v3050
      %v3052 = vrot.slane %v3050, 4
      %v3053 = vrot.slane %v225, 5
      %v3054 = vsel %vm1242, %v3052, %v3053
      %s3055 = scalar_lea.vmem %s1, 512
      %v3056 = vld [vmem:[%s3055] sm:$0xf]
      %v3057 = vld [vmem:[%s3055 + $0x4] sm:$0xf]
      %v3058 = vld [vmem:[%s3055 + $0x8] sm:$0xf]
      %v3059 = vld [vmem:[%s3055 + $0xc] sm:$0xf]
      %v3060 = vld [vmem:[%s3055 + $0x10] sm:$0xf]
      %v3061 = vld [vmem:[%s3055 + $0x14] sm:$0xf]
      %v3062 = vld [vmem:[%s3055 + $0x18] sm:$0xf]
      %v3063 = vld [vmem:[%s3055 + $0x1c] sm:$0xf]
      %v3064 = vld [vmem:[%s3055 + $0x20] sm:$0xf]
      %v3065 = vld [vmem:[%s3055 + $0x24] sm:$0xf]
      %v3066 = vld [vmem:[%s3055 + $0x28] sm:$0xf]
      %v3067 = vld [vmem:[%s3055 + $0x2c] sm:$0xf]
      %v3068 = vld [vmem:[%s3055 + $0x30] sm:$0xf]
      %v3069 = vld [vmem:[%s3055 + $0x34] sm:$0xf]
      %v3070 = vld [vmem:[%s3055 + $0x38] sm:$0xf]
      %v3071 = vld [vmem:[%s3055 + $0x3c] sm:$0xf]
      %v3072 = vunpack.c.l.b16 %v3051
      %v3073 = vunpack.c.l.b16 %v3054
      %v3074 = vpack.c.b16 %v3073, %v3072
      %v3092 = vunpack.c.l.b16 %v3056
      %v3093 = vunpack.c.l.b16 %v3057
      %v3094 = vunpack.c.l.b16 %v3058
      %v3095 = vunpack.c.l.b16 %v3059
      %v3096 = vunpack.c.l.b16 %v3060
      %v3097 = vunpack.c.l.b16 %v3061
      %v3098 = vunpack.c.l.b16 %v3062
      %v3099 = vunpack.c.l.b16 %v3063
      %v3100 = vunpack.c.l.b16 %v3064
      %v3101 = vunpack.c.l.b16 %v3065
      %v3102 = vunpack.c.l.b16 %v3066
      %v3103 = vunpack.c.l.b16 %v3067
      %v3104 = vunpack.c.l.b16 %v3068
      %v3105 = vunpack.c.l.b16 %v3069
      %v3106 = vunpack.c.l.b16 %v3070
      %v3107 = vunpack.c.l.b16 %v3071
      %v3108 = vpack.c.b16 %v3093, %v3092
      %v3109 = vpack.c.b16 %v3095, %v3094
      %v3110 = vpack.c.b16 %v3097, %v3096
      %v3111 = vpack.c.b16 %v3099, %v3098
      %v3112 = vpack.c.b16 %v3101, %v3100
      %v3113 = vpack.c.b16 %v3103, %v3102
      %v3114 = vpack.c.b16 %v3105, %v3104
      %v3115 = vpack.c.b16 %v3107, %v3106
      %3124 = vmatprep.subr.bf16.mxu0 0
      %3125 = vmatpush1.bf16.msra.mxu0 %v3108
      %3126 = vmatprep.subr.bf16.mxu0 0
      %3127 = vmatpush1.bf16.msra.mxu0 %v3109
      %3128 = vmatprep.subr.bf16.mxu0 0
      %3129 = vmatpush1.bf16.msra.mxu0 %v3110
      %3130 = vmatprep.subr.bf16.mxu0 0
      %3131 = vmatpush1.bf16.msra.mxu0 %v3111
      %3132 = vmatprep.subr.bf16.mxu0 0
      %3133 = vmatpush1.bf16.msra.mxu0 %v3112
      %3134 = vmatprep.subr.bf16.mxu0 0
      %3135 = vmatpush1.bf16.msra.mxu0 %v3113
      %3136 = vmatprep.subr.bf16.mxu0 0
      %3137 = vmatpush1.bf16.msra.mxu0 %v3114
      %3138 = vmatprep.subr.bf16.mxu0 0
      %3139 = vmatpush1.bf16.msra.mxu0 %v3115
      %3140 = vmatprep.subr.bf16.mxu0 0
      %3141 = vmatpush1.bf16.msra.mxu0 0
      %3142 = vmatprep.subr.bf16.mxu0 0
      %3143 = vmatpush1.bf16.msra.mxu0 0
      %3144 = vmatprep.subr.bf16.mxu0 0
      %3145 = vmatpush1.bf16.msra.mxu0 0
      %3146 = vmatprep.subr.bf16.mxu0 0
      %3147 = vmatpush1.bf16.msra.mxu0 0
      %3148 = vmatprep.subr.bf16.mxu0 0
      %3149 = vmatpush1.bf16.msra.mxu0 0
      %3150 = vmatprep.subr.bf16.mxu0 0
      %3151 = vmatpush1.bf16.msra.mxu0 0
      %3152 = vmatprep.subr.bf16.mxu0 0
      %3153 = vmatpush1.bf16.msra.mxu0 0
      %3154 = vmatprep.subr.bf16.mxu0 0
      %3155 = vmatpush1.bf16.msra.mxu0 0
      %3156 = vmatprep.mubr.bf16.mxu0 0
      %3157 = vmatmul.mubr.bf16.gmra.mrb[0].mxu0 %v1406
      %v3158 = vpop.f32.mrb[0].mxu0
      %v3159 = vadd.f32 0.0, %v3158
      %v3160 = vpop.f32.mrb[0].mxu0
      %v3161 = vpop.f32.mrb[0].mxu0
      %v3162 = vadd.f32 0.0, %v3161
      %v3163 = vpop.f32.mrb[0].mxu0
      %3164 = vmatprep.mubr.bf16.mxu0 0
      %3165 = vmatmul.mubr.bf16.gmra.mrb[0].mxu0 %v1407
      %v3166 = vpop.f32.mrb[0].mxu0
      %v3167 = vadd.f32 0.0, %v3166
      %v3168 = vpop.f32.mrb[0].mxu0
      %v3169 = vpop.f32.mrb[0].mxu0
      %v3170 = vadd.f32 0.0, %v3169
      %v3171 = vpop.f32.mrb[0].mxu0
      %3172 = vmatprep.mubr.bf16.mxu0 0
      %3173 = vmatmul.mubr.bf16.gmra.mrb[0].mxu0 %v1408
      %v3174 = vpop.f32.mrb[0].mxu0
      %v3175 = vadd.f32 0.0, %v3174
      %v3176 = vpop.f32.mrb[0].mxu0
      %v3177 = vpop.f32.mrb[0].mxu0
      %v3178 = vadd.f32 0.0, %v3177
      %v3179 = vpop.f32.mrb[0].mxu0
      %3180 = vmatprep.mubr.bf16.mxu0 0
      %3181 = vmatmul.mubr.bf16.gmra.mrb[0].mxu0 %v1409
      %v3182 = vpop.f32.mrb[0].mxu0
      %v3183 = vadd.f32 0.0, %v3182
      %v3184 = vpop.f32.mrb[0].mxu0
      %v3185 = vpop.f32.mrb[0].mxu0
      %v3186 = vadd.f32 0.0, %v3185
      %v3187 = vpop.f32.mrb[0].mxu0
      %3188 = vmatprep.mubr.bf16.mxu0 0
      %3189 = vmatmul.mubr.bf16.gmra.mrb[0].mxu0 %v1410
      %v3190 = vpop.f32.mrb[0].mxu0
      %v3191 = vadd.f32 0.0, %v3190
      %v3192 = vpop.f32.mrb[0].mxu0
      %v3193 = vpop.f32.mrb[0].mxu0
      %v3194 = vadd.f32 0.0, %v3193
      %v3195 = vpop.f32.mrb[0].mxu0
      %3196 = vmatprep.mubr.bf16.mxu0 0
      %3197 = vmatmul.mubr.bf16.gmra.mrb[0].mxu0 %v1411
      %v3198 = vpop.f32.mrb[0].mxu0
      %v3199 = vadd.f32 0.0, %v3198
      %v3200 = vpop.f32.mrb[0].mxu0
      %v3201 = vpop.f32.mrb[0].mxu0
      %v3202 = vadd.f32 0.0, %v3201
      %v3203 = vpop.f32.mrb[0].mxu0
      %3204 = vmatprep.mubr.bf16.mxu0 0
      %3205 = vmatmul.mubr.bf16.gmra.mrb[0].mxu0 %v1412
      %v3206 = vpop.f32.mrb[0].mxu0
      %v3207 = vadd.f32 0.0, %v3206
      %v3208 = vpop.f32.mrb[0].mxu0
      %v3209 = vpop.f32.mrb[0].mxu0
      %v3210 = vadd.f32 0.0, %v3209
      %v3211 = vpop.f32.mrb[0].mxu0
      %3212 = vmatprep.mubr.bf16.mxu0 0
      %3213 = vmatmul.mubr.bf16.gmra.mrb[0].mxu0 %v1413
      %v3214 = vpop.f32.mrb[0].mxu0
      %v3215 = vadd.f32 0.0, %v3214
      %v3216 = vpop.f32.mrb[0].mxu0
      %v3217 = vpop.f32.mrb[0].mxu0
      %v3218 = vadd.f32 0.0, %v3217
      %v3219 = vpop.f32.mrb[0].mxu0
      %3220 = vmatprep.mubr.bf16.mxu0 0
      %3221 = vmatmul.mubr.bf16.gmra.mrb[0].mxu0 %v1414
      %v3222 = vpop.f32.mrb[0].mxu0
      %v3223 = vadd.f32 0.0, %v3222
      %v3224 = vpop.f32.mrb[0].mxu0
      %v3225 = vpop.f32.mrb[0].mxu0
      %v3226 = vadd.f32 0.0, %v3225
      %v3227 = vpop.f32.mrb[0].mxu0
      %3228 = vmatprep.mubr.bf16.mxu0 0
      %3229 = vmatmul.mubr.bf16.gmra.mrb[0].mxu0 %v1415
      %v3230 = vpop.f32.mrb[0].mxu0
      %v3231 = vadd.f32 0.0, %v3230
      %v3232 = vpop.f32.mrb[0].mxu0
      %v3233 = vpop.f32.mrb[0].mxu0
      %v3234 = vadd.f32 0.0, %v3233
      %v3235 = vpop.f32.mrb[0].mxu0
      %3236 = vmatprep.mubr.bf16.mxu0 0
      %3237 = vmatmul.mubr.bf16.gmra.mrb[0].mxu0 %v1416
      %v3238 = vpop.f32.mrb[0].mxu0
      %v3239 = vadd.f32 0.0, %v3238
      %v3240 = vpop.f32.mrb[0].mxu0
      %v3241 = vpop.f32.mrb[0].mxu0
      %v3242 = vadd.f32 0.0, %v3241
      %v3243 = vpop.f32.mrb[0].mxu0
      %3244 = vmatprep.mubr.bf16.mxu0 0
      %3245 = vmatmul.mubr.bf16.gmra.mrb[0].mxu0 %v1417
      %v3246 = vpop.f32.mrb[0].mxu0
      %v3247 = vadd.f32 0.0, %v3246
      %v3248 = vpop.f32.mrb[0].mxu0
      %v3249 = vpop.f32.mrb[0].mxu0
      %v3250 = vadd.f32 0.0, %v3249
      %v3251 = vpop.f32.mrb[0].mxu0
      %3252 = vmatprep.mubr.bf16.mxu0 0
      %3253 = vmatmul.mubr.bf16.gmra.mrb[0].mxu0 %v1418
      %v3254 = vpop.f32.mrb[0].mxu0
      %v3255 = vadd.f32 0.0, %v3254
      %v3256 = vpop.f32.mrb[0].mxu0
      %v3257 = vpop.f32.mrb[0].mxu0
      %v3258 = vadd.f32 0.0, %v3257
      %v3259 = vpop.f32.mrb[0].mxu0
      %3260 = vmatprep.mubr.bf16.mxu0 0
      %3261 = vmatmul.mubr.bf16.gmra.mrb[0].mxu0 %v1419
      %v3262 = vpop.f32.mrb[0].mxu0
      %v3263 = vadd.f32 0.0, %v3262
      %v3264 = vpop.f32.mrb[0].mxu0
      %v3265 = vpop.f32.mrb[0].mxu0
      %v3266 = vadd.f32 0.0, %v3265
      %v3267 = vpop.f32.mrb[0].mxu0
      %3268 = vmatprep.mubr.bf16.mxu0 0
      %3269 = vmatmul.mubr.bf16.gmra.mrb[0].mxu0 %v2254
      %v3270 = vpop.f32.mrb[0].mxu0
      %v3271 = vadd.f32 0.0, %v3270
      %v3272 = vpop.f32.mrb[0].mxu0
      %v3273 = vpop.f32.mrb[0].mxu0
      %v3274 = vadd.f32 0.0, %v3273
      %v3275 = vpop.f32.mrb[0].mxu0
      %3276 = vmatprep.mubr.bf16.mxu0 0
      %3277 = vmatmul.mubr.bf16.gmra.mrb[0].mxu0 %v3074
      %v3278 = vpop.f32.mrb[0].mxu0
      %v3279 = vadd.f32 0.0, %v3278
      %v3280 = vpop.f32.mrb[0].mxu0
      %v3281 = vpop.f32.mrb[0].mxu0
      %v3282 = vadd.f32 0.0, %v3281
      %v3283 = vpop.f32.mrb[0].mxu0
      %3284 = vdwg.mxu0
      %v3285 = vadd.f32 %v3015, %v3159
      %v3286 = vadd.f32 %v3016, %v3162
      %v3287 = vadd.f32 %v3017, %v3167
      %v3288 = vadd.f32 %v3018, %v3170
      %v3289 = vadd.f32 %v3019, %v3175
      %v3290 = vadd.f32 %v3020, %v3178
      %v3291 = vadd.f32 %v3021, %v3183
      %v3292 = vadd.f32 %v3022, %v3186
      %v3293 = vadd.f32 %v3023, %v3191
      %v3294 = vadd.f32 %v3024, %v3194
      %v3295 = vadd.f32 %v3025, %v3199
      %v3296 = vadd.f32 %v3026, %v3202
      %v3297 = vadd.f32 %v3027, %v3207
      %v3298 = vadd.f32 %v3028, %v3210
      %v3299 = vadd.f32 %v3029, %v3215
      %v3300 = vadd.f32 %v3030, %v3218
      %v3301 = vadd.f32 %v3031, %v3223
      %v3302 = vadd.f32 %v3032, %v3226
      %v3303 = vadd.f32 %v3033, %v3231
      %v3304 = vadd.f32 %v3034, %v3234
      %v3305 = vadd.f32 %v3035, %v3239
      %v3306 = vadd.f32 %v3036, %v3242
      %v3307 = vadd.f32 %v3037, %v3247
      %v3308 = vadd.f32 %v3038, %v3250
      %v3309 = vadd.f32 %v3039, %v3255
      %v3310 = vadd.f32 %v3040, %v3258
      %v3311 = vadd.f32 %v3041, %v3263
      %v3312 = vadd.f32 %v3042, %v3266
      %v3313 = vadd.f32 %v3043, %v3271
      %v3314 = vadd.f32 %v3044, %v3274
      %v3315 = vadd.f32 %v3045, %v3279
      %v3316 = vadd.f32 %v3046, %v3282
      %v3317 = vld [vmem:[%s2] sm:$0x1]
      %v3319 = vlaneseq
      %v3320 = vshrl.u32 %v3319, 7
      %v3321 = vsub.s32 0, %v3320
      %v3322 = vrot.slane %v3317, %v3321
      %v3324 = vadd.f32 %v3285, %v3322
      %v3325 = vadd.f32 %v3286, %v3322
      %v3326 = vadd.f32 %v3287, %v3322
      %v3327 = vadd.f32 %v3288, %v3322
      %v3328 = vadd.f32 %v3289, %v3322
      %v3329 = vadd.f32 %v3290, %v3322
      %v3330 = vadd.f32 %v3291, %v3322
      %v3331 = vadd.f32 %v3292, %v3322
      %v3332 = vadd.f32 %v3293, %v3322
      %v3333 = vadd.f32 %v3294, %v3322
      %v3334 = vadd.f32 %v3295, %v3322
      %v3335 = vadd.f32 %v3296, %v3322
      %v3336 = vadd.f32 %v3297, %v3322
      %v3337 = vadd.f32 %v3298, %v3322
      %v3338 = vadd.f32 %v3299, %v3322
      %v3339 = vadd.f32 %v3300, %v3322
      %v3340 = vadd.f32 %v3301, %v3322
      %v3341 = vadd.f32 %v3302, %v3322
      %v3342 = vadd.f32 %v3303, %v3322
      %v3343 = vadd.f32 %v3304, %v3322
      %v3344 = vadd.f32 %v3305, %v3322
      %v3345 = vadd.f32 %v3306, %v3322
      %v3346 = vadd.f32 %v3307, %v3322
      %v3347 = vadd.f32 %v3308, %v3322
      %v3348 = vadd.f32 %v3309, %v3322
      %v3349 = vadd.f32 %v3310, %v3322
      %v3350 = vadd.f32 %v3311, %v3322
      %v3351 = vadd.f32 %v3312, %v3322
      %v3352 = vadd.f32 %v3313, %v3322
      %v3353 = vadd.f32 %v3314, %v3322
      %v3354 = vadd.f32 %v3315, %v3322
      %v3355 = vadd.f32 %v3316, %v3322
      %v3356 = vmax.f32 %v3324, 0.0
      %v3357 = vmax.f32 %v3325, 0.0
      %v3358 = vmax.f32 %v3326, 0.0
      %v3359 = vmax.f32 %v3327, 0.0
      %v3360 = vmax.f32 %v3328, 0.0
      %v3361 = vmax.f32 %v3329, 0.0
      %v3362 = vmax.f32 %v3330, 0.0
      %v3363 = vmax.f32 %v3331, 0.0
      %v3364 = vmax.f32 %v3332, 0.0
      %v3365 = vmax.f32 %v3333, 0.0
      %v3366 = vmax.f32 %v3334, 0.0
      %v3367 = vmax.f32 %v3335, 0.0
      %v3368 = vmax.f32 %v3336, 0.0
      %v3369 = vmax.f32 %v3337, 0.0
      %v3370 = vmax.f32 %v3338, 0.0
      %v3371 = vmax.f32 %v3339, 0.0
      %v3372 = vmax.f32 %v3340, 0.0
      %v3373 = vmax.f32 %v3341, 0.0
      %v3374 = vmax.f32 %v3342, 0.0
      %v3375 = vmax.f32 %v3343, 0.0
      %v3376 = vmax.f32 %v3344, 0.0
      %v3377 = vmax.f32 %v3345, 0.0
      %v3378 = vmax.f32 %v3346, 0.0
      %v3379 = vmax.f32 %v3347, 0.0
      %v3380 = vmax.f32 %v3348, 0.0
      %v3381 = vmax.f32 %v3349, 0.0
      %v3382 = vmax.f32 %v3350, 0.0
      %v3383 = vmax.f32 %v3351, 0.0
      %v3384 = vmax.f32 %v3352, 0.0
      %v3385 = vmax.f32 %v3353, 0.0
      %v3386 = vmax.f32 %v3354, 0.0
      %v3387 = vmax.f32 %v3355, 0.0
      %v3388 = vpack.c.bf16 %v3357, %v3356
      %v3389 = vpack.c.bf16 %v3359, %v3358
      %v3390 = vpack.c.bf16 %v3361, %v3360
      %v3391 = vpack.c.bf16 %v3363, %v3362
      %v3392 = vpack.c.bf16 %v3365, %v3364
      %v3393 = vpack.c.bf16 %v3367, %v3366
      %v3394 = vpack.c.bf16 %v3369, %v3368
      %v3395 = vpack.c.bf16 %v3371, %v3370
      %v3396 = vpack.c.bf16 %v3373, %v3372
      %v3397 = vpack.c.bf16 %v3375, %v3374
      %v3398 = vpack.c.bf16 %v3377, %v3376
      %v3399 = vpack.c.bf16 %v3379, %v3378
      %v3400 = vpack.c.bf16 %v3381, %v3380
      %v3401 = vpack.c.bf16 %v3383, %v3382
      %v3402 = vpack.c.bf16 %v3385, %v3384
      %v3403 = vpack.c.bf16 %v3387, %v3386
      %v3420 = vunpack.c.l.b16 %v3388
      %v3421 = vunpack.c.h.b16 %v3388
      %v3422 = vunpack.c.l.b16 %v3389
      %v3423 = vunpack.c.h.b16 %v3389
      %v3424 = vunpack.c.l.b16 %v3390
      %v3425 = vunpack.c.h.b16 %v3390
      %v3426 = vunpack.c.l.b16 %v3391
      %v3427 = vunpack.c.h.b16 %v3391
      %v3428 = vunpack.c.l.b16 %v3392
      %v3429 = vunpack.c.h.b16 %v3392
      %v3430 = vunpack.c.l.b16 %v3393
      %v3431 = vunpack.c.h.b16 %v3393
      %v3432 = vunpack.c.l.b16 %v3394
      %v3433 = vunpack.c.h.b16 %v3394
      %v3434 = vunpack.c.l.b16 %v3395
      %v3435 = vunpack.c.h.b16 %v3395
      %v3436 = vunpack.c.l.b16 %v3396
      %v3437 = vunpack.c.h.b16 %v3396
      %v3438 = vunpack.c.l.b16 %v3397
      %v3439 = vunpack.c.h.b16 %v3397
      %v3440 = vunpack.c.l.b16 %v3398
      %v3441 = vunpack.c.h.b16 %v3398
      %v3442 = vunpack.c.l.b16 %v3399
      %v3443 = vunpack.c.h.b16 %v3399
      %v3444 = vunpack.c.l.b16 %v3400
      %v3445 = vunpack.c.h.b16 %v3400
      %v3446 = vunpack.c.l.b16 %v3401
      %v3447 = vunpack.c.h.b16 %v3401
      %v3448 = vunpack.c.l.b16 %v3402
      %v3449 = vunpack.c.h.b16 %v3402
      %v3450 = vunpack.c.l.b16 %v3403
      %v3451 = vunpack.c.h.b16 %v3403
      %v3452 = vpack.c.b16 %v3420, %v3420
      %v3453 = vpack.c.b16 %v3421, %v3421
      %v3454 = vpack.c.b16 %v3422, %v3422
      %v3455 = vpack.c.b16 %v3423, %v3423
      %v3456 = vpack.c.b16 %v3424, %v3424
      %v3457 = vpack.c.b16 %v3425, %v3425
      %v3458 = vpack.c.b16 %v3426, %v3426
      %v3459 = vpack.c.b16 %v3427, %v3427
      %v3460 = vpack.c.b16 %v3428, %v3428
      %v3461 = vpack.c.b16 %v3429, %v3429
      %v3462 = vpack.c.b16 %v3430, %v3430
      %v3463 = vpack.c.b16 %v3431, %v3431
      %v3464 = vpack.c.b16 %v3432, %v3432
      %v3465 = vpack.c.b16 %v3433, %v3433
      %v3466 = vpack.c.b16 %v3434, %v3434
      %v3467 = vpack.c.b16 %v3435, %v3435
      %v3468 = vpack.c.b16 %v3436, %v3436
      %v3469 = vpack.c.b16 %v3437, %v3437
      %v3470 = vpack.c.b16 %v3438, %v3438
      %v3471 = vpack.c.b16 %v3439, %v3439
      %v3472 = vpack.c.b16 %v3440, %v3440
      %v3473 = vpack.c.b16 %v3441, %v3441
      %v3474 = vpack.c.b16 %v3442, %v3442
      %v3475 = vpack.c.b16 %v3443, %v3443
      %v3476 = vpack.c.b16 %v3444, %v3444
      %v3477 = vpack.c.b16 %v3445, %v3445
      %v3478 = vpack.c.b16 %v3446, %v3446
      %v3479 = vpack.c.b16 %v3447, %v3447
      %v3480 = vpack.c.b16 %v3448, %v3448
      %v3481 = vpack.c.b16 %v3449, %v3449
      %v3482 = vpack.c.b16 %v3450, %v3450
      %v3483 = vpack.c.b16 %v3451, %v3451
      %3516 = vst [vmem:[%s170] sm:$0xf] %v3452
      %3517 = vst [vmem:[%s170 + $0x4] sm:$0xf] %v3453
      %3518 = vst [vmem:[%s170 + $0x8] sm:$0xf] %v3454
      %3519 = vst [vmem:[%s170 + $0xc] sm:$0xf] %v3455
      %3520 = vst [vmem:[%s170 + $0x10] sm:$0xf] %v3456
      %3521 = vst [vmem:[%s170 + $0x14] sm:$0xf] %v3457
      %3522 = vst [vmem:[%s170 + $0x18] sm:$0xf] %v3458
      %3523 = vst [vmem:[%s170 + $0x1c] sm:$0xf] %v3459
      %3524 = vst [vmem:[%s170 + $0x20] sm:$0xf] %v3460
      %3525 = vst [vmem:[%s170 + $0x24] sm:$0xf] %v3461
      %3526 = vst [vmem:[%s170 + $0x28] sm:$0xf] %v3462
      %3527 = vst [vmem:[%s170 + $0x2c] sm:$0xf] %v3463
      %3528 = vst [vmem:[%s170 + $0x30] sm:$0xf] %v3464
      %3529 = vst [vmem:[%s170 + $0x34] sm:$0xf] %v3465
      %3530 = vst [vmem:[%s170 + $0x38] sm:$0xf] %v3466
      %3531 = vst [vmem:[%s170 + $0x3c] sm:$0xf] %v3467
      %3532 = vst [vmem:[%s170 + $0x40] sm:$0xf] %v3468
      %3533 = vst [vmem:[%s170 + $0x44] sm:$0xf] %v3469
      %3534 = vst [vmem:[%s170 + $0x48] sm:$0xf] %v3470
      %3535 = vst [vmem:[%s170 + $0x4c] sm:$0xf] %v3471
      %3536 = vst [vmem:[%s170 + $0x50] sm:$0xf] %v3472
      %3537 = vst [vmem:[%s170 + $0x54] sm:$0xf] %v3473
      %3538 = vst [vmem:[%s170 + $0x58] sm:$0xf] %v3474
      %3539 = vst [vmem:[%s170 + $0x5c] sm:$0xf] %v3475
      %3540 = vst [vmem:[%s170 + $0x60] sm:$0xf] %v3476
      %3541 = vst [vmem:[%s170 + $0x64] sm:$0xf] %v3477
      %3542 = vst [vmem:[%s170 + $0x68] sm:$0xf] %v3478
      %3543 = vst [vmem:[%s170 + $0x6c] sm:$0xf] %v3479
      %3544 = vst [vmem:[%s170 + $0x70] sm:$0xf] %v3480
      %3545 = vst [vmem:[%s170 + $0x74] sm:$0xf] %v3481
      %3546 = vst [vmem:[%s170 + $0x78] sm:$0xf] %v3482
      %3547 = vst [vmem:[%s170 + $0x7c] sm:$0xf] %v3483
      %p3548 = scmp.lt.s32.totalorder %s14, 1
      %s3549 = scalar_select %p3548, %s14, 1
      %s3550 = smul.addr %s3549, 32
      %s3551 = smul.addr %s3550, 4
      %s3552 = scalar_lea.vmem %s3, %s3551
      // Predicated region
      $region33: #{seg_qyl_forward.12} parent=31 // pred_check
        %p3553 = pneg %p100
      $region34: #{seg_qyl_forward.12} parent=31 // pred_check_branch
        %3555 = sbr.rel (%p3553) target = $region36
      $region35: #{seg_qyl_forward.12} parent=31 // pred_region
        _
      $region36: #{seg_qyl_forward.12} parent=31 // pred_fallthru
        _
    $region32: #{seg_qyl_forward.12} parent=5 // pred_fallthru
      _
    %p3556 = scmp.le.s32.totalorder 2, %s9
    // Predicated region
    $region37: #{seg_qyl_forward.12} parent=5 // pred_check
      %p3557 = pneg %p3556
    $region38: #{seg_qyl_forward.12} parent=5 // pred_check_branch
      %3559 = sbr.rel (%p3557) target = $region40
    $region39: #{seg_qyl_forward.12} parent=5 // pred_region
      %s3560 = ssub.s32 %s9, 2
      // Predicated region
      $region41: #{seg_qyl_forward.12} parent=39 // pred_check
        %p3561 = pneg %p106
      $region42: #{seg_qyl_forward.12} parent=39 // pred_check_branch
        %3563 = sbr.rel (%p3561) target = $region44
      $region43: #{seg_qyl_forward.12} parent=39 // pred_region
        %p3564 = scmp.lt.s32.totalorder %s15, 1
        %s3565 = scalar_select %p3564, %s15, 1
        %s3566 = smul.addr %s3565, 32
        %s3567 = smul.addr %s3566, 4
        %s3568 = scalar_lea.vmem %s3, %s3567
      $region44: #{seg_qyl_forward.12} parent=39 // pred_fallthru
        _
    $region40: #{seg_qyl_forward.12} parent=5 // pred_fallthru
      _
  $region6: #{seg_qyl_forward.12} parent=0 // loop_footer
    %s13 = sadd.s32 1, %s9
  $region7: #{seg_qyl_forward.12} parent=0 // loop_footer_branch
    %8 = sbr.rel target = $region3
  $region8: #{seg_qyl_forward.12} parent=0 // loop_exit
    _

// kernel: seg_qyl_forward.14
$region0: #{seg_qyl_forward.14}
  #allocation0 [shape = 'u32[]', space=smem, size = 0x4, offset = 0x4, fixed_abs, tag = 'smem constant byte address 0x4 - core index']
  #allocation1 [shape = 'u32[144,128]{1,0:T(1,128)}', space=vmem, size = 0x12000, scoped, tag = 'internal scratch']
  %s0 = inlined_call_operand.vmem [shape: bf16[2,10,10,128], index: 0, kind: input, shape index: {}]
  %s1 = inlined_call_operand.vmem [shape: bf16[9,128,128], index: 1, kind: input, shape index: {}]
  %s2 = inlined_call_operand.vmem [shape: f32[1,128], index: 2, kind: input, shape index: {}]
  %s3 = inlined_call_operand.vmem [shape: bf16[2,8,8,128], index: 3, kind: output, shape index: {}]
  %s4 = sld [smem:[#allocation0]]
  $region45: #{seg_qyl_forward.14} parent=0
    _
  %s6 = ssub.s32 1, %s4
  %s7 = scalar_select 0, %s6, %s4
  loop: start=0, step=1, limit=4
  $region2: #{seg_qyl_forward.14} parent=0 // loop_pre_header
    _
  $region3: #{seg_qyl_forward.14} parent=0 // loop_header
    %s9 = sphi 0, %s13
    %p10 = scmp.ge.s32.totalorder %s9, 4
    %s19 = sphi 0, %s21
    %s22 = sphi 0, %s19
    %s23 = sphi 0, %s22
    %s39 = sphi 0, %s23
    %s43 = sphi 0, %s43
    %s45 = sphi 0, %s43
    %s46 = sphi 0, %s45
    %s60 = sphi 0, %s46
    %s64 = sphi 0, %s64
    %s66 = sphi 0, %s64
    %s67 = sphi 0, %s66
    %s81 = sphi 0, %s67
    %s87 = sphi 0, %s89
    %s90 = sphi 0, %s87
    %s91 = sphi 0, %s90
    %s107 = sphi 0, %s91
  $region4: #{seg_qyl_forward.14} parent=0 // loop_header_branch
    %12 = sbr.rel (%p10) target = $region8
  $region5: #{seg_qyl_forward.14} parent=0 // loop_body
    %s14 = ssub.s32 %s9, 1
    %s15 = ssub.s32 %s9, 2
    %s16 = sadd.s32 %s9, 1
    %s17 = ssub.s32 %s9, %s16
    %p18 = scmp.eq.s32.totalorder %s17, 0
    %s20 = sadd.s32 %s19, 1
    %s21 = scalar_select %p18, %s19, %s20
    %p24 = pneg %p18
    %p25 = scmp.eq.s32.totalorder %s9, 1
    %p26 = por %p24, %p25
    %p27 = scmp.ne.s32.totalorder %s19, %s22
    %p28 = scmp.eq.s32.totalorder %s9, 0
    %p29 = por %p27, %p28
    %p30 = scmp.ne.s32.totalorder %s19, %s22
    %p31 = scmp.eq.s32.totalorder %s14, 1
    %p32 = por %p30, %p31
    %p33 = scmp.ne.s32.totalorder %s22, %s23
    %p34 = scmp.eq.s32.totalorder %s14, 0
    %p35 = por %p33, %p34
    %p36 = scmp.ne.s32.totalorder %s22, %s23
    %p37 = scmp.eq.s32.totalorder %s15, 1
    %p38 = por %p36, %p37
    %p40 = scmp.ne.s32.totalorder %s23, %s39
    %p41 = scmp.eq.s32.totalorder %s15, 0
    %p42 = por %p40, %p41
    %s44 = sadd.s32 %s43, 1
    %p47 = scmp.eq.s32.totalorder %s9, 1
    %p48 = scmp.ne.s32.totalorder %s43, %s45
    %p49 = scmp.eq.s32.totalorder %s9, 0
    %p50 = por %p48, %p49
    %p51 = scmp.ne.s32.totalorder %s43, %s45
    %p52 = scmp.eq.s32.totalorder %s14, 1
    %p53 = por %p51, %p52
    %p54 = scmp.ne.s32.totalorder %s45, %s46
    %p55 = scmp.eq.s32.totalorder %s14, 0
    %p56 = por %p54, %p55
    %p57 = scmp.ne.s32.totalorder %s45, %s46
    %p58 = scmp.eq.s32.totalorder %s15, 1
    %p59 = por %p57, %p58
    %p61 = scmp.ne.s32.totalorder %s46, %s60
    %p62 = scmp.eq.s32.totalorder %s15, 0
    %p63 = por %p61, %p62
    %s65 = sadd.s32 %s64, 1
    %p68 = scmp.eq.s32.totalorder %s9, 1
    %p69 = scmp.ne.s32.totalorder %s64, %s66
    %p70 = scmp.eq.s32.totalorder %s9, 0
    %p71 = por %p69, %p70
    %p72 = scmp.ne.s32.totalorder %s64, %s66
    %p73 = scmp.eq.s32.totalorder %s14, 1
    %p74 = por %p72, %p73
    %p75 = scmp.ne.s32.totalorder %s66, %s67
    %p76 = scmp.eq.s32.totalorder %s14, 0
    %p77 = por %p75, %p76
    %p78 = scmp.ne.s32.totalorder %s66, %s67
    %p79 = scmp.eq.s32.totalorder %s15, 1
    %p80 = por %p78, %p79
    %p82 = scmp.ne.s32.totalorder %s67, %s81
    %p83 = scmp.eq.s32.totalorder %s15, 0
    %p84 = por %p82, %p83
    %s85 = ssub.s32 %s9, %s16
    %p86 = scmp.eq.s32.totalorder %s85, 0
    %s88 = sadd.s32 %s87, 1
    %s89 = scalar_select %p86, %s87, %s88
    %p92 = pneg %p86
    %p93 = scmp.eq.s32.totalorder %s9, 1
    %p94 = por %p92, %p93
    %p95 = scmp.ne.s32.totalorder %s87, %s90
    %p96 = scmp.eq.s32.totalorder %s9, 0
    %p97 = por %p95, %p96
    %p98 = scmp.ne.s32.totalorder %s87, %s90
    %p99 = scmp.eq.s32.totalorder %s14, 1
    %p100 = por %p98, %p99
    %p101 = scmp.ne.s32.totalorder %s90, %s91
    %p102 = scmp.eq.s32.totalorder %s14, 0
    %p103 = por %p101, %p102
    %p104 = scmp.ne.s32.totalorder %s90, %s91
    %p105 = scmp.eq.s32.totalorder %s15, 1
    %p106 = por %p104, %p105
    %p108 = scmp.ne.s32.totalorder %s91, %s107
    %p109 = scmp.eq.s32.totalorder %s15, 0
    %p110 = por %p108, %p109
    %p111 = scmp.le.s32.totalorder 1, %s9
    %p112 = scmp.lt.s32.totalorder %s9, 3
    %p113 = pnand %p111, %p112
    %p114 = pneg %p113
    // Predicated region
    $region9: #{seg_qyl_forward.14} parent=5 // pred_check
      _
    $region10: #{seg_qyl_forward.14} parent=5 // pred_check_branch
      %116 = sbr.rel (%p113) target = $region12
    $region11: #{seg_qyl_forward.14} parent=5 // pred_region
      %s117 = ssub.s32 %s9, 1
      // Predicated region
      $region13: #{seg_qyl_forward.14} parent=11 // pred_check
        %p118 = pneg %p56
      $region14: #{seg_qyl_forward.14} parent=11 // pred_check_branch
        %120 = sbr.rel (%p118) target = $region16
      $region15: #{seg_qyl_forward.14} parent=11 // pred_region
        _
      $region16: #{seg_qyl_forward.14} parent=11 // pred_fallthru
        _
      // Predicated region
      $region17: #{seg_qyl_forward.14} parent=11 // pred_check
        %p121 = pneg %p77
      $region18: #{seg_qyl_forward.14} parent=11 // pred_check_branch
        %123 = sbr.rel (%p121) target = $region20
      $region19: #{seg_qyl_forward.14} parent=11 // pred_region
        _
      $region20: #{seg_qyl_forward.14} parent=11 // pred_fallthru
        _
    $region12: #{seg_qyl_forward.14} parent=5 // pred_fallthru
      _
    %p124 = scmp.lt.s32.totalorder %s9, 2
    // Predicated region
    $region21: #{seg_qyl_forward.14} parent=5 // pred_check
      %p125 = pneg %p124
    $region22: #{seg_qyl_forward.14} parent=5 // pred_check_branch
      %127 = sbr.rel (%p125) target = $region24
    $region23: #{seg_qyl_forward.14} parent=5 // pred_region
      // Predicated region
      $region25: #{seg_qyl_forward.14} parent=23 // pred_check
        %p128 = pneg %p29
      $region26: #{seg_qyl_forward.14} parent=23 // pred_check_branch
        %130 = sbr.rel (%p128) target = $region28
      $region27: #{seg_qyl_forward.14} parent=23 // pred_region
        %p131 = scmp.lt.s32.totalorder %s9, 1
        %s132 = scalar_select %p131, %s9, 1
        %s133 = smul.addr %s132, 20
        %s134 = smul.addr %s133, 4
        %s135 = scalar_lea.vmem %s0, %s134
      $region28: #{seg_qyl_forward.14} parent=23 // pred_fallthru
        _
    $region24: #{seg_qyl_forward.14} parent=5 // pred_fallthru
      _
    %p136 = scmp.le.s32.totalorder 1, %s9
    %p137 = scmp.lt.s32.totalorder %s9, 3
    %p138 = pnand %p136, %p137
    %p139 = pneg %p138
    // Predicated region
    $region29: #{seg_qyl_forward.14} parent=5 // pred_check
      _
    $region30: #{seg_qyl_forward.14} parent=5 // pred_check_branch
      %141 = sbr.rel (%p138) target = $region32
    $region31: #{seg_qyl_forward.14} parent=5 // pred_region
      %s142 = ssub.s32 %s9, 1
      %p143 = scmp.lt.s32.totalorder %s14, 1
      %s144 = scalar_select %p143, %s14, 1
      %s145 = smul.addr %s144, 20
      %s146 = smul.addr %s145, 4
      %s147 = scalar_lea.vmem %s0, %s146
      %p148 = pneg %p35
      %p149 = pneg %p32
      %p150 = pneg %p56
      %p151 = pneg %p53
      %p152 = pneg %p77
      %p153 = pneg %p74
      %p154 = pneg %p103
      %p155 = pneg %p100
      %p156 = scmp.lt.s32.totalorder %s14, 1
      %s157 = scalar_select %p156, %s14, 1
      %s158 = smul.addr %s157, 8
      %s159 = smul.addr %s158, 4
      %s160 = scalar_lea.vmem %s3, %s159
      %p161 = scmp.lt.s32.totalorder %s14, 1
      %s162 = scalar_select %p161, %s14, 1
      %s163 = smul.addr %s162, 20
      %s164 = smul.addr %s163, 4
      %s165 = scalar_lea.vmem %s0, %s164
      %p166 = scmp.lt.s32.totalorder %s14, 1
      %s167 = scalar_select %p166, %s14, 1
      %s168 = smul.addr %s167, 8
      %s169 = smul.addr %s168, 4
      %s170 = scalar_lea.vmem %s3, %s169
      %v172 = vld [vmem:[%s165] sm:$0xf]
      %v173 = vld [vmem:[%s165 + $0x4] sm:$0x1]
      %v174 = vld [vmem:[%s165 + $0x8] sm:$0xf]
      %v175 = vld [vmem:[%s165 + $0xc] sm:$0x1]
      %v176 = vld [vmem:[%s165 + $0x10] sm:$0xf]
      %v177 = vld [vmem:[%s165 + $0x14] sm:$0x1]
      %v178 = vld [vmem:[%s165 + $0x18] sm:$0xf]
      %v179 = vld [vmem:[%s165 + $0x1c] sm:$0x1]
      %v180 = vld [vmem:[%s165 + $0x20] sm:$0xf]
      %v181 = vld [vmem:[%s165 + $0x24] sm:$0x1]
      %v182 = vld [vmem:[%s165 + $0x28] sm:$0xf]
      %v183 = vld [vmem:[%s165 + $0x2c] sm:$0x1]
      %v184 = vld [vmem:[%s165 + $0x30] sm:$0xf]
      %v185 = vld [vmem:[%s165 + $0x34] sm:$0x1]
      %v186 = vld [vmem:[%s165 + $0x38] sm:$0xf]
      %v187 = vld [vmem:[%s165 + $0x3c] sm:$0x1]
      %v188 = vld [vmem:[%s165 + $0x40] sm:$0xf]
      %v189 = vld [vmem:[%s165 + $0x44] sm:$0x1]
      %v190 = vld [vmem:[%s165 + $0x48] sm:$0xf]
      %v191 = vld [vmem:[%s165 + $0x4c] sm:$0x1]
      %v192 = vld [vmem:[%s1] sm:$0xf]
      %v193 = vld [vmem:[%s1 + $0x4] sm:$0xf]
      %v194 = vld [vmem:[%s1 + $0x8] sm:$0xf]
      %v195 = vld [vmem:[%s1 + $0xc] sm:$0xf]
      %v196 = vld [vmem:[%s1 + $0x10] sm:$0xf]
      %v197 = vld [vmem:[%s1 + $0x14] sm:$0xf]
      %v198 = vld [vmem:[%s1 + $0x18] sm:$0xf]
      %v199 = vld [vmem:[%s1 + $0x1c] sm:$0xf]
      %v200 = vld [vmem:[%s1 + $0x20] sm:$0xf]
      %v201 = vld [vmem:[%s1 + $0x24] sm:$0xf]
      %v202 = vld [vmem:[%s1 + $0x28] sm:$0xf]
      %v203 = vld [vmem:[%s1 + $0x2c] sm:$0xf]
      %v204 = vld [vmem:[%s1 + $0x30] sm:$0xf]
      %v205 = vld [vmem:[%s1 + $0x34] sm:$0xf]
      %v206 = vld [vmem:[%s1 + $0x38] sm:$0xf]
      %v207 = vld [vmem:[%s1 + $0x3c] sm:$0xf]
      %vm208 = vsmask.f32 3328
      %vm209 = vsmask.f32 7440
      %vm210 = vmor %vm208, %vm209
      %v212 = vshrl.u32 %v172, 16
      %v214 = vrot.slane %v212, 4
      %v215 = vshll.u32 %v172, 16
      %v217 = vrot.slane %v215, 5
      %v218 = vor.u32 %v214, %v217
      %v219 = vrot.slane %v218, 4
      %v221 = vshll.u32 %v173, 16
      %v223 = vrot.slane %v221, 5
      %v224 = vsel %vm210, %v219, %v223
      %v226 = vshrl.u32 %v174, 16
      %v228 = vrot.slane %v226, 4
      %v229 = vshll.u32 %v174, 16
      %v231 = vrot.slane %v229, 5
      %v232 = vor.u32 %v228, %v231
      %v233 = vrot.slane %v232, 4
      %v235 = vshll.u32 %v175, 16
      %v237 = vrot.slane %v235, 5
      %v238 = vsel %vm210, %v233, %v237
      %v240 = vshrl.u32 %v176, 16
      %v242 = vrot.slane %v240, 4
      %v243 = vshll.u32 %v176, 16
      %v245 = vrot.slane %v243, 5
      %v246 = vor.u32 %v242, %v245
      %v247 = vrot.slane %v246, 4
      %v249 = vshll.u32 %v177, 16
      %v251 = vrot.slane %v249, 5
      %v252 = vsel %vm210, %v247, %v251
      %v254 = vshrl.u32 %v178, 16
      %v256 = vrot.slane %v254, 4
      %v257 = vshll.u32 %v178, 16
      %v259 = vrot.slane %v257, 5
      %v260 = vor.u32 %v256, %v259
      %v261 = vrot.slane %v260, 4
      %v263 = vshll.u32 %v179, 16
      %v265 = vrot.slane %v263, 5
      %v266 = vsel %vm210, %v261, %v265
      %v268 = vshrl.u32 %v180, 16
      %v270 = vrot.slane %v268, 4
      %v271 = vshll.u32 %v180, 16
      %v273 = vrot.slane %v271, 5
      %v274 = vor.u32 %v270, %v273
      %v275 = vrot.slane %v274, 4
      %v277 = vshll.u32 %v181, 16
      %v279 = vrot.slane %v277, 5
      %v280 = vsel %vm210, %v275, %v279
      %v282 = vshrl.u32 %v182, 16
      %v284 = vrot.slane %v282, 4
      %v285 = vshll.u32 %v182, 16
      %v287 = vrot.slane %v285, 5
      %v288 = vor.u32 %v284, %v287
      %v289 = vrot.slane %v288, 4
      %v291 = vshll.u32 %v183, 16
      %v293 = vrot.slane %v291, 5
      %v294 = vsel %vm210, %v289, %v293
      %v296 = vshrl.u32 %v184, 16
      %v298 = vrot.slane %v296, 4
      %v299 = vshll.u32 %v184, 16
      %v301 = vrot.slane %v299, 5
      %v302 = vor.u32 %v298, %v301
      %v303 = vrot.slane %v302, 4
      %v305 = vshll.u32 %v185, 16
      %v307 = vrot.slane %v305, 5
      %v308 = vsel %vm210, %v303, %v307
      %v310 = vshrl.u32 %v186, 16
      %v312 = vrot.slane %v310, 4
      %v313 = vshll.u32 %v186, 16
      %v315 = vrot.slane %v313, 5
      %v316 = vor.u32 %v312, %v315
      %v317 = vrot.slane %v316, 4
      %v319 = vshll.u32 %v187, 16
      %v321 = vrot.slane %v319, 5
      %v322 = vsel %vm210, %v317, %v321
      %s323 = scalar_lea.vmem %s1, 64
      %v324 = vld [vmem:[%s323] sm:$0xf]
      %v325 = vld [vmem:[%s323 + $0x4] sm:$0xf]
      %v326 = vld [vmem:[%s323 + $0x8] sm:$0xf]
      %v327 = vld [vmem:[%s323 + $0xc] sm:$0xf]
      %v328 = vld [vmem:[%s323 + $0x10] sm:$0xf]
      %v329 = vld [vmem:[%s323 + $0x14] sm:$0xf]
      %v330 = vld [vmem:[%s323 + $0x18] sm:$0xf]
      %v331 = vld [vmem:[%s323 + $0x1c] sm:$0xf]
      %v332 = vld [vmem:[%s323 + $0x20] sm:$0xf]
      %v333 = vld [vmem:[%s323 + $0x24] sm:$0xf]
      %v334 = vld [vmem:[%s323 + $0x28] sm:$0xf]
      %v335 = vld [vmem:[%s323 + $0x2c] sm:$0xf]
      %v336 = vld [vmem:[%s323 + $0x30] sm:$0xf]
      %v337 = vld [vmem:[%s323 + $0x34] sm:$0xf]
      %v338 = vld [vmem:[%s323 + $0x38] sm:$0xf]
      %v339 = vld [vmem:[%s323 + $0x3c] sm:$0xf]
      %v340 = vunpack.c.l.b16 %v224
      %v341 = vunpack.c.l.b16 %v238
      %v342 = vunpack.c.l.b16 %v252
      %v343 = vunpack.c.l.b16 %v266
      %v344 = vunpack.c.l.b16 %v280
      %v345 = vunpack.c.l.b16 %v294
      %v346 = vunpack.c.l.b16 %v308
      %v347 = vunpack.c.l.b16 %v322
      %v348 = vpack.c.b16 %v341, %v340
      %v349 = vpack.c.b16 %v343, %v342
      %v350 = vpack.c.b16 %v345, %v344
      %v351 = vpack.c.b16 %v347, %v346
      %v372 = vunpack.c.l.b16 %v324
      %v373 = vunpack.c.l.b16 %v325
      %v374 = vunpack.c.l.b16 %v326
      %v375 = vunpack.c.l.b16 %v327
      %v376 = vunpack.c.l.b16 %v328
      %v377 = vunpack.c.l.b16 %v329
      %v378 = vunpack.c.l.b16 %v330
      %v379 = vunpack.c.l.b16 %v331
      %v380 = vunpack.c.l.b16 %v332
      %v381 = vunpack.c.l.b16 %v333
      %v382 = vunpack.c.l.b16 %v334
      %v383 = vunpack.c.l.b16 %v335
      %v384 = vunpack.c.l.b16 %v336
      %v385 = vunpack.c.l.b16 %v337
      %v386 = vunpack.c.l.b16 %v338
      %v387 = vunpack.c.l.b16 %v339
      %v388 = vpack.c.b16 %v373, %v372
      %v389 = vpack.c.b16 %v375, %v374
      %v390 = vpack.c.b16 %v377, %v376
      %v391 = vpack.c.b16 %v379, %v378
      %v392 = vpack.c.b16 %v381, %v380
      %v393 = vpack.c.b16 %v383, %v382
      %v394 = vpack.c.b16 %v385, %v384
      %v395 = vpack.c.b16 %v387, %v386
      %404 = vmatprep.subr.bf16.mxu0 0
      %405 = vmatpush1.bf16.msra.mxu0 %v388
      %406 = vmatprep.subr.bf16.mxu0 0
      %407 = vmatpush1.bf16.msra.mxu0 %v389
      %408 = vmatprep.subr.bf16.mxu0 0
      %409 = vmatpush1.bf16.msra.mxu0 %v390
      %410 = vmatprep.subr.bf16.mxu0 0
      %411 = vmatpush1.bf16.msra.mxu0 %v391
      %412 = vmatprep.subr.bf16.mxu0 0
      %413 = vmatpush1.bf16.msra.mxu0 %v392
      %414 = vmatprep.subr.bf16.mxu0 0
      %415 = vmatpush1.bf16.msra.mxu0 %v393
      %416 = vmatprep.subr.bf16.mxu0 0
      %417 = vmatpush1.bf16.msra.mxu0 %v394
      %418 = vmatprep.subr.bf16.mxu0 0
      %419 = vmatpush1.bf16.msra.mxu0 %v395
      %420 = vmatprep.subr.bf16.mxu0 0
      %421 = vmatpush1.bf16.msra.mxu0 0
      %422 = vmatprep.subr.bf16.mxu0 0
      %423 = vmatpush1.bf16.msra.mxu0 0
      %424 = vmatprep.subr.bf16.mxu0 0
      %425 = vmatpush1.bf16.msra.mxu0 0
      %426 = vmatprep.subr.bf16.mxu0 0
      %427 = vmatpush1.bf16.msra.mxu0 0
      %428 = vmatprep.subr.bf16.mxu0 0
      %429 = vmatpush1.bf16.msra.mxu0 0
      %430 = vmatprep.subr.bf16.mxu0 0
      %431 = vmatpush1.bf16.msra.mxu0 0
      %432 = vmatprep.subr.bf16.mxu0 0
      %433 = vmatpush1.bf16.msra.mxu0 0
      %434 = vmatprep.subr.bf16.mxu0 0
      %435 = vmatpush1.bf16.msra.mxu0 0
      %436 = vmatprep.mubr.bf16.mxu0 0
      %437 = vmatmul.mubr.bf16.gmra.mrb[0].mxu0 %v348
      %v438 = vpop.f32.mrb[0].mxu0
      %v439 = vadd.f32 0.0, %v438
      %v440 = vpop.f32.mrb[0].mxu0
      %v441 = vpop.f32.mrb[0].mxu0
      %v442 = vadd.f32 0.0, %v441
      %v443 = vpop.f32.mrb[0].mxu0
      %444 = vmatprep.mubr.bf16.mxu0 0
      %445 = vmatmul.mubr.bf16.gmra.mrb[0].mxu0 %v349
      %v446 = vpop.f32.mrb[0].mxu0
      %v447 = vadd.f32 0.0, %v446
      %v448 = vpop.f32.mrb[0].mxu0
      %v449 = vpop.f32.mrb[0].mxu0
      %v450 = vadd.f32 0.0, %v449
      %v451 = vpop.f32.mrb[0].mxu0
      %452 = vmatprep.mubr.bf16.mxu0 0
      %453 = vmatmul.mubr.bf16.gmra.mrb[0].mxu0 %v350
      %v454 = vpop.f32.mrb[0].mxu0
      %v455 = vadd.f32 0.0, %v454
      %v456 = vpop.f32.mrb[0].mxu0
      %v457 = vpop.f32.mrb[0].mxu0
      %v458 = vadd.f32 0.0, %v457
      %v459 = vpop.f32.mrb[0].mxu0
      %460 = vmatprep.mubr.bf16.mxu0 0
      %461 = vmatmul.mubr.bf16.gmra.mrb[0].mxu0 %v351
      %v462 = vpop.f32.mrb[0].mxu0
      %v463 = vadd.f32 0.0, %v462
      %v464 = vpop.f32.mrb[0].mxu0
      %v465 = vpop.f32.mrb[0].mxu0
      %v466 = vadd.f32 0.0, %v465
      %v467 = vpop.f32.mrb[0].mxu0
      %468 = vdwg.mxu0
      %v477 = vunpack.c.l.b16 %v172
      %v478 = vunpack.c.l.b16 %v174
      %v479 = vunpack.c.l.b16 %v176
      %v480 = vunpack.c.l.b16 %v178
      %v481 = vunpack.c.l.b16 %v180
      %v482 = vunpack.c.l.b16 %v182
      %v483 = vunpack.c.l.b16 %v184
      %v484 = vunpack.c.l.b16 %v186
      %v485 = vpack.c.b16 %v478, %v477
      %v486 = vpack.c.b16 %v480, %v479
      %v487 = vpack.c.b16 %v482, %v481
      %v488 = vpack.c.b16 %v484, %v483
      %v509 = vunpack.c.l.b16 %v192
      %v510 = vunpack.c.l.b16 %v193
      %v511 = vunpack.c.l.b16 %v194
      %v512 = vunpack.c.l.b16 %v195
      %v513 = vunpack.c.l.b16 %v196
      %v514 = vunpack.c.l.b16 %v197
      %v515 = vunpack.c.l.b16 %v198
      %v516 = vunpack.c.l.b16 %v199
      %v517 = vunpack.c.l.b16 %v200
      %v518 = vunpack.c.l.b16 %v201
      %v519 = vunpack.c.l.b16 %v202
      %v520 = vunpack.c.l.b16 %v203
      %v521 = vunpack.c.l.b16 %v204
      %v522 = vunpack.c.l.b16 %v205
      %v523 = vunpack.c.l.b16 %v206
      %v524 = vunpack.c.l.b16 %v207
      %v525 = vpack.c.b16 %v510, %v509
      %v526 = vpack.c.b16 %v512, %v511
      %v527 = vpack.c.b16 %v514, %v513
      %v528 = vpack.c.b16 %v516, %v515
      %v529 = vpack.c.b16 %v518, %v517
      %v530 = vpack.c.b16 %v520, %v519
      %v531 = vpack.c.b16 %v522, %v521
      %v532 = vpack.c.b16 %v524, %v523
      %541 = vmatprep.subr.bf16.mxu0 0
      %542 = vmatpush1.bf16.msra.mxu0 %v525
      %543 = vmatprep.subr.bf16.mxu0 0
      %544 = vmatpush1.bf16.msra.mxu0 %v526
      %545 = vmatprep.subr.bf16.mxu0 0
      %546 = vmatpush1.bf16.msra.mxu0 %v527
      %547 = vmatprep.subr.bf16.mxu0 0
      %548 = vmatpush1.bf16.msra.mxu0 %v528
      %549 = vmatprep.subr.bf16.mxu0 0
      %550 = vmatpush1.bf16.msra.mxu0 %v529
      %551 = vmatprep.subr.bf16.mxu0 0
      %552 = vmatpush1.bf16.msra.mxu0 %v530
      %553 = vmatprep.subr.bf16.mxu0 0
      %554 = vmatpush1.bf16.msra.mxu0 %v531
      %555 = vmatprep.subr.bf16.mxu0 0
      %556 = vmatpush1.bf16.msra.mxu0 %v532
      %557 = vmatprep.subr.bf16.mxu0 0
      %558 = vmatpush1.bf16.msra.mxu0 0
      %559 = vmatprep.subr.bf16.mxu0 0
      %560 = vmatpush1.bf16.msra.mxu0 0
      %561 = vmatprep.subr.bf16.mxu0 0
      %562 = vmatpush1.bf16.msra.mxu0 0
      %563 = vmatprep.subr.bf16.mxu0 0
      %564 = vmatpush1.bf16.msra.mxu0 0
      %565 = vmatprep.subr.bf16.mxu0 0
      %566 = vmatpush1.bf16.msra.mxu0 0
      %567 = vmatprep.subr.bf16.mxu0 0
      %568 = vmatpush1.bf16.msra.mxu0 0
      %569 = vmatprep.subr.bf16.mxu0 0
      %570 = vmatpush1.bf16.msra.mxu0 0
      %571 = vmatprep.subr.bf16.mxu0 0
      %572 = vmatpush1.bf16.msra.mxu0 0
      %573 = vmatprep.mubr.bf16.mxu0 0
      %574 = vmatmul.mubr.bf16.gmra.mrb[0].mxu0 %v485
      %v575 = vpop.f32.mrb[0].mxu0
      %v576 = vadd.f32 %v439, %v575
      %v577 = vpop.f32.mrb[0].mxu0
      %v578 = vpop.f32.mrb[0].mxu0
      %v579 = vadd.f32 %v442, %v578
      %v580 = vpop.f32.mrb[0].mxu0
      %581 = vmatprep.mubr.bf16.mxu0 0
      %582 = vmatmul.mubr.bf16.gmra.mrb[0].mxu0 %v486
      %v583 = vpop.f32.mrb[0].mxu0
      %v584 = vadd.f32 %v447, %v583
      %v585 = vpop.f32.mrb[0].mxu0
      %v586 = vpop.f32.mrb[0].mxu0
      %v587 = vadd.f32 %v450, %v586
      %v588 = vpop.f32.mrb[0].mxu0
      %589 = vmatprep.mubr.bf16.mxu0 0
      %590 = vmatmul.mubr.bf16.gmra.mrb[0].mxu0 %v487
      %v591 = vpop.f32.mrb[0].mxu0
      %v592 = vadd.f32 %v455, %v591
      %v593 = vpop.f32.mrb[0].mxu0
      %v594 = vpop.f32.mrb[0].mxu0
      %v595 = vadd.f32 %v458, %v594
      %v596 = vpop.f32.mrb[0].mxu0
      %597 = vmatprep.mubr.bf16.mxu0 0
      %598 = vmatmul.mubr.bf16.gmra.mrb[0].mxu0 %v488
      %v599 = vpop.f32.mrb[0].mxu0
      %v600 = vadd.f32 %v463, %v599
      %v601 = vpop.f32.mrb[0].mxu0
      %v602 = vpop.f32.mrb[0].mxu0
      %v603 = vadd.f32 %v466, %v602
      %v604 = vpop.f32.mrb[0].mxu0
      %605 = vdwg.mxu0
      %vm614 = vcmask 1042432
      %vm615 = vcmask 1046532
      %vm616 = vmor %vm614, %vm615
      %v617 = vrot.slane %v172, 5
      %v618 = vrot.slane %v617, 4
      %v619 = vrot.slane %v173, 5
      %v620 = vsel %vm616, %v618, %v619
      %v621 = vrot.slane %v174, 5
      %v622 = vrot.slane %v621, 4
      %v623 = vrot.slane %v175, 5
      %v624 = vsel %vm616, %v622, %v623
      %v625 = vrot.slane %v176, 5
      %v626 = vrot.slane %v625, 4
      %v627 = vrot.slane %v177, 5
      %v628 = vsel %vm616, %v626, %v627
      %v629 = vrot.slane %v178, 5
      %v630 = vrot.slane %v629, 4
      %v631 = vrot.slane %v179, 5
      %v632 = vsel %vm616, %v630, %v631
      %v633 = vrot.slane %v180, 5
      %v634 = vrot.slane %v633, 4
      %v635 = vrot.slane %v181, 5
      %v636 = vsel %vm616, %v634, %v635
      %v637 = vrot.slane %v182, 5
      %v638 = vrot.slane %v637, 4
      %v639 = vrot.slane %v183, 5
      %v640 = vsel %vm616, %v638, %v639
      %v641 = vrot.slane %v184, 5
      %v642 = vrot.slane %v641, 4
      %v643 = vrot.slane %v185, 5
      %v644 = vsel %vm616, %v642, %v643
      %v645 = vrot.slane %v186, 5
      %v646 = vrot.slane %v645, 4
      %v647 = vrot.slane %v187, 5
      %v648 = vsel %vm616, %v646, %v647
      %s649 = scalar_lea.vmem %s1, 128
      %v650 = vld [vmem:[%s649] sm:$0xf]
      %v651 = vld [vmem:[%s649 + $0x4] sm:$0xf]
      %v652 = vld [vmem:[%s649 + $0x8] sm:$0xf]
      %v653 = vld [vmem:[%s649 + $0xc] sm:$0xf]
      %v654 = vld [vmem:[%s649 + $0x10] sm:$0xf]
      %v655 = vld [vmem:[%s649 + $0x14] sm:$0xf]
      %v656 = vld [vmem:[%s649 + $0x18] sm:$0xf]
      %v657 = vld [vmem:[%s649 + $0x1c] sm:$0xf]
      %v658 = vld [vmem:[%s649 + $0x20] sm:$0xf]
      %v659 = vld [vmem:[%s649 + $0x24] sm:$0xf]
      %v660 = vld [vmem:[%s649 + $0x28] sm:$0xf]
      %v661 = vld [vmem:[%s649 + $0x2c] sm:$0xf]
      %v662 = vld [vmem:[%s649 + $0x30] sm:$0xf]
      %v663 = vld [vmem:[%s649 + $0x34] sm:$0xf]
      %v664 = vld [vmem:[%s649 + $0x38] sm:$0xf]
      %v665 = vld [vmem:[%s649 + $0x3c] sm:$0xf]
      %v666 = vunpack.c.l.b16 %v620
      %v667 = vunpack.c.l.b16 %v624
      %v668 = vunpack.c.l.b16 %v628
      %v669 = vunpack.c.l.b16 %v632
      %v670 = vunpack.c.l.b16 %v636
      %v671 = vunpack.c.l.b16 %v640
      %v672 = vunpack.c.l.b16 %v644
      %v673 = vunpack.c.l.b16 %v648
      %v674 = vpack.c.b16 %v667, %v666
      %v675 = vpack.c.b16 %v669, %v668
      %v676 = vpack.c.b16 %v671, %v670
      %v677 = vpack.c.b16 %v673, %v672
      %v698 = vunpack.c.l.b16 %v650
      %v699 = vunpack.c.l.b16 %v651
      %v700 = vunpack.c.l.b16 %v652
      %v701 = vunpack.c.l.b16 %v653
      %v702 = vunpack.c.l.b16 %v654
      %v703 = vunpack.c.l.b16 %v655
      %v704 = vunpack.c.l.b16 %v656
      %v705 = vunpack.c.l.b16 %v657
      %v706 = vunpack.c.l.b16 %v658
      %v707 = vunpack.c.l.b16 %v659
      %v708 = vunpack.c.l.b16 %v660
      %v709 = vunpack.c.l.b16 %v661
      %v710 = vunpack.c.l.b16 %v662
      %v711 = vunpack.c.l.b16 %v663
      %v712 = vunpack.c.l.b16 %v664
      %v713 = vunpack.c.l.b16 %v665
      %v714 = vpack.c.b16 %v699, %v698
      %v715 = vpack.c.b16 %v701, %v700
      %v716 = vpack.c.b16 %v703, %v702
      %v717 = vpack.c.b16 %v705, %v704
      %v718 = vpack.c.b16 %v707, %v706
      %v719 = vpack.c.b16 %v709, %v708
      %v720 = vpack.c.b16 %v711, %v710
      %v721 = vpack.c.b16 %v713, %v712
      %730 = vmatprep.subr.bf16.mxu0 0
      %731 = vmatpush1.bf16.msra.mxu0 %v714
      %732 = vmatprep.subr.bf16.mxu0 0
      %733 = vmatpush1.bf16.msra.mxu0 %v715
      %734 = vmatprep.subr.bf16.mxu0 0
      %735 = vmatpush1.bf16.msra.mxu0 %v716
      %736 = vmatprep.subr.bf16.mxu0 0
      %737 = vmatpush1.bf16.msra.mxu0 %v717
      %738 = vmatprep.subr.bf16.mxu0 0
      %739 = vmatpush1.bf16.msra.mxu0 %v718
      %740 = vmatprep.subr.bf16.mxu0 0
      %741 = vmatpush1.bf16.msra.mxu0 %v719
      %742 = vmatprep.subr.bf16.mxu0 0
      %743 = vmatpush1.bf16.msra.mxu0 %v720
      %744 = vmatprep.subr.bf16.mxu0 0
      %745 = vmatpush1.bf16.msra.mxu0 %v721
      %746 = vmatprep.subr.bf16.mxu0 0
      %747 = vmatpush1.bf16.msra.mxu0 0
      %748 = vmatprep.subr.bf16.mxu0 0
      %749 = vmatpush1.bf16.msra.mxu0 0
      %750 = vmatprep.subr.bf16.mxu0 0
      %751 = vmatpush1.bf16.msra.mxu0 0
      %752 = vmatprep.subr.bf16.mxu0 0
      %753 = vmatpush1.bf16.msra.mxu0 0
      %754 = vmatprep.subr.bf16.mxu0 0
      %755 = vmatpush1.bf16.msra.mxu0 0
      %756 = vmatprep.subr.bf16.mxu0 0
      %757 = vmatpush1.bf16.msra.mxu0 0
      %758 = vmatprep.subr.bf16.mxu0 0
      %759 = vmatpush1.bf16.msra.mxu0 0
      %760 = vmatprep.subr.bf16.mxu0 0
      %761 = vmatpush1.bf16.msra.mxu0 0
      %762 = vmatprep.mubr.bf16.mxu0 0
      %763 = vmatmul.mubr.bf16.gmra.mrb[0].mxu0 %v674
      %v764 = vpop.f32.mrb[0].mxu0
      %v765 = vadd.f32 0.0, %v764
      %v766 = vpop.f32.mrb[0].mxu0
      %v767 = vpop.f32.mrb[0].mxu0
      %v768 = vadd.f32 0.0, %v767
      %v769 = vpop.f32.mrb[0].mxu0
      %770 = vmatprep.mubr.bf16.mxu0 0
      %771 = vmatmul.mubr.bf16.gmra.mrb[0].mxu0 %v675
      %v772 = vpop.f32.mrb[0].mxu0
      %v773 = vadd.f32 0.0, %v772
      %v774 = vpop.f32.mrb[0].mxu0
      %v775 = vpop.f32.mrb[0].mxu0
      %v776 = vadd.f32 0.0, %v775
      %v777 = vpop.f32.mrb[0].mxu0
      %778 = vmatprep.mubr.bf16.mxu0 0
      %779 = vmatmul.mubr.bf16.gmra.mrb[0].mxu0 %v676
      %v780 = vpop.f32.mrb[0].mxu0
      %v781 = vadd.f32 0.0, %v780
      %v782 = vpop.f32.mrb[0].mxu0
      %v783 = vpop.f32.mrb[0].mxu0
      %v784 = vadd.f32 0.0, %v783
      %v785 = vpop.f32.mrb[0].mxu0
      %786 = vmatprep.mubr.bf16.mxu0 0
      %787 = vmatmul.mubr.bf16.gmra.mrb[0].mxu0 %v677
      %v788 = vpop.f32.mrb[0].mxu0
      %v789 = vadd.f32 0.0, %v788
      %v790 = vpop.f32.mrb[0].mxu0
      %v791 = vpop.f32.mrb[0].mxu0
      %v792 = vadd.f32 0.0, %v791
      %v793 = vpop.f32.mrb[0].mxu0
      %794 = vdwg.mxu0
      %v795 = vadd.f32 %v576, %v765
      %v796 = vadd.f32 %v579, %v768
      %v797 = vadd.f32 %v584, %v773
      %v798 = vadd.f32 %v587, %v776
      %v799 = vadd.f32 %v592, %v781
      %v800 = vadd.f32 %v595, %v784
      %v801 = vadd.f32 %v600, %v789
      %v802 = vadd.f32 %v603, %v792
      %s803 = scalar_lea.vmem %s1, 192
      %v804 = vld [vmem:[%s803] sm:$0xf]
      %v805 = vld [vmem:[%s803 + $0x4] sm:$0xf]
      %v806 = vld [vmem:[%s803 + $0x8] sm:$0xf]
      %v807 = vld [vmem:[%s803 + $0xc] sm:$0xf]
      %v808 = vld [vmem:[%s803 + $0x10] sm:$0xf]
      %v809 = vld [vmem:[%s803 + $0x14] sm:$0xf]
      %v810 = vld [vmem:[%s803 + $0x18] sm:$0xf]
      %v811 = vld [vmem:[%s803 + $0x1c] sm:$0xf]
      %v812 = vld [vmem:[%s803 + $0x20] sm:$0xf]
      %v813 = vld [vmem:[%s803 + $0x24] sm:$0xf]
      %v814 = vld [vmem:[%s803 + $0x28] sm:$0xf]
      %v815 = vld [vmem:[%s803 + $0x2c] sm:$0xf]
      %v816 = vld [vmem:[%s803 + $0x30] sm:$0xf]
      %v817 = vld [vmem:[%s803 + $0x34] sm:$0xf]
      %v818 = vld [vmem:[%s803 + $0x38] sm:$0xf]
      %v819 = vld [vmem:[%s803 + $0x3c] sm:$0xf]
      %v821 = vunpack.c.l.b16 %v188
      %v822 = vpack.c.b16 %v479, %v478
      %v823 = vpack.c.b16 %v481, %v480
      %v824 = vpack.c.b16 %v483, %v482
      %v825 = vpack.c.b16 %v821, %v484
      %v846 = vunpack.c.l.b16 %v804
      %v847 = vunpack.c.l.b16 %v805
      %v848 = vunpack.c.l.b16 %v806
      %v849 = vunpack.c.l.b16 %v807
      %v850 = vunpack.c.l.b16 %v808
      %v851 = vunpack.c.l.b16 %v809
      %v852 = vunpack.c.l.b16 %v810
      %v853 = vunpack.c.l.b16 %v811
      %v854 = vunpack.c.l.b16 %v812
      %v855 = vunpack.c.l.b16 %v813
      %v856 = vunpack.c.l.b16 %v814
      %v857 = vunpack.c.l.b16 %v815
      %v858 = vunpack.c.l.b16 %v816
      %v859 = vunpack.c.l.b16 %v817
      %v860 = vunpack.c.l.b16 %v818
      %v861 = vunpack.c.l.b16 %v819
      %v862 = vpack.c.b16 %v847, %v846
      %v863 = vpack.c.b16 %v849, %v848
      %v864 = vpack.c.b16 %v851, %v850
      %v865 = vpack.c.b16 %v853, %v852
      %v866 = vpack.c.b16 %v855, %v854
      %v867 = vpack.c.b16 %v857, %v856
      %v868 = vpack.c.b16 %v859, %v858
      %v869 = vpack.c.b16 %v861, %v860
      %878 = vmatprep.subr.bf16.mxu0 0
      %879 = vmatpush1.bf16.msra.mxu0 %v862
      %880 = vmatprep.subr.bf16.mxu0 0
      %881 = vmatpush1.bf16.msra.mxu0 %v863
      %882 = vmatprep.subr.bf16.mxu0 0
      %883 = vmatpush1.bf16.msra.mxu0 %v864
      %884 = vmatprep.subr.bf16.mxu0 0
      %885 = vmatpush1.bf16.msra.mxu0 %v865
      %886 = vmatprep.subr.bf16.mxu0 0
      %887 = vmatpush1.bf16.msra.mxu0 %v866
      %888 = vmatprep.subr.bf16.mxu0 0
      %889 = vmatpush1.bf16.msra.mxu0 %v867
      %890 = vmatprep.subr.bf16.mxu0 0
      %891 = vmatpush1.bf16.msra.mxu0 %v868
      %892 = vmatprep.subr.bf16.mxu0 0
      %893 = vmatpush1.bf16.msra.mxu0 %v869
      %894 = vmatprep.subr.bf16.mxu0 0
      %895 = vmatpush1.bf16.msra.mxu0 0
      %896 = vmatprep.subr.bf16.mxu0 0
      %897 = vmatpush1.bf16.msra.mxu0 0
      %898 = vmatprep.subr.bf16.mxu0 0
      %899 = vmatpush1.bf16.msra.mxu0 0
      %900 = vmatprep.subr.bf16.mxu0 0
      %901 = vmatpush1.bf16.msra.mxu0 0
      %902 = vmatprep.subr.bf16.mxu0 0
      %903 = vmatpush1.bf16.msra.mxu0 0
      %904 = vmatprep.subr.bf16.mxu0 0
      %905 = vmatpush1.bf16.msra.mxu0 0
      %906 = vmatprep.subr.bf16.mxu0 0
      %907 = vmatpush1.bf16.msra.mxu0 0
      %908 = vmatprep.subr.bf16.mxu0 0
      %909 = vmatpush1.bf16.msra.mxu0 0
      %910 = vmatprep.mubr.bf16.mxu0 0
      %911 = vmatmul.mubr.bf16.gmra.mrb[0].mxu0 %v822
      %v912 = vpop.f32.mrb[0].mxu0
      %v913 = vadd.f32 0.0, %v912
      %v914 = vpop.f32.mrb[0].mxu0
      %v915 = vpop.f32.mrb[0].mxu0
      %v916 = vadd.f32 0.0, %v915
      %v917 = vpop.f32.mrb[0].mxu0
      %918 = vmatprep.mubr.bf16.mxu0 0
      %919 = vmatmul.mubr.bf16.gmra.mrb[0].mxu0 %v823
      %v920 = vpop.f32.mrb[0].mxu0
      %v921 = vadd.f32 0.0, %v920
      %v922 = vpop.f32.mrb[0].mxu0
      %v923 = vpop.f32.mrb[0].mxu0
      %v924 = vadd.f32 0.0, %v923
      %v925 = vpop.f32.mrb[0].mxu0
      %926 = vmatprep.mubr.bf16.mxu0 0
      %927 = vmatmul.mubr.bf16.gmra.mrb[0].mxu0 %v824
      %v928 = vpop.f32.mrb[0].mxu0
      %v929 = vadd.f32 0.0, %v928
      %v930 = vpop.f32.mrb[0].mxu0
      %v931 = vpop.f32.mrb[0].mxu0
      %v932 = vadd.f32 0.0, %v931
      %v933 = vpop.f32.mrb[0].mxu0
      %934 = vmatprep.mubr.bf16.mxu0 0
      %935 = vmatmul.mubr.bf16.gmra.mrb[0].mxu0 %v825
      %v936 = vpop.f32.mrb[0].mxu0
      %v937 = vadd.f32 0.0, %v936
      %v938 = vpop.f32.mrb[0].mxu0
      %v939 = vpop.f32.mrb[0].mxu0
      %v940 = vadd.f32 0.0, %v939
      %v941 = vpop.f32.mrb[0].mxu0
      %942 = vdwg.mxu0
      %v943 = vadd.f32 %v795, %v913
      %v944 = vadd.f32 %v796, %v916
      %v945 = vadd.f32 %v797, %v921
      %v946 = vadd.f32 %v798, %v924
      %v947 = vadd.f32 %v799, %v929
      %v948 = vadd.f32 %v800, %v932
      %v949 = vadd.f32 %v801, %v937
      %v950 = vadd.f32 %v802, %v940
      %v952 = vshrl.u32 %v188, 16
      %v954 = vrot.slane %v952, 4
      %v955 = vshll.u32 %v188, 16
      %v957 = vrot.slane %v955, 5
      %v958 = vor.u32 %v954, %v957
      %v959 = vrot.slane %v958, 4
      %v961 = vshll.u32 %v189, 16
      %v963 = vrot.slane %v961, 5
      %v964 = vsel %vm210, %v959, %v963
      %s965 = scalar_lea.vmem %s1, 256
      %v966 = vld [vmem:[%s965] sm:$0xf]
      %v967 = vld [vmem:[%s965 + $0x4] sm:$0xf]
      %v968 = vld [vmem:[%s965 + $0x8] sm:$0xf]
      %v969 = vld [vmem:[%s965 + $0xc] sm:$0xf]
      %v970 = vld [vmem:[%s965 + $0x10] sm:$0xf]
      %v971 = vld [vmem:[%s965 + $0x14] sm:$0xf]
      %v972 = vld [vmem:[%s965 + $0x18] sm:$0xf]
      %v973 = vld [vmem:[%s965 + $0x1c] sm:$0xf]
      %v974 = vld [vmem:[%s965 + $0x20] sm:$0xf]
      %v975 = vld [vmem:[%s965 + $0x24] sm:$0xf]
      %v976 = vld [vmem:[%s965 + $0x28] sm:$0xf]
      %v977 = vld [vmem:[%s965 + $0x2c] sm:$0xf]
      %v978 = vld [vmem:[%s965 + $0x30] sm:$0xf]
      %v979 = vld [vmem:[%s965 + $0x34] sm:$0xf]
      %v980 = vld [vmem:[%s965 + $0x38] sm:$0xf]
      %v981 = vld [vmem:[%s965 + $0x3c] sm:$0xf]
      %v982 = vunpack.c.l.b16 %v964
      %v983 = vpack.c.b16 %v342, %v341
      %v984 = vpack.c.b16 %v344, %v343
      %v985 = vpack.c.b16 %v346, %v345
      %v986 = vpack.c.b16 %v982, %v347
      %v1007 = vunpack.c.l.b16 %v966
      %v1008 = vunpack.c.l.b16 %v967
      %v1009 = vunpack.c.l.b16 %v968
      %v1010 = vunpack.c.l.b16 %v969
      %v1011 = vunpack.c.l.b16 %v970
      %v1012 = vunpack.c.l.b16 %v971
      %v1013 = vunpack.c.l.b16 %v972
      %v1014 = vunpack.c.l.b16 %v973
      %v1015 = vunpack.c.l.b16 %v974
      %v1016 = vunpack.c.l.b16 %v975
      %v1017 = vunpack.c.l.b16 %v976
      %v1018 = vunpack.c.l.b16 %v977
      %v1019 = vunpack.c.l.b16 %v978
      %v1020 = vunpack.c.l.b16 %v979
      %v1021 = vunpack.c.l.b16 %v980
      %v1022 = vunpack.c.l.b16 %v981
      %v1023 = vpack.c.b16 %v1008, %v1007
      %v1024 = vpack.c.b16 %v1010, %v1009
      %v1025 = vpack.c.b16 %v1012, %v1011
      %v1026 = vpack.c.b16 %v1014, %v1013
      %v1027 = vpack.c.b16 %v1016, %v1015
      %v1028 = vpack.c.b16 %v1018, %v1017
      %v1029 = vpack.c.b16 %v1020, %v1019
      %v1030 = vpack.c.b16 %v1022, %v1021
      %1039 = vmatprep.subr.bf16.mxu0 0
      %1040 = vmatpush1.bf16.msra.mxu0 %v1023
      %1041 = vmatprep.subr.bf16.mxu0 0
      %1042 = vmatpush1.bf16.msra.mxu0 %v1024
      %1043 = vmatprep.subr.bf16.mxu0 0
      %1044 = vmatpush1.bf16.msra.mxu0 %v1025
      %1045 = vmatprep.subr.bf16.mxu0 0
      %1046 = vmatpush1.bf16.msra.mxu0 %v1026
      %1047 = vmatprep.subr.bf16.mxu0 0
      %1048 = vmatpush1.bf16.msra.mxu0 %v1027
      %1049 = vmatprep.subr.bf16.mxu0 0
      %1050 = vmatpush1.bf16.msra.mxu0 %v1028
      %1051 = vmatprep.subr.bf16.mxu0 0
      %1052 = vmatpush1.bf16.msra.mxu0 %v1029
      %1053 = vmatprep.subr.bf16.mxu0 0
      %1054 = vmatpush1.bf16.msra.mxu0 %v1030
      %1055 = vmatprep.subr.bf16.mxu0 0
      %1056 = vmatpush1.bf16.msra.mxu0 0
      %1057 = vmatprep.subr.bf16.mxu0 0
      %1058 = vmatpush1.bf16.msra.mxu0 0
      %1059 = vmatprep.subr.bf16.mxu0 0
      %1060 = vmatpush1.bf16.msra.mxu0 0
      %1061 = vmatprep.subr.bf16.mxu0 0
      %1062 = vmatpush1.bf16.msra.mxu0 0
      %1063 = vmatprep.subr.bf16.mxu0 0
      %1064 = vmatpush1.bf16.msra.mxu0 0
      %1065 = vmatprep.subr.bf16.mxu0 0
      %1066 = vmatpush1.bf16.msra.mxu0 0
      %1067 = vmatprep.subr.bf16.mxu0 0
      %1068 = vmatpush1.bf16.msra.mxu0 0
      %1069 = vmatprep.subr.bf16.mxu0 0
      %1070 = vmatpush1.bf16.msra.mxu0 0
      %1071 = vmatprep.mubr.bf16.mxu0 0
      %1072 = vmatmul.mubr.bf16.gmra.mrb[0].mxu0 %v983
      %v1073 = vpop.f32.mrb[0].mxu0
      %v1074 = vadd.f32 0.0, %v1073
      %v1075 = vpop.f32.mrb[0].mxu0
      %v1076 = vpop.f32.mrb[0].mxu0
      %v1077 = vadd.f32 0.0, %v1076
      %v1078 = vpop.f32.mrb[0].mxu0
      %1079 = vmatprep.mubr.bf16.mxu0 0
      %1080 = vmatmul.mubr.bf16.gmra.mrb[0].mxu0 %v984
      %v1081 = vpop.f32.mrb[0].mxu0
      %v1082 = vadd.f32 0.0, %v1081
      %v1083 = vpop.f32.mrb[0].mxu0
      %v1084 = vpop.f32.mrb[0].mxu0
      %v1085 = vadd.f32 0.0, %v1084
      %v1086 = vpop.f32.mrb[0].mxu0
      %1087 = vmatprep.mubr.bf16.mxu0 0
      %1088 = vmatmul.mubr.bf16.gmra.mrb[0].mxu0 %v985
      %v1089 = vpop.f32.mrb[0].mxu0
      %v1090 = vadd.f32 0.0, %v1089
      %v1091 = vpop.f32.mrb[0].mxu0
      %v1092 = vpop.f32.mrb[0].mxu0
      %v1093 = vadd.f32 0.0, %v1092
      %v1094 = vpop.f32.mrb[0].mxu0
      %1095 = vmatprep.mubr.bf16.mxu0 0
      %1096 = vmatmul.mubr.bf16.gmra.mrb[0].mxu0 %v986
      %v1097 = vpop.f32.mrb[0].mxu0
      %v1098 = vadd.f32 0.0, %v1097
      %v1099 = vpop.f32.mrb[0].mxu0
      %v1100 = vpop.f32.mrb[0].mxu0
      %v1101 = vadd.f32 0.0, %v1100
      %v1102 = vpop.f32.mrb[0].mxu0
      %1103 = vdwg.mxu0
      %v1104 = vadd.f32 %v943, %v1074
      %v1105 = vadd.f32 %v944, %v1077
      %v1106 = vadd.f32 %v945, %v1082
      %v1107 = vadd.f32 %v946, %v1085
      %v1108 = vadd.f32 %v947, %v1090
      %v1109 = vadd.f32 %v948, %v1093
      %v1110 = vadd.f32 %v949, %v1098
      %v1111 = vadd.f32 %v950, %v1101
      %v1113 = vrot.slane %v188, 5
      %v1114 = vrot.slane %v1113, 4
      %v1115 = vrot.slane %v189, 5
      %v1116 = vsel %vm616, %v1114, %v1115
      %s1117 = scalar_lea.vmem %s1, 320
      %v1118 = vld [vmem:[%s1117] sm:$0xf]
      %v1119 = vld [vmem:[%s1117 + $0x4] sm:$0xf]
      %v1120 = vld [vmem:[%s1117 + $0x8] sm:$0xf]
      %v1121 = vld [vmem:[%s1117 + $0xc] sm:$0xf]
      %v1122 = vld [vmem:[%s1117 + $0x10] sm:$0xf]
      %v1123 = vld [vmem:[%s1117 + $0x14] sm:$0xf]
      %v1124 = vld [vmem:[%s1117 + $0x18] sm:$0xf]
      %v1125 = vld [vmem:[%s1117 + $0x1c] sm:$0xf]
      %v1126 = vld [vmem:[%s1117 + $0x20] sm:$0xf]
      %v1127 = vld [vmem:[%s1117 + $0x24] sm:$0xf]
      %v1128 = vld [vmem:[%s1117 + $0x28] sm:$0xf]
      %v1129 = vld [vmem:[%s1117 + $0x2c] sm:$0xf]
      %v1130 = vld [vmem:[%s1117 + $0x30] sm:$0xf]
      %v1131 = vld [vmem:[%s1117 + $0x34] sm:$0xf]
      %v1132 = vld [vmem:[%s1117 + $0x38] sm:$0xf]
      %v1133 = vld [vmem:[%s1117 + $0x3c] sm:$0xf]
      %v1134 = vunpack.c.l.b16 %v1116
      %v1135 = vpack.c.b16 %v668, %v667
      %v1136 = vpack.c.b16 %v670, %v669
      %v1137 = vpack.c.b16 %v672, %v671
      %v1138 = vpack.c.b16 %v1134, %v673
      %v1159 = vunpack.c.l.b16 %v1118
      %v1160 = vunpack.c.l.b16 %v1119
      %v1161 = vunpack.c.l.b16 %v1120
      %v1162 = vunpack.c.l.b16 %v1121
      %v1163 = vunpack.c.l.b16 %v1122
      %v1164 = vunpack.c.l.b16 %v1123
      %v1165 = vunpack.c.l.b16 %v1124
      %v1166 = vunpack.c.l.b16 %v1125
      %v1167 = vunpack.c.l.b16 %v1126
      %v1168 = vunpack.c.l.b16 %v1127
      %v1169 = vunpack.c.l.b16 %v1128
      %v1170 = vunpack.c.l.b16 %v1129
      %v1171 = vunpack.c.l.b16 %v1130
      %v1172 = vunpack.c.l.b16 %v1131
      %v1173 = vunpack.c.l.b16 %v1132
      %v1174 = vunpack.c.l.b16 %v1133
      %v1175 = vpack.c.b16 %v1160, %v1159
      %v1176 = vpack.c.b16 %v1162, %v1161
      %v1177 = vpack.c.b16 %v1164, %v1163
      %v1178 = vpack.c.b16 %v1166, %v1165
      %v1179 = vpack.c.b16 %v1168, %v1167
      %v1180 = vpack.c.b16 %v1170, %v1169
      %v1181 = vpack.c.b16 %v1172, %v1171
      %v1182 = vpack.c.b16 %v1174, %v1173
      %1191 = vmatprep.subr.bf16.mxu0 0
      %1192 = vmatpush1.bf16.msra.mxu0 %v1175
      %1193 = vmatprep.subr.bf16.mxu0 0
      %1194 = vmatpush1.bf16.msra.mxu0 %v1176
      %1195 = vmatprep.subr.bf16.mxu0 0
      %1196 = vmatpush1.bf16.msra.mxu0 %v1177
      %1197 = vmatprep.subr.bf16.mxu0 0
      %1198 = vmatpush1.bf16.msra.mxu0 %v1178
      %1199 = vmatprep.subr.bf16.mxu0 0
      %1200 = vmatpush1.bf16.msra.mxu0 %v1179
      %1201 = vmatprep.subr.bf16.mxu0 0
      %1202 = vmatpush1.bf16.msra.mxu0 %v1180
      %1203 = vmatprep.subr.bf16.mxu0 0
      %1204 = vmatpush1.bf16.msra.mxu0 %v1181
      %1205 = vmatprep.subr.bf16.mxu0 0
      %1206 = vmatpush1.bf16.msra.mxu0 %v1182
      %1207 = vmatprep.subr.bf16.mxu0 0
      %1208 = vmatpush1.bf16.msra.mxu0 0
      %1209 = vmatprep.subr.bf16.mxu0 0
      %1210 = vmatpush1.bf16.msra.mxu0 0
      %1211 = vmatprep.subr.bf16.mxu0 0
      %1212 = vmatpush1.bf16.msra.mxu0 0
      %1213 = vmatprep.subr.bf16.mxu0 0
      %1214 = vmatpush1.bf16.msra.mxu0 0
      %1215 = vmatprep.subr.bf16.mxu0 0
      %1216 = vmatpush1.bf16.msra.mxu0 0
      %1217 = vmatprep.subr.bf16.mxu0 0
      %1218 = vmatpush1.bf16.msra.mxu0 0
      %1219 = vmatprep.subr.bf16.mxu0 0
      %1220 = vmatpush1.bf16.msra.mxu0 0
      %1221 = vmatprep.subr.bf16.mxu0 0
      %1222 = vmatpush1.bf16.msra.mxu0 0
      %1223 = vmatprep.mubr.bf16.mxu0 0
      %1224 = vmatmul.mubr.bf16.gmra.mrb[0].mxu0 %v1135
      %v1225 = vpop.f32.mrb[0].mxu0
      %v1226 = vadd.f32 0.0, %v1225
      %v1227 = vpop.f32.mrb[0].mxu0
      %v1228 = vpop.f32.mrb[0].mxu0
      %v1229 = vadd.f32 0.0, %v1228
      %v1230 = vpop.f32.mrb[0].mxu0
      %1231 = vmatprep.mubr.bf16.mxu0 0
      %1232 = vmatmul.mubr.bf16.gmra.mrb[0].mxu0 %v1136
      %v1233 = vpop.f32.mrb[0].mxu0
      %v1234 = vadd.f32 0.0, %v1233
      %v1235 = vpop.f32.mrb[0].mxu0
      %v1236 = vpop.f32.mrb[0].mxu0
      %v1237 = vadd.f32 0.0, %v1236
      %v1238 = vpop.f32.mrb[0].mxu0
      %1239 = vmatprep.mubr.bf16.mxu0 0
      %1240 = vmatmul.mubr.bf16.gmra.mrb[0].mxu0 %v1137
      %v1241 = vpop.f32.mrb[0].mxu0
      %v1242 = vadd.f32 0.0, %v1241
      %v1243 = vpop.f32.mrb[0].mxu0
      %v1244 = vpop.f32.mrb[0].mxu0
      %v1245 = vadd.f32 0.0, %v1244
      %v1246 = vpop.f32.mrb[0].mxu0
      %1247 = vmatprep.mubr.bf16.mxu0 0
      %1248 = vmatmul.mubr.bf16.gmra.mrb[0].mxu0 %v1138
      %v1249 = vpop.f32.mrb[0].mxu0
      %v1250 = vadd.f32 0.0, %v1249
      %v1251 = vpop.f32.mrb[0].mxu0
      %v1252 = vpop.f32.mrb[0].mxu0
      %v1253 = vadd.f32 0.0, %v1252
      %v1254 = vpop.f32.mrb[0].mxu0
      %1255 = vdwg.mxu0
      %v1256 = vadd.f32 %v1104, %v1226
      %v1257 = vadd.f32 %v1105, %v1229
      %v1258 = vadd.f32 %v1106, %v1234
      %v1259 = vadd.f32 %v1107, %v1237
      %v1260 = vadd.f32 %v1108, %v1242
      %v1261 = vadd.f32 %v1109, %v1245
      %v1262 = vadd.f32 %v1110, %v1250
      %v1263 = vadd.f32 %v1111, %v1253
      %s1264 = scalar_lea.vmem %s1, 384
      %v1265 = vld [vmem:[%s1264] sm:$0xf]
      %v1266 = vld [vmem:[%s1264 + $0x4] sm:$0xf]
      %v1267 = vld [vmem:[%s1264 + $0x8] sm:$0xf]
      %v1268 = vld [vmem:[%s1264 + $0xc] sm:$0xf]
      %v1269 = vld [vmem:[%s1264 + $0x10] sm:$0xf]
      %v1270 = vld [vmem:[%s1264 + $0x14] sm:$0xf]
      %v1271 = vld [vmem:[%s1264 + $0x18] sm:$0xf]
      %v1272 = vld [vmem:[%s1264 + $0x1c] sm:$0xf]
      %v1273 = vld [vmem:[%s1264 + $0x20] sm:$0xf]
      %v1274 = vld [vmem:[%s1264 + $0x24] sm:$0xf]
      %v1275 = vld [vmem:[%s1264 + $0x28] sm:$0xf]
      %v1276 = vld [vmem:[%s1264 + $0x2c] sm:$0xf]
      %v1277 = vld [vmem:[%s1264 + $0x30] sm:$0xf]
      %v1278 = vld [vmem:[%s1264 + $0x34] sm:$0xf]
      %v1279 = vld [vmem:[%s1264 + $0x38] sm:$0xf]
      %v1280 = vld [vmem:[%s1264 + $0x3c] sm:$0xf]
      %v1282 = vunpack.c.l.b16 %v190
      %v1283 = vpack.c.b16 %v1282, %v821
      %v1301 = vunpack.c.l.b16 %v1265
      %v1302 = vunpack.c.l.b16 %v1266
      %v1303 = vunpack.c.l.b16 %v1267
      %v1304 = vunpack.c.l.b16 %v1268
      %v1305 = vunpack.c.l.b16 %v1269
      %v1306 = vunpack.c.l.b16 %v1270
      %v1307 = vunpack.c.l.b16 %v1271
      %v1308 = vunpack.c.l.b16 %v1272
      %v1309 = vunpack.c.l.b16 %v1273
      %v1310 = vunpack.c.l.b16 %v1274
      %v1311 = vunpack.c.l.b16 %v1275
      %v1312 = vunpack.c.l.b16 %v1276
      %v1313 = vunpack.c.l.b16 %v1277
      %v1314 = vunpack.c.l.b16 %v1278
      %v1315 = vunpack.c.l.b16 %v1279
      %v1316 = vunpack.c.l.b16 %v1280
      %v1317 = vpack.c.b16 %v1302, %v1301
      %v1318 = vpack.c.b16 %v1304, %v1303
      %v1319 = vpack.c.b16 %v1306, %v1305
      %v1320 = vpack.c.b16 %v1308, %v1307
      %v1321 = vpack.c.b16 %v1310, %v1309
      %v1322 = vpack.c.b16 %v1312, %v1311
      %v1323 = vpack.c.b16 %v1314, %v1313
      %v1324 = vpack.c.b16 %v1316, %v1315
      %1333 = vmatprep.subr.bf16.mxu0 0
      %1334 = vmatpush1.bf16.msra.mxu0 %v1317
      %1335 = vmatprep.subr.bf16.mxu0 0
      %1336 = vmatpush1.bf16.msra.mxu0 %v1318
      %1337 = vmatprep.subr.bf16.mxu0 0
      %1338 = vmatpush1.bf16.msra.mxu0 %v1319
      %1339 = vmatprep.subr.bf16.mxu0 0
      %1340 = vmatpush1.bf16.msra.mxu0 %v1320
      %1341 = vmatprep.subr.bf16.mxu0 0
      %1342 = vmatpush1.bf16.msra.mxu0 %v1321
      %1343 = vmatprep.subr.bf16.mxu0 0
      %1344 = vmatpush1.bf16.msra.mxu0 %v1322
      %1345 = vmatprep.subr.bf16.mxu0 0
      %1346 = vmatpush1.bf16.msra.mxu0 %v1323
      %1347 = vmatprep.subr.bf16.mxu0 0
      %1348 = vmatpush1.bf16.msra.mxu0 %v1324
      %1349 = vmatprep.subr.bf16.mxu0 0
      %1350 = vmatpush1.bf16.msra.mxu0 0
      %1351 = vmatprep.subr.bf16.mxu0 0
      %1352 = vmatpush1.bf16.msra.mxu0 0
      %1353 = vmatprep.subr.bf16.mxu0 0
      %1354 = vmatpush1.bf16.msra.mxu0 0
      %1355 = vmatprep.subr.bf16.mxu0 0
      %1356 = vmatpush1.bf16.msra.mxu0 0
      %1357 = vmatprep.subr.bf16.mxu0 0
      %1358 = vmatpush1.bf16.msra.mxu0 0
      %1359 = vmatprep.subr.bf16.mxu0 0
      %1360 = vmatpush1.bf16.msra.mxu0 0
      %1361 = vmatprep.subr.bf16.mxu0 0
      %1362 = vmatpush1.bf16.msra.mxu0 0
      %1363 = vmatprep.subr.bf16.mxu0 0
      %1364 = vmatpush1.bf16.msra.mxu0 0
      %1365 = vmatprep.mubr.bf16.mxu0 0
      %1366 = vmatmul.mubr.bf16.gmra.mrb[0].mxu0 %v486
      %v1367 = vpop.f32.mrb[0].mxu0
      %v1368 = vadd.f32 0.0, %v1367
      %v1369 = vpop.f32.mrb[0].mxu0
      %v1370 = vpop.f32.mrb[0].mxu0
      %v1371 = vadd.f32 0.0, %v1370
      %v1372 = vpop.f32.mrb[0].mxu0
      %1373 = vmatprep.mubr.bf16.mxu0 0
      %1374 = vmatmul.mubr.bf16.gmra.mrb[0].mxu0 %v487
      %v1375 = vpop.f32.mrb[0].mxu0
      %v1376 = vadd.f32 0.0, %v1375
      %v1377 = vpop.f32.mrb[0].mxu0
      %v1378 = vpop.f32.mrb[0].mxu0
      %v1379 = vadd.f32 0.0, %v1378
      %v1380 = vpop.f32.mrb[0].mxu0
      %1381 = vmatprep.mubr.bf16.mxu0 0
      %1382 = vmatmul.mubr.bf16.gmra.mrb[0].mxu0 %v488
      %v1383 = vpop.f32.mrb[0].mxu0
      %v1384 = vadd.f32 0.0, %v1383
      %v1385 = vpop.f32.mrb[0].mxu0
      %v1386 = vpop.f32.mrb[0].mxu0
      %v1387 = vadd.f32 0.0, %v1386
      %v1388 = vpop.f32.mrb[0].mxu0
      %1389 = vmatprep.mubr.bf16.mxu0 0
      %1390 = vmatmul.mubr.bf16.gmra.mrb[0].mxu0 %v1283
      %v1391 = vpop.f32.mrb[0].mxu0
      %v1392 = vadd.f32 0.0, %v1391
      %v1393 = vpop.f32.mrb[0].mxu0
      %v1394 = vpop.f32.mrb[0].mxu0
      %v1395 = vadd.f32 0.0, %v1394
      %v1396 = vpop.f32.mrb[0].mxu0
      %1397 = vdwg.mxu0
      %v1398 = vadd.f32 %v1256, %v1368
      %v1399 = vadd.f32 %v1257, %v1371
      %v1400 = vadd.f32 %v1258, %v1376
      %v1401 = vadd.f32 %v1259, %v1379
      %v1402 = vadd.f32 %v1260, %v1384
      %v1403 = vadd.f32 %v1261, %v1387
      %v1404 = vadd.f32 %v1262, %v1392
      %v1405 = vadd.f32 %v1263, %v1395
      %v1407 = vshrl.u32 %v190, 16
      %v1409 = vrot.slane %v1407, 4
      %v1410 = vshll.u32 %v190, 16
      %v1412 = vrot.slane %v1410, 5
      %v1413 = vor.u32 %v1409, %v1412
      %v1414 = vrot.slane %v1413, 4
      %v1416 = vshll.u32 %v191, 16
      %v1418 = vrot.slane %v1416, 5
      %v1419 = vsel %vm210, %v1414, %v1418
      %s1420 = scalar_lea.vmem %s1, 448
      %v1421 = vld [vmem:[%s1420] sm:$0xf]
      %v1422 = vld [vmem:[%s1420 + $0x4] sm:$0xf]
      %v1423 = vld [vmem:[%s1420 + $0x8] sm:$0xf]
      %v1424 = vld [vmem:[%s1420 + $0xc] sm:$0xf]
      %v1425 = vld [vmem:[%s1420 + $0x10] sm:$0xf]
      %v1426 = vld [vmem:[%s1420 + $0x14] sm:$0xf]
      %v1427 = vld [vmem:[%s1420 + $0x18] sm:$0xf]
      %v1428 = vld [vmem:[%s1420 + $0x1c] sm:$0xf]
      %v1429 = vld [vmem:[%s1420 + $0x20] sm:$0xf]
      %v1430 = vld [vmem:[%s1420 + $0x24] sm:$0xf]
      %v1431 = vld [vmem:[%s1420 + $0x28] sm:$0xf]
      %v1432 = vld [vmem:[%s1420 + $0x2c] sm:$0xf]
      %v1433 = vld [vmem:[%s1420 + $0x30] sm:$0xf]
      %v1434 = vld [vmem:[%s1420 + $0x34] sm:$0xf]
      %v1435 = vld [vmem:[%s1420 + $0x38] sm:$0xf]
      %v1436 = vld [vmem:[%s1420 + $0x3c] sm:$0xf]
      %v1437 = vunpack.c.l.b16 %v1419
      %v1438 = vpack.c.b16 %v1437, %v982
      %v1456 = vunpack.c.l.b16 %v1421
      %v1457 = vunpack.c.l.b16 %v1422
      %v1458 = vunpack.c.l.b16 %v1423
      %v1459 = vunpack.c.l.b16 %v1424
      %v1460 = vunpack.c.l.b16 %v1425
      %v1461 = vunpack.c.l.b16 %v1426
      %v1462 = vunpack.c.l.b16 %v1427
      %v1463 = vunpack.c.l.b16 %v1428
      %v1464 = vunpack.c.l.b16 %v1429
      %v1465 = vunpack.c.l.b16 %v1430
      %v1466 = vunpack.c.l.b16 %v1431
      %v1467 = vunpack.c.l.b16 %v1432
      %v1468 = vunpack.c.l.b16 %v1433
      %v1469 = vunpack.c.l.b16 %v1434
      %v1470 = vunpack.c.l.b16 %v1435
      %v1471 = vunpack.c.l.b16 %v1436
      %v1472 = vpack.c.b16 %v1457, %v1456
      %v1473 = vpack.c.b16 %v1459, %v1458
      %v1474 = vpack.c.b16 %v1461, %v1460
      %v1475 = vpack.c.b16 %v1463, %v1462
      %v1476 = vpack.c.b16 %v1465, %v1464
      %v1477 = vpack.c.b16 %v1467, %v1466
      %v1478 = vpack.c.b16 %v1469, %v1468
      %v1479 = vpack.c.b16 %v1471, %v1470
      %1488 = vmatprep.subr.bf16.mxu0 0
      %1489 = vmatpush1.bf16.msra.mxu0 %v1472
      %1490 = vmatprep.subr.bf16.mxu0 0
      %1491 = vmatpush1.bf16.msra.mxu0 %v1473
      %1492 = vmatprep.subr.bf16.mxu0 0
      %1493 = vmatpush1.bf16.msra.mxu0 %v1474
      %1494 = vmatprep.subr.bf16.mxu0 0
      %1495 = vmatpush1.bf16.msra.mxu0 %v1475
      %1496 = vmatprep.subr.bf16.mxu0 0
      %1497 = vmatpush1.bf16.msra.mxu0 %v1476
      %1498 = vmatprep.subr.bf16.mxu0 0
      %1499 = vmatpush1.bf16.msra.mxu0 %v1477
      %1500 = vmatprep.subr.bf16.mxu0 0
      %1501 = vmatpush1.bf16.msra.mxu0 %v1478
      %1502 = vmatprep.subr.bf16.mxu0 0
      %1503 = vmatpush1.bf16.msra.mxu0 %v1479
      %1504 = vmatprep.subr.bf16.mxu0 0
      %1505 = vmatpush1.bf16.msra.mxu0 0
      %1506 = vmatprep.subr.bf16.mxu0 0
      %1507 = vmatpush1.bf16.msra.mxu0 0
      %1508 = vmatprep.subr.bf16.mxu0 0
      %1509 = vmatpush1.bf16.msra.mxu0 0
      %1510 = vmatprep.subr.bf16.mxu0 0
      %1511 = vmatpush1.bf16.msra.mxu0 0
      %1512 = vmatprep.subr.bf16.mxu0 0
      %1513 = vmatpush1.bf16.msra.mxu0 0
      %1514 = vmatprep.subr.bf16.mxu0 0
      %1515 = vmatpush1.bf16.msra.mxu0 0
      %1516 = vmatprep.subr.bf16.mxu0 0
      %1517 = vmatpush1.bf16.msra.mxu0 0
      %1518 = vmatprep.subr.bf16.mxu0 0
      %1519 = vmatpush1.bf16.msra.mxu0 0
      %1520 = vmatprep.mubr.bf16.mxu0 0
      %1521 = vmatmul.mubr.bf16.gmra.mrb[0].mxu0 %v349
      %v1522 = vpop.f32.mrb[0].mxu0
      %v1523 = vadd.f32 0.0, %v1522
      %v1524 = vpop.f32.mrb[0].mxu0
      %v1525 = vpop.f32.mrb[0].mxu0
      %v1526 = vadd.f32 0.0, %v1525
      %v1527 = vpop.f32.mrb[0].mxu0
      %1528 = vmatprep.mubr.bf16.mxu0 0
      %1529 = vmatmul.mubr.bf16.gmra.mrb[0].mxu0 %v350
      %v1530 = vpop.f32.mrb[0].mxu0
      %v1531 = vadd.f32 0.0, %v1530
      %v1532 = vpop.f32.mrb[0].mxu0
      %v1533 = vpop.f32.mrb[0].mxu0
      %v1534 = vadd.f32 0.0, %v1533
      %v1535 = vpop.f32.mrb[0].mxu0
      %1536 = vmatprep.mubr.bf16.mxu0 0
      %1537 = vmatmul.mubr.bf16.gmra.mrb[0].mxu0 %v351
      %v1538 = vpop.f32.mrb[0].mxu0
      %v1539 = vadd.f32 0.0, %v1538
      %v1540 = vpop.f32.mrb[0].mxu0
      %v1541 = vpop.f32.mrb[0].mxu0
      %v1542 = vadd.f32 0.0, %v1541
      %v1543 = vpop.f32.mrb[0].mxu0
      %1544 = vmatprep.mubr.bf16.mxu0 0
      %1545 = vmatmul.mubr.bf16.gmra.mrb[0].mxu0 %v1438
      %v1546 = vpop.f32.mrb[0].mxu0
      %v1547 = vadd.f32 0.0, %v1546
      %v1548 = vpop.f32.mrb[0].mxu0
      %v1549 = vpop.f32.mrb[0].mxu0
      %v1550 = vadd.f32 0.0, %v1549
      %v1551 = vpop.f32.mrb[0].mxu0
      %1552 = vdwg.mxu0
      %v1553 = vadd.f32 %v1398, %v1523
      %v1554 = vadd.f32 %v1399, %v1526
      %v1555 = vadd.f32 %v1400, %v1531
      %v1556 = vadd.f32 %v1401, %v1534
      %v1557 = vadd.f32 %v1402, %v1539
      %v1558 = vadd.f32 %v1403, %v1542
      %v1559 = vadd.f32 %v1404, %v1547
      %v1560 = vadd.f32 %v1405, %v1550
      %v1562 = vrot.slane %v190, 5
      %v1563 = vrot.slane %v1562, 4
      %v1564 = vrot.slane %v191, 5
      %v1565 = vsel %vm616, %v1563, %v1564
      %s1566 = scalar_lea.vmem %s1, 512
      %v1567 = vld [vmem:[%s1566] sm:$0xf]
      %v1568 = vld [vmem:[%s1566 + $0x4] sm:$0xf]
      %v1569 = vld [vmem:[%s1566 + $0x8] sm:$0xf]
      %v1570 = vld [vmem:[%s1566 + $0xc] sm:$0xf]
      %v1571 = vld [vmem:[%s1566 + $0x10] sm:$0xf]
      %v1572 = vld [vmem:[%s1566 + $0x14] sm:$0xf]
      %v1573 = vld [vmem:[%s1566 + $0x18] sm:$0xf]
      %v1574 = vld [vmem:[%s1566 + $0x1c] sm:$0xf]
      %v1575 = vld [vmem:[%s1566 + $0x20] sm:$0xf]
      %v1576 = vld [vmem:[%s1566 + $0x24] sm:$0xf]
      %v1577 = vld [vmem:[%s1566 + $0x28] sm:$0xf]
      %v1578 = vld [vmem:[%s1566 + $0x2c] sm:$0xf]
      %v1579 = vld [vmem:[%s1566 + $0x30] sm:$0xf]
      %v1580 = vld [vmem:[%s1566 + $0x34] sm:$0xf]
      %v1581 = vld [vmem:[%s1566 + $0x38] sm:$0xf]
      %v1582 = vld [vmem:[%s1566 + $0x3c] sm:$0xf]
      %v1583 = vunpack.c.l.b16 %v1565
      %v1584 = vpack.c.b16 %v1583, %v1134
      %v1602 = vunpack.c.l.b16 %v1567
      %v1603 = vunpack.c.l.b16 %v1568
      %v1604 = vunpack.c.l.b16 %v1569
      %v1605 = vunpack.c.l.b16 %v1570
      %v1606 = vunpack.c.l.b16 %v1571
      %v1607 = vunpack.c.l.b16 %v1572
      %v1608 = vunpack.c.l.b16 %v1573
      %v1609 = vunpack.c.l.b16 %v1574
      %v1610 = vunpack.c.l.b16 %v1575
      %v1611 = vunpack.c.l.b16 %v1576
      %v1612 = vunpack.c.l.b16 %v1577
      %v1613 = vunpack.c.l.b16 %v1578
      %v1614 = vunpack.c.l.b16 %v1579
      %v1615 = vunpack.c.l.b16 %v1580
      %v1616 = vunpack.c.l.b16 %v1581
      %v1617 = vunpack.c.l.b16 %v1582
      %v1618 = vpack.c.b16 %v1603, %v1602
      %v1619 = vpack.c.b16 %v1605, %v1604
      %v1620 = vpack.c.b16 %v1607, %v1606
      %v1621 = vpack.c.b16 %v1609, %v1608
      %v1622 = vpack.c.b16 %v1611, %v1610
      %v1623 = vpack.c.b16 %v1613, %v1612
      %v1624 = vpack.c.b16 %v1615, %v1614
      %v1625 = vpack.c.b16 %v1617, %v1616
      %1634 = vmatprep.subr.bf16.mxu0 0
      %1635 = vmatpush1.bf16.msra.mxu0 %v1618
      %1636 = vmatprep.subr.bf16.mxu0 0
      %1637 = vmatpush1.bf16.msra.mxu0 %v1619
      %1638 = vmatprep.subr.bf16.mxu0 0
      %1639 = vmatpush1.bf16.msra.mxu0 %v1620
      %1640 = vmatprep.subr.bf16.mxu0 0
      %1641 = vmatpush1.bf16.msra.mxu0 %v1621
      %1642 = vmatprep.subr.bf16.mxu0 0
      %1643 = vmatpush1.bf16.msra.mxu0 %v1622
      %1644 = vmatprep.subr.bf16.mxu0 0
      %1645 = vmatpush1.bf16.msra.mxu0 %v1623
      %1646 = vmatprep.subr.bf16.mxu0 0
      %1647 = vmatpush1.bf16.msra.mxu0 %v1624
      %1648 = vmatprep.subr.bf16.mxu0 0
      %1649 = vmatpush1.bf16.msra.mxu0 %v1625
      %1650 = vmatprep.subr.bf16.mxu0 0
      %1651 = vmatpush1.bf16.msra.mxu0 0
      %1652 = vmatprep.subr.bf16.mxu0 0
      %1653 = vmatpush1.bf16.msra.mxu0 0
      %1654 = vmatprep.subr.bf16.mxu0 0
      %1655 = vmatpush1.bf16.msra.mxu0 0
      %1656 = vmatprep.subr.bf16.mxu0 0
      %1657 = vmatpush1.bf16.msra.mxu0 0
      %1658 = vmatprep.subr.bf16.mxu0 0
      %1659 = vmatpush1.bf16.msra.mxu0 0
      %1660 = vmatprep.subr.bf16.mxu0 0
      %1661 = vmatpush1.bf16.msra.mxu0 0
      %1662 = vmatprep.subr.bf16.mxu0 0
      %1663 = vmatpush1.bf16.msra.mxu0 0
      %1664 = vmatprep.subr.bf16.mxu0 0
      %1665 = vmatpush1.bf16.msra.mxu0 0
      %1666 = vmatprep.mubr.bf16.mxu0 0
      %1667 = vmatmul.mubr.bf16.gmra.mrb[0].mxu0 %v675
      %v1668 = vpop.f32.mrb[0].mxu0
      %v1669 = vadd.f32 0.0, %v1668
      %v1670 = vpop.f32.mrb[0].mxu0
      %v1671 = vpop.f32.mrb[0].mxu0
      %v1672 = vadd.f32 0.0, %v1671
      %v1673 = vpop.f32.mrb[0].mxu0
      %1674 = vmatprep.mubr.bf16.mxu0 0
      %1675 = vmatmul.mubr.bf16.gmra.mrb[0].mxu0 %v676
      %v1676 = vpop.f32.mrb[0].mxu0
      %v1677 = vadd.f32 0.0, %v1676
      %v1678 = vpop.f32.mrb[0].mxu0
      %v1679 = vpop.f32.mrb[0].mxu0
      %v1680 = vadd.f32 0.0, %v1679
      %v1681 = vpop.f32.mrb[0].mxu0
      %1682 = vmatprep.mubr.bf16.mxu0 0
      %1683 = vmatmul.mubr.bf16.gmra.mrb[0].mxu0 %v677
      %v1684 = vpop.f32.mrb[0].mxu0
      %v1685 = vadd.f32 0.0, %v1684
      %v1686 = vpop.f32.mrb[0].mxu0
      %v1687 = vpop.f32.mrb[0].mxu0
      %v1688 = vadd.f32 0.0, %v1687
      %v1689 = vpop.f32.mrb[0].mxu0
      %1690 = vmatprep.mubr.bf16.mxu0 0
      %1691 = vmatmul.mubr.bf16.gmra.mrb[0].mxu0 %v1584
      %v1692 = vpop.f32.mrb[0].mxu0
      %v1693 = vadd.f32 0.0, %v1692
      %v1694 = vpop.f32.mrb[0].mxu0
      %v1695 = vpop.f32.mrb[0].mxu0
      %v1696 = vadd.f32 0.0, %v1695
      %v1697 = vpop.f32.mrb[0].mxu0
      %1698 = vdwg.mxu0
      %v1699 = vadd.f32 %v1553, %v1669
      %v1700 = vadd.f32 %v1554, %v1672
      %v1701 = vadd.f32 %v1555, %v1677
      %v1702 = vadd.f32 %v1556, %v1680
      %v1703 = vadd.f32 %v1557, %v1685
      %v1704 = vadd.f32 %v1558, %v1688
      %v1705 = vadd.f32 %v1559, %v1693
      %v1706 = vadd.f32 %v1560, %v1696
      %v1707 = vld [vmem:[%s2] sm:$0x1]
      %v1709 = vlaneseq
      %v1710 = vshrl.u32 %v1709, 7
      %v1711 = vsub.s32 0, %v1710
      %v1712 = vrot.slane %v1707, %v1711
      %v1714 = vadd.f32 %v1699, %v1712
      %v1715 = vadd.f32 %v1700, %v1712
      %v1716 = vadd.f32 %v1701, %v1712
      %v1717 = vadd.f32 %v1702, %v1712
      %v1718 = vadd.f32 %v1703, %v1712
      %v1719 = vadd.f32 %v1704, %v1712
      %v1720 = vadd.f32 %v1705, %v1712
      %v1721 = vadd.f32 %v1706, %v1712
      %v1722 = vmax.f32 %v1714, 0.0
      %v1723 = vmax.f32 %v1715, 0.0
      %v1724 = vmax.f32 %v1716, 0.0
      %v1725 = vmax.f32 %v1717, 0.0
      %v1726 = vmax.f32 %v1718, 0.0
      %v1727 = vmax.f32 %v1719, 0.0
      %v1728 = vmax.f32 %v1720, 0.0
      %v1729 = vmax.f32 %v1721, 0.0
      %v1730 = vpack.c.bf16 %v1722, %v1722
      %v1731 = vpack.c.bf16 %v1723, %v1723
      %v1732 = vpack.c.bf16 %v1724, %v1724
      %v1733 = vpack.c.bf16 %v1725, %v1725
      %v1734 = vpack.c.bf16 %v1726, %v1726
      %v1735 = vpack.c.bf16 %v1727, %v1727
      %v1736 = vpack.c.bf16 %v1728, %v1728
      %v1737 = vpack.c.bf16 %v1729, %v1729
      %1738 = vst [vmem:[%s170] sm:$0xf] %v1730
      %1739 = vst [vmem:[%s170 + $0x4] sm:$0xf] %v1731
      %1740 = vst [vmem:[%s170 + $0x8] sm:$0xf] %v1732
      %1741 = vst [vmem:[%s170 + $0xc] sm:$0xf] %v1733
      %1742 = vst [vmem:[%s170 + $0x10] sm:$0xf] %v1734
      %1743 = vst [vmem:[%s170 + $0x14] sm:$0xf] %v1735
      %1744 = vst [vmem:[%s170 + $0x18] sm:$0xf] %v1736
      %1745 = vst [vmem:[%s170 + $0x1c] sm:$0xf] %v1737
      %p1746 = scmp.lt.s32.totalorder %s14, 1
      %s1747 = scalar_select %p1746, %s14, 1
      %s1748 = smul.addr %s1747, 8
      %s1749 = smul.addr %s1748, 4
      %s1750 = scalar_lea.vmem %s3, %s1749
      // Predicated region
      $region33: #{seg_qyl_forward.14} parent=31 // pred_check
        %p1751 = pneg %p100
      $region34: #{seg_qyl_forward.14} parent=31 // pred_check_branch
        %1753 = sbr.rel (%p1751) target = $region36
      $region35: #{seg_qyl_forward.14} parent=31 // pred_region
        _
      $region36: #{seg_qyl_forward.14} parent=31 // pred_fallthru
        _
    $region32: #{seg_qyl_forward.14} parent=5 // pred_fallthru
      _
    %p1754 = scmp.le.s32.totalorder 2, %s9
    // Predicated region
    $region37: #{seg_qyl_forward.14} parent=5 // pred_check
      %p1755 = pneg %p1754
    $region38: #{seg_qyl_forward.14} parent=5 // pred_check_branch
      %1757 = sbr.rel (%p1755) target = $region40
    $region39: #{seg_qyl_forward.14} parent=5 // pred_region
      %s1758 = ssub.s32 %s9, 2
      // Predicated region
      $region41: #{seg_qyl_forward.14} parent=39 // pred_check
        %p1759 = pneg %p106
      $region42: #{seg_qyl_forward.14} parent=39 // pred_check_branch
        %1761 = sbr.rel (%p1759) target = $region44
      $region43: #{seg_qyl_forward.14} parent=39 // pred_region
        %p1762 = scmp.lt.s32.totalorder %s15, 1
        %s1763 = scalar_select %p1762, %s15, 1
        %s1764 = smul.addr %s1763, 8
        %s1765 = smul.addr %s1764, 4
        %s1766 = scalar_lea.vmem %s3, %s1765
      $region44: #{seg_qyl_forward.14} parent=39 // pred_fallthru
        _
    $region40: #{seg_qyl_forward.14} parent=5 // pred_fallthru
      _
  $region6: #{seg_qyl_forward.14} parent=0 // loop_footer
    %s13 = sadd.s32 1, %s9
  $region7: #{seg_qyl_forward.14} parent=0 // loop_footer_branch
    %8 = sbr.rel target = $region3
  $region8: #{seg_qyl_forward.14} parent=0 // loop_exit
    _

// kernel: seg_qyl_forward.16
$region0: #{seg_qyl_forward.16}
  #allocation0 [shape = 'u32[]', space=smem, size = 0x4, offset = 0x4, fixed_abs, tag = 'smem constant byte address 0x4 - core index']
  #allocation1 [shape = 'u32[144,128]{1,0:T(1,128)}', space=vmem, size = 0x12000, scoped, tag = 'internal scratch']
  %s0 = inlined_call_operand.vmem [shape: bf16[2,6,10,128], index: 0, kind: input, shape index: {}]
  %s1 = inlined_call_operand.vmem [shape: bf16[9,128,128], index: 1, kind: input, shape index: {}]
  %s2 = inlined_call_operand.vmem [shape: f32[1,128], index: 2, kind: input, shape index: {}]
  %s3 = inlined_call_operand.vmem [shape: bf16[2,4,8,128], index: 3, kind: output, shape index: {}]
  %s4 = sld [smem:[#allocation0]]
  $region45: #{seg_qyl_forward.16} parent=0
    _
  %s6 = ssub.s32 1, %s4
  %s7 = scalar_select 0, %s6, %s4
  loop: start=0, step=1, limit=4
  $region2: #{seg_qyl_forward.16} parent=0 // loop_pre_header
    _
  $region3: #{seg_qyl_forward.16} parent=0 // loop_header
    %s9 = sphi 0, %s13
    %p10 = scmp.ge.s32.totalorder %s9, 4
    %s19 = sphi 0, %s21
    %s22 = sphi 0, %s19
    %s23 = sphi 0, %s22
    %s39 = sphi 0, %s23
    %s43 = sphi 0, %s43
    %s45 = sphi 0, %s43
    %s46 = sphi 0, %s45
    %s60 = sphi 0, %s46
    %s64 = sphi 0, %s64
    %s66 = sphi 0, %s64
    %s67 = sphi 0, %s66
    %s81 = sphi 0, %s67
    %s87 = sphi 0, %s89
    %s90 = sphi 0, %s87
    %s91 = sphi 0, %s90
    %s107 = sphi 0, %s91
  $region4: #{seg_qyl_forward.16} parent=0 // loop_header_branch
    %12 = sbr.rel (%p10) target = $region8
  $region5: #{seg_qyl_forward.16} parent=0 // loop_body
    %s14 = ssub.s32 %s9, 1
    %s15 = ssub.s32 %s9, 2
    %s16 = sadd.s32 %s9, 1
    %s17 = ssub.s32 %s9, %s16
    %p18 = scmp.eq.s32.totalorder %s17, 0
    %s20 = sadd.s32 %s19, 1
    %s21 = scalar_select %p18, %s19, %s20
    %p24 = pneg %p18
    %p25 = scmp.eq.s32.totalorder %s9, 1
    %p26 = por %p24, %p25
    %p27 = scmp.ne.s32.totalorder %s19, %s22
    %p28 = scmp.eq.s32.totalorder %s9, 0
    %p29 = por %p27, %p28
    %p30 = scmp.ne.s32.totalorder %s19, %s22
    %p31 = scmp.eq.s32.totalorder %s14, 1
    %p32 = por %p30, %p31
    %p33 = scmp.ne.s32.totalorder %s22, %s23
    %p34 = scmp.eq.s32.totalorder %s14, 0
    %p35 = por %p33, %p34
    %p36 = scmp.ne.s32.totalorder %s22, %s23
    %p37 = scmp.eq.s32.totalorder %s15, 1
    %p38 = por %p36, %p37
    %p40 = scmp.ne.s32.totalorder %s23, %s39
    %p41 = scmp.eq.s32.totalorder %s15, 0
    %p42 = por %p40, %p41
    %s44 = sadd.s32 %s43, 1
    %p47 = scmp.eq.s32.totalorder %s9, 1
    %p48 = scmp.ne.s32.totalorder %s43, %s45
    %p49 = scmp.eq.s32.totalorder %s9, 0
    %p50 = por %p48, %p49
    %p51 = scmp.ne.s32.totalorder %s43, %s45
    %p52 = scmp.eq.s32.totalorder %s14, 1
    %p53 = por %p51, %p52
    %p54 = scmp.ne.s32.totalorder %s45, %s46
    %p55 = scmp.eq.s32.totalorder %s14, 0
    %p56 = por %p54, %p55
    %p57 = scmp.ne.s32.totalorder %s45, %s46
    %p58 = scmp.eq.s32.totalorder %s15, 1
    %p59 = por %p57, %p58
    %p61 = scmp.ne.s32.totalorder %s46, %s60
    %p62 = scmp.eq.s32.totalorder %s15, 0
    %p63 = por %p61, %p62
    %s65 = sadd.s32 %s64, 1
    %p68 = scmp.eq.s32.totalorder %s9, 1
    %p69 = scmp.ne.s32.totalorder %s64, %s66
    %p70 = scmp.eq.s32.totalorder %s9, 0
    %p71 = por %p69, %p70
    %p72 = scmp.ne.s32.totalorder %s64, %s66
    %p73 = scmp.eq.s32.totalorder %s14, 1
    %p74 = por %p72, %p73
    %p75 = scmp.ne.s32.totalorder %s66, %s67
    %p76 = scmp.eq.s32.totalorder %s14, 0
    %p77 = por %p75, %p76
    %p78 = scmp.ne.s32.totalorder %s66, %s67
    %p79 = scmp.eq.s32.totalorder %s15, 1
    %p80 = por %p78, %p79
    %p82 = scmp.ne.s32.totalorder %s67, %s81
    %p83 = scmp.eq.s32.totalorder %s15, 0
    %p84 = por %p82, %p83
    %s85 = ssub.s32 %s9, %s16
    %p86 = scmp.eq.s32.totalorder %s85, 0
    %s88 = sadd.s32 %s87, 1
    %s89 = scalar_select %p86, %s87, %s88
    %p92 = pneg %p86
    %p93 = scmp.eq.s32.totalorder %s9, 1
    %p94 = por %p92, %p93
    %p95 = scmp.ne.s32.totalorder %s87, %s90
    %p96 = scmp.eq.s32.totalorder %s9, 0
    %p97 = por %p95, %p96
    %p98 = scmp.ne.s32.totalorder %s87, %s90
    %p99 = scmp.eq.s32.totalorder %s14, 1
    %p100 = por %p98, %p99
    %p101 = scmp.ne.s32.totalorder %s90, %s91
    %p102 = scmp.eq.s32.totalorder %s14, 0
    %p103 = por %p101, %p102
    %p104 = scmp.ne.s32.totalorder %s90, %s91
    %p105 = scmp.eq.s32.totalorder %s15, 1
    %p106 = por %p104, %p105
    %p108 = scmp.ne.s32.totalorder %s91, %s107
    %p109 = scmp.eq.s32.totalorder %s15, 0
    %p110 = por %p108, %p109
    %p111 = scmp.le.s32.totalorder 1, %s9
    %p112 = scmp.lt.s32.totalorder %s9, 3
    %p113 = pnand %p111, %p112
    %p114 = pneg %p113
    // Predicated region
    $region9: #{seg_qyl_forward.16} parent=5 // pred_check
      _
    $region10: #{seg_qyl_forward.16} parent=5 // pred_check_branch
      %116 = sbr.rel (%p113) target = $region12
    $region11: #{seg_qyl_forward.16} parent=5 // pred_region
      %s117 = ssub.s32 %s9, 1
      // Predicated region
      $region13: #{seg_qyl_forward.16} parent=11 // pred_check
        %p118 = pneg %p56
      $region14: #{seg_qyl_forward.16} parent=11 // pred_check_branch
        %120 = sbr.rel (%p118) target = $region16
      $region15: #{seg_qyl_forward.16} parent=11 // pred_region
        _
      $region16: #{seg_qyl_forward.16} parent=11 // pred_fallthru
        _
      // Predicated region
      $region17: #{seg_qyl_forward.16} parent=11 // pred_check
        %p121 = pneg %p77
      $region18: #{seg_qyl_forward.16} parent=11 // pred_check_branch
        %123 = sbr.rel (%p121) target = $region20
      $region19: #{seg_qyl_forward.16} parent=11 // pred_region
        _
      $region20: #{seg_qyl_forward.16} parent=11 // pred_fallthru
        _
    $region12: #{seg_qyl_forward.16} parent=5 // pred_fallthru
      _
    %p124 = scmp.lt.s32.totalorder %s9, 2
    // Predicated region
    $region21: #{seg_qyl_forward.16} parent=5 // pred_check
      %p125 = pneg %p124
    $region22: #{seg_qyl_forward.16} parent=5 // pred_check_branch
      %127 = sbr.rel (%p125) target = $region24
    $region23: #{seg_qyl_forward.16} parent=5 // pred_region
      // Predicated region
      $region25: #{seg_qyl_forward.16} parent=23 // pred_check
        %p128 = pneg %p29
      $region26: #{seg_qyl_forward.16} parent=23 // pred_check_branch
        %130 = sbr.rel (%p128) target = $region28
      $region27: #{seg_qyl_forward.16} parent=23 // pred_region
        %p131 = scmp.lt.s32.totalorder %s9, 1
        %s132 = scalar_select %p131, %s9, 1
        %s133 = smul.addr %s132, 12
        %s134 = smul.addr %s133, 4
        %s135 = scalar_lea.vmem %s0, %s134
      $region28: #{seg_qyl_forward.16} parent=23 // pred_fallthru
        _
    $region24: #{seg_qyl_forward.16} parent=5 // pred_fallthru
      _
    %p136 = scmp.le.s32.totalorder 1, %s9
    %p137 = scmp.lt.s32.totalorder %s9, 3
    %p138 = pnand %p136, %p137
    %p139 = pneg %p138
    // Predicated region
    $region29: #{seg_qyl_forward.16} parent=5 // pred_check
      _
    $region30: #{seg_qyl_forward.16} parent=5 // pred_check_branch
      %141 = sbr.rel (%p138) target = $region32
    $region31: #{seg_qyl_forward.16} parent=5 // pred_region
      %s142 = ssub.s32 %s9, 1
      %p143 = scmp.lt.s32.totalorder %s14, 1
      %s144 = scalar_select %p143, %s14, 1
      %s145 = smul.addr %s144, 12
      %s146 = smul.addr %s145, 4
      %s147 = scalar_lea.vmem %s0, %s146
      %p148 = pneg %p35
      %p149 = pneg %p32
      %p150 = pneg %p56
      %p151 = pneg %p53
      %p152 = pneg %p77
      %p153 = pneg %p74
      %p154 = pneg %p103
      %p155 = pneg %p100
      %p156 = scmp.lt.s32.totalorder %s14, 1
      %s157 = scalar_select %p156, %s14, 1
      %s158 = smul.addr %s157, 4
      %s159 = smul.addr %s158, 4
      %s160 = scalar_lea.vmem %s3, %s159
      %p161 = scmp.lt.s32.totalorder %s14, 1
      %s162 = scalar_select %p161, %s14, 1
      %s163 = smul.addr %s162, 12
      %s164 = smul.addr %s163, 4
      %s165 = scalar_lea.vmem %s0, %s164
      %p166 = scmp.lt.s32.totalorder %s14, 1
      %s167 = scalar_select %p166, %s14, 1
      %s168 = smul.addr %s167, 4
      %s169 = smul.addr %s168, 4
      %s170 = scalar_lea.vmem %s3, %s169
      %v172 = vld [vmem:[%s165] sm:$0xf]
      %v173 = vld [vmem:[%s165 + $0x4] sm:$0x1]
      %v174 = vld [vmem:[%s165 + $0x8] sm:$0xf]
      %v175 = vld [vmem:[%s165 + $0xc] sm:$0x1]
      %v176 = vld [vmem:[%s165 + $0x10] sm:$0xf]
      %v177 = vld [vmem:[%s165 + $0x14] sm:$0x1]
      %v178 = vld [vmem:[%s165 + $0x18] sm:$0xf]
      %v179 = vld [vmem:[%s165 + $0x1c] sm:$0x1]
      %v180 = vld [vmem:[%s165 + $0x20] sm:$0xf]
      %v181 = vld [vmem:[%s165 + $0x24] sm:$0x1]
      %v182 = vld [vmem:[%s165 + $0x28] sm:$0xf]
      %v183 = vld [vmem:[%s165 + $0x2c] sm:$0x1]
      %v184 = vld [vmem:[%s1] sm:$0xf]
      %v185 = vld [vmem:[%s1 + $0x4] sm:$0xf]
      %v186 = vld [vmem:[%s1 + $0x8] sm:$0xf]
      %v187 = vld [vmem:[%s1 + $0xc] sm:$0xf]
      %v188 = vld [vmem:[%s1 + $0x10] sm:$0xf]
      %v189 = vld [vmem:[%s1 + $0x14] sm:$0xf]
      %v190 = vld [vmem:[%s1 + $0x18] sm:$0xf]
      %v191 = vld [vmem:[%s1 + $0x1c] sm:$0xf]
      %v192 = vld [vmem:[%s1 + $0x20] sm:$0xf]
      %v193 = vld [vmem:[%s1 + $0x24] sm:$0xf]
      %v194 = vld [vmem:[%s1 + $0x28] sm:$0xf]
      %v195 = vld [vmem:[%s1 + $0x2c] sm:$0xf]
      %v196 = vld [vmem:[%s1 + $0x30] sm:$0xf]
      %v197 = vld [vmem:[%s1 + $0x34] sm:$0xf]
      %v198 = vld [vmem:[%s1 + $0x38] sm:$0xf]
      %v199 = vld [vmem:[%s1 + $0x3c] sm:$0xf]
      %vm200 = vsmask.f32 3328
      %vm201 = vsmask.f32 7440
      %vm202 = vmor %vm200, %vm201
      %v204 = vshrl.u32 %v172, 16
      %v206 = vrot.slane %v204, 4
      %v207 = vshll.u32 %v172, 16
      %v209 = vrot.slane %v207, 5
      %v210 = vor.u32 %v206, %v209
      %v211 = vrot.slane %v210, 4
      %v213 = vshll.u32 %v173, 16
      %v215 = vrot.slane %v213, 5
      %v216 = vsel %vm202, %v211, %v215
      %v218 = vshrl.u32 %v174, 16
      %v220 = vrot.slane %v218, 4
      %v221 = vshll.u32 %v174, 16
      %v223 = vrot.slane %v221, 5
      %v224 = vor.u32 %v220, %v223
      %v225 = vrot.slane %v224, 4
      %v227 = vshll.u32 %v175, 16
      %v229 = vrot.slane %v227, 5
      %v230 = vsel %vm202, %v225, %v229
      %v232 = vshrl.u32 %v176, 16
      %v234 = vrot.slane %v232, 4
      %v235 = vshll.u32 %v176, 16
      %v237 = vrot.slane %v235, 5
      %v238 = vor.u32 %v234, %v237
      %v239 = vrot.slane %v238, 4
      %v241 = vshll.u32 %v177, 16
      %v243 = vrot.slane %v241, 5
      %v244 = vsel %vm202, %v239, %v243
      %v246 = vshrl.u32 %v178, 16
      %v248 = vrot.slane %v246, 4
      %v249 = vshll.u32 %v178, 16
      %v251 = vrot.slane %v249, 5
      %v252 = vor.u32 %v248, %v251
      %v253 = vrot.slane %v252, 4
      %v255 = vshll.u32 %v179, 16
      %v257 = vrot.slane %v255, 5
      %v258 = vsel %vm202, %v253, %v257
      %s259 = scalar_lea.vmem %s1, 64
      %v260 = vld [vmem:[%s259] sm:$0xf]
      %v261 = vld [vmem:[%s259 + $0x4] sm:$0xf]
      %v262 = vld [vmem:[%s259 + $0x8] sm:$0xf]
      %v263 = vld [vmem:[%s259 + $0xc] sm:$0xf]
      %v264 = vld [vmem:[%s259 + $0x10] sm:$0xf]
      %v265 = vld [vmem:[%s259 + $0x14] sm:$0xf]
      %v266 = vld [vmem:[%s259 + $0x18] sm:$0xf]
      %v267 = vld [vmem:[%s259 + $0x1c] sm:$0xf]
      %v268 = vld [vmem:[%s259 + $0x20] sm:$0xf]
      %v269 = vld [vmem:[%s259 + $0x24] sm:$0xf]
      %v270 = vld [vmem:[%s259 + $0x28] sm:$0xf]
      %v271 = vld [vmem:[%s259 + $0x2c] sm:$0xf]
      %v272 = vld [vmem:[%s259 + $0x30] sm:$0xf]
      %v273 = vld [vmem:[%s259 + $0x34] sm:$0xf]
      %v274 = vld [vmem:[%s259 + $0x38] sm:$0xf]
      %v275 = vld [vmem:[%s259 + $0x3c] sm:$0xf]
      %v276 = vunpack.c.l.b16 %v216
      %v277 = vunpack.c.l.b16 %v230
      %v278 = vunpack.c.l.b16 %v244
      %v279 = vunpack.c.l.b16 %v258
      %v280 = vpack.c.b16 %v277, %v276
      %v281 = vpack.c.b16 %v279, %v278
      %v300 = vunpack.c.l.b16 %v260
      %v301 = vunpack.c.l.b16 %v261
      %v302 = vunpack.c.l.b16 %v262
      %v303 = vunpack.c.l.b16 %v263
      %v304 = vunpack.c.l.b16 %v264
      %v305 = vunpack.c.l.b16 %v265
      %v306 = vunpack.c.l.b16 %v266
      %v307 = vunpack.c.l.b16 %v267
      %v308 = vunpack.c.l.b16 %v268
      %v309 = vunpack.c.l.b16 %v269
      %v310 = vunpack.c.l.b16 %v270
      %v311 = vunpack.c.l.b16 %v271
      %v312 = vunpack.c.l.b16 %v272
      %v313 = vunpack.c.l.b16 %v273
      %v314 = vunpack.c.l.b16 %v274
      %v315 = vunpack.c.l.b16 %v275
      %v316 = vpack.c.b16 %v301, %v300
      %v317 = vpack.c.b16 %v303, %v302
      %v318 = vpack.c.b16 %v305, %v304
      %v319 = vpack.c.b16 %v307, %v306
      %v320 = vpack.c.b16 %v309, %v308
      %v321 = vpack.c.b16 %v311, %v310
      %v322 = vpack.c.b16 %v313, %v312
      %v323 = vpack.c.b16 %v315, %v314
      %332 = vmatprep.subr.bf16.mxu0 0
      %333 = vmatpush1.bf16.msra.mxu0 %v316
      %334 = vmatprep.subr.bf16.mxu0 0
      %335 = vmatpush1.bf16.msra.mxu0 %v317
      %336 = vmatprep.subr.bf16.mxu0 0
      %337 = vmatpush1.bf16.msra.mxu0 %v318
      %338 = vmatprep.subr.bf16.mxu0 0
      %339 = vmatpush1.bf16.msra.mxu0 %v319
      %340 = vmatprep.subr.bf16.mxu0 0
      %341 = vmatpush1.bf16.msra.mxu0 %v320
      %342 = vmatprep.subr.bf16.mxu0 0
      %343 = vmatpush1.bf16.msra.mxu0 %v321
      %344 = vmatprep.subr.bf16.mxu0 0
      %345 = vmatpush1.bf16.msra.mxu0 %v322
      %346 = vmatprep.subr.bf16.mxu0 0
      %347 = vmatpush1.bf16.msra.mxu0 %v323
      %348 = vmatprep.subr.bf16.mxu0 0
      %349 = vmatpush1.bf16.msra.mxu0 0
      %350 = vmatprep.subr.bf16.mxu0 0
      %351 = vmatpush1.bf16.msra.mxu0 0
      %352 = vmatprep.subr.bf16.mxu0 0
      %353 = vmatpush1.bf16.msra.mxu0 0
      %354 = vmatprep.subr.bf16.mxu0 0
      %355 = vmatpush1.bf16.msra.mxu0 0
      %356 = vmatprep.subr.bf16.mxu0 0
      %357 = vmatpush1.bf16.msra.mxu0 0
      %358 = vmatprep.subr.bf16.mxu0 0
      %359 = vmatpush1.bf16.msra.mxu0 0
      %360 = vmatprep.subr.bf16.mxu0 0
      %361 = vmatpush1.bf16.msra.mxu0 0
      %362 = vmatprep.subr.bf16.mxu0 0
      %363 = vmatpush1.bf16.msra.mxu0 0
      %364 = vmatprep.mubr.bf16.mxu0 0
      %365 = vmatmul.mubr.bf16.gmra.mrb[0].mxu0 %v280
      %v366 = vpop.f32.mrb[0].mxu0
      %v367 = vadd.f32 0.0, %v366
      %v368 = vpop.f32.mrb[0].mxu0
      %v369 = vpop.f32.mrb[0].mxu0
      %v370 = vadd.f32 0.0, %v369
      %v371 = vpop.f32.mrb[0].mxu0
      %372 = vmatprep.mubr.bf16.mxu0 0
      %373 = vmatmul.mubr.bf16.gmra.mrb[0].mxu0 %v281
      %v374 = vpop.f32.mrb[0].mxu0
      %v375 = vadd.f32 0.0, %v374
      %v376 = vpop.f32.mrb[0].mxu0
      %v377 = vpop.f32.mrb[0].mxu0
      %v378 = vadd.f32 0.0, %v377
      %v379 = vpop.f32.mrb[0].mxu0
      %380 = vdwg.mxu0
      %v385 = vunpack.c.l.b16 %v172
      %v386 = vunpack.c.l.b16 %v174
      %v387 = vunpack.c.l.b16 %v176
      %v388 = vunpack.c.l.b16 %v178
      %v389 = vpack.c.b16 %v386, %v385
      %v390 = vpack.c.b16 %v388, %v387
      %v409 = vunpack.c.l.b16 %v184
      %v410 = vunpack.c.l.b16 %v185
      %v411 = vunpack.c.l.b16 %v186
      %v412 = vunpack.c.l.b16 %v187
      %v413 = vunpack.c.l.b16 %v188
      %v414 = vunpack.c.l.b16 %v189
      %v415 = vunpack.c.l.b16 %v190
      %v416 = vunpack.c.l.b16 %v191
      %v417 = vunpack.c.l.b16 %v192
      %v418 = vunpack.c.l.b16 %v193
      %v419 = vunpack.c.l.b16 %v194
      %v420 = vunpack.c.l.b16 %v195
      %v421 = vunpack.c.l.b16 %v196
      %v422 = vunpack.c.l.b16 %v197
      %v423 = vunpack.c.l.b16 %v198
      %v424 = vunpack.c.l.b16 %v199
      %v425 = vpack.c.b16 %v410, %v409
      %v426 = vpack.c.b16 %v412, %v411
      %v427 = vpack.c.b16 %v414, %v413
      %v428 = vpack.c.b16 %v416, %v415
      %v429 = vpack.c.b16 %v418, %v417
      %v430 = vpack.c.b16 %v420, %v419
      %v431 = vpack.c.b16 %v422, %v421
      %v432 = vpack.c.b16 %v424, %v423
      %441 = vmatprep.subr.bf16.mxu0 0
      %442 = vmatpush1.bf16.msra.mxu0 %v425
      %443 = vmatprep.subr.bf16.mxu0 0
      %444 = vmatpush1.bf16.msra.mxu0 %v426
      %445 = vmatprep.subr.bf16.mxu0 0
      %446 = vmatpush1.bf16.msra.mxu0 %v427
      %447 = vmatprep.subr.bf16.mxu0 0
      %448 = vmatpush1.bf16.msra.mxu0 %v428
      %449 = vmatprep.subr.bf16.mxu0 0
      %450 = vmatpush1.bf16.msra.mxu0 %v429
      %451 = vmatprep.subr.bf16.mxu0 0
      %452 = vmatpush1.bf16.msra.mxu0 %v430
      %453 = vmatprep.subr.bf16.mxu0 0
      %454 = vmatpush1.bf16.msra.mxu0 %v431
      %455 = vmatprep.subr.bf16.mxu0 0
      %456 = vmatpush1.bf16.msra.mxu0 %v432
      %457 = vmatprep.subr.bf16.mxu0 0
      %458 = vmatpush1.bf16.msra.mxu0 0
      %459 = vmatprep.subr.bf16.mxu0 0
      %460 = vmatpush1.bf16.msra.mxu0 0
      %461 = vmatprep.subr.bf16.mxu0 0
      %462 = vmatpush1.bf16.msra.mxu0 0
      %463 = vmatprep.subr.bf16.mxu0 0
      %464 = vmatpush1.bf16.msra.mxu0 0
      %465 = vmatprep.subr.bf16.mxu0 0
      %466 = vmatpush1.bf16.msra.mxu0 0
      %467 = vmatprep.subr.bf16.mxu0 0
      %468 = vmatpush1.bf16.msra.mxu0 0
      %469 = vmatprep.subr.bf16.mxu0 0
      %470 = vmatpush1.bf16.msra.mxu0 0
      %471 = vmatprep.subr.bf16.mxu0 0
      %472 = vmatpush1.bf16.msra.mxu0 0
      %473 = vmatprep.mubr.bf16.mxu0 0
      %474 = vmatmul.mubr.bf16.gmra.mrb[0].mxu0 %v389
      %v475 = vpop.f32.mrb[0].mxu0
      %v476 = vadd.f32 %v367, %v475
      %v477 = vpop.f32.mrb[0].mxu0
      %v478 = vpop.f32.mrb[0].mxu0
      %v479 = vadd.f32 %v370, %v478
      %v480 = vpop.f32.mrb[0].mxu0
      %481 = vmatprep.mubr.bf16.mxu0 0
      %482 = vmatmul.mubr.bf16.gmra.mrb[0].mxu0 %v390
      %v483 = vpop.f32.mrb[0].mxu0
      %v484 = vadd.f32 %v375, %v483
      %v485 = vpop.f32.mrb[0].mxu0
      %v486 = vpop.f32.mrb[0].mxu0
      %v487 = vadd.f32 %v378, %v486
      %v488 = vpop.f32.mrb[0].mxu0
      %489 = vdwg.mxu0
      %vm494 = vcmask 1042432
      %vm495 = vcmask 1046532
      %vm496 = vmor %vm494, %vm495
      %v497 = vrot.slane %v172, 5
      %v498 = vrot.slane %v497, 4
      %v499 = vrot.slane %v173, 5
      %v500 = vsel %vm496, %v498, %v499
      %v501 = vrot.slane %v174, 5
      %v502 = vrot.slane %v501, 4
      %v503 = vrot.slane %v175, 5
      %v504 = vsel %vm496, %v502, %v503
      %v505 = vrot.slane %v176, 5
      %v506 = vrot.slane %v505, 4
      %v507 = vrot.slane %v177, 5
      %v508 = vsel %vm496, %v506, %v507
      %v509 = vrot.slane %v178, 5
      %v510 = vrot.slane %v509, 4
      %v511 = vrot.slane %v179, 5
      %v512 = vsel %vm496, %v510, %v511
      %s513 = scalar_lea.vmem %s1, 128
      %v514 = vld [vmem:[%s513] sm:$0xf]
      %v515 = vld [vmem:[%s513 + $0x4] sm:$0xf]
      %v516 = vld [vmem:[%s513 + $0x8] sm:$0xf]
      %v517 = vld [vmem:[%s513 + $0xc] sm:$0xf]
      %v518 = vld [vmem:[%s513 + $0x10] sm:$0xf]
      %v519 = vld [vmem:[%s513 + $0x14] sm:$0xf]
      %v520 = vld [vmem:[%s513 + $0x18] sm:$0xf]
      %v521 = vld [vmem:[%s513 + $0x1c] sm:$0xf]
      %v522 = vld [vmem:[%s513 + $0x20] sm:$0xf]
      %v523 = vld [vmem:[%s513 + $0x24] sm:$0xf]
      %v524 = vld [vmem:[%s513 + $0x28] sm:$0xf]
      %v525 = vld [vmem:[%s513 + $0x2c] sm:$0xf]
      %v526 = vld [vmem:[%s513 + $0x30] sm:$0xf]
      %v527 = vld [vmem:[%s513 + $0x34] sm:$0xf]
      %v528 = vld [vmem:[%s513 + $0x38] sm:$0xf]
      %v529 = vld [vmem:[%s513 + $0x3c] sm:$0xf]
      %v530 = vunpack.c.l.b16 %v500
      %v531 = vunpack.c.l.b16 %v504
      %v532 = vunpack.c.l.b16 %v508
      %v533 = vunpack.c.l.b16 %v512
      %v534 = vpack.c.b16 %v531, %v530
      %v535 = vpack.c.b16 %v533, %v532
      %v554 = vunpack.c.l.b16 %v514
      %v555 = vunpack.c.l.b16 %v515
      %v556 = vunpack.c.l.b16 %v516
      %v557 = vunpack.c.l.b16 %v517
      %v558 = vunpack.c.l.b16 %v518
      %v559 = vunpack.c.l.b16 %v519
      %v560 = vunpack.c.l.b16 %v520
      %v561 = vunpack.c.l.b16 %v521
      %v562 = vunpack.c.l.b16 %v522
      %v563 = vunpack.c.l.b16 %v523
      %v564 = vunpack.c.l.b16 %v524
      %v565 = vunpack.c.l.b16 %v525
      %v566 = vunpack.c.l.b16 %v526
      %v567 = vunpack.c.l.b16 %v527
      %v568 = vunpack.c.l.b16 %v528
      %v569 = vunpack.c.l.b16 %v529
      %v570 = vpack.c.b16 %v555, %v554
      %v571 = vpack.c.b16 %v557, %v556
      %v572 = vpack.c.b16 %v559, %v558
      %v573 = vpack.c.b16 %v561, %v560
      %v574 = vpack.c.b16 %v563, %v562
      %v575 = vpack.c.b16 %v565, %v564
      %v576 = vpack.c.b16 %v567, %v566
      %v577 = vpack.c.b16 %v569, %v568
      %586 = vmatprep.subr.bf16.mxu0 0
      %587 = vmatpush1.bf16.msra.mxu0 %v570
      %588 = vmatprep.subr.bf16.mxu0 0
      %589 = vmatpush1.bf16.msra.mxu0 %v571
      %590 = vmatprep.subr.bf16.mxu0 0
      %591 = vmatpush1.bf16.msra.mxu0 %v572
      %592 = vmatprep.subr.bf16.mxu0 0
      %593 = vmatpush1.bf16.msra.mxu0 %v573
      %594 = vmatprep.subr.bf16.mxu0 0
      %595 = vmatpush1.bf16.msra.mxu0 %v574
      %596 = vmatprep.subr.bf16.mxu0 0
      %597 = vmatpush1.bf16.msra.mxu0 %v575
      %598 = vmatprep.subr.bf16.mxu0 0
      %599 = vmatpush1.bf16.msra.mxu0 %v576
      %600 = vmatprep.subr.bf16.mxu0 0
      %601 = vmatpush1.bf16.msra.mxu0 %v577
      %602 = vmatprep.subr.bf16.mxu0 0
      %603 = vmatpush1.bf16.msra.mxu0 0
      %604 = vmatprep.subr.bf16.mxu0 0
      %605 = vmatpush1.bf16.msra.mxu0 0
      %606 = vmatprep.subr.bf16.mxu0 0
      %607 = vmatpush1.bf16.msra.mxu0 0
      %608 = vmatprep.subr.bf16.mxu0 0
      %609 = vmatpush1.bf16.msra.mxu0 0
      %610 = vmatprep.subr.bf16.mxu0 0
      %611 = vmatpush1.bf16.msra.mxu0 0
      %612 = vmatprep.subr.bf16.mxu0 0
      %613 = vmatpush1.bf16.msra.mxu0 0
      %614 = vmatprep.subr.bf16.mxu0 0
      %615 = vmatpush1.bf16.msra.mxu0 0
      %616 = vmatprep.subr.bf16.mxu0 0
      %617 = vmatpush1.bf16.msra.mxu0 0
      %618 = vmatprep.mubr.bf16.mxu0 0
      %619 = vmatmul.mubr.bf16.gmra.mrb[0].mxu0 %v534
      %v620 = vpop.f32.mrb[0].mxu0
      %v621 = vadd.f32 0.0, %v620
      %v622 = vpop.f32.mrb[0].mxu0
      %v623 = vpop.f32.mrb[0].mxu0
      %v624 = vadd.f32 0.0, %v623
      %v625 = vpop.f32.mrb[0].mxu0
      %626 = vmatprep.mubr.bf16.mxu0 0
      %627 = vmatmul.mubr.bf16.gmra.mrb[0].mxu0 %v535
      %v628 = vpop.f32.mrb[0].mxu0
      %v629 = vadd.f32 0.0, %v628
      %v630 = vpop.f32.mrb[0].mxu0
      %v631 = vpop.f32.mrb[0].mxu0
      %v632 = vadd.f32 0.0, %v631
      %v633 = vpop.f32.mrb[0].mxu0
      %634 = vdwg.mxu0
      %v635 = vadd.f32 %v476, %v621
      %v636 = vadd.f32 %v479, %v624
      %v637 = vadd.f32 %v484, %v629
      %v638 = vadd.f32 %v487, %v632
      %s639 = scalar_lea.vmem %s1, 192
      %v640 = vld [vmem:[%s639] sm:$0xf]
      %v641 = vld [vmem:[%s639 + $0x4] sm:$0xf]
      %v642 = vld [vmem:[%s639 + $0x8] sm:$0xf]
      %v643 = vld [vmem:[%s639 + $0xc] sm:$0xf]
      %v644 = vld [vmem:[%s639 + $0x10] sm:$0xf]
      %v645 = vld [vmem:[%s639 + $0x14] sm:$0xf]
      %v646 = vld [vmem:[%s639 + $0x18] sm:$0xf]
      %v647 = vld [vmem:[%s639 + $0x1c] sm:$0xf]
      %v648 = vld [vmem:[%s639 + $0x20] sm:$0xf]
      %v649 = vld [vmem:[%s639 + $0x24] sm:$0xf]
      %v650 = vld [vmem:[%s639 + $0x28] sm:$0xf]
      %v651 = vld [vmem:[%s639 + $0x2c] sm:$0xf]
      %v652 = vld [vmem:[%s639 + $0x30] sm:$0xf]
      %v653 = vld [vmem:[%s639 + $0x34] sm:$0xf]
      %v654 = vld [vmem:[%s639 + $0x38] sm:$0xf]
      %v655 = vld [vmem:[%s639 + $0x3c] sm:$0xf]
      %v657 = vunpack.c.l.b16 %v180
      %v658 = vpack.c.b16 %v387, %v386
      %v659 = vpack.c.b16 %v657, %v388
      %v678 = vunpack.c.l.b16 %v640
      %v679 = vunpack.c.l.b16 %v641
      %v680 = vunpack.c.l.b16 %v642
      %v681 = vunpack.c.l.b16 %v643
      %v682 = vunpack.c.l.b16 %v644
      %v683 = vunpack.c.l.b16 %v645
      %v684 = vunpack.c.l.b16 %v646
      %v685 = vunpack.c.l.b16 %v647
      %v686 = vunpack.c.l.b16 %v648
      %v687 = vunpack.c.l.b16 %v649
      %v688 = vunpack.c.l.b16 %v650
      %v689 = vunpack.c.l.b16 %v651
      %v690 = vunpack.c.l.b16 %v652
      %v691 = vunpack.c.l.b16 %v653
      %v692 = vunpack.c.l.b16 %v654
      %v693 = vunpack.c.l.b16 %v655
      %v694 = vpack.c.b16 %v679, %v678
      %v695 = vpack.c.b16 %v681, %v680
      %v696 = vpack.c.b16 %v683, %v682
      %v697 = vpack.c.b16 %v685, %v684
      %v698 = vpack.c.b16 %v687, %v686
      %v699 = vpack.c.b16 %v689, %v688
      %v700 = vpack.c.b16 %v691, %v690
      %v701 = vpack.c.b16 %v693, %v692
      %710 = vmatprep.subr.bf16.mxu0 0
      %711 = vmatpush1.bf16.msra.mxu0 %v694
      %712 = vmatprep.subr.bf16.mxu0 0
      %713 = vmatpush1.bf16.msra.mxu0 %v695
      %714 = vmatprep.subr.bf16.mxu0 0
      %715 = vmatpush1.bf16.msra.mxu0 %v696
      %716 = vmatprep.subr.bf16.mxu0 0
      %717 = vmatpush1.bf16.msra.mxu0 %v697
      %718 = vmatprep.subr.bf16.mxu0 0
      %719 = vmatpush1.bf16.msra.mxu0 %v698
      %720 = vmatprep.subr.bf16.mxu0 0
      %721 = vmatpush1.bf16.msra.mxu0 %v699
      %722 = vmatprep.subr.bf16.mxu0 0
      %723 = vmatpush1.bf16.msra.mxu0 %v700
      %724 = vmatprep.subr.bf16.mxu0 0
      %725 = vmatpush1.bf16.msra.mxu0 %v701
      %726 = vmatprep.subr.bf16.mxu0 0
      %727 = vmatpush1.bf16.msra.mxu0 0
      %728 = vmatprep.subr.bf16.mxu0 0
      %729 = vmatpush1.bf16.msra.mxu0 0
      %730 = vmatprep.subr.bf16.mxu0 0
      %731 = vmatpush1.bf16.msra.mxu0 0
      %732 = vmatprep.subr.bf16.mxu0 0
      %733 = vmatpush1.bf16.msra.mxu0 0
      %734 = vmatprep.subr.bf16.mxu0 0
      %735 = vmatpush1.bf16.msra.mxu0 0
      %736 = vmatprep.subr.bf16.mxu0 0
      %737 = vmatpush1.bf16.msra.mxu0 0
      %738 = vmatprep.subr.bf16.mxu0 0
      %739 = vmatpush1.bf16.msra.mxu0 0
      %740 = vmatprep.subr.bf16.mxu0 0
      %741 = vmatpush1.bf16.msra.mxu0 0
      %742 = vmatprep.mubr.bf16.mxu0 0
      %743 = vmatmul.mubr.bf16.gmra.mrb[0].mxu0 %v658
      %v744 = vpop.f32.mrb[0].mxu0
      %v745 = vadd.f32 0.0, %v744
      %v746 = vpop.f32.mrb[0].mxu0
      %v747 = vpop.f32.mrb[0].mxu0
      %v748 = vadd.f32 0.0, %v747
      %v749 = vpop.f32.mrb[0].mxu0
      %750 = vmatprep.mubr.bf16.mxu0 0
      %751 = vmatmul.mubr.bf16.gmra.mrb[0].mxu0 %v659
      %v752 = vpop.f32.mrb[0].mxu0
      %v753 = vadd.f32 0.0, %v752
      %v754 = vpop.f32.mrb[0].mxu0
      %v755 = vpop.f32.mrb[0].mxu0
      %v756 = vadd.f32 0.0, %v755
      %v757 = vpop.f32.mrb[0].mxu0
      %758 = vdwg.mxu0
      %v759 = vadd.f32 %v635, %v745
      %v760 = vadd.f32 %v636, %v748
      %v761 = vadd.f32 %v637, %v753
      %v762 = vadd.f32 %v638, %v756
      %v764 = vshrl.u32 %v180, 16
      %v766 = vrot.slane %v764, 4
      %v767 = vshll.u32 %v180, 16
      %v769 = vrot.slane %v767, 5
      %v770 = vor.u32 %v766, %v769
      %v771 = vrot.slane %v770, 4
      %v773 = vshll.u32 %v181, 16
      %v775 = vrot.slane %v773, 5
      %v776 = vsel %vm202, %v771, %v775
      %s777 = scalar_lea.vmem %s1, 256
      %v778 = vld [vmem:[%s777] sm:$0xf]
      %v779 = vld [vmem:[%s777 + $0x4] sm:$0xf]
      %v780 = vld [vmem:[%s777 + $0x8] sm:$0xf]
      %v781 = vld [vmem:[%s777 + $0xc] sm:$0xf]
      %v782 = vld [vmem:[%s777 + $0x10] sm:$0xf]
      %v783 = vld [vmem:[%s777 + $0x14] sm:$0xf]
      %v784 = vld [vmem:[%s777 + $0x18] sm:$0xf]
      %v785 = vld [vmem:[%s777 + $0x1c] sm:$0xf]
      %v786 = vld [vmem:[%s777 + $0x20] sm:$0xf]
      %v787 = vld [vmem:[%s777 + $0x24] sm:$0xf]
      %v788 = vld [vmem:[%s777 + $0x28] sm:$0xf]
      %v789 = vld [vmem:[%s777 + $0x2c] sm:$0xf]
      %v790 = vld [vmem:[%s777 + $0x30] sm:$0xf]
      %v791 = vld [vmem:[%s777 + $0x34] sm:$0xf]
      %v792 = vld [vmem:[%s777 + $0x38] sm:$0xf]
      %v793 = vld [vmem:[%s777 + $0x3c] sm:$0xf]
      %v794 = vunpack.c.l.b16 %v776
      %v795 = vpack.c.b16 %v278, %v277
      %v796 = vpack.c.b16 %v794, %v279
      %v815 = vunpack.c.l.b16 %v778
      %v816 = vunpack.c.l.b16 %v779
      %v817 = vunpack.c.l.b16 %v780
      %v818 = vunpack.c.l.b16 %v781
      %v819 = vunpack.c.l.b16 %v782
      %v820 = vunpack.c.l.b16 %v783
      %v821 = vunpack.c.l.b16 %v784
      %v822 = vunpack.c.l.b16 %v785
      %v823 = vunpack.c.l.b16 %v786
      %v824 = vunpack.c.l.b16 %v787
      %v825 = vunpack.c.l.b16 %v788
      %v826 = vunpack.c.l.b16 %v789
      %v827 = vunpack.c.l.b16 %v790
      %v828 = vunpack.c.l.b16 %v791
      %v829 = vunpack.c.l.b16 %v792
      %v830 = vunpack.c.l.b16 %v793
      %v831 = vpack.c.b16 %v816, %v815
      %v832 = vpack.c.b16 %v818, %v817
      %v833 = vpack.c.b16 %v820, %v819
      %v834 = vpack.c.b16 %v822, %v821
      %v835 = vpack.c.b16 %v824, %v823
      %v836 = vpack.c.b16 %v826, %v825
      %v837 = vpack.c.b16 %v828, %v827
      %v838 = vpack.c.b16 %v830, %v829
      %847 = vmatprep.subr.bf16.mxu0 0
      %848 = vmatpush1.bf16.msra.mxu0 %v831
      %849 = vmatprep.subr.bf16.mxu0 0
      %850 = vmatpush1.bf16.msra.mxu0 %v832
      %851 = vmatprep.subr.bf16.mxu0 0
      %852 = vmatpush1.bf16.msra.mxu0 %v833
      %853 = vmatprep.subr.bf16.mxu0 0
      %854 = vmatpush1.bf16.msra.mxu0 %v834
      %855 = vmatprep.subr.bf16.mxu0 0
      %856 = vmatpush1.bf16.msra.mxu0 %v835
      %857 = vmatprep.subr.bf16.mxu0 0
      %858 = vmatpush1.bf16.msra.mxu0 %v836
      %859 = vmatprep.subr.bf16.mxu0 0
      %860 = vmatpush1.bf16.msra.mxu0 %v837
      %861 = vmatprep.subr.bf16.mxu0 0
      %862 = vmatpush1.bf16.msra.mxu0 %v838
      %863 = vmatprep.subr.bf16.mxu0 0
      %864 = vmatpush1.bf16.msra.mxu0 0
      %865 = vmatprep.subr.bf16.mxu0 0
      %866 = vmatpush1.bf16.msra.mxu0 0
      %867 = vmatprep.subr.bf16.mxu0 0
      %868 = vmatpush1.bf16.msra.mxu0 0
      %869 = vmatprep.subr.bf16.mxu0 0
      %870 = vmatpush1.bf16.msra.mxu0 0
      %871 = vmatprep.subr.bf16.mxu0 0
      %872 = vmatpush1.bf16.msra.mxu0 0
      %873 = vmatprep.subr.bf16.mxu0 0
      %874 = vmatpush1.bf16.msra.mxu0 0
      %875 = vmatprep.subr.bf16.mxu0 0
      %876 = vmatpush1.bf16.msra.mxu0 0
      %877 = vmatprep.subr.bf16.mxu0 0
      %878 = vmatpush1.bf16.msra.mxu0 0
      %879 = vmatprep.mubr.bf16.mxu0 0
      %880 = vmatmul.mubr.bf16.gmra.mrb[0].mxu0 %v795
      %v881 = vpop.f32.mrb[0].mxu0
      %v882 = vadd.f32 0.0, %v881
      %v883 = vpop.f32.mrb[0].mxu0
      %v884 = vpop.f32.mrb[0].mxu0
      %v885 = vadd.f32 0.0, %v884
      %v886 = vpop.f32.mrb[0].mxu0
      %887 = vmatprep.mubr.bf16.mxu0 0
      %888 = vmatmul.mubr.bf16.gmra.mrb[0].mxu0 %v796
      %v889 = vpop.f32.mrb[0].mxu0
      %v890 = vadd.f32 0.0, %v889
      %v891 = vpop.f32.mrb[0].mxu0
      %v892 = vpop.f32.mrb[0].mxu0
      %v893 = vadd.f32 0.0, %v892
      %v894 = vpop.f32.mrb[0].mxu0
      %895 = vdwg.mxu0
      %v896 = vadd.f32 %v759, %v882
      %v897 = vadd.f32 %v760, %v885
      %v898 = vadd.f32 %v761, %v890
      %v899 = vadd.f32 %v762, %v893
      %v901 = vrot.slane %v180, 5
      %v902 = vrot.slane %v901, 4
      %v903 = vrot.slane %v181, 5
      %v904 = vsel %vm496, %v902, %v903
      %s905 = scalar_lea.vmem %s1, 320
      %v906 = vld [vmem:[%s905] sm:$0xf]
      %v907 = vld [vmem:[%s905 + $0x4] sm:$0xf]
      %v908 = vld [vmem:[%s905 + $0x8] sm:$0xf]
      %v909 = vld [vmem:[%s905 + $0xc] sm:$0xf]
      %v910 = vld [vmem:[%s905 + $0x10] sm:$0xf]
      %v911 = vld [vmem:[%s905 + $0x14] sm:$0xf]
      %v912 = vld [vmem:[%s905 + $0x18] sm:$0xf]
      %v913 = vld [vmem:[%s905 + $0x1c] sm:$0xf]
      %v914 = vld [vmem:[%s905 + $0x20] sm:$0xf]
      %v915 = vld [vmem:[%s905 + $0x24] sm:$0xf]
      %v916 = vld [vmem:[%s905 + $0x28] sm:$0xf]
      %v917 = vld [vmem:[%s905 + $0x2c] sm:$0xf]
      %v918 = vld [vmem:[%s905 + $0x30] sm:$0xf]
      %v919 = vld [vmem:[%s905 + $0x34] sm:$0xf]
      %v920 = vld [vmem:[%s905 + $0x38] sm:$0xf]
      %v921 = vld [vmem:[%s905 + $0x3c] sm:$0xf]
      %v922 = vunpack.c.l.b16 %v904
      %v923 = vpack.c.b16 %v532, %v531
      %v924 = vpack.c.b16 %v922, %v533
      %v943 = vunpack.c.l.b16 %v906
      %v944 = vunpack.c.l.b16 %v907
      %v945 = vunpack.c.l.b16 %v908
      %v946 = vunpack.c.l.b16 %v909
      %v947 = vunpack.c.l.b16 %v910
      %v948 = vunpack.c.l.b16 %v911
      %v949 = vunpack.c.l.b16 %v912
      %v950 = vunpack.c.l.b16 %v913
      %v951 = vunpack.c.l.b16 %v914
      %v952 = vunpack.c.l.b16 %v915
      %v953 = vunpack.c.l.b16 %v916
      %v954 = vunpack.c.l.b16 %v917
      %v955 = vunpack.c.l.b16 %v918
      %v956 = vunpack.c.l.b16 %v919
      %v957 = vunpack.c.l.b16 %v920
      %v958 = vunpack.c.l.b16 %v921
      %v959 = vpack.c.b16 %v944, %v943
      %v960 = vpack.c.b16 %v946, %v945
      %v961 = vpack.c.b16 %v948, %v947
      %v962 = vpack.c.b16 %v950, %v949
      %v963 = vpack.c.b16 %v952, %v951
      %v964 = vpack.c.b16 %v954, %v953
      %v965 = vpack.c.b16 %v956, %v955
      %v966 = vpack.c.b16 %v958, %v957
      %975 = vmatprep.subr.bf16.mxu0 0
      %976 = vmatpush1.bf16.msra.mxu0 %v959
      %977 = vmatprep.subr.bf16.mxu0 0
      %978 = vmatpush1.bf16.msra.mxu0 %v960
      %979 = vmatprep.subr.bf16.mxu0 0
      %980 = vmatpush1.bf16.msra.mxu0 %v961
      %981 = vmatprep.subr.bf16.mxu0 0
      %982 = vmatpush1.bf16.msra.mxu0 %v962
      %983 = vmatprep.subr.bf16.mxu0 0
      %984 = vmatpush1.bf16.msra.mxu0 %v963
      %985 = vmatprep.subr.bf16.mxu0 0
      %986 = vmatpush1.bf16.msra.mxu0 %v964
      %987 = vmatprep.subr.bf16.mxu0 0
      %988 = vmatpush1.bf16.msra.mxu0 %v965
      %989 = vmatprep.subr.bf16.mxu0 0
      %990 = vmatpush1.bf16.msra.mxu0 %v966
      %991 = vmatprep.subr.bf16.mxu0 0
      %992 = vmatpush1.bf16.msra.mxu0 0
      %993 = vmatprep.subr.bf16.mxu0 0
      %994 = vmatpush1.bf16.msra.mxu0 0
      %995 = vmatprep.subr.bf16.mxu0 0
      %996 = vmatpush1.bf16.msra.mxu0 0
      %997 = vmatprep.subr.bf16.mxu0 0
      %998 = vmatpush1.bf16.msra.mxu0 0
      %999 = vmatprep.subr.bf16.mxu0 0
      %1000 = vmatpush1.bf16.msra.mxu0 0
      %1001 = vmatprep.subr.bf16.mxu0 0
      %1002 = vmatpush1.bf16.msra.mxu0 0
      %1003 = vmatprep.subr.bf16.mxu0 0
      %1004 = vmatpush1.bf16.msra.mxu0 0
      %1005 = vmatprep.subr.bf16.mxu0 0
      %1006 = vmatpush1.bf16.msra.mxu0 0
      %1007 = vmatprep.mubr.bf16.mxu0 0
      %1008 = vmatmul.mubr.bf16.gmra.mrb[0].mxu0 %v923
      %v1009 = vpop.f32.mrb[0].mxu0
      %v1010 = vadd.f32 0.0, %v1009
      %v1011 = vpop.f32.mrb[0].mxu0
      %v1012 = vpop.f32.mrb[0].mxu0
      %v1013 = vadd.f32 0.0, %v1012
      %v1014 = vpop.f32.mrb[0].mxu0
      %1015 = vmatprep.mubr.bf16.mxu0 0
      %1016 = vmatmul.mubr.bf16.gmra.mrb[0].mxu0 %v924
      %v1017 = vpop.f32.mrb[0].mxu0
      %v1018 = vadd.f32 0.0, %v1017
      %v1019 = vpop.f32.mrb[0].mxu0
      %v1020 = vpop.f32.mrb[0].mxu0
      %v1021 = vadd.f32 0.0, %v1020
      %v1022 = vpop.f32.mrb[0].mxu0
      %1023 = vdwg.mxu0
      %v1024 = vadd.f32 %v896, %v1010
      %v1025 = vadd.f32 %v897, %v1013
      %v1026 = vadd.f32 %v898, %v1018
      %v1027 = vadd.f32 %v899, %v1021
      %s1028 = scalar_lea.vmem %s1, 384
      %v1029 = vld [vmem:[%s1028] sm:$0xf]
      %v1030 = vld [vmem:[%s1028 + $0x4] sm:$0xf]
      %v1031 = vld [vmem:[%s1028 + $0x8] sm:$0xf]
      %v1032 = vld [vmem:[%s1028 + $0xc] sm:$0xf]
      %v1033 = vld [vmem:[%s1028 + $0x10] sm:$0xf]
      %v1034 = vld [vmem:[%s1028 + $0x14] sm:$0xf]
      %v1035 = vld [vmem:[%s1028 + $0x18] sm:$0xf]
      %v1036 = vld [vmem:[%s1028 + $0x1c] sm:$0xf]
      %v1037 = vld [vmem:[%s1028 + $0x20] sm:$0xf]
      %v1038 = vld [vmem:[%s1028 + $0x24] sm:$0xf]
      %v1039 = vld [vmem:[%s1028 + $0x28] sm:$0xf]
      %v1040 = vld [vmem:[%s1028 + $0x2c] sm:$0xf]
      %v1041 = vld [vmem:[%s1028 + $0x30] sm:$0xf]
      %v1042 = vld [vmem:[%s1028 + $0x34] sm:$0xf]
      %v1043 = vld [vmem:[%s1028 + $0x38] sm:$0xf]
      %v1044 = vld [vmem:[%s1028 + $0x3c] sm:$0xf]
      %v1046 = vunpack.c.l.b16 %v182
      %v1047 = vpack.c.b16 %v1046, %v657
      %v1065 = vunpack.c.l.b16 %v1029
      %v1066 = vunpack.c.l.b16 %v1030
      %v1067 = vunpack.c.l.b16 %v1031
      %v1068 = vunpack.c.l.b16 %v1032
      %v1069 = vunpack.c.l.b16 %v1033
      %v1070 = vunpack.c.l.b16 %v1034
      %v1071 = vunpack.c.l.b16 %v1035
      %v1072 = vunpack.c.l.b16 %v1036
      %v1073 = vunpack.c.l.b16 %v1037
      %v1074 = vunpack.c.l.b16 %v1038
      %v1075 = vunpack.c.l.b16 %v1039
      %v1076 = vunpack.c.l.b16 %v1040
      %v1077 = vunpack.c.l.b16 %v1041
      %v1078 = vunpack.c.l.b16 %v1042
      %v1079 = vunpack.c.l.b16 %v1043
      %v1080 = vunpack.c.l.b16 %v1044
      %v1081 = vpack.c.b16 %v1066, %v1065
      %v1082 = vpack.c.b16 %v1068, %v1067
      %v1083 = vpack.c.b16 %v1070, %v1069
      %v1084 = vpack.c.b16 %v1072, %v1071
      %v1085 = vpack.c.b16 %v1074, %v1073
      %v1086 = vpack.c.b16 %v1076, %v1075
      %v1087 = vpack.c.b16 %v1078, %v1077
      %v1088 = vpack.c.b16 %v1080, %v1079
      %1097 = vmatprep.subr.bf16.mxu0 0
      %1098 = vmatpush1.bf16.msra.mxu0 %v1081
      %1099 = vmatprep.subr.bf16.mxu0 0
      %1100 = vmatpush1.bf16.msra.mxu0 %v1082
      %1101 = vmatprep.subr.bf16.mxu0 0
      %1102 = vmatpush1.bf16.msra.mxu0 %v1083
      %1103 = vmatprep.subr.bf16.mxu0 0
      %1104 = vmatpush1.bf16.msra.mxu0 %v1084
      %1105 = vmatprep.subr.bf16.mxu0 0
      %1106 = vmatpush1.bf16.msra.mxu0 %v1085
      %1107 = vmatprep.subr.bf16.mxu0 0
      %1108 = vmatpush1.bf16.msra.mxu0 %v1086
      %1109 = vmatprep.subr.bf16.mxu0 0
      %1110 = vmatpush1.bf16.msra.mxu0 %v1087
      %1111 = vmatprep.subr.bf16.mxu0 0
      %1112 = vmatpush1.bf16.msra.mxu0 %v1088
      %1113 = vmatprep.subr.bf16.mxu0 0
      %1114 = vmatpush1.bf16.msra.mxu0 0
      %1115 = vmatprep.subr.bf16.mxu0 0
      %1116 = vmatpush1.bf16.msra.mxu0 0
      %1117 = vmatprep.subr.bf16.mxu0 0
      %1118 = vmatpush1.bf16.msra.mxu0 0
      %1119 = vmatprep.subr.bf16.mxu0 0
      %1120 = vmatpush1.bf16.msra.mxu0 0
      %1121 = vmatprep.subr.bf16.mxu0 0
      %1122 = vmatpush1.bf16.msra.mxu0 0
      %1123 = vmatprep.subr.bf16.mxu0 0
      %1124 = vmatpush1.bf16.msra.mxu0 0
      %1125 = vmatprep.subr.bf16.mxu0 0
      %1126 = vmatpush1.bf16.msra.mxu0 0
      %1127 = vmatprep.subr.bf16.mxu0 0
      %1128 = vmatpush1.bf16.msra.mxu0 0
      %1129 = vmatprep.mubr.bf16.mxu0 0
      %1130 = vmatmul.mubr.bf16.gmra.mrb[0].mxu0 %v390
      %v1131 = vpop.f32.mrb[0].mxu0
      %v1132 = vadd.f32 0.0, %v1131
      %v1133 = vpop.f32.mrb[0].mxu0
      %v1134 = vpop.f32.mrb[0].mxu0
      %v1135 = vadd.f32 0.0, %v1134
      %v1136 = vpop.f32.mrb[0].mxu0
      %1137 = vmatprep.mubr.bf16.mxu0 0
      %1138 = vmatmul.mubr.bf16.gmra.mrb[0].mxu0 %v1047
      %v1139 = vpop.f32.mrb[0].mxu0
      %v1140 = vadd.f32 0.0, %v1139
      %v1141 = vpop.f32.mrb[0].mxu0
      %v1142 = vpop.f32.mrb[0].mxu0
      %v1143 = vadd.f32 0.0, %v1142
      %v1144 = vpop.f32.mrb[0].mxu0
      %1145 = vdwg.mxu0
      %v1146 = vadd.f32 %v1024, %v1132
      %v1147 = vadd.f32 %v1025, %v1135
      %v1148 = vadd.f32 %v1026, %v1140
      %v1149 = vadd.f32 %v1027, %v1143
      %v1151 = vshrl.u32 %v182, 16
      %v1153 = vrot.slane %v1151, 4
      %v1154 = vshll.u32 %v182, 16
      %v1156 = vrot.slane %v1154, 5
      %v1157 = vor.u32 %v1153, %v1156
      %v1158 = vrot.slane %v1157, 4
      %v1160 = vshll.u32 %v183, 16
      %v1162 = vrot.slane %v1160, 5
      %v1163 = vsel %vm202, %v1158, %v1162
      %s1164 = scalar_lea.vmem %s1, 448
      %v1165 = vld [vmem:[%s1164] sm:$0xf]
      %v1166 = vld [vmem:[%s1164 + $0x4] sm:$0xf]
      %v1167 = vld [vmem:[%s1164 + $0x8] sm:$0xf]
      %v1168 = vld [vmem:[%s1164 + $0xc] sm:$0xf]
      %v1169 = vld [vmem:[%s1164 + $0x10] sm:$0xf]
      %v1170 = vld [vmem:[%s1164 + $0x14] sm:$0xf]
      %v1171 = vld [vmem:[%s1164 + $0x18] sm:$0xf]
      %v1172 = vld [vmem:[%s1164 + $0x1c] sm:$0xf]
      %v1173 = vld [vmem:[%s1164 + $0x20] sm:$0xf]
      %v1174 = vld [vmem:[%s1164 + $0x24] sm:$0xf]
      %v1175 = vld [vmem:[%s1164 + $0x28] sm:$0xf]
      %v1176 = vld [vmem:[%s1164 + $0x2c] sm:$0xf]
      %v1177 = vld [vmem:[%s1164 + $0x30] sm:$0xf]
      %v1178 = vld [vmem:[%s1164 + $0x34] sm:$0xf]
      %v1179 = vld [vmem:[%s1164 + $0x38] sm:$0xf]
      %v1180 = vld [vmem:[%s1164 + $0x3c] sm:$0xf]
      %v1181 = vunpack.c.l.b16 %v1163
      %v1182 = vpack.c.b16 %v1181, %v794
      %v1200 = vunpack.c.l.b16 %v1165
      %v1201 = vunpack.c.l.b16 %v1166
      %v1202 = vunpack.c.l.b16 %v1167
      %v1203 = vunpack.c.l.b16 %v1168
      %v1204 = vunpack.c.l.b16 %v1169
      %v1205 = vunpack.c.l.b16 %v1170
      %v1206 = vunpack.c.l.b16 %v1171
      %v1207 = vunpack.c.l.b16 %v1172
      %v1208 = vunpack.c.l.b16 %v1173
      %v1209 = vunpack.c.l.b16 %v1174
      %v1210 = vunpack.c.l.b16 %v1175
      %v1211 = vunpack.c.l.b16 %v1176
      %v1212 = vunpack.c.l.b16 %v1177
      %v1213 = vunpack.c.l.b16 %v1178
      %v1214 = vunpack.c.l.b16 %v1179
      %v1215 = vunpack.c.l.b16 %v1180
      %v1216 = vpack.c.b16 %v1201, %v1200
      %v1217 = vpack.c.b16 %v1203, %v1202
      %v1218 = vpack.c.b16 %v1205, %v1204
      %v1219 = vpack.c.b16 %v1207, %v1206
      %v1220 = vpack.c.b16 %v1209, %v1208
      %v1221 = vpack.c.b16 %v1211, %v1210
      %v1222 = vpack.c.b16 %v1213, %v1212
      %v1223 = vpack.c.b16 %v1215, %v1214
      %1232 = vmatprep.subr.bf16.mxu0 0
      %1233 = vmatpush1.bf16.msra.mxu0 %v1216
      %1234 = vmatprep.subr.bf16.mxu0 0
      %1235 = vmatpush1.bf16.msra.mxu0 %v1217
      %1236 = vmatprep.subr.bf16.mxu0 0
      %1237 = vmatpush1.bf16.msra.mxu0 %v1218
      %1238 = vmatprep.subr.bf16.mxu0 0
      %1239 = vmatpush1.bf16.msra.mxu0 %v1219
      %1240 = vmatprep.subr.bf16.mxu0 0
      %1241 = vmatpush1.bf16.msra.mxu0 %v1220
      %1242 = vmatprep.subr.bf16.mxu0 0
      %1243 = vmatpush1.bf16.msra.mxu0 %v1221
      %1244 = vmatprep.subr.bf16.mxu0 0
      %1245 = vmatpush1.bf16.msra.mxu0 %v1222
      %1246 = vmatprep.subr.bf16.mxu0 0
      %1247 = vmatpush1.bf16.msra.mxu0 %v1223
      %1248 = vmatprep.subr.bf16.mxu0 0
      %1249 = vmatpush1.bf16.msra.mxu0 0
      %1250 = vmatprep.subr.bf16.mxu0 0
      %1251 = vmatpush1.bf16.msra.mxu0 0
      %1252 = vmatprep.subr.bf16.mxu0 0
      %1253 = vmatpush1.bf16.msra.mxu0 0
      %1254 = vmatprep.subr.bf16.mxu0 0
      %1255 = vmatpush1.bf16.msra.mxu0 0
      %1256 = vmatprep.subr.bf16.mxu0 0
      %1257 = vmatpush1.bf16.msra.mxu0 0
      %1258 = vmatprep.subr.bf16.mxu0 0
      %1259 = vmatpush1.bf16.msra.mxu0 0
      %1260 = vmatprep.subr.bf16.mxu0 0
      %1261 = vmatpush1.bf16.msra.mxu0 0
      %1262 = vmatprep.subr.bf16.mxu0 0
      %1263 = vmatpush1.bf16.msra.mxu0 0
      %1264 = vmatprep.mubr.bf16.mxu0 0
      %1265 = vmatmul.mubr.bf16.gmra.mrb[0].mxu0 %v281
      %v1266 = vpop.f32.mrb[0].mxu0
      %v1267 = vadd.f32 0.0, %v1266
      %v1268 = vpop.f32.mrb[0].mxu0
      %v1269 = vpop.f32.mrb[0].mxu0
      %v1270 = vadd.f32 0.0, %v1269
      %v1271 = vpop.f32.mrb[0].mxu0
      %1272 = vmatprep.mubr.bf16.mxu0 0
      %1273 = vmatmul.mubr.bf16.gmra.mrb[0].mxu0 %v1182
      %v1274 = vpop.f32.mrb[0].mxu0
      %v1275 = vadd.f32 0.0, %v1274
      %v1276 = vpop.f32.mrb[0].mxu0
      %v1277 = vpop.f32.mrb[0].mxu0
      %v1278 = vadd.f32 0.0, %v1277
      %v1279 = vpop.f32.mrb[0].mxu0
      %1280 = vdwg.mxu0
      %v1281 = vadd.f32 %v1146, %v1267
      %v1282 = vadd.f32 %v1147, %v1270
      %v1283 = vadd.f32 %v1148, %v1275
      %v1284 = vadd.f32 %v1149, %v1278
      %v1286 = vrot.slane %v182, 5
      %v1287 = vrot.slane %v1286, 4
      %v1288 = vrot.slane %v183, 5
      %v1289 = vsel %vm496, %v1287, %v1288
      %s1290 = scalar_lea.vmem %s1, 512
      %v1291 = vld [vmem:[%s1290] sm:$0xf]
      %v1292 = vld [vmem:[%s1290 + $0x4] sm:$0xf]
      %v1293 = vld [vmem:[%s1290 + $0x8] sm:$0xf]
      %v1294 = vld [vmem:[%s1290 + $0xc] sm:$0xf]
      %v1295 = vld [vmem:[%s1290 + $0x10] sm:$0xf]
      %v1296 = vld [vmem:[%s1290 + $0x14] sm:$0xf]
      %v1297 = vld [vmem:[%s1290 + $0x18] sm:$0xf]
      %v1298 = vld [vmem:[%s1290 + $0x1c] sm:$0xf]
      %v1299 = vld [vmem:[%s1290 + $0x20] sm:$0xf]
      %v1300 = vld [vmem:[%s1290 + $0x24] sm:$0xf]
      %v1301 = vld [vmem:[%s1290 + $0x28] sm:$0xf]
      %v1302 = vld [vmem:[%s1290 + $0x2c] sm:$0xf]
      %v1303 = vld [vmem:[%s1290 + $0x30] sm:$0xf]
      %v1304 = vld [vmem:[%s1290 + $0x34] sm:$0xf]
      %v1305 = vld [vmem:[%s1290 + $0x38] sm:$0xf]
      %v1306 = vld [vmem:[%s1290 + $0x3c] sm:$0xf]
      %v1307 = vunpack.c.l.b16 %v1289
      %v1308 = vpack.c.b16 %v1307, %v922
      %v1326 = vunpack.c.l.b16 %v1291
      %v1327 = vunpack.c.l.b16 %v1292
      %v1328 = vunpack.c.l.b16 %v1293
      %v1329 = vunpack.c.l.b16 %v1294
      %v1330 = vunpack.c.l.b16 %v1295
      %v1331 = vunpack.c.l.b16 %v1296
      %v1332 = vunpack.c.l.b16 %v1297
      %v1333 = vunpack.c.l.b16 %v1298
      %v1334 = vunpack.c.l.b16 %v1299
      %v1335 = vunpack.c.l.b16 %v1300
      %v1336 = vunpack.c.l.b16 %v1301
      %v1337 = vunpack.c.l.b16 %v1302
      %v1338 = vunpack.c.l.b16 %v1303
      %v1339 = vunpack.c.l.b16 %v1304
      %v1340 = vunpack.c.l.b16 %v1305
      %v1341 = vunpack.c.l.b16 %v1306
      %v1342 = vpack.c.b16 %v1327, %v1326
      %v1343 = vpack.c.b16 %v1329, %v1328
      %v1344 = vpack.c.b16 %v1331, %v1330
      %v1345 = vpack.c.b16 %v1333, %v1332
      %v1346 = vpack.c.b16 %v1335, %v1334
      %v1347 = vpack.c.b16 %v1337, %v1336
      %v1348 = vpack.c.b16 %v1339, %v1338
      %v1349 = vpack.c.b16 %v1341, %v1340
      %1358 = vmatprep.subr.bf16.mxu0 0
      %1359 = vmatpush1.bf16.msra.mxu0 %v1342
      %1360 = vmatprep.subr.bf16.mxu0 0
      %1361 = vmatpush1.bf16.msra.mxu0 %v1343
      %1362 = vmatprep.subr.bf16.mxu0 0
      %1363 = vmatpush1.bf16.msra.mxu0 %v1344
      %1364 = vmatprep.subr.bf16.mxu0 0
      %1365 = vmatpush1.bf16.msra.mxu0 %v1345
      %1366 = vmatprep.subr.bf16.mxu0 0
      %1367 = vmatpush1.bf16.msra.mxu0 %v1346
      %1368 = vmatprep.subr.bf16.mxu0 0
      %1369 = vmatpush1.bf16.msra.mxu0 %v1347
      %1370 = vmatprep.subr.bf16.mxu0 0
      %1371 = vmatpush1.bf16.msra.mxu0 %v1348
      %1372 = vmatprep.subr.bf16.mxu0 0
      %1373 = vmatpush1.bf16.msra.mxu0 %v1349
      %1374 = vmatprep.subr.bf16.mxu0 0
      %1375 = vmatpush1.bf16.msra.mxu0 0
      %1376 = vmatprep.subr.bf16.mxu0 0
      %1377 = vmatpush1.bf16.msra.mxu0 0
      %1378 = vmatprep.subr.bf16.mxu0 0
      %1379 = vmatpush1.bf16.msra.mxu0 0
      %1380 = vmatprep.subr.bf16.mxu0 0
      %1381 = vmatpush1.bf16.msra.mxu0 0
      %1382 = vmatprep.subr.bf16.mxu0 0
      %1383 = vmatpush1.bf16.msra.mxu0 0
      %1384 = vmatprep.subr.bf16.mxu0 0
      %1385 = vmatpush1.bf16.msra.mxu0 0
      %1386 = vmatprep.subr.bf16.mxu0 0
      %1387 = vmatpush1.bf16.msra.mxu0 0
      %1388 = vmatprep.subr.bf16.mxu0 0
      %1389 = vmatpush1.bf16.msra.mxu0 0
      %1390 = vmatprep.mubr.bf16.mxu0 0
      %1391 = vmatmul.mubr.bf16.gmra.mrb[0].mxu0 %v535
      %v1392 = vpop.f32.mrb[0].mxu0
      %v1393 = vadd.f32 0.0, %v1392
      %v1394 = vpop.f32.mrb[0].mxu0
      %v1395 = vpop.f32.mrb[0].mxu0
      %v1396 = vadd.f32 0.0, %v1395
      %v1397 = vpop.f32.mrb[0].mxu0
      %1398 = vmatprep.mubr.bf16.mxu0 0
      %1399 = vmatmul.mubr.bf16.gmra.mrb[0].mxu0 %v1308
      %v1400 = vpop.f32.mrb[0].mxu0
      %v1401 = vadd.f32 0.0, %v1400
      %v1402 = vpop.f32.mrb[0].mxu0
      %v1403 = vpop.f32.mrb[0].mxu0
      %v1404 = vadd.f32 0.0, %v1403
      %v1405 = vpop.f32.mrb[0].mxu0
      %1406 = vdwg.mxu0
      %v1407 = vadd.f32 %v1281, %v1393
      %v1408 = vadd.f32 %v1282, %v1396
      %v1409 = vadd.f32 %v1283, %v1401
      %v1410 = vadd.f32 %v1284, %v1404
      %v1411 = vld [vmem:[%s2] sm:$0x1]
      %v1413 = vlaneseq
      %v1414 = vshrl.u32 %v1413, 7
      %v1415 = vsub.s32 0, %v1414
      %v1416 = vrot.slane %v1411, %v1415
      %v1418 = vadd.f32 %v1407, %v1416
      %v1419 = vadd.f32 %v1408, %v1416
      %v1420 = vadd.f32 %v1409, %v1416
      %v1421 = vadd.f32 %v1410, %v1416
      %v1422 = vmax.f32 %v1418, 0.0
      %v1423 = vmax.f32 %v1419, 0.0
      %v1424 = vmax.f32 %v1420, 0.0
      %v1425 = vmax.f32 %v1421, 0.0
      %v1426 = vpack.c.bf16 %v1422, %v1422
      %v1427 = vpack.c.bf16 %v1423, %v1423
      %v1428 = vpack.c.bf16 %v1424, %v1424
      %v1429 = vpack.c.bf16 %v1425, %v1425
      %1430 = vst [vmem:[%s170] sm:$0xf] %v1426
      %1431 = vst [vmem:[%s170 + $0x4] sm:$0xf] %v1427
      %1432 = vst [vmem:[%s170 + $0x8] sm:$0xf] %v1428
      %1433 = vst [vmem:[%s170 + $0xc] sm:$0xf] %v1429
      %p1434 = scmp.lt.s32.totalorder %s14, 1
      %s1435 = scalar_select %p1434, %s14, 1
      %s1436 = smul.addr %s1435, 4
      %s1437 = smul.addr %s1436, 4
      %s1438 = scalar_lea.vmem %s3, %s1437
      // Predicated region
      $region33: #{seg_qyl_forward.16} parent=31 // pred_check
        %p1439 = pneg %p100
      $region34: #{seg_qyl_forward.16} parent=31 // pred_check_branch
        %1441 = sbr.rel (%p1439) target = $region36
      $region35: #{seg_qyl_forward.16} parent=31 // pred_region
        _
      $region36: #{seg_qyl_forward.16} parent=31 // pred_fallthru
        _
    $region32: #{seg_qyl_forward.16} parent=5 // pred_fallthru
      _
    %p1442 = scmp.le.s32.totalorder 2, %s9
    // Predicated region
    $region37: #{seg_qyl_forward.16} parent=5 // pred_check
      %p1443 = pneg %p1442
    $region38: #{seg_qyl_forward.16} parent=5 // pred_check_branch
      %1445 = sbr.rel (%p1443) target = $region40
    $region39: #{seg_qyl_forward.16} parent=5 // pred_region
      %s1446 = ssub.s32 %s9, 2
      // Predicated region
      $region41: #{seg_qyl_forward.16} parent=39 // pred_check
        %p1447 = pneg %p106
      $region42: #{seg_qyl_forward.16} parent=39 // pred_check_branch
        %1449 = sbr.rel (%p1447) target = $region44
      $region43: #{seg_qyl_forward.16} parent=39 // pred_region
        %p1450 = scmp.lt.s32.totalorder %s15, 1
        %s1451 = scalar_select %p1450, %s15, 1
        %s1452 = smul.addr %s1451, 4
        %s1453 = smul.addr %s1452, 4
        %s1454 = scalar_lea.vmem %s3, %s1453
      $region44: #{seg_qyl_forward.16} parent=39 // pred_fallthru
        _
    $region40: #{seg_qyl_forward.16} parent=5 // pred_fallthru
      _
  $region6: #{seg_qyl_forward.16} parent=0 // loop_footer
    %s13 = sadd.s32 1, %s9
  $region7: #{seg_qyl_forward.16} parent=0 // loop_footer_branch
    %8 = sbr.rel target = $region3
  $region8: #{seg_qyl_forward.16} parent=0 // loop_exit
    _

// kernel: seg_qyl_forward.23
$region0: #{seg_qyl_forward.23}
  #allocation0 [shape = 'u32[]', space=smem, size = 0x4, offset = 0x4, fixed_abs, tag = 'smem constant byte address 0x4 - core index']
  #allocation1 [shape = 'u32[144,128]{1,0:T(1,128)}', space=vmem, size = 0x12000, scoped, tag = 'internal scratch']
  %s0 = inlined_call_operand.vmem [shape: bf16[2,18,18,128], index: 0, kind: input, shape index: {}]
  %s1 = inlined_call_operand.vmem [shape: bf16[9,128,128], index: 1, kind: input, shape index: {}]
  %s2 = inlined_call_operand.vmem [shape: f32[1,128], index: 2, kind: input, shape index: {}]
  %s3 = inlined_call_operand.vmem [shape: bf16[128,128], index: 3, kind: input, shape index: {}]
  %s4 = inlined_call_operand.vmem [shape: f32[1,128], index: 4, kind: input, shape index: {}]
  %s5 = inlined_call_operand.vmem [shape: f32[2,16,16,128], index: 5, kind: output, shape index: {}]
  %s6 = sld [smem:[#allocation0]]
  $region53: #{seg_qyl_forward.23} parent=0
    _
  %s8 = ssub.s32 1, %s6
  %s9 = scalar_select 0, %s8, %s6
  loop: start=0, step=1, limit=4
  $region2: #{seg_qyl_forward.23} parent=0 // loop_pre_header
    _
  $region3: #{seg_qyl_forward.23} parent=0 // loop_header
    %s11 = sphi 0, %s15
    %p12 = scmp.ge.s32.totalorder %s11, 4
    %s21 = sphi 0, %s23
    %s24 = sphi 0, %s21
    %s25 = sphi 0, %s24
    %s41 = sphi 0, %s25
    %s45 = sphi 0, %s45
    %s47 = sphi 0, %s45
    %s48 = sphi 0, %s47
    %s62 = sphi 0, %s48
    %s66 = sphi 0, %s66
    %s68 = sphi 0, %s66
    %s69 = sphi 0, %s68
    %s83 = sphi 0, %s69
    %s87 = sphi 0, %s87
    %s89 = sphi 0, %s87
    %s90 = sphi 0, %s89
    %s104 = sphi 0, %s90
    %s108 = sphi 0, %s108
    %s110 = sphi 0, %s108
    %s111 = sphi 0, %s110
    %s125 = sphi 0, %s111
    %s131 = sphi 0, %s133
    %s134 = sphi 0, %s131
    %s135 = sphi 0, %s134
    %s151 = sphi 0, %s135
  $region4: #{seg_qyl_forward.23} parent=0 // loop_header_branch
    %14 = sbr.rel (%p12) target = $region8
  $region5: #{seg_qyl_forward.23} parent=0 // loop_body
    %s16 = ssub.s32 %s11, 1
    %s17 = ssub.s32 %s11, 2
    %s18 = sadd.s32 %s11, 1
    %s19 = ssub.s32 %s11, %s18
    %p20 = scmp.eq.s32.totalorder %s19, 0
    %s22 = sadd.s32 %s21, 1
    %s23 = scalar_select %p20, %s21, %s22
    %p26 = pneg %p20
    %p27 = scmp.eq.s32.totalorder %s11, 1
    %p28 = por %p26, %p27
    %p29 = scmp.ne.s32.totalorder %s21, %s24
    %p30 = scmp.eq.s32.totalorder %s11, 0
    %p31 = por %p29, %p30
    %p32 = scmp.ne.s32.totalorder %s21, %s24
    %p33 = scmp.eq.s32.totalorder %s16, 1
    %p34 = por %p32, %p33
    %p35 = scmp.ne.s32.totalorder %s24, %s25
    %p36 = scmp.eq.s32.totalorder %s16, 0
    %p37 = por %p35, %p36
    %p38 = scmp.ne.s32.totalorder %s24, %s25
    %p39 = scmp.eq.s32.totalorder %s17, 1
    %p40 = por %p38, %p39
    %p42 = scmp.ne.s32.totalorder %s25, %s41
    %p43 = scmp.eq.s32.totalorder %s17, 0
    %p44 = por %p42, %p43
    %s46 = sadd.s32 %s45, 1
    %p49 = scmp.eq.s32.totalorder %s11, 1
    %p50 = scmp.ne.s32.totalorder %s45, %s47
    %p51 = scmp.eq.s32.totalorder %s11, 0
    %p52 = por %p50, %p51
    %p53 = scmp.ne.s32.totalorder %s45, %s47
    %p54 = scmp.eq.s32.totalorder %s16, 1
    %p55 = por %p53, %p54
    %p56 = scmp.ne.s32.totalorder %s47, %s48
    %p57 = scmp.eq.s32.totalorder %s16, 0
    %p58 = por %p56, %p57
    %p59 = scmp.ne.s32.totalorder %s47, %s48
    %p60 = scmp.eq.s32.totalorder %s17, 1
    %p61 = por %p59, %p60
    %p63 = scmp.ne.s32.totalorder %s48, %s62
    %p64 = scmp.eq.s32.totalorder %s17, 0
    %p65 = por %p63, %p64
    %s67 = sadd.s32 %s66, 1
    %p70 = scmp.eq.s32.totalorder %s11, 1
    %p71 = scmp.ne.s32.totalorder %s66, %s68
    %p72 = scmp.eq.s32.totalorder %s11, 0
    %p73 = por %p71, %p72
    %p74 = scmp.ne.s32.totalorder %s66, %s68
    %p75 = scmp.eq.s32.totalorder %s16, 1
    %p76 = por %p74, %p75
    %p77 = scmp.ne.s32.totalorder %s68, %s69
    %p78 = scmp.eq.s32.totalorder %s16, 0
    %p79 = por %p77, %p78
    %p80 = scmp.ne.s32.totalorder %s68, %s69
    %p81 = scmp.eq.s32.totalorder %s17, 1
    %p82 = por %p80, %p81
    %p84 = scmp.ne.s32.totalorder %s69, %s83
    %p85 = scmp.eq.s32.totalorder %s17, 0
    %p86 = por %p84, %p85
    %s88 = sadd.s32 %s87, 1
    %p91 = scmp.eq.s32.totalorder %s11, 1
    %p92 = scmp.ne.s32.totalorder %s87, %s89
    %p93 = scmp.eq.s32.totalorder %s11, 0
    %p94 = por %p92, %p93
    %p95 = scmp.ne.s32.totalorder %s87, %s89
    %p96 = scmp.eq.s32.totalorder %s16, 1
    %p97 = por %p95, %p96
    %p98 = scmp.ne.s32.totalorder %s89, %s90
    %p99 = scmp.eq.s32.totalorder %s16, 0
    %p100 = por %p98, %p99
    %p101 = scmp.ne.s32.totalorder %s89, %s90
    %p102 = scmp.eq.s32.totalorder %s17, 1
    %p103 = por %p101, %p102
    %p105 = scmp.ne.s32.totalorder %s90, %s104
    %p106 = scmp.eq.s32.totalorder %s17, 0
    %p107 = por %p105, %p106
    %s109 = sadd.s32 %s108, 1
    %p112 = scmp.eq.s32.totalorder %s11, 1
    %p113 = scmp.ne.s32.totalorder %s108, %s110
    %p114 = scmp.eq.s32.totalorder %s11, 0
    %p115 = por %p113, %p114
    %p116 = scmp.ne.s32.totalorder %s108, %s110
    %p117 = scmp.eq.s32.totalorder %s16, 1
    %p118 = por %p116, %p117
    %p119 = scmp.ne.s32.totalorder %s110, %s111
    %p120 = scmp.eq.s32.totalorder %s16, 0
    %p121 = por %p119, %p120
    %p122 = scmp.ne.s32.totalorder %s110, %s111
    %p123 = scmp.eq.s32.totalorder %s17, 1
    %p124 = por %p122, %p123
    %p126 = scmp.ne.s32.totalorder %s111, %s125
    %p127 = scmp.eq.s32.totalorder %s17, 0
    %p128 = por %p126, %p127
    %s129 = ssub.s32 %s11, %s18
    %p130 = scmp.eq.s32.totalorder %s129, 0
    %s132 = sadd.s32 %s131, 1
    %s133 = scalar_select %p130, %s131, %s132
    %p136 = pneg %p130
    %p137 = scmp.eq.s32.totalorder %s11, 1
    %p138 = por %p136, %p137
    %p139 = scmp.ne.s32.totalorder %s131, %s134
    %p140 = scmp.eq.s32.totalorder %s11, 0
    %p141 = por %p139, %p140
    %p142 = scmp.ne.s32.totalorder %s131, %s134
    %p143 = scmp.eq.s32.totalorder %s16, 1
    %p144 = por %p142, %p143
    %p145 = scmp.ne.s32.totalorder %s134, %s135
    %p146 = scmp.eq.s32.totalorder %s16, 0
    %p147 = por %p145, %p146
    %p148 = scmp.ne.s32.totalorder %s134, %s135
    %p149 = scmp.eq.s32.totalorder %s17, 1
    %p150 = por %p148, %p149
    %p152 = scmp.ne.s32.totalorder %s135, %s151
    %p153 = scmp.eq.s32.totalorder %s17, 0
    %p154 = por %p152, %p153
    %p155 = scmp.le.s32.totalorder 1, %s11
    %p156 = scmp.lt.s32.totalorder %s11, 3
    %p157 = pnand %p155, %p156
    %p158 = pneg %p157
    // Predicated region
    $region9: #{seg_qyl_forward.23} parent=5 // pred_check
      _
    $region10: #{seg_qyl_forward.23} parent=5 // pred_check_branch
      %160 = sbr.rel (%p157) target = $region12
    $region11: #{seg_qyl_forward.23} parent=5 // pred_region
      %s161 = ssub.s32 %s11, 1
      // Predicated region
      $region13: #{seg_qyl_forward.23} parent=11 // pred_check
        %p162 = pneg %p58
      $region14: #{seg_qyl_forward.23} parent=11 // pred_check_branch
        %164 = sbr.rel (%p162) target = $region16
      $region15: #{seg_qyl_forward.23} parent=11 // pred_region
        _
      $region16: #{seg_qyl_forward.23} parent=11 // pred_fallthru
        _
      // Predicated region
      $region17: #{seg_qyl_forward.23} parent=11 // pred_check
        %p165 = pneg %p79
      $region18: #{seg_qyl_forward.23} parent=11 // pred_check_branch
        %167 = sbr.rel (%p165) target = $region20
      $region19: #{seg_qyl_forward.23} parent=11 // pred_region
        _
      $region20: #{seg_qyl_forward.23} parent=11 // pred_fallthru
        _
      // Predicated region
      $region21: #{seg_qyl_forward.23} parent=11 // pred_check
        %p168 = pneg %p100
      $region22: #{seg_qyl_forward.23} parent=11 // pred_check_branch
        %170 = sbr.rel (%p168) target = $region24
      $region23: #{seg_qyl_forward.23} parent=11 // pred_region
        _
      $region24: #{seg_qyl_forward.23} parent=11 // pred_fallthru
        _
      // Predicated region
      $region25: #{seg_qyl_forward.23} parent=11 // pred_check
        %p171 = pneg %p121
      $region26: #{seg_qyl_forward.23} parent=11 // pred_check_branch
        %173 = sbr.rel (%p171) target = $region28
      $region27: #{seg_qyl_forward.23} parent=11 // pred_region
        _
      $region28: #{seg_qyl_forward.23} parent=11 // pred_fallthru
        _
    $region12: #{seg_qyl_forward.23} parent=5 // pred_fallthru
      _
    %p174 = scmp.lt.s32.totalorder %s11, 2
    // Predicated region
    $region29: #{seg_qyl_forward.23} parent=5 // pred_check
      %p175 = pneg %p174
    $region30: #{seg_qyl_forward.23} parent=5 // pred_check_branch
      %177 = sbr.rel (%p175) target = $region32
    $region31: #{seg_qyl_forward.23} parent=5 // pred_region
      // Predicated region
      $region33: #{seg_qyl_forward.23} parent=31 // pred_check
        %p178 = pneg %p31
      $region34: #{seg_qyl_forward.23} parent=31 // pred_check_branch
        %180 = sbr.rel (%p178) target = $region36
      $region35: #{seg_qyl_forward.23} parent=31 // pred_region
        %p181 = scmp.lt.s32.totalorder %s11, 1
        %s182 = scalar_select %p181, %s11, 1
        %s183 = smul.addr %s182, 54
        %s184 = smul.addr %s183, 4
        %s185 = scalar_lea.vmem %s0, %s184
      $region36: #{seg_qyl_forward.23} parent=31 // pred_fallthru
        _
    $region32: #{seg_qyl_forward.23} parent=5 // pred_fallthru
      _
    %p186 = scmp.le.s32.totalorder 1, %s11
    %p187 = scmp.lt.s32.totalorder %s11, 3
    %p188 = pnand %p186, %p187
    %p189 = pneg %p188
    // Predicated region
    $region37: #{seg_qyl_forward.23} parent=5 // pred_check
      _
    $region38: #{seg_qyl_forward.23} parent=5 // pred_check_branch
      %191 = sbr.rel (%p188) target = $region40
    $region39: #{seg_qyl_forward.23} parent=5 // pred_region
      %s192 = ssub.s32 %s11, 1
      %p193 = scmp.lt.s32.totalorder %s16, 1
      %s194 = scalar_select %p193, %s16, 1
      %s195 = smul.addr %s194, 54
      %s196 = smul.addr %s195, 4
      %s197 = scalar_lea.vmem %s0, %s196
      %p198 = pneg %p37
      %p199 = pneg %p34
      %p200 = pneg %p58
      %p201 = pneg %p55
      %p202 = pneg %p79
      %p203 = pneg %p76
      %p204 = pneg %p100
      %p205 = pneg %p97
      %p206 = pneg %p121
      %p207 = pneg %p118
      %p208 = pneg %p147
      %p209 = pneg %p144
      %p210 = scmp.lt.s32.totalorder %s16, 1
      %s211 = scalar_select %p210, %s16, 1
      %s212 = smul.addr %s211, 32
      %s213 = smul.addr %s212, 8
      %s214 = scalar_lea.vmem %s5, %s213
      %p215 = scmp.lt.s32.totalorder %s16, 1
      %s216 = scalar_select %p215, %s16, 1
      %s217 = smul.addr %s216, 54
      %s218 = smul.addr %s217, 4
      %s219 = scalar_lea.vmem %s0, %s218
      %p220 = scmp.lt.s32.totalorder %s16, 1
      %s221 = scalar_select %p220, %s16, 1
      %s222 = smul.addr %s221, 32
      %s223 = smul.addr %s222, 8
      %s224 = scalar_lea.vmem %s5, %s223
      %v226 = vld [vmem:[%s219] sm:$0xf]
      %v227 = vld [vmem:[%s219 + $0x4] sm:$0xf]
      %v228 = vld [vmem:[%s219 + $0x8] sm:$0x1]
      %v229 = vld [vmem:[%s219 + $0xc] sm:$0xf]
      %v230 = vld [vmem:[%s219 + $0x10] sm:$0xf]
      %v231 = vld [vmem:[%s219 + $0x14] sm:$0x1]
      %v232 = vld [vmem:[%s219 + $0x18] sm:$0xf]
      %v233 = vld [vmem:[%s219 + $0x1c] sm:$0xf]
      %v234 = vld [vmem:[%s219 + $0x20] sm:$0x1]
      %v235 = vld [vmem:[%s219 + $0x24] sm:$0xf]
      %v236 = vld [vmem:[%s219 + $0x28] sm:$0xf]
      %v237 = vld [vmem:[%s219 + $0x2c] sm:$0x1]
      %v238 = vld [vmem:[%s219 + $0x30] sm:$0xf]
      %v239 = vld [vmem:[%s219 + $0x34] sm:$0xf]
      %v240 = vld [vmem:[%s219 + $0x38] sm:$0x1]
      %v241 = vld [vmem:[%s219 + $0x3c] sm:$0xf]
      %v242 = vld [vmem:[%s219 + $0x40] sm:$0xf]
      %v243 = vld [vmem:[%s219 + $0x44] sm:$0x1]
      %v244 = vld [vmem:[%s219 + $0x48] sm:$0xf]
      %v245 = vld [vmem:[%s219 + $0x4c] sm:$0xf]
      %v246 = vld [vmem:[%s219 + $0x50] sm:$0x1]
      %v247 = vld [vmem:[%s219 + $0x54] sm:$0xf]
      %v248 = vld [vmem:[%s219 + $0x58] sm:$0xf]
      %v249 = vld [vmem:[%s219 + $0x5c] sm:$0x1]
      %v250 = vld [vmem:[%s219 + $0x60] sm:$0xf]
      %v251 = vld [vmem:[%s219 + $0x64] sm:$0xf]
      %v252 = vld [vmem:[%s219 + $0x68] sm:$0x1]
      %v253 = vld [vmem:[%s219 + $0x6c] sm:$0xf]
      %v254 = vld [vmem:[%s219 + $0x70] sm:$0xf]
      %v255 = vld [vmem:[%s219 + $0x74] sm:$0x1]
      %v256 = vld [vmem:[%s219 + $0x78] sm:$0xf]
      %v257 = vld [vmem:[%s219 + $0x7c] sm:$0xf]
      %v258 = vld [vmem:[%s219 + $0x80] sm:$0x1]
      %v259 = vld [vmem:[%s219 + $0x84] sm:$0xf]
      %v260 = vld [vmem:[%s219 + $0x88] sm:$0xf]
      %v261 = vld [vmem:[%s219 + $0x8c] sm:$0x1]
      %v262 = vld [vmem:[%s219 + $0x90] sm:$0xf]
      %v263 = vld [vmem:[%s219 + $0x94] sm:$0xf]
      %v264 = vld [vmem:[%s219 + $0x98] sm:$0x1]
      %v265 = vld [vmem:[%s219 + $0x9c] sm:$0xf]
      %v266 = vld [vmem:[%s219 + $0xa0] sm:$0xf]
      %v267 = vld [vmem:[%s219 + $0xa4] sm:$0x1]
      %v268 = vld [vmem:[%s219 + $0xa8] sm:$0xf]
      %v269 = vld [vmem:[%s219 + $0xac] sm:$0xf]
      %v270 = vld [vmem:[%s219 + $0xb0] sm:$0x1]
      %v271 = vld [vmem:[%s219 + $0xb4] sm:$0xf]
      %v272 = vld [vmem:[%s219 + $0xb8] sm:$0xf]
      %v273 = vld [vmem:[%s219 + $0xbc] sm:$0x1]
      %v274 = vld [vmem:[%s219 + $0xc0] sm:$0xf]
      %v275 = vld [vmem:[%s219 + $0xc4] sm:$0xf]
      %v276 = vld [vmem:[%s219 + $0xc8] sm:$0x1]
      %v277 = vld [vmem:[%s219 + $0xcc] sm:$0xf]
      %v278 = vld [vmem:[%s219 + $0xd0] sm:$0xf]
      %v279 = vld [vmem:[%s219 + $0xd4] sm:$0x1]
      %v280 = vld [vmem:[%s1] sm:$0xf]
      %v281 = vld [vmem:[%s1 + $0x4] sm:$0xf]
      %v282 = vld [vmem:[%s1 + $0x8] sm:$0xf]
      %v283 = vld [vmem:[%s1 + $0xc] sm:$0xf]
      %v284 = vld [vmem:[%s1 + $0x10] sm:$0xf]
      %v285 = vld [vmem:[%s1 + $0x14] sm:$0xf]
      %v286 = vld [vmem:[%s1 + $0x18] sm:$0xf]
      %v287 = vld [vmem:[%s1 + $0x1c] sm:$0xf]
      %v288 = vld [vmem:[%s1 + $0x20] sm:$0xf]
      %v289 = vld [vmem:[%s1 + $0x24] sm:$0xf]
      %v290 = vld [vmem:[%s1 + $0x28] sm:$0xf]
      %v291 = vld [vmem:[%s1 + $0x2c] sm:$0xf]
      %v292 = vld [vmem:[%s1 + $0x30] sm:$0xf]
      %v293 = vld [vmem:[%s1 + $0x34] sm:$0xf]
      %v294 = vld [vmem:[%s1 + $0x38] sm:$0xf]
      %v295 = vld [vmem:[%s1 + $0x3c] sm:$0xf]
      %vm296 = vsmask.f32 3328
      %vm297 = vsmask.f32 7440
      %vm298 = vmor %vm296, %vm297
      %v300 = vshrl.u32 %v226, 16
      %v302 = vrot.slane %v300, 4
      %v303 = vshll.u32 %v226, 16
      %v305 = vrot.slane %v303, 5
      %v306 = vor.u32 %v302, %v305
      %v307 = vrot.slane %v306, 4
      %v309 = vshll.u32 %v227, 16
      %v311 = vrot.slane %v309, 5
      %v312 = vsel %vm298, %v307, %v311
      %v313 = vshrl.u32 %v227, 16
      %v315 = vrot.slane %v313, 4
      %v316 = vor.u32 %v315, %v311
      %v317 = vrot.slane %v316, 4
      %v319 = vshll.u32 %v228, 16
      %v321 = vrot.slane %v319, 5
      %v322 = vsel %vm298, %v317, %v321
      %v324 = vshrl.u32 %v229, 16
      %v326 = vrot.slane %v324, 4
      %v327 = vshll.u32 %v229, 16
      %v329 = vrot.slane %v327, 5
      %v330 = vor.u32 %v326, %v329
      %v331 = vrot.slane %v330, 4
      %v333 = vshll.u32 %v230, 16
      %v335 = vrot.slane %v333, 5
      %v336 = vsel %vm298, %v331, %v335
      %v337 = vshrl.u32 %v230, 16
      %v339 = vrot.slane %v337, 4
      %v340 = vor.u32 %v339, %v335
      %v341 = vrot.slane %v340, 4
      %v343 = vshll.u32 %v231, 16
      %v345 = vrot.slane %v343, 5
      %v346 = vsel %vm298, %v341, %v345
      %v348 = vshrl.u32 %v232, 16
      %v350 = vrot.slane %v348, 4
      %v351 = vshll.u32 %v232, 16
      %v353 = vrot.slane %v351, 5
      %v354 = vor.u32 %v350, %v353
      %v355 = vrot.slane %v354, 4
      %v357 = vshll.u32 %v233, 16
      %v359 = vrot.slane %v357, 5
      %v360 = vsel %vm298, %v355, %v359
      %v361 = vshrl.u32 %v233, 16
      %v363 = vrot.slane %v361, 4
      %v364 = vor.u32 %v363, %v359
      %v365 = vrot.slane %v364, 4
      %v367 = vshll.u32 %v234, 16
      %v369 = vrot.slane %v367, 5
      %v370 = vsel %vm298, %v365, %v369
      %v372 = vshrl.u32 %v235, 16
      %v374 = vrot.slane %v372, 4
      %v375 = vshll.u32 %v235, 16
      %v377 = vrot.slane %v375, 5
      %v378 = vor.u32 %v374, %v377
      %v379 = vrot.slane %v378, 4
      %v381 = vshll.u32 %v236, 16
      %v383 = vrot.slane %v381, 5
      %v384 = vsel %vm298, %v379, %v383
      %v385 = vshrl.u32 %v236, 16
      %v387 = vrot.slane %v385, 4
      %v388 = vor.u32 %v387, %v383
      %v389 = vrot.slane %v388, 4
      %v391 = vshll.u32 %v237, 16
      %v393 = vrot.slane %v391, 5
      %v394 = vsel %vm298, %v389, %v393
      %v396 = vshrl.u32 %v238, 16
      %v398 = vrot.slane %v396, 4
      %v399 = vshll.u32 %v238, 16
      %v401 = vrot.slane %v399, 5
      %v402 = vor.u32 %v398, %v401
      %v403 = vrot.slane %v402, 4
      %v405 = vshll.u32 %v239, 16
      %v407 = vrot.slane %v405, 5
      %v408 = vsel %vm298, %v403, %v407
      %v409 = vshrl.u32 %v239, 16
      %v411 = vrot.slane %v409, 4
      %v412 = vor.u32 %v411, %v407
      %v413 = vrot.slane %v412, 4
      %v415 = vshll.u32 %v240, 16
      %v417 = vrot.slane %v415, 5
      %v418 = vsel %vm298, %v413, %v417
      %v420 = vshrl.u32 %v241, 16
      %v422 = vrot.slane %v420, 4
      %v423 = vshll.u32 %v241, 16
      %v425 = vrot.slane %v423, 5
      %v426 = vor.u32 %v422, %v425
      %v427 = vrot.slane %v426, 4
      %v429 = vshll.u32 %v242, 16
      %v431 = vrot.slane %v429, 5
      %v432 = vsel %vm298, %v427, %v431
      %v433 = vshrl.u32 %v242, 16
      %v435 = vrot.slane %v433, 4
      %v436 = vor.u32 %v435, %v431
      %v437 = vrot.slane %v436, 4
      %v439 = vshll.u32 %v243, 16
      %v441 = vrot.slane %v439, 5
      %v442 = vsel %vm298, %v437, %v441
      %v444 = vshrl.u32 %v244, 16
      %v446 = vrot.slane %v444, 4
      %v447 = vshll.u32 %v244, 16
      %v449 = vrot.slane %v447, 5
      %v450 = vor.u32 %v446, %v449
      %v451 = vrot.slane %v450, 4
      %v453 = vshll.u32 %v245, 16
      %v455 = vrot.slane %v453, 5
      %v456 = vsel %vm298, %v451, %v455
      %v457 = vshrl.u32 %v245, 16
      %v459 = vrot.slane %v457, 4
      %v460 = vor.u32 %v459, %v455
      %v461 = vrot.slane %v460, 4
      %v463 = vshll.u32 %v246, 16
      %v465 = vrot.slane %v463, 5
      %v466 = vsel %vm298, %v461, %v465
      %v468 = vshrl.u32 %v247, 16
      %v470 = vrot.slane %v468, 4
      %v471 = vshll.u32 %v247, 16
      %v473 = vrot.slane %v471, 5
      %v474 = vor.u32 %v470, %v473
      %v475 = vrot.slane %v474, 4
      %v477 = vshll.u32 %v248, 16
      %v479 = vrot.slane %v477, 5
      %v480 = vsel %vm298, %v475, %v479
      %v481 = vshrl.u32 %v248, 16
      %v483 = vrot.slane %v481, 4
      %v484 = vor.u32 %v483, %v479
      %v485 = vrot.slane %v484, 4
      %v487 = vshll.u32 %v249, 16
      %v489 = vrot.slane %v487, 5
      %v490 = vsel %vm298, %v485, %v489
      %v492 = vshrl.u32 %v250, 16
      %v494 = vrot.slane %v492, 4
      %v495 = vshll.u32 %v250, 16
      %v497 = vrot.slane %v495, 5
      %v498 = vor.u32 %v494, %v497
      %v499 = vrot.slane %v498, 4
      %v501 = vshll.u32 %v251, 16
      %v503 = vrot.slane %v501, 5
      %v504 = vsel %vm298, %v499, %v503
      %v505 = vshrl.u32 %v251, 16
      %v507 = vrot.slane %v505, 4
      %v508 = vor.u32 %v507, %v503
      %v509 = vrot.slane %v508, 4
      %v511 = vshll.u32 %v252, 16
      %v513 = vrot.slane %v511, 5
      %v514 = vsel %vm298, %v509, %v513
      %v516 = vshrl.u32 %v253, 16
      %v518 = vrot.slane %v516, 4
      %v519 = vshll.u32 %v253, 16
      %v521 = vrot.slane %v519, 5
      %v522 = vor.u32 %v518, %v521
      %v523 = vrot.slane %v522, 4
      %v525 = vshll.u32 %v254, 16
      %v527 = vrot.slane %v525, 5
      %v528 = vsel %vm298, %v523, %v527
      %v529 = vshrl.u32 %v254, 16
      %v531 = vrot.slane %v529, 4
      %v532 = vor.u32 %v531, %v527
      %v533 = vrot.slane %v532, 4
      %v535 = vshll.u32 %v255, 16
      %v537 = vrot.slane %v535, 5
      %v538 = vsel %vm298, %v533, %v537
      %v540 = vshrl.u32 %v256, 16
      %v542 = vrot.slane %v540, 4
      %v543 = vshll.u32 %v256, 16
      %v545 = vrot.slane %v543, 5
      %v546 = vor.u32 %v542, %v545
      %v547 = vrot.slane %v546, 4
      %v549 = vshll.u32 %v257, 16
      %v551 = vrot.slane %v549, 5
      %v552 = vsel %vm298, %v547, %v551
      %v553 = vshrl.u32 %v257, 16
      %v555 = vrot.slane %v553, 4
      %v556 = vor.u32 %v555, %v551
      %v557 = vrot.slane %v556, 4
      %v559 = vshll.u32 %v258, 16
      %v561 = vrot.slane %v559, 5
      %v562 = vsel %vm298, %v557, %v561
      %v564 = vshrl.u32 %v259, 16
      %v566 = vrot.slane %v564, 4
      %v567 = vshll.u32 %v259, 16
      %v569 = vrot.slane %v567, 5
      %v570 = vor.u32 %v566, %v569
      %v571 = vrot.slane %v570, 4
      %v573 = vshll.u32 %v260, 16
      %v575 = vrot.slane %v573, 5
      %v576 = vsel %vm298, %v571, %v575
      %v577 = vshrl.u32 %v260, 16
      %v579 = vrot.slane %v577, 4
      %v580 = vor.u32 %v579, %v575
      %v581 = vrot.slane %v580, 4
      %v583 = vshll.u32 %v261, 16
      %v585 = vrot.slane %v583, 5
      %v586 = vsel %vm298, %v581, %v585
      %v588 = vshrl.u32 %v262, 16
      %v590 = vrot.slane %v588, 4
      %v591 = vshll.u32 %v262, 16
      %v593 = vrot.slane %v591, 5
      %v594 = vor.u32 %v590, %v593
      %v595 = vrot.slane %v594, 4
      %v597 = vshll.u32 %v263, 16
      %v599 = vrot.slane %v597, 5
      %v600 = vsel %vm298, %v595, %v599
      %v601 = vshrl.u32 %v263, 16
      %v603 = vrot.slane %v601, 4
      %v604 = vor.u32 %v603, %v599
      %v605 = vrot.slane %v604, 4
      %v607 = vshll.u32 %v264, 16
      %v609 = vrot.slane %v607, 5
      %v610 = vsel %vm298, %v605, %v609
      %v612 = vshrl.u32 %v265, 16
      %v614 = vrot.slane %v612, 4
      %v615 = vshll.u32 %v265, 16
      %v617 = vrot.slane %v615, 5
      %v618 = vor.u32 %v614, %v617
      %v619 = vrot.slane %v618, 4
      %v621 = vshll.u32 %v266, 16
      %v623 = vrot.slane %v621, 5
      %v624 = vsel %vm298, %v619, %v623
      %v625 = vshrl.u32 %v266, 16
      %v627 = vrot.slane %v625, 4
      %v628 = vor.u32 %v627, %v623
      %v629 = vrot.slane %v628, 4
      %v631 = vshll.u32 %v267, 16
      %v633 = vrot.slane %v631, 5
      %v634 = vsel %vm298, %v629, %v633
      %v636 = vshrl.u32 %v268, 16
      %v638 = vrot.slane %v636, 4
      %v639 = vshll.u32 %v268, 16
      %v641 = vrot.slane %v639, 5
      %v642 = vor.u32 %v638, %v641
      %v643 = vrot.slane %v642, 4
      %v645 = vshll.u32 %v269, 16
      %v647 = vrot.slane %v645, 5
      %v648 = vsel %vm298, %v643, %v647
      %v649 = vshrl.u32 %v269, 16
      %v651 = vrot.slane %v649, 4
      %v652 = vor.u32 %v651, %v647
      %v653 = vrot.slane %v652, 4
      %v655 = vshll.u32 %v270, 16
      %v657 = vrot.slane %v655, 5
      %v658 = vsel %vm298, %v653, %v657
      %v660 = vshrl.u32 %v271, 16
      %v662 = vrot.slane %v660, 4
      %v663 = vshll.u32 %v271, 16
      %v665 = vrot.slane %v663, 5
      %v666 = vor.u32 %v662, %v665
      %v667 = vrot.slane %v666, 4
      %v669 = vshll.u32 %v272, 16
      %v671 = vrot.slane %v669, 5
      %v672 = vsel %vm298, %v667, %v671
      %v673 = vshrl.u32 %v272, 16
      %v675 = vrot.slane %v673, 4
      %v676 = vor.u32 %v675, %v671
      %v677 = vrot.slane %v676, 4
      %v679 = vshll.u32 %v273, 16
      %v681 = vrot.slane %v679, 5
      %v682 = vsel %vm298, %v677, %v681
      %s683 = scalar_lea.vmem %s1, 64
      %v684 = vld [vmem:[%s683] sm:$0xf]
      %v685 = vld [vmem:[%s683 + $0x4] sm:$0xf]
      %v686 = vld [vmem:[%s683 + $0x8] sm:$0xf]
      %v687 = vld [vmem:[%s683 + $0xc] sm:$0xf]
      %v688 = vld [vmem:[%s683 + $0x10] sm:$0xf]
      %v689 = vld [vmem:[%s683 + $0x14] sm:$0xf]
      %v690 = vld [vmem:[%s683 + $0x18] sm:$0xf]
      %v691 = vld [vmem:[%s683 + $0x1c] sm:$0xf]
      %v692 = vld [vmem:[%s683 + $0x20] sm:$0xf]
      %v693 = vld [vmem:[%s683 + $0x24] sm:$0xf]
      %v694 = vld [vmem:[%s683 + $0x28] sm:$0xf]
      %v695 = vld [vmem:[%s683 + $0x2c] sm:$0xf]
      %v696 = vld [vmem:[%s683 + $0x30] sm:$0xf]
      %v697 = vld [vmem:[%s683 + $0x34] sm:$0xf]
      %v698 = vld [vmem:[%s683 + $0x38] sm:$0xf]
      %v699 = vld [vmem:[%s683 + $0x3c] sm:$0xf]
      %v700 = vunpack.c.l.b16 %v312
      %v701 = vunpack.c.l.b16 %v322
      %v702 = vunpack.c.l.b16 %v336
      %v703 = vunpack.c.l.b16 %v346
      %v704 = vunpack.c.l.b16 %v360
      %v705 = vunpack.c.l.b16 %v370
      %v706 = vunpack.c.l.b16 %v384
      %v707 = vunpack.c.l.b16 %v394
      %v708 = vunpack.c.l.b16 %v408
      %v709 = vunpack.c.l.b16 %v418
      %v710 = vunpack.c.l.b16 %v432
      %v711 = vunpack.c.l.b16 %v442
      %v712 = vunpack.c.l.b16 %v456
      %v713 = vunpack.c.l.b16 %v466
      %v714 = vunpack.c.l.b16 %v480
      %v715 = vunpack.c.l.b16 %v490
      %v716 = vunpack.c.l.b16 %v504
      %v717 = vunpack.c.l.b16 %v514
      %v718 = vunpack.c.l.b16 %v528
      %v719 = vunpack.c.l.b16 %v538
      %v720 = vunpack.c.l.b16 %v552
      %v721 = vunpack.c.l.b16 %v562
      %v722 = vunpack.c.l.b16 %v576
      %v723 = vunpack.c.l.b16 %v586
      %v724 = vunpack.c.l.b16 %v600
      %v725 = vunpack.c.l.b16 %v610
      %v726 = vunpack.c.l.b16 %v624
      %v727 = vunpack.c.l.b16 %v634
      %v728 = vunpack.c.l.b16 %v648
      %v729 = vunpack.c.l.b16 %v658
      %v730 = vunpack.c.l.b16 %v672
      %v731 = vunpack.c.l.b16 %v682
      %v732 = vpack.c.b16 %v701, %v700
      %v733 = vpack.c.b16 %v703, %v702
      %v734 = vpack.c.b16 %v705, %v704
      %v735 = vpack.c.b16 %v707, %v706
      %v736 = vpack.c.b16 %v709, %v708
      %v737 = vpack.c.b16 %v711, %v710
      %v738 = vpack.c.b16 %v713, %v712
      %v739 = vpack.c.b16 %v715, %v714
      %v740 = vpack.c.b16 %v717, %v716
      %v741 = vpack.c.b16 %v719, %v718
      %v742 = vpack.c.b16 %v721, %v720
      %v743 = vpack.c.b16 %v723, %v722
      %v744 = vpack.c.b16 %v725, %v724
      %v745 = vpack.c.b16 %v727, %v726
      %v746 = vpack.c.b16 %v729, %v728
      %v747 = vpack.c.b16 %v731, %v730
      %v780 = vunpack.c.l.b16 %v684
      %v781 = vunpack.c.l.b16 %v685
      %v782 = vunpack.c.l.b16 %v686
      %v783 = vunpack.c.l.b16 %v687
      %v784 = vunpack.c.l.b16 %v688
      %v785 = vunpack.c.l.b16 %v689
      %v786 = vunpack.c.l.b16 %v690
      %v787 = vunpack.c.l.b16 %v691
      %v788 = vunpack.c.l.b16 %v692
      %v789 = vunpack.c.l.b16 %v693
      %v790 = vunpack.c.l.b16 %v694
      %v791 = vunpack.c.l.b16 %v695
      %v792 = vunpack.c.l.b16 %v696
      %v793 = vunpack.c.l.b16 %v697
      %v794 = vunpack.c.l.b16 %v698
      %v795 = vunpack.c.l.b16 %v699
      %v796 = vpack.c.b16 %v781, %v780
      %v797 = vpack.c.b16 %v783, %v782
      %v798 = vpack.c.b16 %v785, %v784
      %v799 = vpack.c.b16 %v787, %v786
      %v800 = vpack.c.b16 %v789, %v788
      %v801 = vpack.c.b16 %v791, %v790
      %v802 = vpack.c.b16 %v793, %v792
      %v803 = vpack.c.b16 %v795, %v794
      %812 = vmatprep.subr.bf16.mxu0 0
      %813 = vmatpush1.bf16.msra.mxu0 %v796
      %814 = vmatprep.subr.bf16.mxu0 0
      %815 = vmatpush1.bf16.msra.mxu0 %v797
      %816 = vmatprep.subr.bf16.mxu0 0
      %817 = vmatpush1.bf16.msra.mxu0 %v798
      %818 = vmatprep.subr.bf16.mxu0 0
      %819 = vmatpush1.bf16.msra.mxu0 %v799
      %820 = vmatprep.subr.bf16.mxu0 0
      %821 = vmatpush1.bf16.msra.mxu0 %v800
      %822 = vmatprep.subr.bf16.mxu0 0
      %823 = vmatpush1.bf16.msra.mxu0 %v801
      %824 = vmatprep.subr.bf16.mxu0 0
      %825 = vmatpush1.bf16.msra.mxu0 %v802
      %826 = vmatprep.subr.bf16.mxu0 0
      %827 = vmatpush1.bf16.msra.mxu0 %v803
      %828 = vmatprep.subr.bf16.mxu0 0
      %829 = vmatpush1.bf16.msra.mxu0 0
      %830 = vmatprep.subr.bf16.mxu0 0
      %831 = vmatpush1.bf16.msra.mxu0 0
      %832 = vmatprep.subr.bf16.mxu0 0
      %833 = vmatpush1.bf16.msra.mxu0 0
      %834 = vmatprep.subr.bf16.mxu0 0
      %835 = vmatpush1.bf16.msra.mxu0 0
      %836 = vmatprep.subr.bf16.mxu0 0
      %837 = vmatpush1.bf16.msra.mxu0 0
      %838 = vmatprep.subr.bf16.mxu0 0
      %839 = vmatpush1.bf16.msra.mxu0 0
      %840 = vmatprep.subr.bf16.mxu0 0
      %841 = vmatpush1.bf16.msra.mxu0 0
      %842 = vmatprep.subr.bf16.mxu0 0
      %843 = vmatpush1.bf16.msra.mxu0 0
      %844 = vmatprep.mubr.bf16.mxu0 0
      %845 = vmatmul.mubr.bf16.gmra.mrb[0].mxu0 %v732
      %v846 = vpop.f32.mrb[0].mxu0
      %v847 = vadd.f32 0.0, %v846
      %v848 = vpop.f32.mrb[0].mxu0
      %v849 = vpop.f32.mrb[0].mxu0
      %v850 = vadd.f32 0.0, %v849
      %v851 = vpop.f32.mrb[0].mxu0
      %852 = vmatprep.mubr.bf16.mxu0 0
      %853 = vmatmul.mubr.bf16.gmra.mrb[0].mxu0 %v733
      %v854 = vpop.f32.mrb[0].mxu0
      %v855 = vadd.f32 0.0, %v854
      %v856 = vpop.f32.mrb[0].mxu0
      %v857 = vpop.f32.mrb[0].mxu0
      %v858 = vadd.f32 0.0, %v857
      %v859 = vpop.f32.mrb[0].mxu0
      %860 = vmatprep.mubr.bf16.mxu0 0
      %861 = vmatmul.mubr.bf16.gmra.mrb[0].mxu0 %v734
      %v862 = vpop.f32.mrb[0].mxu0
      %v863 = vadd.f32 0.0, %v862
      %v864 = vpop.f32.mrb[0].mxu0
      %v865 = vpop.f32.mrb[0].mxu0
      %v866 = vadd.f32 0.0, %v865
      %v867 = vpop.f32.mrb[0].mxu0
      %868 = vmatprep.mubr.bf16.mxu0 0
      %869 = vmatmul.mubr.bf16.gmra.mrb[0].mxu0 %v735
      %v870 = vpop.f32.mrb[0].mxu0
      %v871 = vadd.f32 0.0, %v870
      %v872 = vpop.f32.mrb[0].mxu0
      %v873 = vpop.f32.mrb[0].mxu0
      %v874 = vadd.f32 0.0, %v873
      %v875 = vpop.f32.mrb[0].mxu0
      %876 = vmatprep.mubr.bf16.mxu0 0
      %877 = vmatmul.mubr.bf16.gmra.mrb[0].mxu0 %v736
      %v878 = vpop.f32.mrb[0].mxu0
      %v879 = vadd.f32 0.0, %v878
      %v880 = vpop.f32.mrb[0].mxu0
      %v881 = vpop.f32.mrb[0].mxu0
      %v882 = vadd.f32 0.0, %v881
      %v883 = vpop.f32.mrb[0].mxu0
      %884 = vmatprep.mubr.bf16.mxu0 0
      %885 = vmatmul.mubr.bf16.gmra.mrb[0].mxu0 %v737
      %v886 = vpop.f32.mrb[0].mxu0
      %v887 = vadd.f32 0.0, %v886
      %v888 = vpop.f32.mrb[0].mxu0
      %v889 = vpop.f32.mrb[0].mxu0
      %v890 = vadd.f32 0.0, %v889
      %v891 = vpop.f32.mrb[0].mxu0
      %892 = vmatprep.mubr.bf16.mxu0 0
      %893 = vmatmul.mubr.bf16.gmra.mrb[0].mxu0 %v738
      %v894 = vpop.f32.mrb[0].mxu0
      %v895 = vadd.f32 0.0, %v894
      %v896 = vpop.f32.mrb[0].mxu0
      %v897 = vpop.f32.mrb[0].mxu0
      %v898 = vadd.f32 0.0, %v897
      %v899 = vpop.f32.mrb[0].mxu0
      %900 = vmatprep.mubr.bf16.mxu0 0
      %901 = vmatmul.mubr.bf16.gmra.mrb[0].mxu0 %v739
      %v902 = vpop.f32.mrb[0].mxu0
      %v903 = vadd.f32 0.0, %v902
      %v904 = vpop.f32.mrb[0].mxu0
      %v905 = vpop.f32.mrb[0].mxu0
      %v906 = vadd.f32 0.0, %v905
      %v907 = vpop.f32.mrb[0].mxu0
      %908 = vmatprep.mubr.bf16.mxu0 0
      %909 = vmatmul.mubr.bf16.gmra.mrb[0].mxu0 %v740
      %v910 = vpop.f32.mrb[0].mxu0
      %v911 = vadd.f32 0.0, %v910
      %v912 = vpop.f32.mrb[0].mxu0
      %v913 = vpop.f32.mrb[0].mxu0
      %v914 = vadd.f32 0.0, %v913
      %v915 = vpop.f32.mrb[0].mxu0
      %916 = vmatprep.mubr.bf16.mxu0 0
      %917 = vmatmul.mubr.bf16.gmra.mrb[0].mxu0 %v741
      %v918 = vpop.f32.mrb[0].mxu0
      %v919 = vadd.f32 0.0, %v918
      %v920 = vpop.f32.mrb[0].mxu0
      %v921 = vpop.f32.mrb[0].mxu0
      %v922 = vadd.f32 0.0, %v921
      %v923 = vpop.f32.mrb[0].mxu0
      %924 = vmatprep.mubr.bf16.mxu0 0
      %925 = vmatmul.mubr.bf16.gmra.mrb[0].mxu0 %v742
      %v926 = vpop.f32.mrb[0].mxu0
      %v927 = vadd.f32 0.0, %v926
      %v928 = vpop.f32.mrb[0].mxu0
      %v929 = vpop.f32.mrb[0].mxu0
      %v930 = vadd.f32 0.0, %v929
      %v931 = vpop.f32.mrb[0].mxu0
      %932 = vmatprep.mubr.bf16.mxu0 0
      %933 = vmatmul.mubr.bf16.gmra.mrb[0].mxu0 %v743
      %v934 = vpop.f32.mrb[0].mxu0
      %v935 = vadd.f32 0.0, %v934
      %v936 = vpop.f32.mrb[0].mxu0
      %v937 = vpop.f32.mrb[0].mxu0
      %v938 = vadd.f32 0.0, %v937
      %v939 = vpop.f32.mrb[0].mxu0
      %940 = vmatprep.mubr.bf16.mxu0 0
      %941 = vmatmul.mubr.bf16.gmra.mrb[0].mxu0 %v744
      %v942 = vpop.f32.mrb[0].mxu0
      %v943 = vadd.f32 0.0, %v942
      %v944 = vpop.f32.mrb[0].mxu0
      %v945 = vpop.f32.mrb[0].mxu0
      %v946 = vadd.f32 0.0, %v945
      %v947 = vpop.f32.mrb[0].mxu0
      %948 = vmatprep.mubr.bf16.mxu0 0
      %949 = vmatmul.mubr.bf16.gmra.mrb[0].mxu0 %v745
      %v950 = vpop.f32.mrb[0].mxu0
      %v951 = vadd.f32 0.0, %v950
      %v952 = vpop.f32.mrb[0].mxu0
      %v953 = vpop.f32.mrb[0].mxu0
      %v954 = vadd.f32 0.0, %v953
      %v955 = vpop.f32.mrb[0].mxu0
      %956 = vmatprep.mubr.bf16.mxu0 0
      %957 = vmatmul.mubr.bf16.gmra.mrb[0].mxu0 %v746
      %v958 = vpop.f32.mrb[0].mxu0
      %v959 = vadd.f32 0.0, %v958
      %v960 = vpop.f32.mrb[0].mxu0
      %v961 = vpop.f32.mrb[0].mxu0
      %v962 = vadd.f32 0.0, %v961
      %v963 = vpop.f32.mrb[0].mxu0
      %964 = vmatprep.mubr.bf16.mxu0 0
      %965 = vmatmul.mubr.bf16.gmra.mrb[0].mxu0 %v747
      %v966 = vpop.f32.mrb[0].mxu0
      %v967 = vadd.f32 0.0, %v966
      %v968 = vpop.f32.mrb[0].mxu0
      %v969 = vpop.f32.mrb[0].mxu0
      %v970 = vadd.f32 0.0, %v969
      %v971 = vpop.f32.mrb[0].mxu0
      %972 = vdwg.mxu0
      %v1005 = vunpack.c.l.b16 %v226
      %v1006 = vunpack.c.l.b16 %v227
      %v1007 = vunpack.c.l.b16 %v229
      %v1008 = vunpack.c.l.b16 %v230
      %v1009 = vunpack.c.l.b16 %v232
      %v1010 = vunpack.c.l.b16 %v233
      %v1011 = vunpack.c.l.b16 %v235
      %v1012 = vunpack.c.l.b16 %v236
      %v1013 = vunpack.c.l.b16 %v238
      %v1014 = vunpack.c.l.b16 %v239
      %v1015 = vunpack.c.l.b16 %v241
      %v1016 = vunpack.c.l.b16 %v242
      %v1017 = vunpack.c.l.b16 %v244
      %v1018 = vunpack.c.l.b16 %v245
      %v1019 = vunpack.c.l.b16 %v247
      %v1020 = vunpack.c.l.b16 %v248
      %v1021 = vunpack.c.l.b16 %v250
      %v1022 = vunpack.c.l.b16 %v251
      %v1023 = vunpack.c.l.b16 %v253
      %v1024 = vunpack.c.l.b16 %v254
      %v1025 = vunpack.c.l.b16 %v256
      %v1026 = vunpack.c.l.b16 %v257
      %v1027 = vunpack.c.l.b16 %v259
      %v1028 = vunpack.c.l.b16 %v260
      %v1029 = vunpack.c.l.b16 %v262
      %v1030 = vunpack.c.l.b16 %v263
      %v1031 = vunpack.c.l.b16 %v265
      %v1032 = vunpack.c.l.b16 %v266
      %v1033 = vunpack.c.l.b16 %v268
      %v1034 = vunpack.c.l.b16 %v269
      %v1035 = vunpack.c.l.b16 %v271
      %v1036 = vunpack.c.l.b16 %v272
      %v1037 = vpack.c.b16 %v1006, %v1005
      %v1038 = vpack.c.b16 %v1008, %v1007
      %v1039 = vpack.c.b16 %v1010, %v1009
      %v1040 = vpack.c.b16 %v1012, %v1011
      %v1041 = vpack.c.b16 %v1014, %v1013
      %v1042 = vpack.c.b16 %v1016, %v1015
      %v1043 = vpack.c.b16 %v1018, %v1017
      %v1044 = vpack.c.b16 %v1020, %v1019
      %v1045 = vpack.c.b16 %v1022, %v1021
      %v1046 = vpack.c.b16 %v1024, %v1023
      %v1047 = vpack.c.b16 %v1026, %v1025
      %v1048 = vpack.c.b16 %v1028, %v1027
      %v1049 = vpack.c.b16 %v1030, %v1029
      %v1050 = vpack.c.b16 %v1032, %v1031
      %v1051 = vpack.c.b16 %v1034, %v1033
      %v1052 = vpack.c.b16 %v1036, %v1035
      %v1085 = vunpack.c.l.b16 %v280
      %v1086 = vunpack.c.l.b16 %v281
      %v1087 = vunpack.c.l.b16 %v282
      %v1088 = vunpack.c.l.b16 %v283
      %v1089 = vunpack.c.l.b16 %v284
      %v1090 = vunpack.c.l.b16 %v285
      %v1091 = vunpack.c.l.b16 %v286
      %v1092 = vunpack.c.l.b16 %v287
      %v1093 = vunpack.c.l.b16 %v288
      %v1094 = vunpack.c.l.b16 %v289
      %v1095 = vunpack.c.l.b16 %v290
      %v1096 = vunpack.c.l.b16 %v291
      %v1097 = vunpack.c.l.b16 %v292
      %v1098 = vunpack.c.l.b16 %v293
      %v1099 = vunpack.c.l.b16 %v294
      %v1100 = vunpack.c.l.b16 %v295
      %v1101 = vpack.c.b16 %v1086, %v1085
      %v1102 = vpack.c.b16 %v1088, %v1087
      %v1103 = vpack.c.b16 %v1090, %v1089
      %v1104 = vpack.c.b16 %v1092, %v1091
      %v1105 = vpack.c.b16 %v1094, %v1093
      %v1106 = vpack.c.b16 %v1096, %v1095
      %v1107 = vpack.c.b16 %v1098, %v1097
      %v1108 = vpack.c.b16 %v1100, %v1099
      %1117 = vmatprep.subr.bf16.mxu0 0
      %1118 = vmatpush1.bf16.msra.mxu0 %v1101
      %1119 = vmatprep.subr.bf16.mxu0 0
      %1120 = vmatpush1.bf16.msra.mxu0 %v1102
      %1121 = vmatprep.subr.bf16.mxu0 0
      %1122 = vmatpush1.bf16.msra.mxu0 %v1103
      %1123 = vmatprep.subr.bf16.mxu0 0
      %1124 = vmatpush1.bf16.msra.mxu0 %v1104
      %1125 = vmatprep.subr.bf16.mxu0 0
      %1126 = vmatpush1.bf16.msra.mxu0 %v1105
      %1127 = vmatprep.subr.bf16.mxu0 0
      %1128 = vmatpush1.bf16.msra.mxu0 %v1106
      %1129 = vmatprep.subr.bf16.mxu0 0
      %1130 = vmatpush1.bf16.msra.mxu0 %v1107
      %1131 = vmatprep.subr.bf16.mxu0 0
      %1132 = vmatpush1.bf16.msra.mxu0 %v1108
      %1133 = vmatprep.subr.bf16.mxu0 0
      %1134 = vmatpush1.bf16.msra.mxu0 0
      %1135 = vmatprep.subr.bf16.mxu0 0
      %1136 = vmatpush1.bf16.msra.mxu0 0
      %1137 = vmatprep.subr.bf16.mxu0 0
      %1138 = vmatpush1.bf16.msra.mxu0 0
      %1139 = vmatprep.subr.bf16.mxu0 0
      %1140 = vmatpush1.bf16.msra.mxu0 0
      %1141 = vmatprep.subr.bf16.mxu0 0
      %1142 = vmatpush1.bf16.msra.mxu0 0
      %1143 = vmatprep.subr.bf16.mxu0 0
      %1144 = vmatpush1.bf16.msra.mxu0 0
      %1145 = vmatprep.subr.bf16.mxu0 0
      %1146 = vmatpush1.bf16.msra.mxu0 0
      %1147 = vmatprep.subr.bf16.mxu0 0
      %1148 = vmatpush1.bf16.msra.mxu0 0
      %1149 = vmatprep.mubr.bf16.mxu0 0
      %1150 = vmatmul.mubr.bf16.gmra.mrb[0].mxu0 %v1037
      %v1151 = vpop.f32.mrb[0].mxu0
      %v1152 = vadd.f32 %v847, %v1151
      %v1153 = vpop.f32.mrb[0].mxu0
      %v1154 = vpop.f32.mrb[0].mxu0
      %v1155 = vadd.f32 %v850, %v1154
      %v1156 = vpop.f32.mrb[0].mxu0
      %1157 = vmatprep.mubr.bf16.mxu0 0
      %1158 = vmatmul.mubr.bf16.gmra.mrb[0].mxu0 %v1038
      %v1159 = vpop.f32.mrb[0].mxu0
      %v1160 = vadd.f32 %v855, %v1159
      %v1161 = vpop.f32.mrb[0].mxu0
      %v1162 = vpop.f32.mrb[0].mxu0
      %v1163 = vadd.f32 %v858, %v1162
      %v1164 = vpop.f32.mrb[0].mxu0
      %1165 = vmatprep.mubr.bf16.mxu0 0
      %1166 = vmatmul.mubr.bf16.gmra.mrb[0].mxu0 %v1039
      %v1167 = vpop.f32.mrb[0].mxu0
      %v1168 = vadd.f32 %v863, %v1167
      %v1169 = vpop.f32.mrb[0].mxu0
      %v1170 = vpop.f32.mrb[0].mxu0
      %v1171 = vadd.f32 %v866, %v1170
      %v1172 = vpop.f32.mrb[0].mxu0
      %1173 = vmatprep.mubr.bf16.mxu0 0
      %1174 = vmatmul.mubr.bf16.gmra.mrb[0].mxu0 %v1040
      %v1175 = vpop.f32.mrb[0].mxu0
      %v1176 = vadd.f32 %v871, %v1175
      %v1177 = vpop.f32.mrb[0].mxu0
      %v1178 = vpop.f32.mrb[0].mxu0
      %v1179 = vadd.f32 %v874, %v1178
      %v1180 = vpop.f32.mrb[0].mxu0
      %1181 = vmatprep.mubr.bf16.mxu0 0
      %1182 = vmatmul.mubr.bf16.gmra.mrb[0].mxu0 %v1041
      %v1183 = vpop.f32.mrb[0].mxu0
      %v1184 = vadd.f32 %v879, %v1183
      %v1185 = vpop.f32.mrb[0].mxu0
      %v1186 = vpop.f32.mrb[0].mxu0
      %v1187 = vadd.f32 %v882, %v1186
      %v1188 = vpop.f32.mrb[0].mxu0
      %1189 = vmatprep.mubr.bf16.mxu0 0
      %1190 = vmatmul.mubr.bf16.gmra.mrb[0].mxu0 %v1042
      %v1191 = vpop.f32.mrb[0].mxu0
      %v1192 = vadd.f32 %v887, %v1191
      %v1193 = vpop.f32.mrb[0].mxu0
      %v1194 = vpop.f32.mrb[0].mxu0
      %v1195 = vadd.f32 %v890, %v1194
      %v1196 = vpop.f32.mrb[0].mxu0
      %1197 = vmatprep.mubr.bf16.mxu0 0
      %1198 = vmatmul.mubr.bf16.gmra.mrb[0].mxu0 %v1043
      %v1199 = vpop.f32.mrb[0].mxu0
      %v1200 = vadd.f32 %v895, %v1199
      %v1201 = vpop.f32.mrb[0].mxu0
      %v1202 = vpop.f32.mrb[0].mxu0
      %v1203 = vadd.f32 %v898, %v1202
      %v1204 = vpop.f32.mrb[0].mxu0
      %1205 = vmatprep.mubr.bf16.mxu0 0
      %1206 = vmatmul.mubr.bf16.gmra.mrb[0].mxu0 %v1044
      %v1207 = vpop.f32.mrb[0].mxu0
      %v1208 = vadd.f32 %v903, %v1207
      %v1209 = vpop.f32.mrb[0].mxu0
      %v1210 = vpop.f32.mrb[0].mxu0
      %v1211 = vadd.f32 %v906, %v1210
      %v1212 = vpop.f32.mrb[0].mxu0
      %1213 = vmatprep.mubr.bf16.mxu0 0
      %1214 = vmatmul.mubr.bf16.gmra.mrb[0].mxu0 %v1045
      %v1215 = vpop.f32.mrb[0].mxu0
      %v1216 = vadd.f32 %v911, %v1215
      %v1217 = vpop.f32.mrb[0].mxu0
      %v1218 = vpop.f32.mrb[0].mxu0
      %v1219 = vadd.f32 %v914, %v1218
      %v1220 = vpop.f32.mrb[0].mxu0
      %1221 = vmatprep.mubr.bf16.mxu0 0
      %1222 = vmatmul.mubr.bf16.gmra.mrb[0].mxu0 %v1046
      %v1223 = vpop.f32.mrb[0].mxu0
      %v1224 = vadd.f32 %v919, %v1223
      %v1225 = vpop.f32.mrb[0].mxu0
      %v1226 = vpop.f32.mrb[0].mxu0
      %v1227 = vadd.f32 %v922, %v1226
      %v1228 = vpop.f32.mrb[0].mxu0
      %1229 = vmatprep.mubr.bf16.mxu0 0
      %1230 = vmatmul.mubr.bf16.gmra.mrb[0].mxu0 %v1047
      %v1231 = vpop.f32.mrb[0].mxu0
      %v1232 = vadd.f32 %v927, %v1231
      %v1233 = vpop.f32.mrb[0].mxu0
      %v1234 = vpop.f32.mrb[0].mxu0
      %v1235 = vadd.f32 %v930, %v1234
      %v1236 = vpop.f32.mrb[0].mxu0
      %1237 = vmatprep.mubr.bf16.mxu0 0
      %1238 = vmatmul.mubr.bf16.gmra.mrb[0].mxu0 %v1048
      %v1239 = vpop.f32.mrb[0].mxu0
      %v1240 = vadd.f32 %v935, %v1239
      %v1241 = vpop.f32.mrb[0].mxu0
      %v1242 = vpop.f32.mrb[0].mxu0
      %v1243 = vadd.f32 %v938, %v1242
      %v1244 = vpop.f32.mrb[0].mxu0
      %1245 = vmatprep.mubr.bf16.mxu0 0
      %1246 = vmatmul.mubr.bf16.gmra.mrb[0].mxu0 %v1049
      %v1247 = vpop.f32.mrb[0].mxu0
      %v1248 = vadd.f32 %v943, %v1247
      %v1249 = vpop.f32.mrb[0].mxu0
      %v1250 = vpop.f32.mrb[0].mxu0
      %v1251 = vadd.f32 %v946, %v1250
      %v1252 = vpop.f32.mrb[0].mxu0
      %1253 = vmatprep.mubr.bf16.mxu0 0
      %1254 = vmatmul.mubr.bf16.gmra.mrb[0].mxu0 %v1050
      %v1255 = vpop.f32.mrb[0].mxu0
      %v1256 = vadd.f32 %v951, %v1255
      %v1257 = vpop.f32.mrb[0].mxu0
      %v1258 = vpop.f32.mrb[0].mxu0
      %v1259 = vadd.f32 %v954, %v1258
      %v1260 = vpop.f32.mrb[0].mxu0
      %1261 = vmatprep.mubr.bf16.mxu0 0
      %1262 = vmatmul.mubr.bf16.gmra.mrb[0].mxu0 %v1051
      %v1263 = vpop.f32.mrb[0].mxu0
      %v1264 = vadd.f32 %v959, %v1263
      %v1265 = vpop.f32.mrb[0].mxu0
      %v1266 = vpop.f32.mrb[0].mxu0
      %v1267 = vadd.f32 %v962, %v1266
      %v1268 = vpop.f32.mrb[0].mxu0
      %1269 = vmatprep.mubr.bf16.mxu0 0
      %1270 = vmatmul.mubr.bf16.gmra.mrb[0].mxu0 %v1052
      %v1271 = vpop.f32.mrb[0].mxu0
      %v1272 = vadd.f32 %v967, %v1271
      %v1273 = vpop.f32.mrb[0].mxu0
      %v1274 = vpop.f32.mrb[0].mxu0
      %v1275 = vadd.f32 %v970, %v1274
      %v1276 = vpop.f32.mrb[0].mxu0
      %1277 = vdwg.mxu0
      %vm1294 = vcmask 1042432
      %vm1295 = vcmask 1046532
      %vm1296 = vmor %vm1294, %vm1295
      %v1297 = vrot.slane %v226, 5
      %v1298 = vrot.slane %v1297, 4
      %v1299 = vrot.slane %v227, 5
      %v1300 = vsel %vm1296, %v1298, %v1299
      %v1301 = vrot.slane %v1299, 4
      %v1302 = vrot.slane %v228, 5
      %v1303 = vsel %vm1296, %v1301, %v1302
      %v1304 = vrot.slane %v229, 5
      %v1305 = vrot.slane %v1304, 4
      %v1306 = vrot.slane %v230, 5
      %v1307 = vsel %vm1296, %v1305, %v1306
      %v1308 = vrot.slane %v1306, 4
      %v1309 = vrot.slane %v231, 5
      %v1310 = vsel %vm1296, %v1308, %v1309
      %v1311 = vrot.slane %v232, 5
      %v1312 = vrot.slane %v1311, 4
      %v1313 = vrot.slane %v233, 5
      %v1314 = vsel %vm1296, %v1312, %v1313
      %v1315 = vrot.slane %v1313, 4
      %v1316 = vrot.slane %v234, 5
      %v1317 = vsel %vm1296, %v1315, %v1316
      %v1318 = vrot.slane %v235, 5
      %v1319 = vrot.slane %v1318, 4
      %v1320 = vrot.slane %v236, 5
      %v1321 = vsel %vm1296, %v1319, %v1320
      %v1322 = vrot.slane %v1320, 4
      %v1323 = vrot.slane %v237, 5
      %v1324 = vsel %vm1296, %v1322, %v1323
      %v1325 = vrot.slane %v238, 5
      %v1326 = vrot.slane %v1325, 4
      %v1327 = vrot.slane %v239, 5
      %v1328 = vsel %vm1296, %v1326, %v1327
      %v1329 = vrot.slane %v1327, 4
      %v1330 = vrot.slane %v240, 5
      %v1331 = vsel %vm1296, %v1329, %v1330
      %v1332 = vrot.slane %v241, 5
      %v1333 = vrot.slane %v1332, 4
      %v1334 = vrot.slane %v242, 5
      %v1335 = vsel %vm1296, %v1333, %v1334
      %v1336 = vrot.slane %v1334, 4
      %v1337 = vrot.slane %v243, 5
      %v1338 = vsel %vm1296, %v1336, %v1337
      %v1339 = vrot.slane %v244, 5
      %v1340 = vrot.slane %v1339, 4
      %v1341 = vrot.slane %v245, 5
      %v1342 = vsel %vm1296, %v1340, %v1341
      %v1343 = vrot.slane %v1341, 4
      %v1344 = vrot.slane %v246, 5
      %v1345 = vsel %vm1296, %v1343, %v1344
      %v1346 = vrot.slane %v247, 5
      %v1347 = vrot.slane %v1346, 4
      %v1348 = vrot.slane %v248, 5
      %v1349 = vsel %vm1296, %v1347, %v1348
      %v1350 = vrot.slane %v1348, 4
      %v1351 = vrot.slane %v249, 5
      %v1352 = vsel %vm1296, %v1350, %v1351
      %v1353 = vrot.slane %v250, 5
      %v1354 = vrot.slane %v1353, 4
      %v1355 = vrot.slane %v251, 5
      %v1356 = vsel %vm1296, %v1354, %v1355
      %v1357 = vrot.slane %v1355, 4
      %v1358 = vrot.slane %v252, 5
      %v1359 = vsel %vm1296, %v1357, %v1358
      %v1360 = vrot.slane %v253, 5
      %v1361 = vrot.slane %v1360, 4
      %v1362 = vrot.slane %v254, 5
      %v1363 = vsel %vm1296, %v1361, %v1362
      %v1364 = vrot.slane %v1362, 4
      %v1365 = vrot.slane %v255, 5
      %v1366 = vsel %vm1296, %v1364, %v1365
      %v1367 = vrot.slane %v256, 5
      %v1368 = vrot.slane %v1367, 4
      %v1369 = vrot.slane %v257, 5
      %v1370 = vsel %vm1296, %v1368, %v1369
      %v1371 = vrot.slane %v1369, 4
      %v1372 = vrot.slane %v258, 5
      %v1373 = vsel %vm1296, %v1371, %v1372
      %v1374 = vrot.slane %v259, 5
      %v1375 = vrot.slane %v1374, 4
      %v1376 = vrot.slane %v260, 5
      %v1377 = vsel %vm1296, %v1375, %v1376
      %v1378 = vrot.slane %v1376, 4
      %v1379 = vrot.slane %v261, 5
      %v1380 = vsel %vm1296, %v1378, %v1379
      %v1381 = vrot.slane %v262, 5
      %v1382 = vrot.slane %v1381, 4
      %v1383 = vrot.slane %v263, 5
      %v1384 = vsel %vm1296, %v1382, %v1383
      %v1385 = vrot.slane %v1383, 4
      %v1386 = vrot.slane %v264, 5
      %v1387 = vsel %vm1296, %v1385, %v1386
      %v1388 = vrot.slane %v265, 5
      %v1389 = vrot.slane %v1388, 4
      %v1390 = vrot.slane %v266, 5
      %v1391 = vsel %vm1296, %v1389, %v1390
      %v1392 = vrot.slane %v1390, 4
      %v1393 = vrot.slane %v267, 5
      %v1394 = vsel %vm1296, %v1392, %v1393
      %v1395 = vrot.slane %v268, 5
      %v1396 = vrot.slane %v1395, 4
      %v1397 = vrot.slane %v269, 5
      %v1398 = vsel %vm1296, %v1396, %v1397
      %v1399 = vrot.slane %v1397, 4
      %v1400 = vrot.slane %v270, 5
      %v1401 = vsel %vm1296, %v1399, %v1400
      %v1402 = vrot.slane %v271, 5
      %v1403 = vrot.slane %v1402, 4
      %v1404 = vrot.slane %v272, 5
      %v1405 = vsel %vm1296, %v1403, %v1404
      %v1406 = vrot.slane %v1404, 4
      %v1407 = vrot.slane %v273, 5
      %v1408 = vsel %vm1296, %v1406, %v1407
      %s1409 = scalar_lea.vmem %s1, 128
      %v1410 = vld [vmem:[%s1409] sm:$0xf]
      %v1411 = vld [vmem:[%s1409 + $0x4] sm:$0xf]
      %v1412 = vld [vmem:[%s1409 + $0x8] sm:$0xf]
      %v1413 = vld [vmem:[%s1409 + $0xc] sm:$0xf]
      %v1414 = vld [vmem:[%s1409 + $0x10] sm:$0xf]
      %v1415 = vld [vmem:[%s1409 + $0x14] sm:$0xf]
      %v1416 = vld [vmem:[%s1409 + $0x18] sm:$0xf]
      %v1417 = vld [vmem:[%s1409 + $0x1c] sm:$0xf]
      %v1418 = vld [vmem:[%s1409 + $0x20] sm:$0xf]
      %v1419 = vld [vmem:[%s1409 + $0x24] sm:$0xf]
      %v1420 = vld [vmem:[%s1409 + $0x28] sm:$0xf]
      %v1421 = vld [vmem:[%s1409 + $0x2c] sm:$0xf]
      %v1422 = vld [vmem:[%s1409 + $0x30] sm:$0xf]
      %v1423 = vld [vmem:[%s1409 + $0x34] sm:$0xf]
      %v1424 = vld [vmem:[%s1409 + $0x38] sm:$0xf]
      %v1425 = vld [vmem:[%s1409 + $0x3c] sm:$0xf]
      %v1426 = vunpack.c.l.b16 %v1300
      %v1427 = vunpack.c.l.b16 %v1303
      %v1428 = vunpack.c.l.b16 %v1307
      %v1429 = vunpack.c.l.b16 %v1310
      %v1430 = vunpack.c.l.b16 %v1314
      %v1431 = vunpack.c.l.b16 %v1317
      %v1432 = vunpack.c.l.b16 %v1321
      %v1433 = vunpack.c.l.b16 %v1324
      %v1434 = vunpack.c.l.b16 %v1328
      %v1435 = vunpack.c.l.b16 %v1331
      %v1436 = vunpack.c.l.b16 %v1335
      %v1437 = vunpack.c.l.b16 %v1338
      %v1438 = vunpack.c.l.b16 %v1342
      %v1439 = vunpack.c.l.b16 %v1345
      %v1440 = vunpack.c.l.b16 %v1349
      %v1441 = vunpack.c.l.b16 %v1352
      %v1442 = vunpack.c.l.b16 %v1356
      %v1443 = vunpack.c.l.b16 %v1359
      %v1444 = vunpack.c.l.b16 %v1363
      %v1445 = vunpack.c.l.b16 %v1366
      %v1446 = vunpack.c.l.b16 %v1370
      %v1447 = vunpack.c.l.b16 %v1373
      %v1448 = vunpack.c.l.b16 %v1377
      %v1449 = vunpack.c.l.b16 %v1380
      %v1450 = vunpack.c.l.b16 %v1384
      %v1451 = vunpack.c.l.b16 %v1387
      %v1452 = vunpack.c.l.b16 %v1391
      %v1453 = vunpack.c.l.b16 %v1394
      %v1454 = vunpack.c.l.b16 %v1398
      %v1455 = vunpack.c.l.b16 %v1401
      %v1456 = vunpack.c.l.b16 %v1405
      %v1457 = vunpack.c.l.b16 %v1408
      %v1458 = vpack.c.b16 %v1427, %v1426
      %v1459 = vpack.c.b16 %v1429, %v1428
      %v1460 = vpack.c.b16 %v1431, %v1430
      %v1461 = vpack.c.b16 %v1433, %v1432
      %v1462 = vpack.c.b16 %v1435, %v1434
      %v1463 = vpack.c.b16 %v1437, %v1436
      %v1464 = vpack.c.b16 %v1439, %v1438
      %v1465 = vpack.c.b16 %v1441, %v1440
      %v1466 = vpack.c.b16 %v1443, %v1442
      %v1467 = vpack.c.b16 %v1445, %v1444
      %v1468 = vpack.c.b16 %v1447, %v1446
      %v1469 = vpack.c.b16 %v1449, %v1448
      %v1470 = vpack.c.b16 %v1451, %v1450
      %v1471 = vpack.c.b16 %v1453, %v1452
      %v1472 = vpack.c.b16 %v1455, %v1454
      %v1473 = vpack.c.b16 %v1457, %v1456
      %v1506 = vunpack.c.l.b16 %v1410
      %v1507 = vunpack.c.l.b16 %v1411
      %v1508 = vunpack.c.l.b16 %v1412
      %v1509 = vunpack.c.l.b16 %v1413
      %v1510 = vunpack.c.l.b16 %v1414
      %v1511 = vunpack.c.l.b16 %v1415
      %v1512 = vunpack.c.l.b16 %v1416
      %v1513 = vunpack.c.l.b16 %v1417
      %v1514 = vunpack.c.l.b16 %v1418
      %v1515 = vunpack.c.l.b16 %v1419
      %v1516 = vunpack.c.l.b16 %v1420
      %v1517 = vunpack.c.l.b16 %v1421
      %v1518 = vunpack.c.l.b16 %v1422
      %v1519 = vunpack.c.l.b16 %v1423
      %v1520 = vunpack.c.l.b16 %v1424
      %v1521 = vunpack.c.l.b16 %v1425
      %v1522 = vpack.c.b16 %v1507, %v1506
      %v1523 = vpack.c.b16 %v1509, %v1508
      %v1524 = vpack.c.b16 %v1511, %v1510
      %v1525 = vpack.c.b16 %v1513, %v1512
      %v1526 = vpack.c.b16 %v1515, %v1514
      %v1527 = vpack.c.b16 %v1517, %v1516
      %v1528 = vpack.c.b16 %v1519, %v1518
      %v1529 = vpack.c.b16 %v1521, %v1520
      %1538 = vmatprep.subr.bf16.mxu0 0
      %1539 = vmatpush1.bf16.msra.mxu0 %v1522
      %1540 = vmatprep.subr.bf16.mxu0 0
      %1541 = vmatpush1.bf16.msra.mxu0 %v1523
      %1542 = vmatprep.subr.bf16.mxu0 0
      %1543 = vmatpush1.bf16.msra.mxu0 %v1524
      %1544 = vmatprep.subr.bf16.mxu0 0
      %1545 = vmatpush1.bf16.msra.mxu0 %v1525
      %1546 = vmatprep.subr.bf16.mxu0 0
      %1547 = vmatpush1.bf16.msra.mxu0 %v1526
      %1548 = vmatprep.subr.bf16.mxu0 0
      %1549 = vmatpush1.bf16.msra.mxu0 %v1527
      %1550 = vmatprep.subr.bf16.mxu0 0
      %1551 = vmatpush1.bf16.msra.mxu0 %v1528
      %1552 = vmatprep.subr.bf16.mxu0 0
      %1553 = vmatpush1.bf16.msra.mxu0 %v1529
      %1554 = vmatprep.subr.bf16.mxu0 0
      %1555 = vmatpush1.bf16.msra.mxu0 0
      %1556 = vmatprep.subr.bf16.mxu0 0
      %1557 = vmatpush1.bf16.msra.mxu0 0
      %1558 = vmatprep.subr.bf16.mxu0 0
      %1559 = vmatpush1.bf16.msra.mxu0 0
      %1560 = vmatprep.subr.bf16.mxu0 0
      %1561 = vmatpush1.bf16.msra.mxu0 0
      %1562 = vmatprep.subr.bf16.mxu0 0
      %1563 = vmatpush1.bf16.msra.mxu0 0
      %1564 = vmatprep.subr.bf16.mxu0 0
      %1565 = vmatpush1.bf16.msra.mxu0 0
      %1566 = vmatprep.subr.bf16.mxu0 0
      %1567 = vmatpush1.bf16.msra.mxu0 0
      %1568 = vmatprep.subr.bf16.mxu0 0
      %1569 = vmatpush1.bf16.msra.mxu0 0
      %1570 = vmatprep.mubr.bf16.mxu0 0
      %1571 = vmatmul.mubr.bf16.gmra.mrb[0].mxu0 %v1458
      %v1572 = vpop.f32.mrb[0].mxu0
      %v1573 = vadd.f32 0.0, %v1572
      %v1574 = vpop.f32.mrb[0].mxu0
      %v1575 = vpop.f32.mrb[0].mxu0
      %v1576 = vadd.f32 0.0, %v1575
      %v1577 = vpop.f32.mrb[0].mxu0
      %1578 = vmatprep.mubr.bf16.mxu0 0
      %1579 = vmatmul.mubr.bf16.gmra.mrb[0].mxu0 %v1459
      %v1580 = vpop.f32.mrb[0].mxu0
      %v1581 = vadd.f32 0.0, %v1580
      %v1582 = vpop.f32.mrb[0].mxu0
      %v1583 = vpop.f32.mrb[0].mxu0
      %v1584 = vadd.f32 0.0, %v1583
      %v1585 = vpop.f32.mrb[0].mxu0
      %1586 = vmatprep.mubr.bf16.mxu0 0
      %1587 = vmatmul.mubr.bf16.gmra.mrb[0].mxu0 %v1460
      %v1588 = vpop.f32.mrb[0].mxu0
      %v1589 = vadd.f32 0.0, %v1588
      %v1590 = vpop.f32.mrb[0].mxu0
      %v1591 = vpop.f32.mrb[0].mxu0
      %v1592 = vadd.f32 0.0, %v1591
      %v1593 = vpop.f32.mrb[0].mxu0
      %1594 = vmatprep.mubr.bf16.mxu0 0
      %1595 = vmatmul.mubr.bf16.gmra.mrb[0].mxu0 %v1461
      %v1596 = vpop.f32.mrb[0].mxu0
      %v1597 = vadd.f32 0.0, %v1596
      %v1598 = vpop.f32.mrb[0].mxu0
      %v1599 = vpop.f32.mrb[0].mxu0
      %v1600 = vadd.f32 0.0, %v1599
      %v1601 = vpop.f32.mrb[0].mxu0
      %1602 = vmatprep.mubr.bf16.mxu0 0
      %1603 = vmatmul.mubr.bf16.gmra.mrb[0].mxu0 %v1462
      %v1604 = vpop.f32.mrb[0].mxu0
      %v1605 = vadd.f32 0.0, %v1604
      %v1606 = vpop.f32.mrb[0].mxu0
      %v1607 = vpop.f32.mrb[0].mxu0
      %v1608 = vadd.f32 0.0, %v1607
      %v1609 = vpop.f32.mrb[0].mxu0
      %1610 = vmatprep.mubr.bf16.mxu0 0
      %1611 = vmatmul.mubr.bf16.gmra.mrb[0].mxu0 %v1463
      %v1612 = vpop.f32.mrb[0].mxu0
      %v1613 = vadd.f32 0.0, %v1612
      %v1614 = vpop.f32.mrb[0].mxu0
      %v1615 = vpop.f32.mrb[0].mxu0
      %v1616 = vadd.f32 0.0, %v1615
      %v1617 = vpop.f32.mrb[0].mxu0
      %1618 = vmatprep.mubr.bf16.mxu0 0
      %1619 = vmatmul.mubr.bf16.gmra.mrb[0].mxu0 %v1464
      %v1620 = vpop.f32.mrb[0].mxu0
      %v1621 = vadd.f32 0.0, %v1620
      %v1622 = vpop.f32.mrb[0].mxu0
      %v1623 = vpop.f32.mrb[0].mxu0
      %v1624 = vadd.f32 0.0, %v1623
      %v1625 = vpop.f32.mrb[0].mxu0
      %1626 = vmatprep.mubr.bf16.mxu0 0
      %1627 = vmatmul.mubr.bf16.gmra.mrb[0].mxu0 %v1465
      %v1628 = vpop.f32.mrb[0].mxu0
      %v1629 = vadd.f32 0.0, %v1628
      %v1630 = vpop.f32.mrb[0].mxu0
      %v1631 = vpop.f32.mrb[0].mxu0
      %v1632 = vadd.f32 0.0, %v1631
      %v1633 = vpop.f32.mrb[0].mxu0
      %1634 = vmatprep.mubr.bf16.mxu0 0
      %1635 = vmatmul.mubr.bf16.gmra.mrb[0].mxu0 %v1466
      %v1636 = vpop.f32.mrb[0].mxu0
      %v1637 = vadd.f32 0.0, %v1636
      %v1638 = vpop.f32.mrb[0].mxu0
      %v1639 = vpop.f32.mrb[0].mxu0
      %v1640 = vadd.f32 0.0, %v1639
      %v1641 = vpop.f32.mrb[0].mxu0
      %1642 = vmatprep.mubr.bf16.mxu0 0
      %1643 = vmatmul.mubr.bf16.gmra.mrb[0].mxu0 %v1467
      %v1644 = vpop.f32.mrb[0].mxu0
      %v1645 = vadd.f32 0.0, %v1644
      %v1646 = vpop.f32.mrb[0].mxu0
      %v1647 = vpop.f32.mrb[0].mxu0
      %v1648 = vadd.f32 0.0, %v1647
      %v1649 = vpop.f32.mrb[0].mxu0
      %1650 = vmatprep.mubr.bf16.mxu0 0
      %1651 = vmatmul.mubr.bf16.gmra.mrb[0].mxu0 %v1468
      %v1652 = vpop.f32.mrb[0].mxu0
      %v1653 = vadd.f32 0.0, %v1652
      %v1654 = vpop.f32.mrb[0].mxu0
      %v1655 = vpop.f32.mrb[0].mxu0
      %v1656 = vadd.f32 0.0, %v1655
      %v1657 = vpop.f32.mrb[0].mxu0
      %1658 = vmatprep.mubr.bf16.mxu0 0
      %1659 = vmatmul.mubr.bf16.gmra.mrb[0].mxu0 %v1469
      %v1660 = vpop.f32.mrb[0].mxu0
      %v1661 = vadd.f32 0.0, %v1660
      %v1662 = vpop.f32.mrb[0].mxu0
      %v1663 = vpop.f32.mrb[0].mxu0
      %v1664 = vadd.f32 0.0, %v1663
      %v1665 = vpop.f32.mrb[0].mxu0
      %1666 = vmatprep.mubr.bf16.mxu0 0
      %1667 = vmatmul.mubr.bf16.gmra.mrb[0].mxu0 %v1470
      %v1668 = vpop.f32.mrb[0].mxu0
      %v1669 = vadd.f32 0.0, %v1668
      %v1670 = vpop.f32.mrb[0].mxu0
      %v1671 = vpop.f32.mrb[0].mxu0
      %v1672 = vadd.f32 0.0, %v1671
      %v1673 = vpop.f32.mrb[0].mxu0
      %1674 = vmatprep.mubr.bf16.mxu0 0
      %1675 = vmatmul.mubr.bf16.gmra.mrb[0].mxu0 %v1471
      %v1676 = vpop.f32.mrb[0].mxu0
      %v1677 = vadd.f32 0.0, %v1676
      %v1678 = vpop.f32.mrb[0].mxu0
      %v1679 = vpop.f32.mrb[0].mxu0
      %v1680 = vadd.f32 0.0, %v1679
      %v1681 = vpop.f32.mrb[0].mxu0
      %1682 = vmatprep.mubr.bf16.mxu0 0
      %1683 = vmatmul.mubr.bf16.gmra.mrb[0].mxu0 %v1472
      %v1684 = vpop.f32.mrb[0].mxu0
      %v1685 = vadd.f32 0.0, %v1684
      %v1686 = vpop.f32.mrb[0].mxu0
      %v1687 = vpop.f32.mrb[0].mxu0
      %v1688 = vadd.f32 0.0, %v1687
      %v1689 = vpop.f32.mrb[0].mxu0
      %1690 = vmatprep.mubr.bf16.mxu0 0
      %1691 = vmatmul.mubr.bf16.gmra.mrb[0].mxu0 %v1473
      %v1692 = vpop.f32.mrb[0].mxu0
      %v1693 = vadd.f32 0.0, %v1692
      %v1694 = vpop.f32.mrb[0].mxu0
      %v1695 = vpop.f32.mrb[0].mxu0
      %v1696 = vadd.f32 0.0, %v1695
      %v1697 = vpop.f32.mrb[0].mxu0
      %1698 = vdwg.mxu0
      %v1699 = vadd.f32 %v1152, %v1573
      %v1700 = vadd.f32 %v1155, %v1576
      %v1701 = vadd.f32 %v1160, %v1581
      %v1702 = vadd.f32 %v1163, %v1584
      %v1703 = vadd.f32 %v1168, %v1589
      %v1704 = vadd.f32 %v1171, %v1592
      %v1705 = vadd.f32 %v1176, %v1597
      %v1706 = vadd.f32 %v1179, %v1600
      %v1707 = vadd.f32 %v1184, %v1605
      %v1708 = vadd.f32 %v1187, %v1608
      %v1709 = vadd.f32 %v1192, %v1613
      %v1710 = vadd.f32 %v1195, %v1616
      %v1711 = vadd.f32 %v1200, %v1621
      %v1712 = vadd.f32 %v1203, %v1624
      %v1713 = vadd.f32 %v1208, %v1629
      %v1714 = vadd.f32 %v1211, %v1632
      %v1715 = vadd.f32 %v1216, %v1637
      %v1716 = vadd.f32 %v1219, %v1640
      %v1717 = vadd.f32 %v1224, %v1645
      %v1718 = vadd.f32 %v1227, %v1648
      %v1719 = vadd.f32 %v1232, %v1653
      %v1720 = vadd.f32 %v1235, %v1656
      %v1721 = vadd.f32 %v1240, %v1661
      %v1722 = vadd.f32 %v1243, %v1664
      %v1723 = vadd.f32 %v1248, %v1669
      %v1724 = vadd.f32 %v1251, %v1672
      %v1725 = vadd.f32 %v1256, %v1677
      %v1726 = vadd.f32 %v1259, %v1680
      %v1727 = vadd.f32 %v1264, %v1685
      %v1728 = vadd.f32 %v1267, %v1688
      %v1729 = vadd.f32 %v1272, %v1693
      %v1730 = vadd.f32 %v1275, %v1696
      %s1731 = scalar_lea.vmem %s1, 192
      %v1732 = vld [vmem:[%s1731] sm:$0xf]
      %v1733 = vld [vmem:[%s1731 + $0x4] sm:$0xf]
      %v1734 = vld [vmem:[%s1731 + $0x8] sm:$0xf]
      %v1735 = vld [vmem:[%s1731 + $0xc] sm:$0xf]
      %v1736 = vld [vmem:[%s1731 + $0x10] sm:$0xf]
      %v1737 = vld [vmem:[%s1731 + $0x14] sm:$0xf]
      %v1738 = vld [vmem:[%s1731 + $0x18] sm:$0xf]
      %v1739 = vld [vmem:[%s1731 + $0x1c] sm:$0xf]
      %v1740 = vld [vmem:[%s1731 + $0x20] sm:$0xf]
      %v1741 = vld [vmem:[%s1731 + $0x24] sm:$0xf]
      %v1742 = vld [vmem:[%s1731 + $0x28] sm:$0xf]
      %v1743 = vld [vmem:[%s1731 + $0x2c] sm:$0xf]
      %v1744 = vld [vmem:[%s1731 + $0x30] sm:$0xf]
      %v1745 = vld [vmem:[%s1731 + $0x34] sm:$0xf]
      %v1746 = vld [vmem:[%s1731 + $0x38] sm:$0xf]
      %v1747 = vld [vmem:[%s1731 + $0x3c] sm:$0xf]
      %v1750 = vunpack.c.l.b16 %v274
      %v1751 = vunpack.c.l.b16 %v275
      %v1752 = vpack.c.b16 %v1751, %v1750
      %v1770 = vunpack.c.l.b16 %v1732
      %v1771 = vunpack.c.l.b16 %v1733
      %v1772 = vunpack.c.l.b16 %v1734
      %v1773 = vunpack.c.l.b16 %v1735
      %v1774 = vunpack.c.l.b16 %v1736
      %v1775 = vunpack.c.l.b16 %v1737
      %v1776 = vunpack.c.l.b16 %v1738
      %v1777 = vunpack.c.l.b16 %v1739
      %v1778 = vunpack.c.l.b16 %v1740
      %v1779 = vunpack.c.l.b16 %v1741
      %v1780 = vunpack.c.l.b16 %v1742
      %v1781 = vunpack.c.l.b16 %v1743
      %v1782 = vunpack.c.l.b16 %v1744
      %v1783 = vunpack.c.l.b16 %v1745
      %v1784 = vunpack.c.l.b16 %v1746
      %v1785 = vunpack.c.l.b16 %v1747
      %v1786 = vpack.c.b16 %v1771, %v1770
      %v1787 = vpack.c.b16 %v1773, %v1772
      %v1788 = vpack.c.b16 %v1775, %v1774
      %v1789 = vpack.c.b16 %v1777, %v1776
      %v1790 = vpack.c.b16 %v1779, %v1778
      %v1791 = vpack.c.b16 %v1781, %v1780
      %v1792 = vpack.c.b16 %v1783, %v1782
      %v1793 = vpack.c.b16 %v1785, %v1784
      %1802 = vmatprep.subr.bf16.mxu0 0
      %1803 = vmatpush1.bf16.msra.mxu0 %v1786
      %1804 = vmatprep.subr.bf16.mxu0 0
      %1805 = vmatpush1.bf16.msra.mxu0 %v1787
      %1806 = vmatprep.subr.bf16.mxu0 0
      %1807 = vmatpush1.bf16.msra.mxu0 %v1788
      %1808 = vmatprep.subr.bf16.mxu0 0
      %1809 = vmatpush1.bf16.msra.mxu0 %v1789
      %1810 = vmatprep.subr.bf16.mxu0 0
      %1811 = vmatpush1.bf16.msra.mxu0 %v1790
      %1812 = vmatprep.subr.bf16.mxu0 0
      %1813 = vmatpush1.bf16.msra.mxu0 %v1791
      %1814 = vmatprep.subr.bf16.mxu0 0
      %1815 = vmatpush1.bf16.msra.mxu0 %v1792
      %1816 = vmatprep.subr.bf16.mxu0 0
      %1817 = vmatpush1.bf16.msra.mxu0 %v1793
      %1818 = vmatprep.subr.bf16.mxu0 0
      %1819 = vmatpush1.bf16.msra.mxu0 0
      %1820 = vmatprep.subr.bf16.mxu0 0
      %1821 = vmatpush1.bf16.msra.mxu0 0
      %1822 = vmatprep.subr.bf16.mxu0 0
      %1823 = vmatpush1.bf16.msra.mxu0 0
      %1824 = vmatprep.subr.bf16.mxu0 0
      %1825 = vmatpush1.bf16.msra.mxu0 0
      %1826 = vmatprep.subr.bf16.mxu0 0
      %1827 = vmatpush1.bf16.msra.mxu0 0
      %1828 = vmatprep.subr.bf16.mxu0 0
      %1829 = vmatpush1.bf16.msra.mxu0 0
      %1830 = vmatprep.subr.bf16.mxu0 0
      %1831 = vmatpush1.bf16.msra.mxu0 0
      %1832 = vmatprep.subr.bf16.mxu0 0
      %1833 = vmatpush1.bf16.msra.mxu0 0
      %1834 = vmatprep.mubr.bf16.mxu0 0
      %1835 = vmatmul.mubr.bf16.gmra.mrb[0].mxu0 %v1038
      %v1836 = vpop.f32.mrb[0].mxu0
      %v1837 = vadd.f32 0.0, %v1836
      %v1838 = vpop.f32.mrb[0].mxu0
      %v1839 = vpop.f32.mrb[0].mxu0
      %v1840 = vadd.f32 0.0, %v1839
      %v1841 = vpop.f32.mrb[0].mxu0
      %1842 = vmatprep.mubr.bf16.mxu0 0
      %1843 = vmatmul.mubr.bf16.gmra.mrb[0].mxu0 %v1039
      %v1844 = vpop.f32.mrb[0].mxu0
      %v1845 = vadd.f32 0.0, %v1844
      %v1846 = vpop.f32.mrb[0].mxu0
      %v1847 = vpop.f32.mrb[0].mxu0
      %v1848 = vadd.f32 0.0, %v1847
      %v1849 = vpop.f32.mrb[0].mxu0
      %1850 = vmatprep.mubr.bf16.mxu0 0
      %1851 = vmatmul.mubr.bf16.gmra.mrb[0].mxu0 %v1040
      %v1852 = vpop.f32.mrb[0].mxu0
      %v1853 = vadd.f32 0.0, %v1852
      %v1854 = vpop.f32.mrb[0].mxu0
      %v1855 = vpop.f32.mrb[0].mxu0
      %v1856 = vadd.f32 0.0, %v1855
      %v1857 = vpop.f32.mrb[0].mxu0
      %1858 = vmatprep.mubr.bf16.mxu0 0
      %1859 = vmatmul.mubr.bf16.gmra.mrb[0].mxu0 %v1041
      %v1860 = vpop.f32.mrb[0].mxu0
      %v1861 = vadd.f32 0.0, %v1860
      %v1862 = vpop.f32.mrb[0].mxu0
      %v1863 = vpop.f32.mrb[0].mxu0
      %v1864 = vadd.f32 0.0, %v1863
      %v1865 = vpop.f32.mrb[0].mxu0
      %1866 = vmatprep.mubr.bf16.mxu0 0
      %1867 = vmatmul.mubr.bf16.gmra.mrb[0].mxu0 %v1042
      %v1868 = vpop.f32.mrb[0].mxu0
      %v1869 = vadd.f32 0.0, %v1868
      %v1870 = vpop.f32.mrb[0].mxu0
      %v1871 = vpop.f32.mrb[0].mxu0
      %v1872 = vadd.f32 0.0, %v1871
      %v1873 = vpop.f32.mrb[0].mxu0
      %1874 = vmatprep.mubr.bf16.mxu0 0
      %1875 = vmatmul.mubr.bf16.gmra.mrb[0].mxu0 %v1043
      %v1876 = vpop.f32.mrb[0].mxu0
      %v1877 = vadd.f32 0.0, %v1876
      %v1878 = vpop.f32.mrb[0].mxu0
      %v1879 = vpop.f32.mrb[0].mxu0
      %v1880 = vadd.f32 0.0, %v1879
      %v1881 = vpop.f32.mrb[0].mxu0
      %1882 = vmatprep.mubr.bf16.mxu0 0
      %1883 = vmatmul.mubr.bf16.gmra.mrb[0].mxu0 %v1044
      %v1884 = vpop.f32.mrb[0].mxu0
      %v1885 = vadd.f32 0.0, %v1884
      %v1886 = vpop.f32.mrb[0].mxu0
      %v1887 = vpop.f32.mrb[0].mxu0
      %v1888 = vadd.f32 0.0, %v1887
      %v1889 = vpop.f32.mrb[0].mxu0
      %1890 = vmatprep.mubr.bf16.mxu0 0
      %1891 = vmatmul.mubr.bf16.gmra.mrb[0].mxu0 %v1045
      %v1892 = vpop.f32.mrb[0].mxu0
      %v1893 = vadd.f32 0.0, %v1892
      %v1894 = vpop.f32.mrb[0].mxu0
      %v1895 = vpop.f32.mrb[0].mxu0
      %v1896 = vadd.f32 0.0, %v1895
      %v1897 = vpop.f32.mrb[0].mxu0
      %1898 = vmatprep.mubr.bf16.mxu0 0
      %1899 = vmatmul.mubr.bf16.gmra.mrb[0].mxu0 %v1046
      %v1900 = vpop.f32.mrb[0].mxu0
      %v1901 = vadd.f32 0.0, %v1900
      %v1902 = vpop.f32.mrb[0].mxu0
      %v1903 = vpop.f32.mrb[0].mxu0
      %v1904 = vadd.f32 0.0, %v1903
      %v1905 = vpop.f32.mrb[0].mxu0
      %1906 = vmatprep.mubr.bf16.mxu0 0
      %1907 = vmatmul.mubr.bf16.gmra.mrb[0].mxu0 %v1047
      %v1908 = vpop.f32.mrb[0].mxu0
      %v1909 = vadd.f32 0.0, %v1908
      %v1910 = vpop.f32.mrb[0].mxu0
      %v1911 = vpop.f32.mrb[0].mxu0
      %v1912 = vadd.f32 0.0, %v1911
      %v1913 = vpop.f32.mrb[0].mxu0
      %1914 = vmatprep.mubr.bf16.mxu0 0
      %1915 = vmatmul.mubr.bf16.gmra.mrb[0].mxu0 %v1048
      %v1916 = vpop.f32.mrb[0].mxu0
      %v1917 = vadd.f32 0.0, %v1916
      %v1918 = vpop.f32.mrb[0].mxu0
      %v1919 = vpop.f32.mrb[0].mxu0
      %v1920 = vadd.f32 0.0, %v1919
      %v1921 = vpop.f32.mrb[0].mxu0
      %1922 = vmatprep.mubr.bf16.mxu0 0
      %1923 = vmatmul.mubr.bf16.gmra.mrb[0].mxu0 %v1049
      %v1924 = vpop.f32.mrb[0].mxu0
      %v1925 = vadd.f32 0.0, %v1924
      %v1926 = vpop.f32.mrb[0].mxu0
      %v1927 = vpop.f32.mrb[0].mxu0
      %v1928 = vadd.f32 0.0, %v1927
      %v1929 = vpop.f32.mrb[0].mxu0
      %1930 = vmatprep.mubr.bf16.mxu0 0
      %1931 = vmatmul.mubr.bf16.gmra.mrb[0].mxu0 %v1050
      %v1932 = vpop.f32.mrb[0].mxu0
      %v1933 = vadd.f32 0.0, %v1932
      %v1934 = vpop.f32.mrb[0].mxu0
      %v1935 = vpop.f32.mrb[0].mxu0
      %v1936 = vadd.f32 0.0, %v1935
      %v1937 = vpop.f32.mrb[0].mxu0
      %1938 = vmatprep.mubr.bf16.mxu0 0
      %1939 = vmatmul.mubr.bf16.gmra.mrb[0].mxu0 %v1051
      %v1940 = vpop.f32.mrb[0].mxu0
      %v1941 = vadd.f32 0.0, %v1940
      %v1942 = vpop.f32.mrb[0].mxu0
      %v1943 = vpop.f32.mrb[0].mxu0
      %v1944 = vadd.f32 0.0, %v1943
      %v1945 = vpop.f32.mrb[0].mxu0
      %1946 = vmatprep.mubr.bf16.mxu0 0
      %1947 = vmatmul.mubr.bf16.gmra.mrb[0].mxu0 %v1052
      %v1948 = vpop.f32.mrb[0].mxu0
      %v1949 = vadd.f32 0.0, %v1948
      %v1950 = vpop.f32.mrb[0].mxu0
      %v1951 = vpop.f32.mrb[0].mxu0
      %v1952 = vadd.f32 0.0, %v1951
      %v1953 = vpop.f32.mrb[0].mxu0
      %1954 = vmatprep.mubr.bf16.mxu0 0
      %1955 = vmatmul.mubr.bf16.gmra.mrb[0].mxu0 %v1752
      %v1956 = vpop.f32.mrb[0].mxu0
      %v1957 = vadd.f32 0.0, %v1956
      %v1958 = vpop.f32.mrb[0].mxu0
      %v1959 = vpop.f32.mrb[0].mxu0
      %v1960 = vadd.f32 0.0, %v1959
      %v1961 = vpop.f32.mrb[0].mxu0
      %1962 = vdwg.mxu0
      %v1963 = vadd.f32 %v1699, %v1837
      %v1964 = vadd.f32 %v1700, %v1840
      %v1965 = vadd.f32 %v1701, %v1845
      %v1966 = vadd.f32 %v1702, %v1848
      %v1967 = vadd.f32 %v1703, %v1853
      %v1968 = vadd.f32 %v1704, %v1856
      %v1969 = vadd.f32 %v1705, %v1861
      %v1970 = vadd.f32 %v1706, %v1864
      %v1971 = vadd.f32 %v1707, %v1869
      %v1972 = vadd.f32 %v1708, %v1872
      %v1973 = vadd.f32 %v1709, %v1877
      %v1974 = vadd.f32 %v1710, %v1880
      %v1975 = vadd.f32 %v1711, %v1885
      %v1976 = vadd.f32 %v1712, %v1888
      %v1977 = vadd.f32 %v1713, %v1893
      %v1978 = vadd.f32 %v1714, %v1896
      %v1979 = vadd.f32 %v1715, %v1901
      %v1980 = vadd.f32 %v1716, %v1904
      %v1981 = vadd.f32 %v1717, %v1909
      %v1982 = vadd.f32 %v1718, %v1912
      %v1983 = vadd.f32 %v1719, %v1917
      %v1984 = vadd.f32 %v1720, %v1920
      %v1985 = vadd.f32 %v1721, %v1925
      %v1986 = vadd.f32 %v1722, %v1928
      %v1987 = vadd.f32 %v1723, %v1933
      %v1988 = vadd.f32 %v1724, %v1936
      %v1989 = vadd.f32 %v1725, %v1941
      %v1990 = vadd.f32 %v1726, %v1944
      %v1991 = vadd.f32 %v1727, %v1949
      %v1992 = vadd.f32 %v1728, %v1952
      %v1993 = vadd.f32 %v1729, %v1957
      %v1994 = vadd.f32 %v1730, %v1960
      %v1996 = vshrl.u32 %v274, 16
      %v1998 = vrot.slane %v1996, 4
      %v1999 = vshll.u32 %v274, 16
      %v2001 = vrot.slane %v1999, 5
      %v2002 = vor.u32 %v1998, %v2001
      %v2003 = vrot.slane %v2002, 4
      %v2005 = vshll.u32 %v275, 16
      %v2007 = vrot.slane %v2005, 5
      %v2008 = vsel %vm298, %v2003, %v2007
      %v2009 = vshrl.u32 %v275, 16
      %v2011 = vrot.slane %v2009, 4
      %v2012 = vor.u32 %v2011, %v2007
      %v2013 = vrot.slane %v2012, 4
      %v2015 = vshll.u32 %v276, 16
      %v2017 = vrot.slane %v2015, 5
      %v2018 = vsel %vm298, %v2013, %v2017
      %s2019 = scalar_lea.vmem %s1, 256
      %v2020 = vld [vmem:[%s2019] sm:$0xf]
      %v2021 = vld [vmem:[%s2019 + $0x4] sm:$0xf]
      %v2022 = vld [vmem:[%s2019 + $0x8] sm:$0xf]
      %v2023 = vld [vmem:[%s2019 + $0xc] sm:$0xf]
      %v2024 = vld [vmem:[%s2019 + $0x10] sm:$0xf]
      %v2025 = vld [vmem:[%s2019 + $0x14] sm:$0xf]
      %v2026 = vld [vmem:[%s2019 + $0x18] sm:$0xf]
      %v2027 = vld [vmem:[%s2019 + $0x1c] sm:$0xf]
      %v2028 = vld [vmem:[%s2019 + $0x20] sm:$0xf]
      %v2029 = vld [vmem:[%s2019 + $0x24] sm:$0xf]
      %v2030 = vld [vmem:[%s2019 + $0x28] sm:$0xf]
      %v2031 = vld [vmem:[%s2019 + $0x2c] sm:$0xf]
      %v2032 = vld [vmem:[%s2019 + $0x30] sm:$0xf]
      %v2033 = vld [vmem:[%s2019 + $0x34] sm:$0xf]
      %v2034 = vld [vmem:[%s2019 + $0x38] sm:$0xf]
      %v2035 = vld [vmem:[%s2019 + $0x3c] sm:$0xf]
      %v2036 = vunpack.c.l.b16 %v2008
      %v2037 = vunpack.c.l.b16 %v2018
      %v2038 = vpack.c.b16 %v2037, %v2036
      %v2056 = vunpack.c.l.b16 %v2020
      %v2057 = vunpack.c.l.b16 %v2021
      %v2058 = vunpack.c.l.b16 %v2022
      %v2059 = vunpack.c.l.b16 %v2023
      %v2060 = vunpack.c.l.b16 %v2024
      %v2061 = vunpack.c.l.b16 %v2025
      %v2062 = vunpack.c.l.b16 %v2026
      %v2063 = vunpack.c.l.b16 %v2027
      %v2064 = vunpack.c.l.b16 %v2028
      %v2065 = vunpack.c.l.b16 %v2029
      %v2066 = vunpack.c.l.b16 %v2030
      %v2067 = vunpack.c.l.b16 %v2031
      %v2068 = vunpack.c.l.b16 %v2032
      %v2069 = vunpack.c.l.b16 %v2033
      %v2070 = vunpack.c.l.b16 %v2034
      %v2071 = vunpack.c.l.b16 %v2035
      %v2072 = vpack.c.b16 %v2057, %v2056
      %v2073 = vpack.c.b16 %v2059, %v2058
      %v2074 = vpack.c.b16 %v2061, %v2060
      %v2075 = vpack.c.b16 %v2063, %v2062
      %v2076 = vpack.c.b16 %v2065, %v2064
      %v2077 = vpack.c.b16 %v2067, %v2066
      %v2078 = vpack.c.b16 %v2069, %v2068
      %v2079 = vpack.c.b16 %v2071, %v2070
      %2088 = vmatprep.subr.bf16.mxu0 0
      %2089 = vmatpush1.bf16.msra.mxu0 %v2072
      %2090 = vmatprep.subr.bf16.mxu0 0
      %2091 = vmatpush1.bf16.msra.mxu0 %v2073
      %2092 = vmatprep.subr.bf16.mxu0 0
      %2093 = vmatpush1.bf16.msra.mxu0 %v2074
      %2094 = vmatprep.subr.bf16.mxu0 0
      %2095 = vmatpush1.bf16.msra.mxu0 %v2075
      %2096 = vmatprep.subr.bf16.mxu0 0
      %2097 = vmatpush1.bf16.msra.mxu0 %v2076
      %2098 = vmatprep.subr.bf16.mxu0 0
      %2099 = vmatpush1.bf16.msra.mxu0 %v2077
      %2100 = vmatprep.subr.bf16.mxu0 0
      %2101 = vmatpush1.bf16.msra.mxu0 %v2078
      %2102 = vmatprep.subr.bf16.mxu0 0
      %2103 = vmatpush1.bf16.msra.mxu0 %v2079
      %2104 = vmatprep.subr.bf16.mxu0 0
      %2105 = vmatpush1.bf16.msra.mxu0 0
      %2106 = vmatprep.subr.bf16.mxu0 0
      %2107 = vmatpush1.bf16.msra.mxu0 0
      %2108 = vmatprep.subr.bf16.mxu0 0
      %2109 = vmatpush1.bf16.msra.mxu0 0
      %2110 = vmatprep.subr.bf16.mxu0 0
      %2111 = vmatpush1.bf16.msra.mxu0 0
      %2112 = vmatprep.subr.bf16.mxu0 0
      %2113 = vmatpush1.bf16.msra.mxu0 0
      %2114 = vmatprep.subr.bf16.mxu0 0
      %2115 = vmatpush1.bf16.msra.mxu0 0
      %2116 = vmatprep.subr.bf16.mxu0 0
      %2117 = vmatpush1.bf16.msra.mxu0 0
      %2118 = vmatprep.subr.bf16.mxu0 0
      %2119 = vmatpush1.bf16.msra.mxu0 0
      %2120 = vmatprep.mubr.bf16.mxu0 0
      %2121 = vmatmul.mubr.bf16.gmra.mrb[0].mxu0 %v733
      %v2122 = vpop.f32.mrb[0].mxu0
      %v2123 = vadd.f32 0.0, %v2122
      %v2124 = vpop.f32.mrb[0].mxu0
      %v2125 = vpop.f32.mrb[0].mxu0
      %v2126 = vadd.f32 0.0, %v2125
      %v2127 = vpop.f32.mrb[0].mxu0
      %2128 = vmatprep.mubr.bf16.mxu0 0
      %2129 = vmatmul.mubr.bf16.gmra.mrb[0].mxu0 %v734
      %v2130 = vpop.f32.mrb[0].mxu0
      %v2131 = vadd.f32 0.0, %v2130
      %v2132 = vpop.f32.mrb[0].mxu0
      %v2133 = vpop.f32.mrb[0].mxu0
      %v2134 = vadd.f32 0.0, %v2133
      %v2135 = vpop.f32.mrb[0].mxu0
      %2136 = vmatprep.mubr.bf16.mxu0 0
      %2137 = vmatmul.mubr.bf16.gmra.mrb[0].mxu0 %v735
      %v2138 = vpop.f32.mrb[0].mxu0
      %v2139 = vadd.f32 0.0, %v2138
      %v2140 = vpop.f32.mrb[0].mxu0
      %v2141 = vpop.f32.mrb[0].mxu0
      %v2142 = vadd.f32 0.0, %v2141
      %v2143 = vpop.f32.mrb[0].mxu0
      %2144 = vmatprep.mubr.bf16.mxu0 0
      %2145 = vmatmul.mubr.bf16.gmra.mrb[0].mxu0 %v736
      %v2146 = vpop.f32.mrb[0].mxu0
      %v2147 = vadd.f32 0.0, %v2146
      %v2148 = vpop.f32.mrb[0].mxu0
      %v2149 = vpop.f32.mrb[0].mxu0
      %v2150 = vadd.f32 0.0, %v2149
      %v2151 = vpop.f32.mrb[0].mxu0
      %2152 = vmatprep.mubr.bf16.mxu0 0
      %2153 = vmatmul.mubr.bf16.gmra.mrb[0].mxu0 %v737
      %v2154 = vpop.f32.mrb[0].mxu0
      %v2155 = vadd.f32 0.0, %v2154
      %v2156 = vpop.f32.mrb[0].mxu0
      %v2157 = vpop.f32.mrb[0].mxu0
      %v2158 = vadd.f32 0.0, %v2157
      %v2159 = vpop.f32.mrb[0].mxu0
      %2160 = vmatprep.mubr.bf16.mxu0 0
      %2161 = vmatmul.mubr.bf16.gmra.mrb[0].mxu0 %v738
      %v2162 = vpop.f32.mrb[0].mxu0
      %v2163 = vadd.f32 0.0, %v2162
      %v2164 = vpop.f32.mrb[0].mxu0
      %v2165 = vpop.f32.mrb[0].mxu0
      %v2166 = vadd.f32 0.0, %v2165
      %v2167 = vpop.f32.mrb[0].mxu0
      %2168 = vmatprep.mubr.bf16.mxu0 0
      %2169 = vmatmul.mubr.bf16.gmra.mrb[0].mxu0 %v739
      %v2170 = vpop.f32.mrb[0].mxu0
      %v2171 = vadd.f32 0.0, %v2170
      %v2172 = vpop.f32.mrb[0].mxu0
      %v2173 = vpop.f32.mrb[0].mxu0
      %v2174 = vadd.f32 0.0, %v2173
      %v2175 = vpop.f32.mrb[0].mxu0
      %2176 = vmatprep.mubr.bf16.mxu0 0
      %2177 = vmatmul.mubr.bf16.gmra.mrb[0].mxu0 %v740
      %v2178 = vpop.f32.mrb[0].mxu0
      %v2179 = vadd.f32 0.0, %v2178
      %v2180 = vpop.f32.mrb[0].mxu0
      %v2181 = vpop.f32.mrb[0].mxu0
      %v2182 = vadd.f32 0.0, %v2181
      %v2183 = vpop.f32.mrb[0].mxu0
      %2184 = vmatprep.mubr.bf16.mxu0 0
      %2185 = vmatmul.mubr.bf16.gmra.mrb[0].mxu0 %v741
      %v2186 = vpop.f32.mrb[0].mxu0
      %v2187 = vadd.f32 0.0, %v2186
      %v2188 = vpop.f32.mrb[0].mxu0
      %v2189 = vpop.f32.mrb[0].mxu0
      %v2190 = vadd.f32 0.0, %v2189
      %v2191 = vpop.f32.mrb[0].mxu0
      %2192 = vmatprep.mubr.bf16.mxu0 0
      %2193 = vmatmul.mubr.bf16.gmra.mrb[0].mxu0 %v742
      %v2194 = vpop.f32.mrb[0].mxu0
      %v2195 = vadd.f32 0.0, %v2194
      %v2196 = vpop.f32.mrb[0].mxu0
      %v2197 = vpop.f32.mrb[0].mxu0
      %v2198 = vadd.f32 0.0, %v2197
      %v2199 = vpop.f32.mrb[0].mxu0
      %2200 = vmatprep.mubr.bf16.mxu0 0
      %2201 = vmatmul.mubr.bf16.gmra.mrb[0].mxu0 %v743
      %v2202 = vpop.f32.mrb[0].mxu0
      %v2203 = vadd.f32 0.0, %v2202
      %v2204 = vpop.f32.mrb[0].mxu0
      %v2205 = vpop.f32.mrb[0].mxu0
      %v2206 = vadd.f32 0.0, %v2205
      %v2207 = vpop.f32.mrb[0].mxu0
      %2208 = vmatprep.mubr.bf16.mxu0 0
      %2209 = vmatmul.mubr.bf16.gmra.mrb[0].mxu0 %v744
      %v2210 = vpop.f32.mrb[0].mxu0
      %v2211 = vadd.f32 0.0, %v2210
      %v2212 = vpop.f32.mrb[0].mxu0
      %v2213 = vpop.f32.mrb[0].mxu0
      %v2214 = vadd.f32 0.0, %v2213
      %v2215 = vpop.f32.mrb[0].mxu0
      %2216 = vmatprep.mubr.bf16.mxu0 0
      %2217 = vmatmul.mubr.bf16.gmra.mrb[0].mxu0 %v745
      %v2218 = vpop.f32.mrb[0].mxu0
      %v2219 = vadd.f32 0.0, %v2218
      %v2220 = vpop.f32.mrb[0].mxu0
      %v2221 = vpop.f32.mrb[0].mxu0
      %v2222 = vadd.f32 0.0, %v2221
      %v2223 = vpop.f32.mrb[0].mxu0
      %2224 = vmatprep.mubr.bf16.mxu0 0
      %2225 = vmatmul.mubr.bf16.gmra.mrb[0].mxu0 %v746
      %v2226 = vpop.f32.mrb[0].mxu0
      %v2227 = vadd.f32 0.0, %v2226
      %v2228 = vpop.f32.mrb[0].mxu0
      %v2229 = vpop.f32.mrb[0].mxu0
      %v2230 = vadd.f32 0.0, %v2229
      %v2231 = vpop.f32.mrb[0].mxu0
      %2232 = vmatprep.mubr.bf16.mxu0 0
      %2233 = vmatmul.mubr.bf16.gmra.mrb[0].mxu0 %v747
      %v2234 = vpop.f32.mrb[0].mxu0
      %v2235 = vadd.f32 0.0, %v2234
      %v2236 = vpop.f32.mrb[0].mxu0
      %v2237 = vpop.f32.mrb[0].mxu0
      %v2238 = vadd.f32 0.0, %v2237
      %v2239 = vpop.f32.mrb[0].mxu0
      %2240 = vmatprep.mubr.bf16.mxu0 0
      %2241 = vmatmul.mubr.bf16.gmra.mrb[0].mxu0 %v2038
      %v2242 = vpop.f32.mrb[0].mxu0
      %v2243 = vadd.f32 0.0, %v2242
      %v2244 = vpop.f32.mrb[0].mxu0
      %v2245 = vpop.f32.mrb[0].mxu0
      %v2246 = vadd.f32 0.0, %v2245
      %v2247 = vpop.f32.mrb[0].mxu0
      %2248 = vdwg.mxu0
      %v2249 = vadd.f32 %v1963, %v2123
      %v2250 = vadd.f32 %v1964, %v2126
      %v2251 = vadd.f32 %v1965, %v2131
      %v2252 = vadd.f32 %v1966, %v2134
      %v2253 = vadd.f32 %v1967, %v2139
      %v2254 = vadd.f32 %v1968, %v2142
      %v2255 = vadd.f32 %v1969, %v2147
      %v2256 = vadd.f32 %v1970, %v2150
      %v2257 = vadd.f32 %v1971, %v2155
      %v2258 = vadd.f32 %v1972, %v2158
      %v2259 = vadd.f32 %v1973, %v2163
      %v2260 = vadd.f32 %v1974, %v2166
      %v2261 = vadd.f32 %v1975, %v2171
      %v2262 = vadd.f32 %v1976, %v2174
      %v2263 = vadd.f32 %v1977, %v2179
      %v2264 = vadd.f32 %v1978, %v2182
      %v2265 = vadd.f32 %v1979, %v2187
      %v2266 = vadd.f32 %v1980, %v2190
      %v2267 = vadd.f32 %v1981, %v2195
      %v2268 = vadd.f32 %v1982, %v2198
      %v2269 = vadd.f32 %v1983, %v2203
      %v2270 = vadd.f32 %v1984, %v2206
      %v2271 = vadd.f32 %v1985, %v2211
      %v2272 = vadd.f32 %v1986, %v2214
      %v2273 = vadd.f32 %v1987, %v2219
      %v2274 = vadd.f32 %v1988, %v2222
      %v2275 = vadd.f32 %v1989, %v2227
      %v2276 = vadd.f32 %v1990, %v2230
      %v2277 = vadd.f32 %v1991, %v2235
      %v2278 = vadd.f32 %v1992, %v2238
      %v2279 = vadd.f32 %v1993, %v2243
      %v2280 = vadd.f32 %v1994, %v2246
      %v2282 = vrot.slane %v274, 5
      %v2283 = vrot.slane %v2282, 4
      %v2284 = vrot.slane %v275, 5
      %v2285 = vsel %vm1296, %v2283, %v2284
      %v2286 = vrot.slane %v2284, 4
      %v2287 = vrot.slane %v276, 5
      %v2288 = vsel %vm1296, %v2286, %v2287
      %s2289 = scalar_lea.vmem %s1, 320
      %v2290 = vld [vmem:[%s2289] sm:$0xf]
      %v2291 = vld [vmem:[%s2289 + $0x4] sm:$0xf]
      %v2292 = vld [vmem:[%s2289 + $0x8] sm:$0xf]
      %v2293 = vld [vmem:[%s2289 + $0xc] sm:$0xf]
      %v2294 = vld [vmem:[%s2289 + $0x10] sm:$0xf]
      %v2295 = vld [vmem:[%s2289 + $0x14] sm:$0xf]
      %v2296 = vld [vmem:[%s2289 + $0x18] sm:$0xf]
      %v2297 = vld [vmem:[%s2289 + $0x1c] sm:$0xf]
      %v2298 = vld [vmem:[%s2289 + $0x20] sm:$0xf]
      %v2299 = vld [vmem:[%s2289 + $0x24] sm:$0xf]
      %v2300 = vld [vmem:[%s2289 + $0x28] sm:$0xf]
      %v2301 = vld [vmem:[%s2289 + $0x2c] sm:$0xf]
      %v2302 = vld [vmem:[%s2289 + $0x30] sm:$0xf]
      %v2303 = vld [vmem:[%s2289 + $0x34] sm:$0xf]
      %v2304 = vld [vmem:[%s2289 + $0x38] sm:$0xf]
      %v2305 = vld [vmem:[%s2289 + $0x3c] sm:$0xf]
      %v2306 = vunpack.c.l.b16 %v2285
      %v2307 = vunpack.c.l.b16 %v2288
      %v2308 = vpack.c.b16 %v2307, %v2306
      %v2326 = vunpack.c.l.b16 %v2290
      %v2327 = vunpack.c.l.b16 %v2291
      %v2328 = vunpack.c.l.b16 %v2292
      %v2329 = vunpack.c.l.b16 %v2293
      %v2330 = vunpack.c.l.b16 %v2294
      %v2331 = vunpack.c.l.b16 %v2295
      %v2332 = vunpack.c.l.b16 %v2296
      %v2333 = vunpack.c.l.b16 %v2297
      %v2334 = vunpack.c.l.b16 %v2298
      %v2335 = vunpack.c.l.b16 %v2299
      %v2336 = vunpack.c.l.b16 %v2300
      %v2337 = vunpack.c.l.b16 %v2301
      %v2338 = vunpack.c.l.b16 %v2302
      %v2339 = vunpack.c.l.b16 %v2303
      %v2340 = vunpack.c.l.b16 %v2304
      %v2341 = vunpack.c.l.b16 %v2305
      %v2342 = vpack.c.b16 %v2327, %v2326
      %v2343 = vpack.c.b16 %v2329, %v2328
      %v2344 = vpack.c.b16 %v2331, %v2330
      %v2345 = vpack.c.b16 %v2333, %v2332
      %v2346 = vpack.c.b16 %v2335, %v2334
      %v2347 = vpack.c.b16 %v2337, %v2336
      %v2348 = vpack.c.b16 %v2339, %v2338
      %v2349 = vpack.c.b16 %v2341, %v2340
      %2358 = vmatprep.subr.bf16.mxu0 0
      %2359 = vmatpush1.bf16.msra.mxu0 %v2342
      %2360 = vmatprep.subr.bf16.mxu0 0
      %2361 = vmatpush1.bf16.msra.mxu0 %v2343
      %2362 = vmatprep.subr.bf16.mxu0 0
      %2363 = vmatpush1.bf16.msra.mxu0 %v2344
      %2364 = vmatprep.subr.bf16.mxu0 0
      %2365 = vmatpush1.bf16.msra.mxu0 %v2345
      %2366 = vmatprep.subr.bf16.mxu0 0
      %2367 = vmatpush1.bf16.msra.mxu0 %v2346
      %2368 = vmatprep.subr.bf16.mxu0 0
      %2369 = vmatpush1.bf16.msra.mxu0 %v2347
      %2370 = vmatprep.subr.bf16.mxu0 0
      %2371 = vmatpush1.bf16.msra.mxu0 %v2348
      %2372 = vmatprep.subr.bf16.mxu0 0
      %2373 = vmatpush1.bf16.msra.mxu0 %v2349
      %2374 = vmatprep.subr.bf16.mxu0 0
      %2375 = vmatpush1.bf16.msra.mxu0 0
      %2376 = vmatprep.subr.bf16.mxu0 0
      %2377 = vmatpush1.bf16.msra.mxu0 0
      %2378 = vmatprep.subr.bf16.mxu0 0
      %2379 = vmatpush1.bf16.msra.mxu0 0
      %2380 = vmatprep.subr.bf16.mxu0 0
      %2381 = vmatpush1.bf16.msra.mxu0 0
      %2382 = vmatprep.subr.bf16.mxu0 0
      %2383 = vmatpush1.bf16.msra.mxu0 0
      %2384 = vmatprep.subr.bf16.mxu0 0
      %2385 = vmatpush1.bf16.msra.mxu0 0
      %2386 = vmatprep.subr.bf16.mxu0 0
      %2387 = vmatpush1.bf16.msra.mxu0 0
      %2388 = vmatprep.subr.bf16.mxu0 0
      %2389 = vmatpush1.bf16.msra.mxu0 0
      %2390 = vmatprep.mubr.bf16.mxu0 0
      %2391 = vmatmul.mubr.bf16.gmra.mrb[0].mxu0 %v1459
      %v2392 = vpop.f32.mrb[0].mxu0
      %v2393 = vadd.f32 0.0, %v2392
      %v2394 = vpop.f32.mrb[0].mxu0
      %v2395 = vpop.f32.mrb[0].mxu0
      %v2396 = vadd.f32 0.0, %v2395
      %v2397 = vpop.f32.mrb[0].mxu0
      %2398 = vmatprep.mubr.bf16.mxu0 0
      %2399 = vmatmul.mubr.bf16.gmra.mrb[0].mxu0 %v1460
      %v2400 = vpop.f32.mrb[0].mxu0
      %v2401 = vadd.f32 0.0, %v2400
      %v2402 = vpop.f32.mrb[0].mxu0
      %v2403 = vpop.f32.mrb[0].mxu0
      %v2404 = vadd.f32 0.0, %v2403
      %v2405 = vpop.f32.mrb[0].mxu0
      %2406 = vmatprep.mubr.bf16.mxu0 0
      %2407 = vmatmul.mubr.bf16.gmra.mrb[0].mxu0 %v1461
      %v2408 = vpop.f32.mrb[0].mxu0
      %v2409 = vadd.f32 0.0, %v2408
      %v2410 = vpop.f32.mrb[0].mxu0
      %v2411 = vpop.f32.mrb[0].mxu0
      %v2412 = vadd.f32 0.0, %v2411
      %v2413 = vpop.f32.mrb[0].mxu0
      %2414 = vmatprep.mubr.bf16.mxu0 0
      %2415 = vmatmul.mubr.bf16.gmra.mrb[0].mxu0 %v1462
      %v2416 = vpop.f32.mrb[0].mxu0
      %v2417 = vadd.f32 0.0, %v2416
      %v2418 = vpop.f32.mrb[0].mxu0
      %v2419 = vpop.f32.mrb[0].mxu0
      %v2420 = vadd.f32 0.0, %v2419
      %v2421 = vpop.f32.mrb[0].mxu0
      %2422 = vmatprep.mubr.bf16.mxu0 0
      %2423 = vmatmul.mubr.bf16.gmra.mrb[0].mxu0 %v1463
      %v2424 = vpop.f32.mrb[0].mxu0
      %v2425 = vadd.f32 0.0, %v2424
      %v2426 = vpop.f32.mrb[0].mxu0
      %v2427 = vpop.f32.mrb[0].mxu0
      %v2428 = vadd.f32 0.0, %v2427
      %v2429 = vpop.f32.mrb[0].mxu0
      %2430 = vmatprep.mubr.bf16.mxu0 0
      %2431 = vmatmul.mubr.bf16.gmra.mrb[0].mxu0 %v1464
      %v2432 = vpop.f32.mrb[0].mxu0
      %v2433 = vadd.f32 0.0, %v2432
      %v2434 = vpop.f32.mrb[0].mxu0
      %v2435 = vpop.f32.mrb[0].mxu0
      %v2436 = vadd.f32 0.0, %v2435
      %v2437 = vpop.f32.mrb[0].mxu0
      %2438 = vmatprep.mubr.bf16.mxu0 0
      %2439 = vmatmul.mubr.bf16.gmra.mrb[0].mxu0 %v1465
      %v2440 = vpop.f32.mrb[0].mxu0
      %v2441 = vadd.f32 0.0, %v2440
      %v2442 = vpop.f32.mrb[0].mxu0
      %v2443 = vpop.f32.mrb[0].mxu0
      %v2444 = vadd.f32 0.0, %v2443
      %v2445 = vpop.f32.mrb[0].mxu0
      %2446 = vmatprep.mubr.bf16.mxu0 0
      %2447 = vmatmul.mubr.bf16.gmra.mrb[0].mxu0 %v1466
      %v2448 = vpop.f32.mrb[0].mxu0
      %v2449 = vadd.f32 0.0, %v2448
      %v2450 = vpop.f32.mrb[0].mxu0
      %v2451 = vpop.f32.mrb[0].mxu0
      %v2452 = vadd.f32 0.0, %v2451
      %v2453 = vpop.f32.mrb[0].mxu0
      %2454 = vmatprep.mubr.bf16.mxu0 0
      %2455 = vmatmul.mubr.bf16.gmra.mrb[0].mxu0 %v1467
      %v2456 = vpop.f32.mrb[0].mxu0
      %v2457 = vadd.f32 0.0, %v2456
      %v2458 = vpop.f32.mrb[0].mxu0
      %v2459 = vpop.f32.mrb[0].mxu0
      %v2460 = vadd.f32 0.0, %v2459
      %v2461 = vpop.f32.mrb[0].mxu0
      %2462 = vmatprep.mubr.bf16.mxu0 0
      %2463 = vmatmul.mubr.bf16.gmra.mrb[0].mxu0 %v1468
      %v2464 = vpop.f32.mrb[0].mxu0
      %v2465 = vadd.f32 0.0, %v2464
      %v2466 = vpop.f32.mrb[0].mxu0
      %v2467 = vpop.f32.mrb[0].mxu0
      %v2468 = vadd.f32 0.0, %v2467
      %v2469 = vpop.f32.mrb[0].mxu0
      %2470 = vmatprep.mubr.bf16.mxu0 0
      %2471 = vmatmul.mubr.bf16.gmra.mrb[0].mxu0 %v1469
      %v2472 = vpop.f32.mrb[0].mxu0
      %v2473 = vadd.f32 0.0, %v2472
      %v2474 = vpop.f32.mrb[0].mxu0
      %v2475 = vpop.f32.mrb[0].mxu0
      %v2476 = vadd.f32 0.0, %v2475
      %v2477 = vpop.f32.mrb[0].mxu0
      %2478 = vmatprep.mubr.bf16.mxu0 0
      %2479 = vmatmul.mubr.bf16.gmra.mrb[0].mxu0 %v1470
      %v2480 = vpop.f32.mrb[0].mxu0
      %v2481 = vadd.f32 0.0, %v2480
      %v2482 = vpop.f32.mrb[0].mxu0
      %v2483 = vpop.f32.mrb[0].mxu0
      %v2484 = vadd.f32 0.0, %v2483
      %v2485 = vpop.f32.mrb[0].mxu0
      %2486 = vmatprep.mubr.bf16.mxu0 0
      %2487 = vmatmul.mubr.bf16.gmra.mrb[0].mxu0 %v1471
      %v2488 = vpop.f32.mrb[0].mxu0
      %v2489 = vadd.f32 0.0, %v2488
      %v2490 = vpop.f32.mrb[0].mxu0
      %v2491 = vpop.f32.mrb[0].mxu0
      %v2492 = vadd.f32 0.0, %v2491
      %v2493 = vpop.f32.mrb[0].mxu0
      %2494 = vmatprep.mubr.bf16.mxu0 0
      %2495 = vmatmul.mubr.bf16.gmra.mrb[0].mxu0 %v1472
      %v2496 = vpop.f32.mrb[0].mxu0
      %v2497 = vadd.f32 0.0, %v2496
      %v2498 = vpop.f32.mrb[0].mxu0
      %v2499 = vpop.f32.mrb[0].mxu0
      %v2500 = vadd.f32 0.0, %v2499
      %v2501 = vpop.f32.mrb[0].mxu0
      %2502 = vmatprep.mubr.bf16.mxu0 0
      %2503 = vmatmul.mubr.bf16.gmra.mrb[0].mxu0 %v1473
      %v2504 = vpop.f32.mrb[0].mxu0
      %v2505 = vadd.f32 0.0, %v2504
      %v2506 = vpop.f32.mrb[0].mxu0
      %v2507 = vpop.f32.mrb[0].mxu0
      %v2508 = vadd.f32 0.0, %v2507
      %v2509 = vpop.f32.mrb[0].mxu0
      %2510 = vmatprep.mubr.bf16.mxu0 0
      %2511 = vmatmul.mubr.bf16.gmra.mrb[0].mxu0 %v2308
      %v2512 = vpop.f32.mrb[0].mxu0
      %v2513 = vadd.f32 0.0, %v2512
      %v2514 = vpop.f32.mrb[0].mxu0
      %v2515 = vpop.f32.mrb[0].mxu0
      %v2516 = vadd.f32 0.0, %v2515
      %v2517 = vpop.f32.mrb[0].mxu0
      %2518 = vdwg.mxu0
      %v2519 = vadd.f32 %v2249, %v2393
      %v2520 = vadd.f32 %v2250, %v2396
      %v2521 = vadd.f32 %v2251, %v2401
      %v2522 = vadd.f32 %v2252, %v2404
      %v2523 = vadd.f32 %v2253, %v2409
      %v2524 = vadd.f32 %v2254, %v2412
      %v2525 = vadd.f32 %v2255, %v2417
      %v2526 = vadd.f32 %v2256, %v2420
      %v2527 = vadd.f32 %v2257, %v2425
      %v2528 = vadd.f32 %v2258, %v2428
      %v2529 = vadd.f32 %v2259, %v2433
      %v2530 = vadd.f32 %v2260, %v2436
      %v2531 = vadd.f32 %v2261, %v2441
      %v2532 = vadd.f32 %v2262, %v2444
      %v2533 = vadd.f32 %v2263, %v2449
      %v2534 = vadd.f32 %v2264, %v2452
      %v2535 = vadd.f32 %v2265, %v2457
      %v2536 = vadd.f32 %v2266, %v2460
      %v2537 = vadd.f32 %v2267, %v2465
      %v2538 = vadd.f32 %v2268, %v2468
      %v2539 = vadd.f32 %v2269, %v2473
      %v2540 = vadd.f32 %v2270, %v2476
      %v2541 = vadd.f32 %v2271, %v2481
      %v2542 = vadd.f32 %v2272, %v2484
      %v2543 = vadd.f32 %v2273, %v2489
      %v2544 = vadd.f32 %v2274, %v2492
      %v2545 = vadd.f32 %v2275, %v2497
      %v2546 = vadd.f32 %v2276, %v2500
      %v2547 = vadd.f32 %v2277, %v2505
      %v2548 = vadd.f32 %v2278, %v2508
      %v2549 = vadd.f32 %v2279, %v2513
      %v2550 = vadd.f32 %v2280, %v2516
      %s2551 = scalar_lea.vmem %s1, 384
      %v2552 = vld [vmem:[%s2551] sm:$0xf]
      %v2553 = vld [vmem:[%s2551 + $0x4] sm:$0xf]
      %v2554 = vld [vmem:[%s2551 + $0x8] sm:$0xf]
      %v2555 = vld [vmem:[%s2551 + $0xc] sm:$0xf]
      %v2556 = vld [vmem:[%s2551 + $0x10] sm:$0xf]
      %v2557 = vld [vmem:[%s2551 + $0x14] sm:$0xf]
      %v2558 = vld [vmem:[%s2551 + $0x18] sm:$0xf]
      %v2559 = vld [vmem:[%s2551 + $0x1c] sm:$0xf]
      %v2560 = vld [vmem:[%s2551 + $0x20] sm:$0xf]
      %v2561 = vld [vmem:[%s2551 + $0x24] sm:$0xf]
      %v2562 = vld [vmem:[%s2551 + $0x28] sm:$0xf]
      %v2563 = vld [vmem:[%s2551 + $0x2c] sm:$0xf]
      %v2564 = vld [vmem:[%s2551 + $0x30] sm:$0xf]
      %v2565 = vld [vmem:[%s2551 + $0x34] sm:$0xf]
      %v2566 = vld [vmem:[%s2551 + $0x38] sm:$0xf]
      %v2567 = vld [vmem:[%s2551 + $0x3c] sm:$0xf]
      %v2570 = vunpack.c.l.b16 %v277
      %v2571 = vunpack.c.l.b16 %v278
      %v2572 = vpack.c.b16 %v2571, %v2570
      %v2590 = vunpack.c.l.b16 %v2552
      %v2591 = vunpack.c.l.b16 %v2553
      %v2592 = vunpack.c.l.b16 %v2554
      %v2593 = vunpack.c.l.b16 %v2555
      %v2594 = vunpack.c.l.b16 %v2556
      %v2595 = vunpack.c.l.b16 %v2557
      %v2596 = vunpack.c.l.b16 %v2558
      %v2597 = vunpack.c.l.b16 %v2559
      %v2598 = vunpack.c.l.b16 %v2560
      %v2599 = vunpack.c.l.b16 %v2561
      %v2600 = vunpack.c.l.b16 %v2562
      %v2601 = vunpack.c.l.b16 %v2563
      %v2602 = vunpack.c.l.b16 %v2564
      %v2603 = vunpack.c.l.b16 %v2565
      %v2604 = vunpack.c.l.b16 %v2566
      %v2605 = vunpack.c.l.b16 %v2567
      %v2606 = vpack.c.b16 %v2591, %v2590
      %v2607 = vpack.c.b16 %v2593, %v2592
      %v2608 = vpack.c.b16 %v2595, %v2594
      %v2609 = vpack.c.b16 %v2597, %v2596
      %v2610 = vpack.c.b16 %v2599, %v2598
      %v2611 = vpack.c.b16 %v2601, %v2600
      %v2612 = vpack.c.b16 %v2603, %v2602
      %v2613 = vpack.c.b16 %v2605, %v2604
      %2622 = vmatprep.subr.bf16.mxu0 0
      %2623 = vmatpush1.bf16.msra.mxu0 %v2606
      %2624 = vmatprep.subr.bf16.mxu0 0
      %2625 = vmatpush1.bf16.msra.mxu0 %v2607
      %2626 = vmatprep.subr.bf16.mxu0 0
      %2627 = vmatpush1.bf16.msra.mxu0 %v2608
      %2628 = vmatprep.subr.bf16.mxu0 0
      %2629 = vmatpush1.bf16.msra.mxu0 %v2609
      %2630 = vmatprep.subr.bf16.mxu0 0
      %2631 = vmatpush1.bf16.msra.mxu0 %v2610
      %2632 = vmatprep.subr.bf16.mxu0 0
      %2633 = vmatpush1.bf16.msra.mxu0 %v2611
      %2634 = vmatprep.subr.bf16.mxu0 0
      %2635 = vmatpush1.bf16.msra.mxu0 %v2612
      %2636 = vmatprep.subr.bf16.mxu0 0
      %2637 = vmatpush1.bf16.msra.mxu0 %v2613
      %2638 = vmatprep.subr.bf16.mxu0 0
      %2639 = vmatpush1.bf16.msra.mxu0 0
      %2640 = vmatprep.subr.bf16.mxu0 0
      %2641 = vmatpush1.bf16.msra.mxu0 0
      %2642 = vmatprep.subr.bf16.mxu0 0
      %2643 = vmatpush1.bf16.msra.mxu0 0
      %2644 = vmatprep.subr.bf16.mxu0 0
      %2645 = vmatpush1.bf16.msra.mxu0 0
      %2646 = vmatprep.subr.bf16.mxu0 0
      %2647 = vmatpush1.bf16.msra.mxu0 0
      %2648 = vmatprep.subr.bf16.mxu0 0
      %2649 = vmatpush1.bf16.msra.mxu0 0
      %2650 = vmatprep.subr.bf16.mxu0 0
      %2651 = vmatpush1.bf16.msra.mxu0 0
      %2652 = vmatprep.subr.bf16.mxu0 0
      %2653 = vmatpush1.bf16.msra.mxu0 0
      %2654 = vmatprep.mubr.bf16.mxu0 0
      %2655 = vmatmul.mubr.bf16.gmra.mrb[0].mxu0 %v1039
      %v2656 = vpop.f32.mrb[0].mxu0
      %v2657 = vadd.f32 0.0, %v2656
      %v2658 = vpop.f32.mrb[0].mxu0
      %v2659 = vpop.f32.mrb[0].mxu0
      %v2660 = vadd.f32 0.0, %v2659
      %v2661 = vpop.f32.mrb[0].mxu0
      %2662 = vmatprep.mubr.bf16.mxu0 0
      %2663 = vmatmul.mubr.bf16.gmra.mrb[0].mxu0 %v1040
      %v2664 = vpop.f32.mrb[0].mxu0
      %v2665 = vadd.f32 0.0, %v2664
      %v2666 = vpop.f32.mrb[0].mxu0
      %v2667 = vpop.f32.mrb[0].mxu0
      %v2668 = vadd.f32 0.0, %v2667
      %v2669 = vpop.f32.mrb[0].mxu0
      %2670 = vmatprep.mubr.bf16.mxu0 0
      %2671 = vmatmul.mubr.bf16.gmra.mrb[0].mxu0 %v1041
      %v2672 = vpop.f32.mrb[0].mxu0
      %v2673 = vadd.f32 0.0, %v2672
      %v2674 = vpop.f32.mrb[0].mxu0
      %v2675 = vpop.f32.mrb[0].mxu0
      %v2676 = vadd.f32 0.0, %v2675
      %v2677 = vpop.f32.mrb[0].mxu0
      %2678 = vmatprep.mubr.bf16.mxu0 0
      %2679 = vmatmul.mubr.bf16.gmra.mrb[0].mxu0 %v1042
      %v2680 = vpop.f32.mrb[0].mxu0
      %v2681 = vadd.f32 0.0, %v2680
      %v2682 = vpop.f32.mrb[0].mxu0
      %v2683 = vpop.f32.mrb[0].mxu0
      %v2684 = vadd.f32 0.0, %v2683
      %v2685 = vpop.f32.mrb[0].mxu0
      %2686 = vmatprep.mubr.bf16.mxu0 0
      %2687 = vmatmul.mubr.bf16.gmra.mrb[0].mxu0 %v1043
      %v2688 = vpop.f32.mrb[0].mxu0
      %v2689 = vadd.f32 0.0, %v2688
      %v2690 = vpop.f32.mrb[0].mxu0
      %v2691 = vpop.f32.mrb[0].mxu0
      %v2692 = vadd.f32 0.0, %v2691
      %v2693 = vpop.f32.mrb[0].mxu0
      %2694 = vmatprep.mubr.bf16.mxu0 0
      %2695 = vmatmul.mubr.bf16.gmra.mrb[0].mxu0 %v1044
      %v2696 = vpop.f32.mrb[0].mxu0
      %v2697 = vadd.f32 0.0, %v2696
      %v2698 = vpop.f32.mrb[0].mxu0
      %v2699 = vpop.f32.mrb[0].mxu0
      %v2700 = vadd.f32 0.0, %v2699
      %v2701 = vpop.f32.mrb[0].mxu0
      %2702 = vmatprep.mubr.bf16.mxu0 0
      %2703 = vmatmul.mubr.bf16.gmra.mrb[0].mxu0 %v1045
      %v2704 = vpop.f32.mrb[0].mxu0
      %v2705 = vadd.f32 0.0, %v2704
      %v2706 = vpop.f32.mrb[0].mxu0
      %v2707 = vpop.f32.mrb[0].mxu0
      %v2708 = vadd.f32 0.0, %v2707
      %v2709 = vpop.f32.mrb[0].mxu0
      %2710 = vmatprep.mubr.bf16.mxu0 0
      %2711 = vmatmul.mubr.bf16.gmra.mrb[0].mxu0 %v1046
      %v2712 = vpop.f32.mrb[0].mxu0
      %v2713 = vadd.f32 0.0, %v2712
      %v2714 = vpop.f32.mrb[0].mxu0
      %v2715 = vpop.f32.mrb[0].mxu0
      %v2716 = vadd.f32 0.0, %v2715
      %v2717 = vpop.f32.mrb[0].mxu0
      %2718 = vmatprep.mubr.bf16.mxu0 0
      %2719 = vmatmul.mubr.bf16.gmra.mrb[0].mxu0 %v1047
      %v2720 = vpop.f32.mrb[0].mxu0
      %v2721 = vadd.f32 0.0, %v2720
      %v2722 = vpop.f32.mrb[0].mxu0
      %v2723 = vpop.f32.mrb[0].mxu0
      %v2724 = vadd.f32 0.0, %v2723
      %v2725 = vpop.f32.mrb[0].mxu0
      %2726 = vmatprep.mubr.bf16.mxu0 0
      %2727 = vmatmul.mubr.bf16.gmra.mrb[0].mxu0 %v1048
      %v2728 = vpop.f32.mrb[0].mxu0
      %v2729 = vadd.f32 0.0, %v2728
      %v2730 = vpop.f32.mrb[0].mxu0
      %v2731 = vpop.f32.mrb[0].mxu0
      %v2732 = vadd.f32 0.0, %v2731
      %v2733 = vpop.f32.mrb[0].mxu0
      %2734 = vmatprep.mubr.bf16.mxu0 0
      %2735 = vmatmul.mubr.bf16.gmra.mrb[0].mxu0 %v1049
      %v2736 = vpop.f32.mrb[0].mxu0
      %v2737 = vadd.f32 0.0, %v2736
      %v2738 = vpop.f32.mrb[0].mxu0
      %v2739 = vpop.f32.mrb[0].mxu0
      %v2740 = vadd.f32 0.0, %v2739
      %v2741 = vpop.f32.mrb[0].mxu0
      %2742 = vmatprep.mubr.bf16.mxu0 0
      %2743 = vmatmul.mubr.bf16.gmra.mrb[0].mxu0 %v1050
      %v2744 = vpop.f32.mrb[0].mxu0
      %v2745 = vadd.f32 0.0, %v2744
      %v2746 = vpop.f32.mrb[0].mxu0
      %v2747 = vpop.f32.mrb[0].mxu0
      %v2748 = vadd.f32 0.0, %v2747
      %v2749 = vpop.f32.mrb[0].mxu0
      %2750 = vmatprep.mubr.bf16.mxu0 0
      %2751 = vmatmul.mubr.bf16.gmra.mrb[0].mxu0 %v1051
      %v2752 = vpop.f32.mrb[0].mxu0
      %v2753 = vadd.f32 0.0, %v2752
      %v2754 = vpop.f32.mrb[0].mxu0
      %v2755 = vpop.f32.mrb[0].mxu0
      %v2756 = vadd.f32 0.0, %v2755
      %v2757 = vpop.f32.mrb[0].mxu0
      %2758 = vmatprep.mubr.bf16.mxu0 0
      %2759 = vmatmul.mubr.bf16.gmra.mrb[0].mxu0 %v1052
      %v2760 = vpop.f32.mrb[0].mxu0
      %v2761 = vadd.f32 0.0, %v2760
      %v2762 = vpop.f32.mrb[0].mxu0
      %v2763 = vpop.f32.mrb[0].mxu0
      %v2764 = vadd.f32 0.0, %v2763
      %v2765 = vpop.f32.mrb[0].mxu0
      %2766 = vmatprep.mubr.bf16.mxu0 0
      %2767 = vmatmul.mubr.bf16.gmra.mrb[0].mxu0 %v1752
      %v2768 = vpop.f32.mrb[0].mxu0
      %v2769 = vadd.f32 0.0, %v2768
      %v2770 = vpop.f32.mrb[0].mxu0
      %v2771 = vpop.f32.mrb[0].mxu0
      %v2772 = vadd.f32 0.0, %v2771
      %v2773 = vpop.f32.mrb[0].mxu0
      %2774 = vmatprep.mubr.bf16.mxu0 0
      %2775 = vmatmul.mubr.bf16.gmra.mrb[0].mxu0 %v2572
      %v2776 = vpop.f32.mrb[0].mxu0
      %v2777 = vadd.f32 0.0, %v2776
      %v2778 = vpop.f32.mrb[0].mxu0
      %v2779 = vpop.f32.mrb[0].mxu0
      %v2780 = vadd.f32 0.0, %v2779
      %v2781 = vpop.f32.mrb[0].mxu0
      %2782 = vdwg.mxu0
      %v2783 = vadd.f32 %v2519, %v2657
      %v2784 = vadd.f32 %v2520, %v2660
      %v2785 = vadd.f32 %v2521, %v2665
      %v2786 = vadd.f32 %v2522, %v2668
      %v2787 = vadd.f32 %v2523, %v2673
      %v2788 = vadd.f32 %v2524, %v2676
      %v2789 = vadd.f32 %v2525, %v2681
      %v2790 = vadd.f32 %v2526, %v2684
      %v2791 = vadd.f32 %v2527, %v2689
      %v2792 = vadd.f32 %v2528, %v2692
      %v2793 = vadd.f32 %v2529, %v2697
      %v2794 = vadd.f32 %v2530, %v2700
      %v2795 = vadd.f32 %v2531, %v2705
      %v2796 = vadd.f32 %v2532, %v2708
      %v2797 = vadd.f32 %v2533, %v2713
      %v2798 = vadd.f32 %v2534, %v2716
      %v2799 = vadd.f32 %v2535, %v2721
      %v2800 = vadd.f32 %v2536, %v2724
      %v2801 = vadd.f32 %v2537, %v2729
      %v2802 = vadd.f32 %v2538, %v2732
      %v2803 = vadd.f32 %v2539, %v2737
      %v2804 = vadd.f32 %v2540, %v2740
      %v2805 = vadd.f32 %v2541, %v2745
      %v2806 = vadd.f32 %v2542, %v2748
      %v2807 = vadd.f32 %v2543, %v2753
      %v2808 = vadd.f32 %v2544, %v2756
      %v2809 = vadd.f32 %v2545, %v2761
      %v2810 = vadd.f32 %v2546, %v2764
      %v2811 = vadd.f32 %v2547, %v2769
      %v2812 = vadd.f32 %v2548, %v2772
      %v2813 = vadd.f32 %v2549, %v2777
      %v2814 = vadd.f32 %v2550, %v2780
      %v2816 = vshrl.u32 %v277, 16
      %v2818 = vrot.slane %v2816, 4
      %v2819 = vshll.u32 %v277, 16
      %v2821 = vrot.slane %v2819, 5
      %v2822 = vor.u32 %v2818, %v2821
      %v2823 = vrot.slane %v2822, 4
      %v2825 = vshll.u32 %v278, 16
      %v2827 = vrot.slane %v2825, 5
      %v2828 = vsel %vm298, %v2823, %v2827
      %v2829 = vshrl.u32 %v278, 16
      %v2831 = vrot.slane %v2829, 4
      %v2832 = vor.u32 %v2831, %v2827
      %v2833 = vrot.slane %v2832, 4
      %v2835 = vshll.u32 %v279, 16
      %v2837 = vrot.slane %v2835, 5
      %v2838 = vsel %vm298, %v2833, %v2837
      %s2839 = scalar_lea.vmem %s1, 448
      %v2840 = vld [vmem:[%s2839] sm:$0xf]
      %v2841 = vld [vmem:[%s2839 + $0x4] sm:$0xf]
      %v2842 = vld [vmem:[%s2839 + $0x8] sm:$0xf]
      %v2843 = vld [vmem:[%s2839 + $0xc] sm:$0xf]
      %v2844 = vld [vmem:[%s2839 + $0x10] sm:$0xf]
      %v2845 = vld [vmem:[%s2839 + $0x14] sm:$0xf]
      %v2846 = vld [vmem:[%s2839 + $0x18] sm:$0xf]
      %v2847 = vld [vmem:[%s2839 + $0x1c] sm:$0xf]
      %v2848 = vld [vmem:[%s2839 + $0x20] sm:$0xf]
      %v2849 = vld [vmem:[%s2839 + $0x24] sm:$0xf]
      %v2850 = vld [vmem:[%s2839 + $0x28] sm:$0xf]
      %v2851 = vld [vmem:[%s2839 + $0x2c] sm:$0xf]
      %v2852 = vld [vmem:[%s2839 + $0x30] sm:$0xf]
      %v2853 = vld [vmem:[%s2839 + $0x34] sm:$0xf]
      %v2854 = vld [vmem:[%s2839 + $0x38] sm:$0xf]
      %v2855 = vld [vmem:[%s2839 + $0x3c] sm:$0xf]
      %v2856 = vunpack.c.l.b16 %v2828
      %v2857 = vunpack.c.l.b16 %v2838
      %v2858 = vpack.c.b16 %v2857, %v2856
      %v2876 = vunpack.c.l.b16 %v2840
      %v2877 = vunpack.c.l.b16 %v2841
      %v2878 = vunpack.c.l.b16 %v2842
      %v2879 = vunpack.c.l.b16 %v2843
      %v2880 = vunpack.c.l.b16 %v2844
      %v2881 = vunpack.c.l.b16 %v2845
      %v2882 = vunpack.c.l.b16 %v2846
      %v2883 = vunpack.c.l.b16 %v2847
      %v2884 = vunpack.c.l.b16 %v2848
      %v2885 = vunpack.c.l.b16 %v2849
      %v2886 = vunpack.c.l.b16 %v2850
      %v2887 = vunpack.c.l.b16 %v2851
      %v2888 = vunpack.c.l.b16 %v2852
      %v2889 = vunpack.c.l.b16 %v2853
      %v2890 = vunpack.c.l.b16 %v2854
      %v2891 = vunpack.c.l.b16 %v2855
      %v2892 = vpack.c.b16 %v2877, %v2876
      %v2893 = vpack.c.b16 %v2879, %v2878
      %v2894 = vpack.c.b16 %v2881, %v2880
      %v2895 = vpack.c.b16 %v2883, %v2882
      %v2896 = vpack.c.b16 %v2885, %v2884
      %v2897 = vpack.c.b16 %v2887, %v2886
      %v2898 = vpack.c.b16 %v2889, %v2888
      %v2899 = vpack.c.b16 %v2891, %v2890
      %2908 = vmatprep.subr.bf16.mxu0 0
      %2909 = vmatpush1.bf16.msra.mxu0 %v2892
      %2910 = vmatprep.subr.bf16.mxu0 0
      %2911 = vmatpush1.bf16.msra.mxu0 %v2893
      %2912 = vmatprep.subr.bf16.mxu0 0
      %2913 = vmatpush1.bf16.msra.mxu0 %v2894
      %2914 = vmatprep.subr.bf16.mxu0 0
      %2915 = vmatpush1.bf16.msra.mxu0 %v2895
      %2916 = vmatprep.subr.bf16.mxu0 0
      %2917 = vmatpush1.bf16.msra.mxu0 %v2896
      %2918 = vmatprep.subr.bf16.mxu0 0
      %2919 = vmatpush1.bf16.msra.mxu0 %v2897
      %2920 = vmatprep.subr.bf16.mxu0 0
      %2921 = vmatpush1.bf16.msra.mxu0 %v2898
      %2922 = vmatprep.subr.bf16.mxu0 0
      %2923 = vmatpush1.bf16.msra.mxu0 %v2899
      %2924 = vmatprep.subr.bf16.mxu0 0
      %2925 = vmatpush1.bf16.msra.mxu0 0
      %2926 = vmatprep.subr.bf16.mxu0 0
      %2927 = vmatpush1.bf16.msra.mxu0 0
      %2928 = vmatprep.subr.bf16.mxu0 0
      %2929 = vmatpush1.bf16.msra.mxu0 0
      %2930 = vmatprep.subr.bf16.mxu0 0
      %2931 = vmatpush1.bf16.msra.mxu0 0
      %2932 = vmatprep.subr.bf16.mxu0 0
      %2933 = vmatpush1.bf16.msra.mxu0 0
      %2934 = vmatprep.subr.bf16.mxu0 0
      %2935 = vmatpush1.bf16.msra.mxu0 0
      %2936 = vmatprep.subr.bf16.mxu0 0
      %2937 = vmatpush1.bf16.msra.mxu0 0
      %2938 = vmatprep.subr.bf16.mxu0 0
      %2939 = vmatpush1.bf16.msra.mxu0 0
      %2940 = vmatprep.mubr.bf16.mxu0 0
      %2941 = vmatmul.mubr.bf16.gmra.mrb[0].mxu0 %v734
      %v2942 = vpop.f32.mrb[0].mxu0
      %v2943 = vadd.f32 0.0, %v2942
      %v2944 = vpop.f32.mrb[0].mxu0
      %v2945 = vpop.f32.mrb[0].mxu0
      %v2946 = vadd.f32 0.0, %v2945
      %v2947 = vpop.f32.mrb[0].mxu0
      %2948 = vmatprep.mubr.bf16.mxu0 0
      %2949 = vmatmul.mubr.bf16.gmra.mrb[0].mxu0 %v735
      %v2950 = vpop.f32.mrb[0].mxu0
      %v2951 = vadd.f32 0.0, %v2950
      %v2952 = vpop.f32.mrb[0].mxu0
      %v2953 = vpop.f32.mrb[0].mxu0
      %v2954 = vadd.f32 0.0, %v2953
      %v2955 = vpop.f32.mrb[0].mxu0
      %2956 = vmatprep.mubr.bf16.mxu0 0
      %2957 = vmatmul.mubr.bf16.gmra.mrb[0].mxu0 %v736
      %v2958 = vpop.f32.mrb[0].mxu0
      %v2959 = vadd.f32 0.0, %v2958
      %v2960 = vpop.f32.mrb[0].mxu0
      %v2961 = vpop.f32.mrb[0].mxu0
      %v2962 = vadd.f32 0.0, %v2961
      %v2963 = vpop.f32.mrb[0].mxu0
      %2964 = vmatprep.mubr.bf16.mxu0 0
      %2965 = vmatmul.mubr.bf16.gmra.mrb[0].mxu0 %v737
      %v2966 = vpop.f32.mrb[0].mxu0
      %v2967 = vadd.f32 0.0, %v2966
      %v2968 = vpop.f32.mrb[0].mxu0
      %v2969 = vpop.f32.mrb[0].mxu0
      %v2970 = vadd.f32 0.0, %v2969
      %v2971 = vpop.f32.mrb[0].mxu0
      %2972 = vmatprep.mubr.bf16.mxu0 0
      %2973 = vmatmul.mubr.bf16.gmra.mrb[0].mxu0 %v738
      %v2974 = vpop.f32.mrb[0].mxu0
      %v2975 = vadd.f32 0.0, %v2974
      %v2976 = vpop.f32.mrb[0].mxu0
      %v2977 = vpop.f32.mrb[0].mxu0
      %v2978 = vadd.f32 0.0, %v2977
      %v2979 = vpop.f32.mrb[0].mxu0
      %2980 = vmatprep.mubr.bf16.mxu0 0
      %2981 = vmatmul.mubr.bf16.gmra.mrb[0].mxu0 %v739
      %v2982 = vpop.f32.mrb[0].mxu0
      %v2983 = vadd.f32 0.0, %v2982
      %v2984 = vpop.f32.mrb[0].mxu0
      %v2985 = vpop.f32.mrb[0].mxu0
      %v2986 = vadd.f32 0.0, %v2985
      %v2987 = vpop.f32.mrb[0].mxu0
      %2988 = vmatprep.mubr.bf16.mxu0 0
      %2989 = vmatmul.mubr.bf16.gmra.mrb[0].mxu0 %v740
      %v2990 = vpop.f32.mrb[0].mxu0
      %v2991 = vadd.f32 0.0, %v2990
      %v2992 = vpop.f32.mrb[0].mxu0
      %v2993 = vpop.f32.mrb[0].mxu0
      %v2994 = vadd.f32 0.0, %v2993
      %v2995 = vpop.f32.mrb[0].mxu0
      %2996 = vmatprep.mubr.bf16.mxu0 0
      %2997 = vmatmul.mubr.bf16.gmra.mrb[0].mxu0 %v741
      %v2998 = vpop.f32.mrb[0].mxu0
      %v2999 = vadd.f32 0.0, %v2998
      %v3000 = vpop.f32.mrb[0].mxu0
      %v3001 = vpop.f32.mrb[0].mxu0
      %v3002 = vadd.f32 0.0, %v3001
      %v3003 = vpop.f32.mrb[0].mxu0
      %3004 = vmatprep.mubr.bf16.mxu0 0
      %3005 = vmatmul.mubr.bf16.gmra.mrb[0].mxu0 %v742
      %v3006 = vpop.f32.mrb[0].mxu0
      %v3007 = vadd.f32 0.0, %v3006
      %v3008 = vpop.f32.mrb[0].mxu0
      %v3009 = vpop.f32.mrb[0].mxu0
      %v3010 = vadd.f32 0.0, %v3009
      %v3011 = vpop.f32.mrb[0].mxu0
      %3012 = vmatprep.mubr.bf16.mxu0 0
      %3013 = vmatmul.mubr.bf16.gmra.mrb[0].mxu0 %v743
      %v3014 = vpop.f32.mrb[0].mxu0
      %v3015 = vadd.f32 0.0, %v3014
      %v3016 = vpop.f32.mrb[0].mxu0
      %v3017 = vpop.f32.mrb[0].mxu0
      %v3018 = vadd.f32 0.0, %v3017
      %v3019 = vpop.f32.mrb[0].mxu0
      %3020 = vmatprep.mubr.bf16.mxu0 0
      %3021 = vmatmul.mubr.bf16.gmra.mrb[0].mxu0 %v744
      %v3022 = vpop.f32.mrb[0].mxu0
      %v3023 = vadd.f32 0.0, %v3022
      %v3024 = vpop.f32.mrb[0].mxu0
      %v3025 = vpop.f32.mrb[0].mxu0
      %v3026 = vadd.f32 0.0, %v3025
      %v3027 = vpop.f32.mrb[0].mxu0
      %3028 = vmatprep.mubr.bf16.mxu0 0
      %3029 = vmatmul.mubr.bf16.gmra.mrb[0].mxu0 %v745
      %v3030 = vpop.f32.mrb[0].mxu0
      %v3031 = vadd.f32 0.0, %v3030
      %v3032 = vpop.f32.mrb[0].mxu0
      %v3033 = vpop.f32.mrb[0].mxu0
      %v3034 = vadd.f32 0.0, %v3033
      %v3035 = vpop.f32.mrb[0].mxu0
      %3036 = vmatprep.mubr.bf16.mxu0 0
      %3037 = vmatmul.mubr.bf16.gmra.mrb[0].mxu0 %v746
      %v3038 = vpop.f32.mrb[0].mxu0
      %v3039 = vadd.f32 0.0, %v3038
      %v3040 = vpop.f32.mrb[0].mxu0
      %v3041 = vpop.f32.mrb[0].mxu0
      %v3042 = vadd.f32 0.0, %v3041
      %v3043 = vpop.f32.mrb[0].mxu0
      %3044 = vmatprep.mubr.bf16.mxu0 0
      %3045 = vmatmul.mubr.bf16.gmra.mrb[0].mxu0 %v747
      %v3046 = vpop.f32.mrb[0].mxu0
      %v3047 = vadd.f32 0.0, %v3046
      %v3048 = vpop.f32.mrb[0].mxu0
      %v3049 = vpop.f32.mrb[0].mxu0
      %v3050 = vadd.f32 0.0, %v3049
      %v3051 = vpop.f32.mrb[0].mxu0
      %3052 = vmatprep.mubr.bf16.mxu0 0
      %3053 = vmatmul.mubr.bf16.gmra.mrb[0].mxu0 %v2038
      %v3054 = vpop.f32.mrb[0].mxu0
      %v3055 = vadd.f32 0.0, %v3054
      %v3056 = vpop.f32.mrb[0].mxu0
      %v3057 = vpop.f32.mrb[0].mxu0
      %v3058 = vadd.f32 0.0, %v3057
      %v3059 = vpop.f32.mrb[0].mxu0
      %3060 = vmatprep.mubr.bf16.mxu0 0
      %3061 = vmatmul.mubr.bf16.gmra.mrb[0].mxu0 %v2858
      %v3062 = vpop.f32.mrb[0].mxu0
      %v3063 = vadd.f32 0.0, %v3062
      %v3064 = vpop.f32.mrb[0].mxu0
      %v3065 = vpop.f32.mrb[0].mxu0
      %v3066 = vadd.f32 0.0, %v3065
      %v3067 = vpop.f32.mrb[0].mxu0
      %3068 = vdwg.mxu0
      %v3069 = vadd.f32 %v2783, %v2943
      %v3070 = vadd.f32 %v2784, %v2946
      %v3071 = vadd.f32 %v2785, %v2951
      %v3072 = vadd.f32 %v2786, %v2954
      %v3073 = vadd.f32 %v2787, %v2959
      %v3074 = vadd.f32 %v2788, %v2962
      %v3075 = vadd.f32 %v2789, %v2967
      %v3076 = vadd.f32 %v2790, %v2970
      %v3077 = vadd.f32 %v2791, %v2975
      %v3078 = vadd.f32 %v2792, %v2978
      %v3079 = vadd.f32 %v2793, %v2983
      %v3080 = vadd.f32 %v2794, %v2986
      %v3081 = vadd.f32 %v2795, %v2991
      %v3082 = vadd.f32 %v2796, %v2994
      %v3083 = vadd.f32 %v2797, %v2999
      %v3084 = vadd.f32 %v2798, %v3002
      %v3085 = vadd.f32 %v2799, %v3007
      %v3086 = vadd.f32 %v2800, %v3010
      %v3087 = vadd.f32 %v2801, %v3015
      %v3088 = vadd.f32 %v2802, %v3018
      %v3089 = vadd.f32 %v2803, %v3023
      %v3090 = vadd.f32 %v2804, %v3026
      %v3091 = vadd.f32 %v2805, %v3031
      %v3092 = vadd.f32 %v2806, %v3034
      %v3093 = vadd.f32 %v2807, %v3039
      %v3094 = vadd.f32 %v2808, %v3042
      %v3095 = vadd.f32 %v2809, %v3047
      %v3096 = vadd.f32 %v2810, %v3050
      %v3097 = vadd.f32 %v2811, %v3055
      %v3098 = vadd.f32 %v2812, %v3058
      %v3099 = vadd.f32 %v2813, %v3063
      %v3100 = vadd.f32 %v2814, %v3066
      %v3102 = vrot.slane %v277, 5
      %v3103 = vrot.slane %v3102, 4
      %v3104 = vrot.slane %v278, 5
      %v3105 = vsel %vm1296, %v3103, %v3104
      %v3106 = vrot.slane %v3104, 4
      %v3107 = vrot.slane %v279, 5
      %v3108 = vsel %vm1296, %v3106, %v3107
      %s3109 = scalar_lea.vmem %s1, 512
      %v3110 = vld [vmem:[%s3109] sm:$0xf]
      %v3111 = vld [vmem:[%s3109 + $0x4] sm:$0xf]
      %v3112 = vld [vmem:[%s3109 + $0x8] sm:$0xf]
      %v3113 = vld [vmem:[%s3109 + $0xc] sm:$0xf]
      %v3114 = vld [vmem:[%s3109 + $0x10] sm:$0xf]
      %v3115 = vld [vmem:[%s3109 + $0x14] sm:$0xf]
      %v3116 = vld [vmem:[%s3109 + $0x18] sm:$0xf]
      %v3117 = vld [vmem:[%s3109 + $0x1c] sm:$0xf]
      %v3118 = vld [vmem:[%s3109 + $0x20] sm:$0xf]
      %v3119 = vld [vmem:[%s3109 + $0x24] sm:$0xf]
      %v3120 = vld [vmem:[%s3109 + $0x28] sm:$0xf]
      %v3121 = vld [vmem:[%s3109 + $0x2c] sm:$0xf]
      %v3122 = vld [vmem:[%s3109 + $0x30] sm:$0xf]
      %v3123 = vld [vmem:[%s3109 + $0x34] sm:$0xf]
      %v3124 = vld [vmem:[%s3109 + $0x38] sm:$0xf]
      %v3125 = vld [vmem:[%s3109 + $0x3c] sm:$0xf]
      %v3126 = vunpack.c.l.b16 %v3105
      %v3127 = vunpack.c.l.b16 %v3108
      %v3128 = vpack.c.b16 %v3127, %v3126
      %v3146 = vunpack.c.l.b16 %v3110
      %v3147 = vunpack.c.l.b16 %v3111
      %v3148 = vunpack.c.l.b16 %v3112
      %v3149 = vunpack.c.l.b16 %v3113
      %v3150 = vunpack.c.l.b16 %v3114
      %v3151 = vunpack.c.l.b16 %v3115
      %v3152 = vunpack.c.l.b16 %v3116
      %v3153 = vunpack.c.l.b16 %v3117
      %v3154 = vunpack.c.l.b16 %v3118
      %v3155 = vunpack.c.l.b16 %v3119
      %v3156 = vunpack.c.l.b16 %v3120
      %v3157 = vunpack.c.l.b16 %v3121
      %v3158 = vunpack.c.l.b16 %v3122
      %v3159 = vunpack.c.l.b16 %v3123
      %v3160 = vunpack.c.l.b16 %v3124
      %v3161 = vunpack.c.l.b16 %v3125
      %v3162 = vpack.c.b16 %v3147, %v3146
      %v3163 = vpack.c.b16 %v3149, %v3148
      %v3164 = vpack.c.b16 %v3151, %v3150
      %v3165 = vpack.c.b16 %v3153, %v3152
      %v3166 = vpack.c.b16 %v3155, %v3154
      %v3167 = vpack.c.b16 %v3157, %v3156
      %v3168 = vpack.c.b16 %v3159, %v3158
      %v3169 = vpack.c.b16 %v3161, %v3160
      %3178 = vmatprep.subr.bf16.mxu0 0
      %3179 = vmatpush1.bf16.msra.mxu0 %v3162
      %3180 = vmatprep.subr.bf16.mxu0 0
      %3181 = vmatpush1.bf16.msra.mxu0 %v3163
      %3182 = vmatprep.subr.bf16.mxu0 0
      %3183 = vmatpush1.bf16.msra.mxu0 %v3164
      %3184 = vmatprep.subr.bf16.mxu0 0
      %3185 = vmatpush1.bf16.msra.mxu0 %v3165
      %3186 = vmatprep.subr.bf16.mxu0 0
      %3187 = vmatpush1.bf16.msra.mxu0 %v3166
      %3188 = vmatprep.subr.bf16.mxu0 0
      %3189 = vmatpush1.bf16.msra.mxu0 %v3167
      %3190 = vmatprep.subr.bf16.mxu0 0
      %3191 = vmatpush1.bf16.msra.mxu0 %v3168
      %3192 = vmatprep.subr.bf16.mxu0 0
      %3193 = vmatpush1.bf16.msra.mxu0 %v3169
      %3194 = vmatprep.subr.bf16.mxu0 0
      %3195 = vmatpush1.bf16.msra.mxu0 0
      %3196 = vmatprep.subr.bf16.mxu0 0
      %3197 = vmatpush1.bf16.msra.mxu0 0
      %3198 = vmatprep.subr.bf16.mxu0 0
      %3199 = vmatpush1.bf16.msra.mxu0 0
      %3200 = vmatprep.subr.bf16.mxu0 0
      %3201 = vmatpush1.bf16.msra.mxu0 0
      %3202 = vmatprep.subr.bf16.mxu0 0
      %3203 = vmatpush1.bf16.msra.mxu0 0
      %3204 = vmatprep.subr.bf16.mxu0 0
      %3205 = vmatpush1.bf16.msra.mxu0 0
      %3206 = vmatprep.subr.bf16.mxu0 0
      %3207 = vmatpush1.bf16.msra.mxu0 0
      %3208 = vmatprep.subr.bf16.mxu0 0
      %3209 = vmatpush1.bf16.msra.mxu0 0
      %3210 = vmatprep.mubr.bf16.mxu0 0
      %3211 = vmatmul.mubr.bf16.gmra.mrb[0].mxu0 %v1460
      %v3212 = vpop.f32.mrb[0].mxu0
      %v3213 = vadd.f32 0.0, %v3212
      %v3214 = vpop.f32.mrb[0].mxu0
      %v3215 = vpop.f32.mrb[0].mxu0
      %v3216 = vadd.f32 0.0, %v3215
      %v3217 = vpop.f32.mrb[0].mxu0
      %3218 = vmatprep.mubr.bf16.mxu0 0
      %3219 = vmatmul.mubr.bf16.gmra.mrb[0].mxu0 %v1461
      %v3220 = vpop.f32.mrb[0].mxu0
      %v3221 = vadd.f32 0.0, %v3220
      %v3222 = vpop.f32.mrb[0].mxu0
      %v3223 = vpop.f32.mrb[0].mxu0
      %v3224 = vadd.f32 0.0, %v3223
      %v3225 = vpop.f32.mrb[0].mxu0
      %3226 = vmatprep.mubr.bf16.mxu0 0
      %3227 = vmatmul.mubr.bf16.gmra.mrb[0].mxu0 %v1462
      %v3228 = vpop.f32.mrb[0].mxu0
      %v3229 = vadd.f32 0.0, %v3228
      %v3230 = vpop.f32.mrb[0].mxu0
      %v3231 = vpop.f32.mrb[0].mxu0
      %v3232 = vadd.f32 0.0, %v3231
      %v3233 = vpop.f32.mrb[0].mxu0
      %3234 = vmatprep.mubr.bf16.mxu0 0
      %3235 = vmatmul.mubr.bf16.gmra.mrb[0].mxu0 %v1463
      %v3236 = vpop.f32.mrb[0].mxu0
      %v3237 = vadd.f32 0.0, %v3236
      %v3238 = vpop.f32.mrb[0].mxu0
      %v3239 = vpop.f32.mrb[0].mxu0
      %v3240 = vadd.f32 0.0, %v3239
      %v3241 = vpop.f32.mrb[0].mxu0
      %3242 = vmatprep.mubr.bf16.mxu0 0
      %3243 = vmatmul.mubr.bf16.gmra.mrb[0].mxu0 %v1464
      %v3244 = vpop.f32.mrb[0].mxu0
      %v3245 = vadd.f32 0.0, %v3244
      %v3246 = vpop.f32.mrb[0].mxu0
      %v3247 = vpop.f32.mrb[0].mxu0
      %v3248 = vadd.f32 0.0, %v3247
      %v3249 = vpop.f32.mrb[0].mxu0
      %3250 = vmatprep.mubr.bf16.mxu0 0
      %3251 = vmatmul.mubr.bf16.gmra.mrb[0].mxu0 %v1465
      %v3252 = vpop.f32.mrb[0].mxu0
      %v3253 = vadd.f32 0.0, %v3252
      %v3254 = vpop.f32.mrb[0].mxu0
      %v3255 = vpop.f32.mrb[0].mxu0
      %v3256 = vadd.f32 0.0, %v3255
      %v3257 = vpop.f32.mrb[0].mxu0
      %3258 = vmatprep.mubr.bf16.mxu0 0
      %3259 = vmatmul.mubr.bf16.gmra.mrb[0].mxu0 %v1466
      %v3260 = vpop.f32.mrb[0].mxu0
      %v3261 = vadd.f32 0.0, %v3260
      %v3262 = vpop.f32.mrb[0].mxu0
      %v3263 = vpop.f32.mrb[0].mxu0
      %v3264 = vadd.f32 0.0, %v3263
      %v3265 = vpop.f32.mrb[0].mxu0
      %3266 = vmatprep.mubr.bf16.mxu0 0
      %3267 = vmatmul.mubr.bf16.gmra.mrb[0].mxu0 %v1467
      %v3268 = vpop.f32.mrb[0].mxu0
      %v3269 = vadd.f32 0.0, %v3268
      %v3270 = vpop.f32.mrb[0].mxu0
      %v3271 = vpop.f32.mrb[0].mxu0
      %v3272 = vadd.f32 0.0, %v3271
      %v3273 = vpop.f32.mrb[0].mxu0
      %3274 = vmatprep.mubr.bf16.mxu0 0
      %3275 = vmatmul.mubr.bf16.gmra.mrb[0].mxu0 %v1468
      %v3276 = vpop.f32.mrb[0].mxu0
      %v3277 = vadd.f32 0.0, %v3276
      %v3278 = vpop.f32.mrb[0].mxu0
      %v3279 = vpop.f32.mrb[0].mxu0
      %v3280 = vadd.f32 0.0, %v3279
      %v3281 = vpop.f32.mrb[0].mxu0
      %3282 = vmatprep.mubr.bf16.mxu0 0
      %3283 = vmatmul.mubr.bf16.gmra.mrb[0].mxu0 %v1469
      %v3284 = vpop.f32.mrb[0].mxu0
      %v3285 = vadd.f32 0.0, %v3284
      %v3286 = vpop.f32.mrb[0].mxu0
      %v3287 = vpop.f32.mrb[0].mxu0
      %v3288 = vadd.f32 0.0, %v3287
      %v3289 = vpop.f32.mrb[0].mxu0
      %3290 = vmatprep.mubr.bf16.mxu0 0
      %3291 = vmatmul.mubr.bf16.gmra.mrb[0].mxu0 %v1470
      %v3292 = vpop.f32.mrb[0].mxu0
      %v3293 = vadd.f32 0.0, %v3292
      %v3294 = vpop.f32.mrb[0].mxu0
      %v3295 = vpop.f32.mrb[0].mxu0
      %v3296 = vadd.f32 0.0, %v3295
      %v3297 = vpop.f32.mrb[0].mxu0
      %3298 = vmatprep.mubr.bf16.mxu0 0
      %3299 = vmatmul.mubr.bf16.gmra.mrb[0].mxu0 %v1471
      %v3300 = vpop.f32.mrb[0].mxu0
      %v3301 = vadd.f32 0.0, %v3300
      %v3302 = vpop.f32.mrb[0].mxu0
      %v3303 = vpop.f32.mrb[0].mxu0
      %v3304 = vadd.f32 0.0, %v3303
      %v3305 = vpop.f32.mrb[0].mxu0
      %3306 = vmatprep.mubr.bf16.mxu0 0
      %3307 = vmatmul.mubr.bf16.gmra.mrb[0].mxu0 %v1472
      %v3308 = vpop.f32.mrb[0].mxu0
      %v3309 = vadd.f32 0.0, %v3308
      %v3310 = vpop.f32.mrb[0].mxu0
      %v3311 = vpop.f32.mrb[0].mxu0
      %v3312 = vadd.f32 0.0, %v3311
      %v3313 = vpop.f32.mrb[0].mxu0
      %3314 = vmatprep.mubr.bf16.mxu0 0
      %3315 = vmatmul.mubr.bf16.gmra.mrb[0].mxu0 %v1473
      %v3316 = vpop.f32.mrb[0].mxu0
      %v3317 = vadd.f32 0.0, %v3316
      %v3318 = vpop.f32.mrb[0].mxu0
      %v3319 = vpop.f32.mrb[0].mxu0
      %v3320 = vadd.f32 0.0, %v3319
      %v3321 = vpop.f32.mrb[0].mxu0
      %3322 = vmatprep.mubr.bf16.mxu0 0
      %3323 = vmatmul.mubr.bf16.gmra.mrb[0].mxu0 %v2308
      %v3324 = vpop.f32.mrb[0].mxu0
      %v3325 = vadd.f32 0.0, %v3324
      %v3326 = vpop.f32.mrb[0].mxu0
      %v3327 = vpop.f32.mrb[0].mxu0
      %v3328 = vadd.f32 0.0, %v3327
      %v3329 = vpop.f32.mrb[0].mxu0
      %3330 = vmatprep.mubr.bf16.mxu0 0
      %3331 = vmatmul.mubr.bf16.gmra.mrb[0].mxu0 %v3128
      %v3332 = vpop.f32.mrb[0].mxu0
      %v3333 = vadd.f32 0.0, %v3332
      %v3334 = vpop.f32.mrb[0].mxu0
      %v3335 = vpop.f32.mrb[0].mxu0
      %v3336 = vadd.f32 0.0, %v3335
      %v3337 = vpop.f32.mrb[0].mxu0
      %3338 = vdwg.mxu0
      %v3339 = vadd.f32 %v3069, %v3213
      %v3340 = vadd.f32 %v3070, %v3216
      %v3341 = vadd.f32 %v3071, %v3221
      %v3342 = vadd.f32 %v3072, %v3224
      %v3343 = vadd.f32 %v3073, %v3229
      %v3344 = vadd.f32 %v3074, %v3232
      %v3345 = vadd.f32 %v3075, %v3237
      %v3346 = vadd.f32 %v3076, %v3240
      %v3347 = vadd.f32 %v3077, %v3245
      %v3348 = vadd.f32 %v3078, %v3248
      %v3349 = vadd.f32 %v3079, %v3253
      %v3350 = vadd.f32 %v3080, %v3256
      %v3351 = vadd.f32 %v3081, %v3261
      %v3352 = vadd.f32 %v3082, %v3264
      %v3353 = vadd.f32 %v3083, %v3269
      %v3354 = vadd.f32 %v3084, %v3272
      %v3355 = vadd.f32 %v3085, %v3277
      %v3356 = vadd.f32 %v3086, %v3280
      %v3357 = vadd.f32 %v3087, %v3285
      %v3358 = vadd.f32 %v3088, %v3288
      %v3359 = vadd.f32 %v3089, %v3293
      %v3360 = vadd.f32 %v3090, %v3296
      %v3361 = vadd.f32 %v3091, %v3301
      %v3362 = vadd.f32 %v3092, %v3304
      %v3363 = vadd.f32 %v3093, %v3309
      %v3364 = vadd.f32 %v3094, %v3312
      %v3365 = vadd.f32 %v3095, %v3317
      %v3366 = vadd.f32 %v3096, %v3320
      %v3367 = vadd.f32 %v3097, %v3325
      %v3368 = vadd.f32 %v3098, %v3328
      %v3369 = vadd.f32 %v3099, %v3333
      %v3370 = vadd.f32 %v3100, %v3336
      %v3371 = vld [vmem:[%s2] sm:$0x1]
      %v3373 = vlaneseq
      %v3374 = vshrl.u32 %v3373, 7
      %v3375 = vsub.s32 0, %v3374
      %v3376 = vrot.slane %v3371, %v3375
      %v3378 = vadd.f32 %v3339, %v3376
      %v3379 = vadd.f32 %v3340, %v3376
      %v3380 = vadd.f32 %v3341, %v3376
      %v3381 = vadd.f32 %v3342, %v3376
      %v3382 = vadd.f32 %v3343, %v3376
      %v3383 = vadd.f32 %v3344, %v3376
      %v3384 = vadd.f32 %v3345, %v3376
      %v3385 = vadd.f32 %v3346, %v3376
      %v3386 = vadd.f32 %v3347, %v3376
      %v3387 = vadd.f32 %v3348, %v3376
      %v3388 = vadd.f32 %v3349, %v3376
      %v3389 = vadd.f32 %v3350, %v3376
      %v3390 = vadd.f32 %v3351, %v3376
      %v3391 = vadd.f32 %v3352, %v3376
      %v3392 = vadd.f32 %v3353, %v3376
      %v3393 = vadd.f32 %v3354, %v3376
      %v3394 = vadd.f32 %v3355, %v3376
      %v3395 = vadd.f32 %v3356, %v3376
      %v3396 = vadd.f32 %v3357, %v3376
      %v3397 = vadd.f32 %v3358, %v3376
      %v3398 = vadd.f32 %v3359, %v3376
      %v3399 = vadd.f32 %v3360, %v3376
      %v3400 = vadd.f32 %v3361, %v3376
      %v3401 = vadd.f32 %v3362, %v3376
      %v3402 = vadd.f32 %v3363, %v3376
      %v3403 = vadd.f32 %v3364, %v3376
      %v3404 = vadd.f32 %v3365, %v3376
      %v3405 = vadd.f32 %v3366, %v3376
      %v3406 = vadd.f32 %v3367, %v3376
      %v3407 = vadd.f32 %v3368, %v3376
      %v3408 = vadd.f32 %v3369, %v3376
      %v3409 = vadd.f32 %v3370, %v3376
      %v3410 = vmax.f32 %v3378, 0.0
      %v3411 = vmax.f32 %v3379, 0.0
      %v3412 = vmax.f32 %v3380, 0.0
      %v3413 = vmax.f32 %v3381, 0.0
      %v3414 = vmax.f32 %v3382, 0.0
      %v3415 = vmax.f32 %v3383, 0.0
      %v3416 = vmax.f32 %v3384, 0.0
      %v3417 = vmax.f32 %v3385, 0.0
      %v3418 = vmax.f32 %v3386, 0.0
      %v3419 = vmax.f32 %v3387, 0.0
      %v3420 = vmax.f32 %v3388, 0.0
      %v3421 = vmax.f32 %v3389, 0.0
      %v3422 = vmax.f32 %v3390, 0.0
      %v3423 = vmax.f32 %v3391, 0.0
      %v3424 = vmax.f32 %v3392, 0.0
      %v3425 = vmax.f32 %v3393, 0.0
      %v3426 = vmax.f32 %v3394, 0.0
      %v3427 = vmax.f32 %v3395, 0.0
      %v3428 = vmax.f32 %v3396, 0.0
      %v3429 = vmax.f32 %v3397, 0.0
      %v3430 = vmax.f32 %v3398, 0.0
      %v3431 = vmax.f32 %v3399, 0.0
      %v3432 = vmax.f32 %v3400, 0.0
      %v3433 = vmax.f32 %v3401, 0.0
      %v3434 = vmax.f32 %v3402, 0.0
      %v3435 = vmax.f32 %v3403, 0.0
      %v3436 = vmax.f32 %v3404, 0.0
      %v3437 = vmax.f32 %v3405, 0.0
      %v3438 = vmax.f32 %v3406, 0.0
      %v3439 = vmax.f32 %v3407, 0.0
      %v3440 = vmax.f32 %v3408, 0.0
      %v3441 = vmax.f32 %v3409, 0.0
      %v3442 = vpack.c.bf16 %v3411, %v3410
      %v3443 = vpack.c.bf16 %v3413, %v3412
      %v3444 = vpack.c.bf16 %v3415, %v3414
      %v3445 = vpack.c.bf16 %v3417, %v3416
      %v3446 = vpack.c.bf16 %v3419, %v3418
      %v3447 = vpack.c.bf16 %v3421, %v3420
      %v3448 = vpack.c.bf16 %v3423, %v3422
      %v3449 = vpack.c.bf16 %v3425, %v3424
      %v3450 = vpack.c.bf16 %v3427, %v3426
      %v3451 = vpack.c.bf16 %v3429, %v3428
      %v3452 = vpack.c.bf16 %v3431, %v3430
      %v3453 = vpack.c.bf16 %v3433, %v3432
      %v3454 = vpack.c.bf16 %v3435, %v3434
      %v3455 = vpack.c.bf16 %v3437, %v3436
      %v3456 = vpack.c.bf16 %v3439, %v3438
      %v3457 = vpack.c.bf16 %v3441, %v3440
      %v3458 = vld [vmem:[%s3] sm:$0xf]
      %v3459 = vld [vmem:[%s3 + $0x4] sm:$0xf]
      %v3460 = vld [vmem:[%s3 + $0x8] sm:$0xf]
      %v3461 = vld [vmem:[%s3 + $0xc] sm:$0xf]
      %v3462 = vld [vmem:[%s3 + $0x10] sm:$0xf]
      %v3463 = vld [vmem:[%s3 + $0x14] sm:$0xf]
      %v3464 = vld [vmem:[%s3 + $0x18] sm:$0xf]
      %v3465 = vld [vmem:[%s3 + $0x1c] sm:$0xf]
      %v3466 = vld [vmem:[%s3 + $0x20] sm:$0xf]
      %v3467 = vld [vmem:[%s3 + $0x24] sm:$0xf]
      %v3468 = vld [vmem:[%s3 + $0x28] sm:$0xf]
      %v3469 = vld [vmem:[%s3 + $0x2c] sm:$0xf]
      %v3470 = vld [vmem:[%s3 + $0x30] sm:$0xf]
      %v3471 = vld [vmem:[%s3 + $0x34] sm:$0xf]
      %v3472 = vld [vmem:[%s3 + $0x38] sm:$0xf]
      %v3473 = vld [vmem:[%s3 + $0x3c] sm:$0xf]
      %v3474 = vld [vmem:[%s4] sm:$0x1]
      %v3476 = vlaneseq
      %v3477 = vshrl.u32 %v3476, 7
      %v3478 = vsub.s32 0, %v3477
      %v3479 = vrot.slane %v3474, %v3478
      %v3497 = vunpack.c.l.b16 %v3458
      %v3498 = vunpack.c.l.b16 %v3459
      %v3499 = vunpack.c.l.b16 %v3460
      %v3500 = vunpack.c.l.b16 %v3461
      %v3501 = vunpack.c.l.b16 %v3462
      %v3502 = vunpack.c.l.b16 %v3463
      %v3503 = vunpack.c.l.b16 %v3464
      %v3504 = vunpack.c.l.b16 %v3465
      %v3505 = vunpack.c.l.b16 %v3466
      %v3506 = vunpack.c.l.b16 %v3467
      %v3507 = vunpack.c.l.b16 %v3468
      %v3508 = vunpack.c.l.b16 %v3469
      %v3509 = vunpack.c.l.b16 %v3470
      %v3510 = vunpack.c.l.b16 %v3471
      %v3511 = vunpack.c.l.b16 %v3472
      %v3512 = vunpack.c.l.b16 %v3473
      %v3513 = vpack.c.b16 %v3498, %v3497
      %v3514 = vpack.c.b16 %v3500, %v3499
      %v3515 = vpack.c.b16 %v3502, %v3501
      %v3516 = vpack.c.b16 %v3504, %v3503
      %v3517 = vpack.c.b16 %v3506, %v3505
      %v3518 = vpack.c.b16 %v3508, %v3507
      %v3519 = vpack.c.b16 %v3510, %v3509
      %v3520 = vpack.c.b16 %v3512, %v3511
      %3529 = vmatprep.subr.bf16.mxu0 0
      %3530 = vmatpush1.bf16.msra.mxu0 %v3513
      %3531 = vmatprep.subr.bf16.mxu0 0
      %3532 = vmatpush1.bf16.msra.mxu0 %v3514
      %3533 = vmatprep.subr.bf16.mxu0 0
      %3534 = vmatpush1.bf16.msra.mxu0 %v3515
      %3535 = vmatprep.subr.bf16.mxu0 0
      %3536 = vmatpush1.bf16.msra.mxu0 %v3516
      %3537 = vmatprep.subr.bf16.mxu0 0
      %3538 = vmatpush1.bf16.msra.mxu0 %v3517
      %3539 = vmatprep.subr.bf16.mxu0 0
      %3540 = vmatpush1.bf16.msra.mxu0 %v3518
      %3541 = vmatprep.subr.bf16.mxu0 0
      %3542 = vmatpush1.bf16.msra.mxu0 %v3519
      %3543 = vmatprep.subr.bf16.mxu0 0
      %3544 = vmatpush1.bf16.msra.mxu0 %v3520
      %3545 = vmatprep.subr.bf16.mxu0 0
      %3546 = vmatpush1.bf16.msra.mxu0 0
      %3547 = vmatprep.subr.bf16.mxu0 0
      %3548 = vmatpush1.bf16.msra.mxu0 0
      %3549 = vmatprep.subr.bf16.mxu0 0
      %3550 = vmatpush1.bf16.msra.mxu0 0
      %3551 = vmatprep.subr.bf16.mxu0 0
      %3552 = vmatpush1.bf16.msra.mxu0 0
      %3553 = vmatprep.subr.bf16.mxu0 0
      %3554 = vmatpush1.bf16.msra.mxu0 0
      %3555 = vmatprep.subr.bf16.mxu0 0
      %3556 = vmatpush1.bf16.msra.mxu0 0
      %3557 = vmatprep.subr.bf16.mxu0 0
      %3558 = vmatpush1.bf16.msra.mxu0 0
      %3559 = vmatprep.subr.bf16.mxu0 0
      %3560 = vmatpush1.bf16.msra.mxu0 0
      %3561 = vmatprep.mubr.bf16.mxu0 0
      %3562 = vmatmul.mubr.bf16.gmra.mrb[0].mxu0 %v3442
      %v3563 = vpop.f32.mrb[0].mxu0
      %v3564 = vadd.f32 %v3479, %v3563
      %v3565 = vpop.f32.mrb[0].mxu0
      %v3566 = vpop.f32.mrb[0].mxu0
      %v3567 = vadd.f32 %v3479, %v3566
      %v3568 = vpop.f32.mrb[0].mxu0
      %3569 = vmatprep.mubr.bf16.mxu0 0
      %3570 = vmatmul.mubr.bf16.gmra.mrb[0].mxu0 %v3443
      %v3571 = vpop.f32.mrb[0].mxu0
      %v3572 = vadd.f32 %v3479, %v3571
      %v3573 = vpop.f32.mrb[0].mxu0
      %v3574 = vpop.f32.mrb[0].mxu0
      %v3575 = vadd.f32 %v3479, %v3574
      %v3576 = vpop.f32.mrb[0].mxu0
      %3577 = vmatprep.mubr.bf16.mxu0 0
      %3578 = vmatmul.mubr.bf16.gmra.mrb[0].mxu0 %v3444
      %v3579 = vpop.f32.mrb[0].mxu0
      %v3580 = vadd.f32 %v3479, %v3579
      %v3581 = vpop.f32.mrb[0].mxu0
      %v3582 = vpop.f32.mrb[0].mxu0
      %v3583 = vadd.f32 %v3479, %v3582
      %v3584 = vpop.f32.mrb[0].mxu0
      %3585 = vmatprep.mubr.bf16.mxu0 0
      %3586 = vmatmul.mubr.bf16.gmra.mrb[0].mxu0 %v3445
      %v3587 = vpop.f32.mrb[0].mxu0
      %v3588 = vadd.f32 %v3479, %v3587
      %v3589 = vpop.f32.mrb[0].mxu0
      %v3590 = vpop.f32.mrb[0].mxu0
      %v3591 = vadd.f32 %v3479, %v3590
      %v3592 = vpop.f32.mrb[0].mxu0
      %3593 = vmatprep.mubr.bf16.mxu0 0
      %3594 = vmatmul.mubr.bf16.gmra.mrb[0].mxu0 %v3446
      %v3595 = vpop.f32.mrb[0].mxu0
      %v3596 = vadd.f32 %v3479, %v3595
      %v3597 = vpop.f32.mrb[0].mxu0
      %v3598 = vpop.f32.mrb[0].mxu0
      %v3599 = vadd.f32 %v3479, %v3598
      %v3600 = vpop.f32.mrb[0].mxu0
      %3601 = vmatprep.mubr.bf16.mxu0 0
      %3602 = vmatmul.mubr.bf16.gmra.mrb[0].mxu0 %v3447
      %v3603 = vpop.f32.mrb[0].mxu0
      %v3604 = vadd.f32 %v3479, %v3603
      %v3605 = vpop.f32.mrb[0].mxu0
      %v3606 = vpop.f32.mrb[0].mxu0
      %v3607 = vadd.f32 %v3479, %v3606
      %v3608 = vpop.f32.mrb[0].mxu0
      %3609 = vmatprep.mubr.bf16.mxu0 0
      %3610 = vmatmul.mubr.bf16.gmra.mrb[0].mxu0 %v3448
      %v3611 = vpop.f32.mrb[0].mxu0
      %v3612 = vadd.f32 %v3479, %v3611
      %v3613 = vpop.f32.mrb[0].mxu0
      %v3614 = vpop.f32.mrb[0].mxu0
      %v3615 = vadd.f32 %v3479, %v3614
      %v3616 = vpop.f32.mrb[0].mxu0
      %3617 = vmatprep.mubr.bf16.mxu0 0
      %3618 = vmatmul.mubr.bf16.gmra.mrb[0].mxu0 %v3449
      %v3619 = vpop.f32.mrb[0].mxu0
      %v3620 = vadd.f32 %v3479, %v3619
      %v3621 = vpop.f32.mrb[0].mxu0
      %v3622 = vpop.f32.mrb[0].mxu0
      %v3623 = vadd.f32 %v3479, %v3622
      %v3624 = vpop.f32.mrb[0].mxu0
      %3625 = vmatprep.mubr.bf16.mxu0 0
      %3626 = vmatmul.mubr.bf16.gmra.mrb[0].mxu0 %v3450
      %v3627 = vpop.f32.mrb[0].mxu0
      %v3628 = vadd.f32 %v3479, %v3627
      %v3629 = vpop.f32.mrb[0].mxu0
      %v3630 = vpop.f32.mrb[0].mxu0
      %v3631 = vadd.f32 %v3479, %v3630
      %v3632 = vpop.f32.mrb[0].mxu0
      %3633 = vmatprep.mubr.bf16.mxu0 0
      %3634 = vmatmul.mubr.bf16.gmra.mrb[0].mxu0 %v3451
      %v3635 = vpop.f32.mrb[0].mxu0
      %v3636 = vadd.f32 %v3479, %v3635
      %v3637 = vpop.f32.mrb[0].mxu0
      %v3638 = vpop.f32.mrb[0].mxu0
      %v3639 = vadd.f32 %v3479, %v3638
      %v3640 = vpop.f32.mrb[0].mxu0
      %3641 = vmatprep.mubr.bf16.mxu0 0
      %3642 = vmatmul.mubr.bf16.gmra.mrb[0].mxu0 %v3452
      %v3643 = vpop.f32.mrb[0].mxu0
      %v3644 = vadd.f32 %v3479, %v3643
      %v3645 = vpop.f32.mrb[0].mxu0
      %v3646 = vpop.f32.mrb[0].mxu0
      %v3647 = vadd.f32 %v3479, %v3646
      %v3648 = vpop.f32.mrb[0].mxu0
      %3649 = vmatprep.mubr.bf16.mxu0 0
      %3650 = vmatmul.mubr.bf16.gmra.mrb[0].mxu0 %v3453
      %v3651 = vpop.f32.mrb[0].mxu0
      %v3652 = vadd.f32 %v3479, %v3651
      %v3653 = vpop.f32.mrb[0].mxu0
      %v3654 = vpop.f32.mrb[0].mxu0
      %v3655 = vadd.f32 %v3479, %v3654
      %v3656 = vpop.f32.mrb[0].mxu0
      %3657 = vmatprep.mubr.bf16.mxu0 0
      %3658 = vmatmul.mubr.bf16.gmra.mrb[0].mxu0 %v3454
      %v3659 = vpop.f32.mrb[0].mxu0
      %v3660 = vadd.f32 %v3479, %v3659
      %v3661 = vpop.f32.mrb[0].mxu0
      %v3662 = vpop.f32.mrb[0].mxu0
      %v3663 = vadd.f32 %v3479, %v3662
      %v3664 = vpop.f32.mrb[0].mxu0
      %3665 = vmatprep.mubr.bf16.mxu0 0
      %3666 = vmatmul.mubr.bf16.gmra.mrb[0].mxu0 %v3455
      %v3667 = vpop.f32.mrb[0].mxu0
      %v3668 = vadd.f32 %v3479, %v3667
      %v3669 = vpop.f32.mrb[0].mxu0
      %v3670 = vpop.f32.mrb[0].mxu0
      %v3671 = vadd.f32 %v3479, %v3670
      %v3672 = vpop.f32.mrb[0].mxu0
      %3673 = vmatprep.mubr.bf16.mxu0 0
      %3674 = vmatmul.mubr.bf16.gmra.mrb[0].mxu0 %v3456
      %v3675 = vpop.f32.mrb[0].mxu0
      %v3676 = vadd.f32 %v3479, %v3675
      %v3677 = vpop.f32.mrb[0].mxu0
      %v3678 = vpop.f32.mrb[0].mxu0
      %v3679 = vadd.f32 %v3479, %v3678
      %v3680 = vpop.f32.mrb[0].mxu0
      %3681 = vmatprep.mubr.bf16.mxu0 0
      %3682 = vmatmul.mubr.bf16.gmra.mrb[0].mxu0 %v3457
      %v3683 = vpop.f32.mrb[0].mxu0
      %v3684 = vadd.f32 %v3479, %v3683
      %v3685 = vpop.f32.mrb[0].mxu0
      %v3686 = vpop.f32.mrb[0].mxu0
      %v3687 = vadd.f32 %v3479, %v3686
      %v3688 = vpop.f32.mrb[0].mxu0
      %3689 = vdwg.mxu0
      %3690 = vst [vmem:[%s224] sm:$0xff] %v3564
      %3691 = vst [vmem:[%s224 + $0x8] sm:$0xff] %v3567
      %3692 = vst [vmem:[%s224 + $0x10] sm:$0xff] %v3572
      %3693 = vst [vmem:[%s224 + $0x18] sm:$0xff] %v3575
      %3694 = vst [vmem:[%s224 + $0x20] sm:$0xff] %v3580
      %3695 = vst [vmem:[%s224 + $0x28] sm:$0xff] %v3583
      %3696 = vst [vmem:[%s224 + $0x30] sm:$0xff] %v3588
      %3697 = vst [vmem:[%s224 + $0x38] sm:$0xff] %v3591
      %3698 = vst [vmem:[%s224 + $0x40] sm:$0xff] %v3596
      %3699 = vst [vmem:[%s224 + $0x48] sm:$0xff] %v3599
      %3700 = vst [vmem:[%s224 + $0x50] sm:$0xff] %v3604
      %3701 = vst [vmem:[%s224 + $0x58] sm:$0xff] %v3607
      %3702 = vst [vmem:[%s224 + $0x60] sm:$0xff] %v3612
      %3703 = vst [vmem:[%s224 + $0x68] sm:$0xff] %v3615
      %3704 = vst [vmem:[%s224 + $0x70] sm:$0xff] %v3620
      %3705 = vst [vmem:[%s224 + $0x78] sm:$0xff] %v3623
      %3706 = vst [vmem:[%s224 + $0x80] sm:$0xff] %v3628
      %3707 = vst [vmem:[%s224 + $0x88] sm:$0xff] %v3631
      %3708 = vst [vmem:[%s224 + $0x90] sm:$0xff] %v3636
      %3709 = vst [vmem:[%s224 + $0x98] sm:$0xff] %v3639
      %3710 = vst [vmem:[%s224 + $0xa0] sm:$0xff] %v3644
      %3711 = vst [vmem:[%s224 + $0xa8] sm:$0xff] %v3647
      %3712 = vst [vmem:[%s224 + $0xb0] sm:$0xff] %v3652
      %3713 = vst [vmem:[%s224 + $0xb8] sm:$0xff] %v3655
      %3714 = vst [vmem:[%s224 + $0xc0] sm:$0xff] %v3660
      %3715 = vst [vmem:[%s224 + $0xc8] sm:$0xff] %v3663
      %3716 = vst [vmem:[%s224 + $0xd0] sm:$0xff] %v3668
      %3717 = vst [vmem:[%s224 + $0xd8] sm:$0xff] %v3671
      %3718 = vst [vmem:[%s224 + $0xe0] sm:$0xff] %v3676
      %3719 = vst [vmem:[%s224 + $0xe8] sm:$0xff] %v3679
      %3720 = vst [vmem:[%s224 + $0xf0] sm:$0xff] %v3684
      %3721 = vst [vmem:[%s224 + $0xf8] sm:$0xff] %v3687
      %p3722 = scmp.lt.s32.totalorder %s16, 1
      %s3723 = scalar_select %p3722, %s16, 1
      %s3724 = smul.addr %s3723, 32
      %s3725 = smul.addr %s3724, 8
      %s3726 = scalar_lea.vmem %s5, %s3725
      // Predicated region
      $region41: #{seg_qyl_forward.23} parent=39 // pred_check
        %p3727 = pneg %p144
      $region42: #{seg_qyl_forward.23} parent=39 // pred_check_branch
        %3729 = sbr.rel (%p3727) target = $region44
      $region43: #{seg_qyl_forward.23} parent=39 // pred_region
        _
      $region44: #{seg_qyl_forward.23} parent=39 // pred_fallthru
        _
    $region40: #{seg_qyl_forward.23} parent=5 // pred_fallthru
      _
    %p3730 = scmp.le.s32.totalorder 2, %s11
    // Predicated region
    $region45: #{seg_qyl_forward.23} parent=5 // pred_check
      %p3731 = pneg %p3730
    $region46: #{seg_qyl_forward.23} parent=5 // pred_check_branch
      %3733 = sbr.rel (%p3731) target = $region48
    $region47: #{seg_qyl_forward.23} parent=5 // pred_region
      %s3734 = ssub.s32 %s11, 2
      // Predicated region
      $region49: #{seg_qyl_forward.23} parent=47 // pred_check
        %p3735 = pneg %p150
      $region50: #{seg_qyl_forward.23} parent=47 // pred_check_branch
        %3737 = sbr.rel (%p3735) target = $region52
      $region51: #{seg_qyl_forward.23} parent=47 // pred_region
        %p3738 = scmp.lt.s32.totalorder %s17, 1
        %s3739 = scalar_select %p3738, %s17, 1
        %s3740 = smul.addr %s3739, 32
        %s3741 = smul.addr %s3740, 8
        %s3742 = scalar_lea.vmem %s5, %s3741
      $region52: #{seg_qyl_forward.23} parent=47 // pred_fallthru
        _
    $region48: #{seg_qyl_forward.23} parent=5 // pred_fallthru
      _
  $region6: #{seg_qyl_forward.23} parent=0 // loop_footer
    %s15 = sadd.s32 1, %s11
  $region7: #{seg_qyl_forward.23} parent=0 // loop_footer_branch
    %10 = sbr.rel target = $region3
  $region8: #{seg_qyl_forward.23} parent=0 // loop_exit
    _

</llo_original>
